<compile_context>
chip_gen: v7x
topology: tpu7x:2x2x1
jax: 0.10.0
libtpu: 0.0.40
codegen_flags: <defaults>
</compile_context>

<pallas_src>
import functools
import numpy as np
import jax
import jax.numpy as jnp
from jax import lax
from jax.experimental import pallas as pl
from jax.experimental.pallas import tpu as pltpu

F32 = jnp.float32
BF16 = jnp.bfloat16


# --------------------------------------------------------------------------------------
# helpers
# --------------------------------------------------------------------------------------

def haar_matrix(n):
    """Orthonormal Haar transform matrix (n must be a power of 2)."""
    if n == 1:
        return np.ones((1, 1), np.float64)
    h = haar_matrix(n // 2)
    top = np.kron(h, np.array([1.0, 1.0]))
    bot = np.kron(np.eye(n // 2), np.array([1.0, -1.0]))
    return np.concatenate([top, bot], axis=0) / np.sqrt(2.0)


def shift_matrices(H, W):
    """S[tap] is the (HW, HW) 0/1 operator with (x @ S[tap])[:, y*W + x] =
    x[:, (y+dy)*W + (x+dx)] for tap offsets dy, dx in {-1, 0, 1} and 0 outside the image,
    i.e. one 'same'-padded 3x3 tap shift expressed as an MXU matmul (no relayouts)."""
    HW = H * W
    S = np.zeros((9, HW, HW), np.float32)
    for tap in range(9):
        dy, dx = tap // 3 - 1, tap % 3 - 1
        for y in range(H):
            for x in range(W):
                ys, xs = y + dy, x + dx
                if 0 <= ys < H and 0 <= xs < W:
                    S[tap, ys * W + xs, y * W + x] = 1.0
    return S


def _largest_divisor_at_most(n, cap):
    cap = max(1, min(n, cap))
    for d in range(cap, 0, -1):
        if n % d == 0:
            return d
    return 1


def _pick_row_tile(n, max_bytes, row_bytes):
    """Largest sublane-aligned (multiple of 8) divisor of n under a VMEM byte cap,
    falling back to the full extent (always layout-legal)."""
    cap = max(1, max_bytes // row_bytes)
    for d in range(min(n, cap), 0, -1):
        if n % d == 0 and d % 8 == 0:
            return d
    return n


def _bn_affine(sums, sqs, gamma, beta, count, eps=1e-5):
    """Per-channel BatchNorm (scale, shift) from fused sum / sum-sq partials (tiny XLA ops)."""
    mean = sums / count
    var = jnp.maximum(sqs / count - mean * mean, 0.0)
    scale = gamma.astype(F32) * lax.rsqrt(var + eps)
    shift = beta.astype(F32) - mean * scale
    return scale.reshape(-1, 1), shift.reshape(-1, 1)


# --------------------------------------------------------------------------------------
# K1: LIF -> { forward Haar + NegIF, grouped 1x1 conv, grouped 3x3 conv } + BN-stat partials
# --------------------------------------------------------------------------------------

def _make_k1_kernel(T, bB, C, HW, tau, vth, haar_vth):
    inv_tau = 1.0 / tau

    def kernel(x_ref, kf_ref, s9_ref, w1_ref, b1_ref, w2_ref, b2_ref,
               h1_ref, c1_ref, c2_ref, st_ref, stk_ref):
        zc = jnp.zeros((C, 1), F32)
        h1_sum = zc; h1_sq = zc
        c1_sum = zc; c1_sq = zc
        c2_sum = zc; c2_sq = zc

        # T and bB are small & static -> fully unrolled.
        for bb in range(bB):
            v_lif = jnp.zeros((C, HW), F32)
            v_neg = jnp.zeros((C, HW), F32)
            for t in range(T):
                xt = x_ref[t, bb]                                  # (C, HW) f32

                # ---- multi-step LIF (decay-input charge, hard reset to 0) ----
                chg = v_lif + (xt - v_lif) * inv_tau
                s = (chg >= vth).astype(F32)
                v_lif = chg * (1.0 - s)
                s_bf = s.astype(BF16)                              # spikes exact in bf16

                # ---- forward 2-D Haar: Kronecker right-matmul on the flat HW axis ----
                hf = jnp.dot(s_bf, kf_ref[...], preferred_element_type=F32)
                # ---- ternary NegIF neuron on the Haar coefficients ----
                hm = v_neg + hf
                sp = (jnp.where(hm >= haar_vth, 1.0, 0.0)
                      + jnp.where(hm <= -haar_vth, -1.0, 0.0))
                v_neg = jnp.where(sp != 0.0, 0.0, hm)
                h1_ref[t, bb] = sp.astype(BF16)
                h1_sum = h1_sum + jnp.sum(sp, axis=1, keepdims=True)
                h1_sq = h1_sq + jnp.sum(sp * sp, axis=1, keepdims=True)

                # ---- conv1: grouped 1x1 conv == block-diagonal (C,C) left-matmul ----
                c1 = jnp.dot(w1_ref[...], s_bf, preferred_element_type=F32) + b1_ref[...]
                c1_ref[t, bb] = c1.astype(BF16)
                c1_sum = c1_sum + jnp.sum(c1, axis=1, keepdims=True)
                c1_sq = c1_sq + jnp.sum(c1 * c1, axis=1, keepdims=True)

                # ---- conv2: grouped 3x3 conv, padding=1 ----
                # 9 spatial taps as 0/1 shift matrices on the flat HW axis (MXU, no padded
                # scratch / strided relayouts), stacked along the contraction dim, then one
                # (C, 9C) @ (9C, HW) channel-mixing matmul.
                for tap in range(9):
                    shifted = jnp.dot(s_bf, s9_ref[tap], preferred_element_type=F32)
                    stk_ref[tap * C:(tap + 1) * C, :] = shifted.astype(BF16)
                c2 = (jnp.dot(w2_ref[...], stk_ref[...], preferred_element_type=F32)
                      + b2_ref[...])
                c2_ref[t, bb] = c2.astype(BF16)
                c2_sum = c2_sum + jnp.sum(c2, axis=1, keepdims=True)
                c2_sq = c2_sq + jnp.sum(c2 * c2, axis=1, keepdims=True)

        # fused BatchNorm batch-statistic partials (per grid block)
        st_ref[0, 0] = h1_sum
        st_ref[0, 1] = h1_sq
        st_ref[0, 2] = c1_sum
        st_ref[0, 3] = c1_sq
        st_ref[0, 4] = c2_sum
        st_ref[0, 5] = c2_sq

    return kernel


def _fatm_stage1(x4, kfwd, sall, w1L, b1f, w2stk, b2f, bB, tau, vth, haar_vth):
    T, B, C, HW = x4.shape
    nblk = B // bB
    blk = pl.BlockSpec((T, bB, C, HW), lambda i: (0, i, 0, 0))
    act = jax.ShapeDtypeStruct((T, B, C, HW), BF16)
    return pl.pallas_call(
        _make_k1_kernel(T, bB, C, HW, tau, vth, haar_vth),
        grid=(nblk,),
        in_specs=[blk,
                  pl.BlockSpec((HW, HW), lambda i: (0, 0)),
                  pl.BlockSpec((9, HW, HW), lambda i: (0, 0, 0)),
                  pl.BlockSpec((C, C), lambda i: (0, 0)),
                  pl.BlockSpec((C, 1), lambda i: (0, 0)),
                  pl.BlockSpec((C, 9 * C), lambda i: (0, 0)),
                  pl.BlockSpec((C, 1), lambda i: (0, 0))],
        out_specs=(blk, blk, blk,
                   pl.BlockSpec((1, 6, C, 1), lambda i: (i, 0, 0, 0))),
        out_shape=(act, act, act,
                   jax.ShapeDtypeStruct((nblk, 6, C, 1), F32)),
        scratch_shapes=[pltpu.VMEM((9 * C, HW), BF16)],
        compiler_params=pltpu.CompilerParams(dimension_semantics=("parallel",)),
    )(x4, kfwd, sall, w1L, b1f, w2stk, b2f)


# --------------------------------------------------------------------------------------
# K3: haar_forward_bn apply + LIF (haar_neuron) + block-diagonal mixing + BN-stat partials
# --------------------------------------------------------------------------------------

def _make_k3_kernel(T, bB, C, HW, tau, vth):
    inv_tau = 1.0 / tau

    def kernel(h1_ref, sc_ref, sh_ref, wm_ref, m_ref, st_ref):
        sc = sc_ref[...]
        sh = sh_ref[...]
        zc = jnp.zeros((C, 1), F32)
        m_sum = zc; m_sq = zc
        for bb in range(bB):
            v = jnp.zeros((C, HW), F32)
            for t in range(T):
                y = h1_ref[t, bb].astype(F32) * sc + sh            # BN apply
                chg = v + (y - v) * inv_tau                        # LIF
                s = (chg >= vth).astype(F32)
                v = chg * (1.0 - s)
                m = jnp.dot(wm_ref[...], s.astype(BF16), preferred_element_type=F32)
                m_ref[t, bb] = m.astype(BF16)
                m_sum = m_sum + jnp.sum(m, axis=1, keepdims=True)
                m_sq = m_sq + jnp.sum(m * m, axis=1, keepdims=True)
        st_ref[0, 0] = m_sum
        st_ref[0, 1] = m_sq

    return kernel


def _fatm_stage3(h1, scale, shift, wmixL, bB, tau, vth):
    T, B, C, HW = h1.shape
    nblk = B // bB
    blk = pl.BlockSpec((T, bB, C, HW), lambda i: (0, i, 0, 0))
    vec = pl.BlockSpec((C, 1), lambda i: (0, 0))
    return pl.pallas_call(
        _make_k3_kernel(T, bB, C, HW, tau, vth),
        grid=(nblk,),
        in_specs=[blk, vec, vec, pl.BlockSpec((C, C), lambda i: (0, 0))],
        out_specs=(blk, pl.BlockSpec((1, 2, C, 1), lambda i: (i, 0, 0, 0))),
        out_shape=(jax.ShapeDtypeStruct((T, B, C, HW), BF16),
                   jax.ShapeDtypeStruct((nblk, 2, C, 1), F32)),
        compiler_params=pltpu.CompilerParams(dimension_semantics=("parallel",)),
    )(h1, scale, shift, wmixL)


# --------------------------------------------------------------------------------------
# K4: haar_bn apply + inverse Haar (Kronecker matmul) + NegIF + BN-stat partials
# --------------------------------------------------------------------------------------

def _make_k4_kernel(T, bB, C, HW, haar_vth):
    def kernel(m_ref, sc_ref, sh_ref, ki_ref, h3_ref, st_ref):
        sc = sc_ref[...]
        sh = sh_ref[...]
        zc = jnp.zeros((C, 1), F32)
        s_sum = zc; s_sq = zc
        for bb in range(bB):
            v = jnp.zeros((C, HW), F32)
            for t in range(T):
                y = m_ref[t, bb].astype(F32) * sc + sh             # BN apply
                g = jnp.dot(y.astype(BF16), ki_ref[...], preferred_element_type=F32)
                hm = v + g                                         # NegIF
                sp = (jnp.where(hm >= haar_vth, 1.0, 0.0)
                      + jnp.where(hm <= -haar_vth, -1.0, 0.0))
                v = jnp.where(sp != 0.0, 0.0, hm)
                h3_ref[t, bb] = sp.astype(BF16)
                s_sum = s_sum + jnp.sum(sp, axis=1, keepdims=True)
                s_sq = s_sq + jnp.sum(sp * sp, axis=1, keepdims=True)
        st_ref[0, 0] = s_sum
        st_ref[0, 1] = s_sq

    return kernel


def _fatm_stage4(m, scale, shift, kinv, bB, haar_vth):
    T, B, C, HW = m.shape
    nblk = B // bB
    blk = pl.BlockSpec((T, bB, C, HW), lambda i: (0, i, 0, 0))
    vec = pl.BlockSpec((C, 1), lambda i: (0, 0))
    return pl.pallas_call(
        _make_k4_kernel(T, bB, C, HW, haar_vth),
        grid=(nblk,),
        in_specs=[blk, vec, vec, pl.BlockSpec((HW, HW), lambda i: (0, 0))],
        out_specs=(blk, pl.BlockSpec((1, 2, C, 1), lambda i: (i, 0, 0, 0))),
        out_shape=(jax.ShapeDtypeStruct((T, B, C, HW), BF16),
                   jax.ShapeDtypeStruct((nblk, 2, C, 1), F32)),
        compiler_params=pltpu.CompilerParams(dimension_semantics=("parallel",)),
    )(m, scale, shift, kinv)


# --------------------------------------------------------------------------------------
# K5: fused BN normalization of the 3 branches + residual add, lane-dense (rows, C*HW)
# --------------------------------------------------------------------------------------

def _final_add_kernel(h3_ref, c1_ref, c2_ref, idn_ref,
                      shi_ref, thi_ref, sc1_ref, tc1_ref, sc2_ref, tc2_ref, o_ref):
    o_ref[...] = (h3_ref[...].astype(F32) * shi_ref[...] + thi_ref[...]
                  + c1_ref[...].astype(F32) * sc1_ref[...] + tc1_ref[...]
                  + c2_ref[...].astype(F32) * sc2_ref[...] + tc2_ref[...]
                  + idn_ref[...])


def fused_bn_add(h3, c1, c2, identity, affines):
    N, CHW = h3.shape
    # ~1 MiB f32 per slab per step: safe under v5e's 16 MiB scoped-VMEM default,
    # still >85% of HBM roofline on v6e/v7x.
    tile_n = _pick_row_tile(N, 1 << 20, CHW * 4)
    blk = pl.BlockSpec((tile_n, CHW), lambda i: (i, 0))
    vec = pl.BlockSpec((1, CHW), lambda i: (0, 0))
    return pl.pallas_call(
        _final_add_kernel,
        grid=(N // tile_n,),
        in_specs=[blk, blk, blk, blk] + [vec] * 6,
        out_specs=blk,
        out_shape=jax.ShapeDtypeStruct((N, CHW), F32),
        compiler_params=pltpu.CompilerParams(dimension_semantics=("parallel",)),
    )(h3, c1, c2, identity, *affines)


# --------------------------------------------------------------------------------------
# FATM forward
# --------------------------------------------------------------------------------------

def init_fatm_params(key, dim, FL_blocks, H):
    bs = dim // FL_blocks
    ks = jax.random.split(key, 5)
    params = {
        "haar_weight": 0.02 * jax.random.normal(ks[0], (FL_blocks, bs, bs), F32),
        "conv1_w": 0.2 * jax.random.normal(ks[1], (bs, bs), F32),        # (Cin, Cout)
        "conv1_b": 0.1 * jax.random.normal(ks[2], (bs,), F32),
        "conv2_w": 0.2 * jax.random.normal(ks[3], (3, 3, bs, bs), F32),  # (kh, kw, Cin, Cout)
        "conv2_b": 0.1 * jax.random.normal(ks[4], (bs,), F32),
        "haar_mat": jnp.asarray(haar_matrix(H), F32),
    }
    for name in ("haar_forward_bn", "haar_bn", "haar_inverse_bn", "conv1_bn", "conv2_bn"):
        params[name + "_g"] = jnp.ones((dim,), F32)      # PyTorch BN default init
        params[name + "_b"] = jnp.zeros((dim,), F32)
    return params


def fatm_forward(x, params, FL_blocks, haar_vth=1.0):
    T, B, C, H, W = x.shape
    nb = FL_blocks
    assert C % nb == 0
    HW = H * W
    CHW = C * HW
    TB = T * B

    x4 = x.reshape(T, B, C, HW).astype(F32)          # contiguity-preserving reshape (free)

    # ---- derived, parameter-sized constants (no activation traffic) ----
    Hm = params["haar_mat"].astype(F32)
    Kr = jnp.kron(Hm, Hm)                            # vec(Hm @ X @ Hm.T) = Kr @ vec(X)
    kfwd = Kr.T.astype(BF16)                         # row-vectors: forward = v @ Kr.T
    kinv = Kr.astype(BF16)                           # row-vectors: inverse = v @ Kr
    sall = jnp.asarray(shift_matrices(H, W), BF16)   # (9, HW, HW) 3x3 tap shift operators

    eye_nb = jnp.eye(nb, dtype=F32)
    w1L = jnp.einsum('bc,pq->bpcq', eye_nb,
                     params["conv1_w"].astype(F32).T).reshape(C, C).astype(BF16)
    b1f = jnp.tile(params["conv1_b"].astype(F32), nb).reshape(C, 1)
    w2T = jnp.transpose(params["conv2_w"].astype(F32), (0, 1, 3, 2))
    w2L = jnp.einsum('bc,yxpq->yxbpcq', eye_nb, w2T).reshape(3, 3, C, C)
    w2stk = w2L.reshape(9, C, C).transpose(1, 0, 2).reshape(C, 9 * C).astype(BF16)
    b2f = jnp.tile(params["conv2_b"].astype(F32), nb).reshape(C, 1)
    hwT = jnp.transpose(params["haar_weight"].astype(F32), (0, 2, 1))   # block b = w[b].T
    wmixL = jnp.einsum('bc,bpq->bpcq', eye_nb, hwT).reshape(C, C).astype(BF16)

    bB = _largest_divisor_at_most(B, 4)              # batches per grid step
    count = float(TB * HW)                           # BN element count per channel

    # ---- K1: LIF -> {forward Haar + NegIF, conv1, conv2} + fused BN-stat partials ----
    h1, c1, c2, st1 = _fatm_stage1(x4, kfwd, sall, w1L, b1f, w2stk, b2f, bB,
                                   tau=2.0, vth=1.0, haar_vth=haar_vth)
    tot1 = jnp.sum(st1, axis=0)[..., 0]              # (6, C): tiny XLA reduction of partials

    # ---- K3: haar_forward_bn -> haar_neuron (LIF) -> block-diagonal mixing + stats ----
    s1, t1 = _bn_affine(tot1[0], tot1[1],
                        params["haar_forward_bn_g"], params["haar_forward_bn_b"], count)
    m, st2 = _fatm_stage3(h1, s1, t1, wmixL, bB, tau=2.0, vth=1.0)
    tot2 = jnp.sum(st2, axis=0)[..., 0]

    # ---- K4: haar_bn -> inverse Haar -> NegIF + stats ----
    s2, t2 = _bn_affine(tot2[0], tot2[1], params["haar_bn_g"], params["haar_bn_b"], count)
    h3, st3 = _fatm_stage4(m, s2, t2, kinv, bB, haar_vth=haar_vth)
    tot3 = jnp.sum(st3, axis=0)[..., 0]

    # ---- per-channel affines for the remaining BNs, broadcast lane-dense for K5 ----
    shi, thi = _bn_affine(tot3[0], tot3[1],
                          params["haar_inverse_bn_g"], params["haar_inverse_bn_b"], count)
    sc1, tc1 = _bn_affine(tot1[2], tot1[3],
                          params["conv1_bn_g"], params["conv1_bn_b"], count)
    sc2, tc2 = _bn_affine(tot1[4], tot1[5],
                          params["conv2_bn_g"], params["conv2_bn_b"], count)

    def expand(v):                                   # (C, 1) -> (1, C*HW), parameter-sized
        return jnp.broadcast_to(v, (C, HW)).reshape(1, CHW)

    # ---- K5: fused BN apply (3 branches) + residual add ----
    out = fused_bn_add(h3.reshape(TB, CHW), c1.reshape(TB, CHW), c2.reshape(TB, CHW),
                       x4.reshape(TB, CHW),
                       (expand(shi), expand(thi), expand(sc1), expand(tc1),
                        expand(sc2), expand(tc2)))
    return out.reshape(T, B, C, H, W)


if __name__ == "__main__":
    # Small shapes consistent with the module: T=2, B=2, dim=32, H=W=8 (power of 2 for Haar),
    # FL_blocks=4 -> block_size=8.
    T, B, dim, H, W = 2, 2, 32, 8, 8
    FL_blocks = 4
    key = jax.random.PRNGKey(0)
    kx, kp = jax.random.split(key)
    x = 2.0 * jax.random.normal(kx, (T, B, dim, H, W), jnp.float32)
    params = init_fatm_params(kp, dim, FL_blocks, H)

    fwd = jax.jit(functools.partial(fatm_forward, FL_blocks=FL_blocks, haar_vth=1.0))
    out = jax.block_until_ready(fwd(x, params))
    assert out.shape == (T, B, dim, H, W)
    assert bool(jnp.all(jnp.isfinite(out)))
    print("KERNEL_OK")
</pallas_src>

<mosaic_0001>
module attributes {stable_mosaic.version = 11 : i64} {
  func.func @kernel(%arg0: i32, %arg1: memref<2x2x32x64xf32, #tpu.memory_space<vmem>>, %arg2: memref<64x64xbf16, #tpu.memory_space<vmem>>, %arg3: memref<9x64x64xbf16, #tpu.memory_space<vmem>>, %arg4: memref<32x32xbf16, #tpu.memory_space<vmem>>, %arg5: memref<32x1xf32, #tpu.memory_space<vmem>>, %arg6: memref<32x288xbf16, #tpu.memory_space<vmem>>, %arg7: memref<32x1xf32, #tpu.memory_space<vmem>>, %arg8: memref<2x2x32x64xbf16, #tpu.memory_space<vmem>>, %arg9: memref<2x2x32x64xbf16, #tpu.memory_space<vmem>>, %arg10: memref<2x2x32x64xbf16, #tpu.memory_space<vmem>>, %arg11: memref<1x6x32x1xf32, #tpu.memory_space<vmem>>, %arg12: memref<288x64xbf16, #tpu.memory_space<vmem>>) attributes {dimension_semantics = [#tpu.dimension_semantics<parallel>], iteration_bounds = array<i64: 1>, scalar_prefetch = 0 : i64, scratch_operands = 1 : i64, tpu.core_type = #tpu.core_type<tc>, window_params = [{transform_indices = @transform_0, window_bounds = array<i64: 2, 2, 32, 64>}, {pipeline_mode = #tpu.pipeline_mode<synchronous>, transform_indices = @transform_1, window_bounds = array<i64: 64, 64>}, {pipeline_mode = #tpu.pipeline_mode<synchronous>, transform_indices = @transform_2, window_bounds = array<i64: 9, 64, 64>}, {pipeline_mode = #tpu.pipeline_mode<synchronous>, transform_indices = @transform_3, window_bounds = array<i64: 32, 32>}, {pipeline_mode = #tpu.pipeline_mode<synchronous>, transform_indices = @transform_4, window_bounds = array<i64: 32, 1>}, {pipeline_mode = #tpu.pipeline_mode<synchronous>, transform_indices = @transform_5, window_bounds = array<i64: 32, 288>}, {pipeline_mode = #tpu.pipeline_mode<synchronous>, transform_indices = @transform_6, window_bounds = array<i64: 32, 1>}, {transform_indices = @transform_7, window_bounds = array<i64: 2, 2, 32, 64>}, {transform_indices = @transform_8, window_bounds = array<i64: 2, 2, 32, 64>}, {transform_indices = @transform_9, window_bounds = array<i64: 2, 2, 32, 64>}, {transform_indices = @transform_10, window_bounds = array<i64: 1, 6, 32, 1>}]} {
    %cst = arith.constant 0.000000e+00 : f32
    %0 = vector.broadcast %cst : f32 to vector<32x1xf32>
    %cst_0 = arith.constant 0.000000e+00 : f32
    %1 = vector.broadcast %cst_0 : f32 to vector<32x64xf32>
    %cst_1 = arith.constant 0.000000e+00 : f32
    %2 = vector.broadcast %cst_1 : f32 to vector<32x64xf32>
    %c0 = arith.constant 0 : index
    %c0_2 = arith.constant 0 : index
    %c0_3 = arith.constant 0 : index
    %c0_4 = arith.constant 0 : index
    %3 = vector.load %arg1[%c0, %c0_2, %c0_3, %c0_4] : memref<2x2x32x64xf32, #tpu.memory_space<vmem>>, vector<1x1x32x64xf32>
    %4 = vector.shape_cast %3 : vector<1x1x32x64xf32> to vector<32x64xf32>
    %5 = arith.subf %4, %1 : vector<32x64xf32>
    %cst_5 = arith.constant 5.000000e-01 : f32
    %6 = vector.broadcast %cst_5 : f32 to vector<32x64xf32>
    %7 = arith.mulf %5, %6 : vector<32x64xf32>
    %8 = arith.addf %1, %7 : vector<32x64xf32>
    %cst_6 = arith.constant 1.000000e+00 : f32
    %9 = vector.broadcast %cst_6 : f32 to vector<32x64xf32>
    %10 = arith.cmpf oge, %8, %9 : vector<32x64xf32>
    %11 = arith.extui %10 : vector<32x64xi1> to vector<32x64xi32>
    %12 = arith.sitofp %11 : vector<32x64xi32> to vector<32x64xf32>
    %cst_7 = arith.constant 1.000000e+00 : f32
    %13 = vector.broadcast %cst_7 : f32 to vector<32x64xf32>
    %14 = arith.subf %13, %12 : vector<32x64xf32>
    %15 = arith.mulf %8, %14 : vector<32x64xf32>
    %16 = arith.truncf %12 : vector<32x64xf32> to vector<32x64xbf16>
    %c0_8 = arith.constant 0 : index
    %c0_9 = arith.constant 0 : index
    %17 = vector.load %arg2[%c0_8, %c0_9] : memref<64x64xbf16, #tpu.memory_space<vmem>>, vector<64x64xbf16>
    %cst_10 = arith.constant dense<0.000000e+00> : vector<32x64xf32>
    %18 = tpu.matmul %16, %17, %cst_10 {dimension_numbers = #tpu.dot_dimension_numbers<[1], [0], [0], [1], [0, 0, 1, 1], [], []>} : vector<32x64xbf16>, vector<64x64xbf16>, vector<32x64xf32> -> vector<32x64xf32>
    %19 = arith.addf %2, %18 : vector<32x64xf32>
    %cst_11 = arith.constant 1.000000e+00 : f32
    %20 = vector.broadcast %cst_11 : f32 to vector<32x64xf32>
    %21 = arith.cmpf oge, %19, %20 : vector<32x64xf32>
    %cst_12 = arith.constant 1.000000e+00 : f32
    %cst_13 = arith.constant 0.000000e+00 : f32
    %22 = vector.broadcast %cst_12 : f32 to vector<32x64xf32>
    %23 = vector.broadcast %cst_13 : f32 to vector<32x64xf32>
    %24 = arith.select %21, %22, %23 : vector<32x64xi1>, vector<32x64xf32>
    %cst_14 = arith.constant -1.000000e+00 : f32
    %25 = vector.broadcast %cst_14 : f32 to vector<32x64xf32>
    %26 = arith.cmpf ole, %19, %25 : vector<32x64xf32>
    %cst_15 = arith.constant -1.000000e+00 : f32
    %cst_16 = arith.constant 0.000000e+00 : f32
    %27 = vector.broadcast %cst_15 : f32 to vector<32x64xf32>
    %28 = vector.broadcast %cst_16 : f32 to vector<32x64xf32>
    %29 = arith.select %26, %27, %28 : vector<32x64xi1>, vector<32x64xf32>
    %30 = arith.addf %24, %29 : vector<32x64xf32>
    %cst_17 = arith.constant 0.000000e+00 : f32
    %31 = vector.broadcast %cst_17 : f32 to vector<32x64xf32>
    %32 = arith.cmpf one, %30, %31 : vector<32x64xf32>
    %cst_18 = arith.constant 0.000000e+00 : f32
    %33 = vector.broadcast %cst_18 : f32 to vector<32x64xf32>
    %34 = arith.select %32, %33, %19 : vector<32x64xi1>, vector<32x64xf32>
    %35 = arith.truncf %30 : vector<32x64xf32> to vector<32x64xbf16>
    %c0_19 = arith.constant 0 : index
    %c0_20 = arith.constant 0 : index
    %c0_21 = arith.constant 0 : index
    %c0_22 = arith.constant 0 : index
    %36 = vector.load %arg8[%c0_19, %c0_20, %c0_21, %c0_22] : memref<2x2x32x64xbf16, #tpu.memory_space<vmem>>, vector<1x1x32x64xbf16>
    %37 = vector.shape_cast %36 : vector<1x1x32x64xbf16> to vector<32x64xbf16>
    %38 = vector.shape_cast %35 : vector<32x64xbf16> to vector<1x1x32x64xbf16>
    tpu.vector_store %arg8[%c0_19, %c0_20, %c0_21, %c0_22], %38 {strides = array<i32>} : memref<2x2x32x64xbf16, #tpu.memory_space<vmem>>, vector<1x1x32x64xbf16>,
    %cst_23 = arith.constant dense<0.000000e+00> : vector<32xf32>
    %39 = vector.multi_reduction <add>, %30, %cst_23 [1] : vector<32x64xf32> to vector<32xf32>
    %40 = vector.shape_cast %39 : vector<32xf32> to vector<32x1xf32>
    %41 = arith.addf %0, %40 : vector<32x1xf32>
    %42 = arith.mulf %30, %30 : vector<32x64xf32>
    %cst_24 = arith.constant dense<0.000000e+00> : vector<32xf32>
    %43 = vector.multi_reduction <add>, %42, %cst_24 [1] : vector<32x64xf32> to vector<32xf32>
    %44 = vector.shape_cast %43 : vector<32xf32> to vector<32x1xf32>
    %45 = arith.addf %0, %44 : vector<32x1xf32>
    %c0_25 = arith.constant 0 : index
    %c0_26 = arith.constant 0 : index
    %46 = vector.load %arg4[%c0_25, %c0_26] : memref<32x32xbf16, #tpu.memory_space<vmem>>, vector<32x32xbf16>
    %cst_27 = arith.constant dense<0.000000e+00> : vector<32x64xf32>
    %47 = tpu.matmul %46, %16, %cst_27 {dimension_numbers = #tpu.dot_dimension_numbers<[1], [0], [0], [1], [0, 0, 1, 1], [], []>} : vector<32x32xbf16>, vector<32x64xbf16>, vector<32x64xf32> -> vector<32x64xf32>
    %c0_28 = arith.constant 0 : index
    %c0_29 = arith.constant 0 : index
    %48 = vector.load %arg5[%c0_28, %c0_29] : memref<32x1xf32, #tpu.memory_space<vmem>>, vector<32x1xf32>
    %49 = vector.broadcast %48 : vector<32x1xf32> to vector<32x64xf32>
    %50 = arith.addf %47, %49 : vector<32x64xf32>
    %51 = arith.truncf %50 : vector<32x64xf32> to vector<32x64xbf16>
    %c0_30 = arith.constant 0 : index
    %c0_31 = arith.constant 0 : index
    %c0_32 = arith.constant 0 : index
    %c0_33 = arith.constant 0 : index
    %52 = vector.load %arg9[%c0_30, %c0_31, %c0_32, %c0_33] : memref<2x2x32x64xbf16, #tpu.memory_space<vmem>>, vector<1x1x32x64xbf16>
    %53 = vector.shape_cast %52 : vector<1x1x32x64xbf16> to vector<32x64xbf16>
    %54 = vector.shape_cast %51 : vector<32x64xbf16> to vector<1x1x32x64xbf16>
    tpu.vector_store %arg9[%c0_30, %c0_31, %c0_32, %c0_33], %54 {strides = array<i32>} : memref<2x2x32x64xbf16, #tpu.memory_space<vmem>>, vector<1x1x32x64xbf16>,
    %cst_34 = arith.constant dense<0.000000e+00> : vector<32xf32>
    %55 = vector.multi_reduction <add>, %50, %cst_34 [1] : vector<32x64xf32> to vector<32xf32>
    %56 = vector.shape_cast %55 : vector<32xf32> to vector<32x1xf32>
    %57 = arith.addf %0, %56 : vector<32x1xf32>
    %58 = arith.mulf %50, %50 : vector<32x64xf32>
    %cst_35 = arith.constant dense<0.000000e+00> : vector<32xf32>
    %59 = vector.multi_reduction <add>, %58, %cst_35 [1] : vector<32x64xf32> to vector<32xf32>
    %60 = vector.shape_cast %59 : vector<32xf32> to vector<32x1xf32>
    %61 = arith.addf %0, %60 : vector<32x1xf32>
    %c0_36 = arith.constant 0 : index
    %c0_37 = arith.constant 0 : index
    %c0_38 = arith.constant 0 : index
    %62 = vector.load %arg3[%c0_36, %c0_37, %c0_38] : memref<9x64x64xbf16, #tpu.memory_space<vmem>>, vector<1x64x64xbf16>
    %63 = vector.shape_cast %62 : vector<1x64x64xbf16> to vector<64x64xbf16>
    %cst_39 = arith.constant dense<0.000000e+00> : vector<32x64xf32>
    %64 = tpu.matmul %16, %63, %cst_39 {dimension_numbers = #tpu.dot_dimension_numbers<[1], [0], [0], [1], [0, 0, 1, 1], [], []>} : vector<32x64xbf16>, vector<64x64xbf16>, vector<32x64xf32> -> vector<32x64xf32>
    %65 = arith.truncf %64 : vector<32x64xf32> to vector<32x64xbf16>
    %c0_40 = arith.constant 0 : index
    %c0_41 = arith.constant 0 : index
    %66 = vector.load %arg12[%c0_40, %c0_41] : memref<288x64xbf16, #tpu.memory_space<vmem>>, vector<32x64xbf16>
    tpu.vector_store %arg12[%c0_40, %c0_41], %65 {strides = array<i32>} : memref<288x64xbf16, #tpu.memory_space<vmem>>, vector<32x64xbf16>,
    %c1 = arith.constant 1 : index
    %c0_42 = arith.constant 0 : index
    %c0_43 = arith.constant 0 : index
    %67 = vector.load %arg3[%c1, %c0_42, %c0_43] : memref<9x64x64xbf16, #tpu.memory_space<vmem>>, vector<1x64x64xbf16>
    %68 = vector.shape_cast %67 : vector<1x64x64xbf16> to vector<64x64xbf16>
    %cst_44 = arith.constant dense<0.000000e+00> : vector<32x64xf32>
    %69 = tpu.matmul %16, %68, %cst_44 {dimension_numbers = #tpu.dot_dimension_numbers<[1], [0], [0], [1], [0, 0, 1, 1], [], []>} : vector<32x64xbf16>, vector<64x64xbf16>, vector<32x64xf32> -> vector<32x64xf32>
    %70 = arith.truncf %69 : vector<32x64xf32> to vector<32x64xbf16>
    %c32 = arith.constant 32 : index
    %c0_45 = arith.constant 0 : index
    %71 = vector.load %arg12[%c32, %c0_45] : memref<288x64xbf16, #tpu.memory_space<vmem>>, vector<32x64xbf16>
    tpu.vector_store %arg12[%c32, %c0_45], %70 {strides = array<i32>} : memref<288x64xbf16, #tpu.memory_space<vmem>>, vector<32x64xbf16>,
    %c2 = arith.constant 2 : index
    %c0_46 = arith.constant 0 : index
    %c0_47 = arith.constant 0 : index
    %72 = vector.load %arg3[%c2, %c0_46, %c0_47] : memref<9x64x64xbf16, #tpu.memory_space<vmem>>, vector<1x64x64xbf16>
    %73 = vector.shape_cast %72 : vector<1x64x64xbf16> to vector<64x64xbf16>
    %cst_48 = arith.constant dense<0.000000e+00> : vector<32x64xf32>
    %74 = tpu.matmul %16, %73, %cst_48 {dimension_numbers = #tpu.dot_dimension_numbers<[1], [0], [0], [1], [0, 0, 1, 1], [], []>} : vector<32x64xbf16>, vector<64x64xbf16>, vector<32x64xf32> -> vector<32x64xf32>
    %75 = arith.truncf %74 : vector<32x64xf32> to vector<32x64xbf16>
    %c64 = arith.constant 64 : index
    %c0_49 = arith.constant 0 : index
    %76 = vector.load %arg12[%c64, %c0_49] : memref<288x64xbf16, #tpu.memory_space<vmem>>, vector<32x64xbf16>
    tpu.vector_store %arg12[%c64, %c0_49], %75 {strides = array<i32>} : memref<288x64xbf16, #tpu.memory_space<vmem>>, vector<32x64xbf16>,
    %c3 = arith.constant 3 : index
    %c0_50 = arith.constant 0 : index
    %c0_51 = arith.constant 0 : index
    %77 = vector.load %arg3[%c3, %c0_50, %c0_51] : memref<9x64x64xbf16, #tpu.memory_space<vmem>>, vector<1x64x64xbf16>
    %78 = vector.shape_cast %77 : vector<1x64x64xbf16> to vector<64x64xbf16>
    %cst_52 = arith.constant dense<0.000000e+00> : vector<32x64xf32>
    %79 = tpu.matmul %16, %78, %cst_52 {dimension_numbers = #tpu.dot_dimension_numbers<[1], [0], [0], [1], [0, 0, 1, 1], [], []>} : vector<32x64xbf16>, vector<64x64xbf16>, vector<32x64xf32> -> vector<32x64xf32>
    %80 = arith.truncf %79 : vector<32x64xf32> to vector<32x64xbf16>
    %c96 = arith.constant 96 : index
    %c0_53 = arith.constant 0 : index
    %81 = vector.load %arg12[%c96, %c0_53] : memref<288x64xbf16, #tpu.memory_space<vmem>>, vector<32x64xbf16>
    tpu.vector_store %arg12[%c96, %c0_53], %80 {strides = array<i32>} : memref<288x64xbf16, #tpu.memory_space<vmem>>, vector<32x64xbf16>,
    %c4 = arith.constant 4 : index
    %c0_54 = arith.constant 0 : index
    %c0_55 = arith.constant 0 : index
    %82 = vector.load %arg3[%c4, %c0_54, %c0_55] : memref<9x64x64xbf16, #tpu.memory_space<vmem>>, vector<1x64x64xbf16>
    %83 = vector.shape_cast %82 : vector<1x64x64xbf16> to vector<64x64xbf16>
    %cst_56 = arith.constant dense<0.000000e+00> : vector<32x64xf32>
    %84 = tpu.matmul %16, %83, %cst_56 {dimension_numbers = #tpu.dot_dimension_numbers<[1], [0], [0], [1], [0, 0, 1, 1], [], []>} : vector<32x64xbf16>, vector<64x64xbf16>, vector<32x64xf32> -> vector<32x64xf32>
    %85 = arith.truncf %84 : vector<32x64xf32> to vector<32x64xbf16>
    %c128 = arith.constant 128 : index
    %c0_57 = arith.constant 0 : index
    %86 = vector.load %arg12[%c128, %c0_57] : memref<288x64xbf16, #tpu.memory_space<vmem>>, vector<32x64xbf16>
    tpu.vector_store %arg12[%c128, %c0_57], %85 {strides = array<i32>} : memref<288x64xbf16, #tpu.memory_space<vmem>>, vector<32x64xbf16>,
    %c5 = arith.constant 5 : index
    %c0_58 = arith.constant 0 : index
    %c0_59 = arith.constant 0 : index
    %87 = vector.load %arg3[%c5, %c0_58, %c0_59] : memref<9x64x64xbf16, #tpu.memory_space<vmem>>, vector<1x64x64xbf16>
    %88 = vector.shape_cast %87 : vector<1x64x64xbf16> to vector<64x64xbf16>
    %cst_60 = arith.constant dense<0.000000e+00> : vector<32x64xf32>
    %89 = tpu.matmul %16, %88, %cst_60 {dimension_numbers = #tpu.dot_dimension_numbers<[1], [0], [0], [1], [0, 0, 1, 1], [], []>} : vector<32x64xbf16>, vector<64x64xbf16>, vector<32x64xf32> -> vector<32x64xf32>
    %90 = arith.truncf %89 : vector<32x64xf32> to vector<32x64xbf16>
    %c160 = arith.constant 160 : index
    %c0_61 = arith.constant 0 : index
    %91 = vector.load %arg12[%c160, %c0_61] : memref<288x64xbf16, #tpu.memory_space<vmem>>, vector<32x64xbf16>
    tpu.vector_store %arg12[%c160, %c0_61], %90 {strides = array<i32>} : memref<288x64xbf16, #tpu.memory_space<vmem>>, vector<32x64xbf16>,
    %c6 = arith.constant 6 : index
    %c0_62 = arith.constant 0 : index
    %c0_63 = arith.constant 0 : index
    %92 = vector.load %arg3[%c6, %c0_62, %c0_63] : memref<9x64x64xbf16, #tpu.memory_space<vmem>>, vector<1x64x64xbf16>
    %93 = vector.shape_cast %92 : vector<1x64x64xbf16> to vector<64x64xbf16>
    %cst_64 = arith.constant dense<0.000000e+00> : vector<32x64xf32>
    %94 = tpu.matmul %16, %93, %cst_64 {dimension_numbers = #tpu.dot_dimension_numbers<[1], [0], [0], [1], [0, 0, 1, 1], [], []>} : vector<32x64xbf16>, vector<64x64xbf16>, vector<32x64xf32> -> vector<32x64xf32>
    %95 = arith.truncf %94 : vector<32x64xf32> to vector<32x64xbf16>
    %c192 = arith.constant 192 : index
    %c0_65 = arith.constant 0 : index
    %96 = vector.load %arg12[%c192, %c0_65] : memref<288x64xbf16, #tpu.memory_space<vmem>>, vector<32x64xbf16>
    tpu.vector_store %arg12[%c192, %c0_65], %95 {strides = array<i32>} : memref<288x64xbf16, #tpu.memory_space<vmem>>, vector<32x64xbf16>,
    %c7 = arith.constant 7 : index
    %c0_66 = arith.constant 0 : index
    %c0_67 = arith.constant 0 : index
    %97 = vector.load %arg3[%c7, %c0_66, %c0_67] : memref<9x64x64xbf16, #tpu.memory_space<vmem>>, vector<1x64x64xbf16>
    %98 = vector.shape_cast %97 : vector<1x64x64xbf16> to vector<64x64xbf16>
    %cst_68 = arith.constant dense<0.000000e+00> : vector<32x64xf32>
    %99 = tpu.matmul %16, %98, %cst_68 {dimension_numbers = #tpu.dot_dimension_numbers<[1], [0], [0], [1], [0, 0, 1, 1], [], []>} : vector<32x64xbf16>, vector<64x64xbf16>, vector<32x64xf32> -> vector<32x64xf32>
    %100 = arith.truncf %99 : vector<32x64xf32> to vector<32x64xbf16>
    %c224 = arith.constant 224 : index
    %c0_69 = arith.constant 0 : index
    %101 = vector.load %arg12[%c224, %c0_69] : memref<288x64xbf16, #tpu.memory_space<vmem>>, vector<32x64xbf16>
    tpu.vector_store %arg12[%c224, %c0_69], %100 {strides = array<i32>} : memref<288x64xbf16, #tpu.memory_space<vmem>>, vector<32x64xbf16>,
    %c8 = arith.constant 8 : index
    %c0_70 = arith.constant 0 : index
    %c0_71 = arith.constant 0 : index
    %102 = vector.load %arg3[%c8, %c0_70, %c0_71] : memref<9x64x64xbf16, #tpu.memory_space<vmem>>, vector<1x64x64xbf16>
    %103 = vector.shape_cast %102 : vector<1x64x64xbf16> to vector<64x64xbf16>
    %cst_72 = arith.constant dense<0.000000e+00> : vector<32x64xf32>
    %104 = tpu.matmul %16, %103, %cst_72 {dimension_numbers = #tpu.dot_dimension_numbers<[1], [0], [0], [1], [0, 0, 1, 1], [], []>} : vector<32x64xbf16>, vector<64x64xbf16>, vector<32x64xf32> -> vector<32x64xf32>
    %105 = arith.truncf %104 : vector<32x64xf32> to vector<32x64xbf16>
    %c256 = arith.constant 256 : index
    %c0_73 = arith.constant 0 : index
    %106 = vector.load %arg12[%c256, %c0_73] : memref<288x64xbf16, #tpu.memory_space<vmem>>, vector<32x64xbf16>
    tpu.vector_store %arg12[%c256, %c0_73], %105 {strides = array<i32>} : memref<288x64xbf16, #tpu.memory_space<vmem>>, vector<32x64xbf16>,
    %c0_74 = arith.constant 0 : index
    %c0_75 = arith.constant 0 : index
    %107 = vector.load %arg6[%c0_74, %c0_75] : memref<32x288xbf16, #tpu.memory_space<vmem>>, vector<32x288xbf16>
    %c0_76 = arith.constant 0 : index
    %c0_77 = arith.constant 0 : index
    %108 = vector.load %arg12[%c0_76, %c0_77] : memref<288x64xbf16, #tpu.memory_space<vmem>>, vector<288x64xbf16>
    %cst_78 = arith.constant dense<0.000000e+00> : vector<32x64xf32>
    %109 = tpu.matmul %107, %108, %cst_78 {dimension_numbers = #tpu.dot_dimension_numbers<[1], [0], [0], [1], [0, 0, 1, 1], [], []>} : vector<32x288xbf16>, vector<288x64xbf16>, vector<32x64xf32> -> vector<32x64xf32>
    %c0_79 = arith.constant 0 : index
    %c0_80 = arith.constant 0 : index
    %110 = vector.load %arg7[%c0_79, %c0_80] : memref<32x1xf32, #tpu.memory_space<vmem>>, vector<32x1xf32>
    %111 = vector.broadcast %110 : vector<32x1xf32> to vector<32x64xf32>
    %112 = arith.addf %109, %111 : vector<32x64xf32>
    %113 = arith.truncf %112 : vector<32x64xf32> to vector<32x64xbf16>
    %c0_81 = arith.constant 0 : index
    %c0_82 = arith.constant 0 : index
    %c0_83 = arith.constant 0 : index
    %c0_84 = arith.constant 0 : index
    %114 = vector.load %arg10[%c0_81, %c0_82, %c0_83, %c0_84] : memref<2x2x32x64xbf16, #tpu.memory_space<vmem>>, vector<1x1x32x64xbf16>
    %115 = vector.shape_cast %114 : vector<1x1x32x64xbf16> to vector<32x64xbf16>
    %116 = vector.shape_cast %113 : vector<32x64xbf16> to vector<1x1x32x64xbf16>
    tpu.vector_store %arg10[%c0_81, %c0_82, %c0_83, %c0_84], %116 {strides = array<i32>} : memref<2x2x32x64xbf16, #tpu.memory_space<vmem>>, vector<1x1x32x64xbf16>,
    %cst_85 = arith.constant dense<0.000000e+00> : vector<32xf32>
    %117 = vector.multi_reduction <add>, %112, %cst_85 [1] : vector<32x64xf32> to vector<32xf32>
    %118 = vector.shape_cast %117 : vector<32xf32> to vector<32x1xf32>
    %119 = arith.addf %0, %118 : vector<32x1xf32>
    %120 = arith.mulf %112, %112 : vector<32x64xf32>
    %cst_86 = arith.constant dense<0.000000e+00> : vector<32xf32>
    %121 = vector.multi_reduction <add>, %120, %cst_86 [1] : vector<32x64xf32> to vector<32xf32>
    %122 = vector.shape_cast %121 : vector<32xf32> to vector<32x1xf32>
    %123 = arith.addf %0, %122 : vector<32x1xf32>
    %c1_87 = arith.constant 1 : index
    %c0_88 = arith.constant 0 : index
    %c0_89 = arith.constant 0 : index
    %c0_90 = arith.constant 0 : index
    %124 = vector.load %arg1[%c1_87, %c0_88, %c0_89, %c0_90] : memref<2x2x32x64xf32, #tpu.memory_space<vmem>>, vector<1x1x32x64xf32>
    %125 = vector.shape_cast %124 : vector<1x1x32x64xf32> to vector<32x64xf32>
    %126 = arith.subf %125, %15 : vector<32x64xf32>
    %cst_91 = arith.constant 5.000000e-01 : f32
    %127 = vector.broadcast %cst_91 : f32 to vector<32x64xf32>
    %128 = arith.mulf %126, %127 : vector<32x64xf32>
    %129 = arith.addf %15, %128 : vector<32x64xf32>
    %cst_92 = arith.constant 1.000000e+00 : f32
    %130 = vector.broadcast %cst_92 : f32 to vector<32x64xf32>
    %131 = arith.cmpf oge, %129, %130 : vector<32x64xf32>
    %132 = arith.extui %131 : vector<32x64xi1> to vector<32x64xi32>
    %133 = arith.sitofp %132 : vector<32x64xi32> to vector<32x64xf32>
    %134 = arith.truncf %133 : vector<32x64xf32> to vector<32x64xbf16>
    %c0_93 = arith.constant 0 : index
    %c0_94 = arith.constant 0 : index
    %135 = vector.load %arg2[%c0_93, %c0_94] : memref<64x64xbf16, #tpu.memory_space<vmem>>, vector<64x64xbf16>
    %cst_95 = arith.constant dense<0.000000e+00> : vector<32x64xf32>
    %136 = tpu.matmul %134, %135, %cst_95 {dimension_numbers = #tpu.dot_dimension_numbers<[1], [0], [0], [1], [0, 0, 1, 1], [], []>} : vector<32x64xbf16>, vector<64x64xbf16>, vector<32x64xf32> -> vector<32x64xf32>
    %137 = arith.addf %34, %136 : vector<32x64xf32>
    %cst_96 = arith.constant 1.000000e+00 : f32
    %138 = vector.broadcast %cst_96 : f32 to vector<32x64xf32>
    %139 = arith.cmpf oge, %137, %138 : vector<32x64xf32>
    %cst_97 = arith.constant 1.000000e+00 : f32
    %cst_98 = arith.constant 0.000000e+00 : f32
    %140 = vector.broadcast %cst_97 : f32 to vector<32x64xf32>
    %141 = vector.broadcast %cst_98 : f32 to vector<32x64xf32>
    %142 = arith.select %139, %140, %141 : vector<32x64xi1>, vector<32x64xf32>
    %cst_99 = arith.constant -1.000000e+00 : f32
    %143 = vector.broadcast %cst_99 : f32 to vector<32x64xf32>
    %144 = arith.cmpf ole, %137, %143 : vector<32x64xf32>
    %cst_100 = arith.constant -1.000000e+00 : f32
    %cst_101 = arith.constant 0.000000e+00 : f32
    %145 = vector.broadcast %cst_100 : f32 to vector<32x64xf32>
    %146 = vector.broadcast %cst_101 : f32 to vector<32x64xf32>
    %147 = arith.select %144, %145, %146 : vector<32x64xi1>, vector<32x64xf32>
    %148 = arith.addf %142, %147 : vector<32x64xf32>
    %149 = arith.truncf %148 : vector<32x64xf32> to vector<32x64xbf16>
    %c1_102 = arith.constant 1 : index
    %c0_103 = arith.constant 0 : index
    %c0_104 = arith.constant 0 : index
    %c0_105 = arith.constant 0 : index
    %150 = vector.load %arg8[%c1_102, %c0_103, %c0_104, %c0_105] : memref<2x2x32x64xbf16, #tpu.memory_space<vmem>>, vector<1x1x32x64xbf16>
    %151 = vector.shape_cast %150 : vector<1x1x32x64xbf16> to vector<32x64xbf16>
    %152 = vector.shape_cast %149 : vector<32x64xbf16> to vector<1x1x32x64xbf16>
    tpu.vector_store %arg8[%c1_102, %c0_103, %c0_104, %c0_105], %152 {strides = array<i32>} : memref<2x2x32x64xbf16, #tpu.memory_space<vmem>>, vector<1x1x32x64xbf16>,
    %cst_106 = arith.constant dense<0.000000e+00> : vector<32xf32>
    %153 = vector.multi_reduction <add>, %148, %cst_106 [1] : vector<32x64xf32> to vector<32xf32>
    %154 = vector.shape_cast %153 : vector<32xf32> to vector<32x1xf32>
    %155 = arith.addf %41, %154 : vector<32x1xf32>
    %156 = arith.mulf %148, %148 : vector<32x64xf32>
    %cst_107 = arith.constant dense<0.000000e+00> : vector<32xf32>
    %157 = vector.multi_reduction <add>, %156, %cst_107 [1] : vector<32x64xf32> to vector<32xf32>
    %158 = vector.shape_cast %157 : vector<32xf32> to vector<32x1xf32>
    %159 = arith.addf %45, %158 : vector<32x1xf32>
    %c0_108 = arith.constant 0 : index
    %c0_109 = arith.constant 0 : index
    %160 = vector.load %arg4[%c0_108, %c0_109] : memref<32x32xbf16, #tpu.memory_space<vmem>>, vector<32x32xbf16>
    %cst_110 = arith.constant dense<0.000000e+00> : vector<32x64xf32>
    %161 = tpu.matmul %160, %134, %cst_110 {dimension_numbers = #tpu.dot_dimension_numbers<[1], [0], [0], [1], [0, 0, 1, 1], [], []>} : vector<32x32xbf16>, vector<32x64xbf16>, vector<32x64xf32> -> vector<32x64xf32>
    %c0_111 = arith.constant 0 : index
    %c0_112 = arith.constant 0 : index
    %162 = vector.load %arg5[%c0_111, %c0_112] : memref<32x1xf32, #tpu.memory_space<vmem>>, vector<32x1xf32>
    %163 = vector.broadcast %162 : vector<32x1xf32> to vector<32x64xf32>
    %164 = arith.addf %161, %163 : vector<32x64xf32>
    %165 = arith.truncf %164 : vector<32x64xf32> to vector<32x64xbf16>
    %c1_113 = arith.constant 1 : index
    %c0_114 = arith.constant 0 : index
    %c0_115 = arith.constant 0 : index
    %c0_116 = arith.constant 0 : index
    %166 = vector.load %arg9[%c1_113, %c0_114, %c0_115, %c0_116] : memref<2x2x32x64xbf16, #tpu.memory_space<vmem>>, vector<1x1x32x64xbf16>
    %167 = vector.shape_cast %166 : vector<1x1x32x64xbf16> to vector<32x64xbf16>
    %168 = vector.shape_cast %165 : vector<32x64xbf16> to vector<1x1x32x64xbf16>
    tpu.vector_store %arg9[%c1_113, %c0_114, %c0_115, %c0_116], %168 {strides = array<i32>} : memref<2x2x32x64xbf16, #tpu.memory_space<vmem>>, vector<1x1x32x64xbf16>,
    %cst_117 = arith.constant dense<0.000000e+00> : vector<32xf32>
    %169 = vector.multi_reduction <add>, %164, %cst_117 [1] : vector<32x64xf32> to vector<32xf32>
    %170 = vector.shape_cast %169 : vector<32xf32> to vector<32x1xf32>
    %171 = arith.addf %57, %170 : vector<32x1xf32>
    %172 = arith.mulf %164, %164 : vector<32x64xf32>
    %cst_118 = arith.constant dense<0.000000e+00> : vector<32xf32>
    %173 = vector.multi_reduction <add>, %172, %cst_118 [1] : vector<32x64xf32> to vector<32xf32>
    %174 = vector.shape_cast %173 : vector<32xf32> to vector<32x1xf32>
    %175 = arith.addf %61, %174 : vector<32x1xf32>
    %c0_119 = arith.constant 0 : index
    %c0_120 = arith.constant 0 : index
    %c0_121 = arith.constant 0 : index
    %176 = vector.load %arg3[%c0_119, %c0_120, %c0_121] : memref<9x64x64xbf16, #tpu.memory_space<vmem>>, vector<1x64x64xbf16>
    %177 = vector.shape_cast %176 : vector<1x64x64xbf16> to vector<64x64xbf16>
    %cst_122 = arith.constant dense<0.000000e+00> : vector<32x64xf32>
    %178 = tpu.matmul %134, %177, %cst_122 {dimension_numbers = #tpu.dot_dimension_numbers<[1], [0], [0], [1], [0, 0, 1, 1], [], []>} : vector<32x64xbf16>, vector<64x64xbf16>, vector<32x64xf32> -> vector<32x64xf32>
    %179 = arith.truncf %178 : vector<32x64xf32> to vector<32x64xbf16>
    %c0_123 = arith.constant 0 : index
    %c0_124 = arith.constant 0 : index
    %180 = vector.load %arg12[%c0_123, %c0_124] : memref<288x64xbf16, #tpu.memory_space<vmem>>, vector<32x64xbf16>
    tpu.vector_store %arg12[%c0_123, %c0_124], %179 {strides = array<i32>} : memref<288x64xbf16, #tpu.memory_space<vmem>>, vector<32x64xbf16>,
    %c1_125 = arith.constant 1 : index
    %c0_126 = arith.constant 0 : index
    %c0_127 = arith.constant 0 : index
    %181 = vector.load %arg3[%c1_125, %c0_126, %c0_127] : memref<9x64x64xbf16, #tpu.memory_space<vmem>>, vector<1x64x64xbf16>
    %182 = vector.shape_cast %181 : vector<1x64x64xbf16> to vector<64x64xbf16>
    %cst_128 = arith.constant dense<0.000000e+00> : vector<32x64xf32>
    %183 = tpu.matmul %134, %182, %cst_128 {dimension_numbers = #tpu.dot_dimension_numbers<[1], [0], [0], [1], [0, 0, 1, 1], [], []>} : vector<32x64xbf16>, vector<64x64xbf16>, vector<32x64xf32> -> vector<32x64xf32>
    %184 = arith.truncf %183 : vector<32x64xf32> to vector<32x64xbf16>
    %c32_129 = arith.constant 32 : index
    %c0_130 = arith.constant 0 : index
    %185 = vector.load %arg12[%c32_129, %c0_130] : memref<288x64xbf16, #tpu.memory_space<vmem>>, vector<32x64xbf16>
    tpu.vector_store %arg12[%c32_129, %c0_130], %184 {strides = array<i32>} : memref<288x64xbf16, #tpu.memory_space<vmem>>, vector<32x64xbf16>,
    %c2_131 = arith.constant 2 : index
    %c0_132 = arith.constant 0 : index
    %c0_133 = arith.constant 0 : index
    %186 = vector.load %arg3[%c2_131, %c0_132, %c0_133] : memref<9x64x64xbf16, #tpu.memory_space<vmem>>, vector<1x64x64xbf16>
    %187 = vector.shape_cast %186 : vector<1x64x64xbf16> to vector<64x64xbf16>
    %cst_134 = arith.constant dense<0.000000e+00> : vector<32x64xf32>
    %188 = tpu.matmul %134, %187, %cst_134 {dimension_numbers = #tpu.dot_dimension_numbers<[1], [0], [0], [1], [0, 0, 1, 1], [], []>} : vector<32x64xbf16>, vector<64x64xbf16>, vector<32x64xf32> -> vector<32x64xf32>
    %189 = arith.truncf %188 : vector<32x64xf32> to vector<32x64xbf16>
    %c64_135 = arith.constant 64 : index
    %c0_136 = arith.constant 0 : index
    %190 = vector.load %arg12[%c64_135, %c0_136] : memref<288x64xbf16, #tpu.memory_space<vmem>>, vector<32x64xbf16>
    tpu.vector_store %arg12[%c64_135, %c0_136], %189 {strides = array<i32>} : memref<288x64xbf16, #tpu.memory_space<vmem>>, vector<32x64xbf16>,
    %c3_137 = arith.constant 3 : index
    %c0_138 = arith.constant 0 : index
    %c0_139 = arith.constant 0 : index
    %191 = vector.load %arg3[%c3_137, %c0_138, %c0_139] : memref<9x64x64xbf16, #tpu.memory_space<vmem>>, vector<1x64x64xbf16>
    %192 = vector.shape_cast %191 : vector<1x64x64xbf16> to vector<64x64xbf16>
    %cst_140 = arith.constant dense<0.000000e+00> : vector<32x64xf32>
    %193 = tpu.matmul %134, %192, %cst_140 {dimension_numbers = #tpu.dot_dimension_numbers<[1], [0], [0], [1], [0, 0, 1, 1], [], []>} : vector<32x64xbf16>, vector<64x64xbf16>, vector<32x64xf32> -> vector<32x64xf32>
    %194 = arith.truncf %193 : vector<32x64xf32> to vector<32x64xbf16>
    %c96_141 = arith.constant 96 : index
    %c0_142 = arith.constant 0 : index
    %195 = vector.load %arg12[%c96_141, %c0_142] : memref<288x64xbf16, #tpu.memory_space<vmem>>, vector<32x64xbf16>
    tpu.vector_store %arg12[%c96_141, %c0_142], %194 {strides = array<i32>} : memref<288x64xbf16, #tpu.memory_space<vmem>>, vector<32x64xbf16>,
    %c4_143 = arith.constant 4 : index
    %c0_144 = arith.constant 0 : index
    %c0_145 = arith.constant 0 : index
    %196 = vector.load %arg3[%c4_143, %c0_144, %c0_145] : memref<9x64x64xbf16, #tpu.memory_space<vmem>>, vector<1x64x64xbf16>
    %197 = vector.shape_cast %196 : vector<1x64x64xbf16> to vector<64x64xbf16>
    %cst_146 = arith.constant dense<0.000000e+00> : vector<32x64xf32>
    %198 = tpu.matmul %134, %197, %cst_146 {dimension_numbers = #tpu.dot_dimension_numbers<[1], [0], [0], [1], [0, 0, 1, 1], [], []>} : vector<32x64xbf16>, vector<64x64xbf16>, vector<32x64xf32> -> vector<32x64xf32>
    %199 = arith.truncf %198 : vector<32x64xf32> to vector<32x64xbf16>
    %c128_147 = arith.constant 128 : index
    %c0_148 = arith.constant 0 : index
    %200 = vector.load %arg12[%c128_147, %c0_148] : memref<288x64xbf16, #tpu.memory_space<vmem>>, vector<32x64xbf16>
    tpu.vector_store %arg12[%c128_147, %c0_148], %199 {strides = array<i32>} : memref<288x64xbf16, #tpu.memory_space<vmem>>, vector<32x64xbf16>,
    %c5_149 = arith.constant 5 : index
    %c0_150 = arith.constant 0 : index
    %c0_151 = arith.constant 0 : index
    %201 = vector.load %arg3[%c5_149, %c0_150, %c0_151] : memref<9x64x64xbf16, #tpu.memory_space<vmem>>, vector<1x64x64xbf16>
    %202 = vector.shape_cast %201 : vector<1x64x64xbf16> to vector<64x64xbf16>
    %cst_152 = arith.constant dense<0.000000e+00> : vector<32x64xf32>
    %203 = tpu.matmul %134, %202, %cst_152 {dimension_numbers = #tpu.dot_dimension_numbers<[1], [0], [0], [1], [0, 0, 1, 1], [], []>} : vector<32x64xbf16>, vector<64x64xbf16>, vector<32x64xf32> -> vector<32x64xf32>
    %204 = arith.truncf %203 : vector<32x64xf32> to vector<32x64xbf16>
    %c160_153 = arith.constant 160 : index
    %c0_154 = arith.constant 0 : index
    %205 = vector.load %arg12[%c160_153, %c0_154] : memref<288x64xbf16, #tpu.memory_space<vmem>>, vector<32x64xbf16>
    tpu.vector_store %arg12[%c160_153, %c0_154], %204 {strides = array<i32>} : memref<288x64xbf16, #tpu.memory_space<vmem>>, vector<32x64xbf16>,
    %c6_155 = arith.constant 6 : index
    %c0_156 = arith.constant 0 : index
    %c0_157 = arith.constant 0 : index
    %206 = vector.load %arg3[%c6_155, %c0_156, %c0_157] : memref<9x64x64xbf16, #tpu.memory_space<vmem>>, vector<1x64x64xbf16>
    %207 = vector.shape_cast %206 : vector<1x64x64xbf16> to vector<64x64xbf16>
    %cst_158 = arith.constant dense<0.000000e+00> : vector<32x64xf32>
    %208 = tpu.matmul %134, %207, %cst_158 {dimension_numbers = #tpu.dot_dimension_numbers<[1], [0], [0], [1], [0, 0, 1, 1], [], []>} : vector<32x64xbf16>, vector<64x64xbf16>, vector<32x64xf32> -> vector<32x64xf32>
    %209 = arith.truncf %208 : vector<32x64xf32> to vector<32x64xbf16>
    %c192_159 = arith.constant 192 : index
    %c0_160 = arith.constant 0 : index
    %210 = vector.load %arg12[%c192_159, %c0_160] : memref<288x64xbf16, #tpu.memory_space<vmem>>, vector<32x64xbf16>
    tpu.vector_store %arg12[%c192_159, %c0_160], %209 {strides = array<i32>} : memref<288x64xbf16, #tpu.memory_space<vmem>>, vector<32x64xbf16>,
    %c7_161 = arith.constant 7 : index
    %c0_162 = arith.constant 0 : index
    %c0_163 = arith.constant 0 : index
    %211 = vector.load %arg3[%c7_161, %c0_162, %c0_163] : memref<9x64x64xbf16, #tpu.memory_space<vmem>>, vector<1x64x64xbf16>
    %212 = vector.shape_cast %211 : vector<1x64x64xbf16> to vector<64x64xbf16>
    %cst_164 = arith.constant dense<0.000000e+00> : vector<32x64xf32>
    %213 = tpu.matmul %134, %212, %cst_164 {dimension_numbers = #tpu.dot_dimension_numbers<[1], [0], [0], [1], [0, 0, 1, 1], [], []>} : vector<32x64xbf16>, vector<64x64xbf16>, vector<32x64xf32> -> vector<32x64xf32>
    %214 = arith.truncf %213 : vector<32x64xf32> to vector<32x64xbf16>
    %c224_165 = arith.constant 224 : index
    %c0_166 = arith.constant 0 : index
    %215 = vector.load %arg12[%c224_165, %c0_166] : memref<288x64xbf16, #tpu.memory_space<vmem>>, vector<32x64xbf16>
    tpu.vector_store %arg12[%c224_165, %c0_166], %214 {strides = array<i32>} : memref<288x64xbf16, #tpu.memory_space<vmem>>, vector<32x64xbf16>,
    %c8_167 = arith.constant 8 : index
    %c0_168 = arith.constant 0 : index
    %c0_169 = arith.constant 0 : index
    %216 = vector.load %arg3[%c8_167, %c0_168, %c0_169] : memref<9x64x64xbf16, #tpu.memory_space<vmem>>, vector<1x64x64xbf16>
    %217 = vector.shape_cast %216 : vector<1x64x64xbf16> to vector<64x64xbf16>
    %cst_170 = arith.constant dense<0.000000e+00> : vector<32x64xf32>
    %218 = tpu.matmul %134, %217, %cst_170 {dimension_numbers = #tpu.dot_dimension_numbers<[1], [0], [0], [1], [0, 0, 1, 1], [], []>} : vector<32x64xbf16>, vector<64x64xbf16>, vector<32x64xf32> -> vector<32x64xf32>
    %219 = arith.truncf %218 : vector<32x64xf32> to vector<32x64xbf16>
    %c256_171 = arith.constant 256 : index
    %c0_172 = arith.constant 0 : index
    %220 = vector.load %arg12[%c256_171, %c0_172] : memref<288x64xbf16, #tpu.memory_space<vmem>>, vector<32x64xbf16>
    tpu.vector_store %arg12[%c256_171, %c0_172], %219 {strides = array<i32>} : memref<288x64xbf16, #tpu.memory_space<vmem>>, vector<32x64xbf16>,
    %c0_173 = arith.constant 0 : index
    %c0_174 = arith.constant 0 : index
    %221 = vector.load %arg6[%c0_173, %c0_174] : memref<32x288xbf16, #tpu.memory_space<vmem>>, vector<32x288xbf16>
    %c0_175 = arith.constant 0 : index
    %c0_176 = arith.constant 0 : index
    %222 = vector.load %arg12[%c0_175, %c0_176] : memref<288x64xbf16, #tpu.memory_space<vmem>>, vector<288x64xbf16>
    %cst_177 = arith.constant dense<0.000000e+00> : vector<32x64xf32>
    %223 = tpu.matmul %221, %222, %cst_177 {dimension_numbers = #tpu.dot_dimension_numbers<[1], [0], [0], [1], [0, 0, 1, 1], [], []>} : vector<32x288xbf16>, vector<288x64xbf16>, vector<32x64xf32> -> vector<32x64xf32>
    %c0_178 = arith.constant 0 : index
    %c0_179 = arith.constant 0 : index
    %224 = vector.load %arg7[%c0_178, %c0_179] : memref<32x1xf32, #tpu.memory_space<vmem>>, vector<32x1xf32>
    %225 = vector.broadcast %224 : vector<32x1xf32> to vector<32x64xf32>
    %226 = arith.addf %223, %225 : vector<32x64xf32>
    %227 = arith.truncf %226 : vector<32x64xf32> to vector<32x64xbf16>
    %c1_180 = arith.constant 1 : index
    %c0_181 = arith.constant 0 : index
    %c0_182 = arith.constant 0 : index
    %c0_183 = arith.constant 0 : index
    %228 = vector.load %arg10[%c1_180, %c0_181, %c0_182, %c0_183] : memref<2x2x32x64xbf16, #tpu.memory_space<vmem>>, vector<1x1x32x64xbf16>
    %229 = vector.shape_cast %228 : vector<1x1x32x64xbf16> to vector<32x64xbf16>
    %230 = vector.shape_cast %227 : vector<32x64xbf16> to vector<1x1x32x64xbf16>
    tpu.vector_store %arg10[%c1_180, %c0_181, %c0_182, %c0_183], %230 {strides = array<i32>} : memref<2x2x32x64xbf16, #tpu.memory_space<vmem>>, vector<1x1x32x64xbf16>,
    %cst_184 = arith.constant dense<0.000000e+00> : vector<32xf32>
    %231 = vector.multi_reduction <add>, %226, %cst_184 [1] : vector<32x64xf32> to vector<32xf32>
    %232 = vector.shape_cast %231 : vector<32xf32> to vector<32x1xf32>
    %233 = arith.addf %119, %232 : vector<32x1xf32>
    %234 = arith.mulf %226, %226 : vector<32x64xf32>
    %cst_185 = arith.constant dense<0.000000e+00> : vector<32xf32>
    %235 = vector.multi_reduction <add>, %234, %cst_185 [1] : vector<32x64xf32> to vector<32xf32>
    %236 = vector.shape_cast %235 : vector<32xf32> to vector<32x1xf32>
    %237 = arith.addf %123, %236 : vector<32x1xf32>
    %cst_186 = arith.constant 0.000000e+00 : f32
    %238 = vector.broadcast %cst_186 : f32 to vector<32x64xf32>
    %cst_187 = arith.constant 0.000000e+00 : f32
    %239 = vector.broadcast %cst_187 : f32 to vector<32x64xf32>
    %c0_188 = arith.constant 0 : index
    %c1_189 = arith.constant 1 : index
    %c0_190 = arith.constant 0 : index
    %c0_191 = arith.constant 0 : index
    %240 = vector.load %arg1[%c0_188, %c1_189, %c0_190, %c0_191] : memref<2x2x32x64xf32, #tpu.memory_space<vmem>>, vector<1x1x32x64xf32>
    %241 = vector.shape_cast %240 : vector<1x1x32x64xf32> to vector<32x64xf32>
    %242 = arith.subf %241, %238 : vector<32x64xf32>
    %cst_192 = arith.constant 5.000000e-01 : f32
    %243 = vector.broadcast %cst_192 : f32 to vector<32x64xf32>
    %244 = arith.mulf %242, %243 : vector<32x64xf32>
    %245 = arith.addf %238, %244 : vector<32x64xf32>
    %cst_193 = arith.constant 1.000000e+00 : f32
    %246 = vector.broadcast %cst_193 : f32 to vector<32x64xf32>
    %247 = arith.cmpf oge, %245, %246 : vector<32x64xf32>
    %248 = arith.extui %247 : vector<32x64xi1> to vector<32x64xi32>
    %249 = arith.sitofp %248 : vector<32x64xi32> to vector<32x64xf32>
    %cst_194 = arith.constant 1.000000e+00 : f32
    %250 = vector.broadcast %cst_194 : f32 to vector<32x64xf32>
    %251 = arith.subf %250, %249 : vector<32x64xf32>
    %252 = arith.mulf %245, %251 : vector<32x64xf32>
    %253 = arith.truncf %249 : vector<32x64xf32> to vector<32x64xbf16>
    %c0_195 = arith.constant 0 : index
    %c0_196 = arith.constant 0 : index
    %254 = vector.load %arg2[%c0_195, %c0_196] : memref<64x64xbf16, #tpu.memory_space<vmem>>, vector<64x64xbf16>
    %cst_197 = arith.constant dense<0.000000e+00> : vector<32x64xf32>
    %255 = tpu.matmul %253, %254, %cst_197 {dimension_numbers = #tpu.dot_dimension_numbers<[1], [0], [0], [1], [0, 0, 1, 1], [], []>} : vector<32x64xbf16>, vector<64x64xbf16>, vector<32x64xf32> -> vector<32x64xf32>
    %256 = arith.addf %239, %255 : vector<32x64xf32>
    %cst_198 = arith.constant 1.000000e+00 : f32
    %257 = vector.broadcast %cst_198 : f32 to vector<32x64xf32>
    %258 = arith.cmpf oge, %256, %257 : vector<32x64xf32>
    %cst_199 = arith.constant 1.000000e+00 : f32
    %cst_200 = arith.constant 0.000000e+00 : f32
    %259 = vector.broadcast %cst_199 : f32 to vector<32x64xf32>
    %260 = vector.broadcast %cst_200 : f32 to vector<32x64xf32>
    %261 = arith.select %258, %259, %260 : vector<32x64xi1>, vector<32x64xf32>
    %cst_201 = arith.constant -1.000000e+00 : f32
    %262 = vector.broadcast %cst_201 : f32 to vector<32x64xf32>
    %263 = arith.cmpf ole, %256, %262 : vector<32x64xf32>
    %cst_202 = arith.constant -1.000000e+00 : f32
    %cst_203 = arith.constant 0.000000e+00 : f32
    %264 = vector.broadcast %cst_202 : f32 to vector<32x64xf32>
    %265 = vector.broadcast %cst_203 : f32 to vector<32x64xf32>
    %266 = arith.select %263, %264, %265 : vector<32x64xi1>, vector<32x64xf32>
    %267 = arith.addf %261, %266 : vector<32x64xf32>
    %cst_204 = arith.constant 0.000000e+00 : f32
    %268 = vector.broadcast %cst_204 : f32 to vector<32x64xf32>
    %269 = arith.cmpf one, %267, %268 : vector<32x64xf32>
    %cst_205 = arith.constant 0.000000e+00 : f32
    %270 = vector.broadcast %cst_205 : f32 to vector<32x64xf32>
    %271 = arith.select %269, %270, %256 : vector<32x64xi1>, vector<32x64xf32>
    %272 = arith.truncf %267 : vector<32x64xf32> to vector<32x64xbf16>
    %c0_206 = arith.constant 0 : index
    %c1_207 = arith.constant 1 : index
    %c0_208 = arith.constant 0 : index
    %c0_209 = arith.constant 0 : index
    %273 = vector.load %arg8[%c0_206, %c1_207, %c0_208, %c0_209] : memref<2x2x32x64xbf16, #tpu.memory_space<vmem>>, vector<1x1x32x64xbf16>
    %274 = vector.shape_cast %273 : vector<1x1x32x64xbf16> to vector<32x64xbf16>
    %275 = vector.shape_cast %272 : vector<32x64xbf16> to vector<1x1x32x64xbf16>
    tpu.vector_store %arg8[%c0_206, %c1_207, %c0_208, %c0_209], %275 {strides = array<i32>} : memref<2x2x32x64xbf16, #tpu.memory_space<vmem>>, vector<1x1x32x64xbf16>,
    %cst_210 = arith.constant dense<0.000000e+00> : vector<32xf32>
    %276 = vector.multi_reduction <add>, %267, %cst_210 [1] : vector<32x64xf32> to vector<32xf32>
    %277 = vector.shape_cast %276 : vector<32xf32> to vector<32x1xf32>
    %278 = arith.addf %155, %277 : vector<32x1xf32>
    %279 = arith.mulf %267, %267 : vector<32x64xf32>
    %cst_211 = arith.constant dense<0.000000e+00> : vector<32xf32>
    %280 = vector.multi_reduction <add>, %279, %cst_211 [1] : vector<32x64xf32> to vector<32xf32>
    %281 = vector.shape_cast %280 : vector<32xf32> to vector<32x1xf32>
    %282 = arith.addf %159, %281 : vector<32x1xf32>
    %c0_212 = arith.constant 0 : index
    %c0_213 = arith.constant 0 : index
    %283 = vector.load %arg4[%c0_212, %c0_213] : memref<32x32xbf16, #tpu.memory_space<vmem>>, vector<32x32xbf16>
    %cst_214 = arith.constant dense<0.000000e+00> : vector<32x64xf32>
    %284 = tpu.matmul %283, %253, %cst_214 {dimension_numbers = #tpu.dot_dimension_numbers<[1], [0], [0], [1], [0, 0, 1, 1], [], []>} : vector<32x32xbf16>, vector<32x64xbf16>, vector<32x64xf32> -> vector<32x64xf32>
    %c0_215 = arith.constant 0 : index
    %c0_216 = arith.constant 0 : index
    %285 = vector.load %arg5[%c0_215, %c0_216] : memref<32x1xf32, #tpu.memory_space<vmem>>, vector<32x1xf32>
    %286 = vector.broadcast %285 : vector<32x1xf32> to vector<32x64xf32>
    %287 = arith.addf %284, %286 : vector<32x64xf32>
    %288 = arith.truncf %287 : vector<32x64xf32> to vector<32x64xbf16>
    %c0_217 = arith.constant 0 : index
    %c1_218 = arith.constant 1 : index
    %c0_219 = arith.constant 0 : index
    %c0_220 = arith.constant 0 : index
    %289 = vector.load %arg9[%c0_217, %c1_218, %c0_219, %c0_220] : memref<2x2x32x64xbf16, #tpu.memory_space<vmem>>, vector<1x1x32x64xbf16>
    %290 = vector.shape_cast %289 : vector<1x1x32x64xbf16> to vector<32x64xbf16>
    %291 = vector.shape_cast %288 : vector<32x64xbf16> to vector<1x1x32x64xbf16>
    tpu.vector_store %arg9[%c0_217, %c1_218, %c0_219, %c0_220], %291 {strides = array<i32>} : memref<2x2x32x64xbf16, #tpu.memory_space<vmem>>, vector<1x1x32x64xbf16>,
    %cst_221 = arith.constant dense<0.000000e+00> : vector<32xf32>
    %292 = vector.multi_reduction <add>, %287, %cst_221 [1] : vector<32x64xf32> to vector<32xf32>
    %293 = vector.shape_cast %292 : vector<32xf32> to vector<32x1xf32>
    %294 = arith.addf %171, %293 : vector<32x1xf32>
    %295 = arith.mulf %287, %287 : vector<32x64xf32>
    %cst_222 = arith.constant dense<0.000000e+00> : vector<32xf32>
    %296 = vector.multi_reduction <add>, %295, %cst_222 [1] : vector<32x64xf32> to vector<32xf32>
    %297 = vector.shape_cast %296 : vector<32xf32> to vector<32x1xf32>
    %298 = arith.addf %175, %297 : vector<32x1xf32>
    %c0_223 = arith.constant 0 : index
    %c0_224 = arith.constant 0 : index
    %c0_225 = arith.constant 0 : index
    %299 = vector.load %arg3[%c0_223, %c0_224, %c0_225] : memref<9x64x64xbf16, #tpu.memory_space<vmem>>, vector<1x64x64xbf16>
    %300 = vector.shape_cast %299 : vector<1x64x64xbf16> to vector<64x64xbf16>
    %cst_226 = arith.constant dense<0.000000e+00> : vector<32x64xf32>
    %301 = tpu.matmul %253, %300, %cst_226 {dimension_numbers = #tpu.dot_dimension_numbers<[1], [0], [0], [1], [0, 0, 1, 1], [], []>} : vector<32x64xbf16>, vector<64x64xbf16>, vector<32x64xf32> -> vector<32x64xf32>
    %302 = arith.truncf %301 : vector<32x64xf32> to vector<32x64xbf16>
    %c0_227 = arith.constant 0 : index
    %c0_228 = arith.constant 0 : index
    %303 = vector.load %arg12[%c0_227, %c0_228] : memref<288x64xbf16, #tpu.memory_space<vmem>>, vector<32x64xbf16>
    tpu.vector_store %arg12[%c0_227, %c0_228], %302 {strides = array<i32>} : memref<288x64xbf16, #tpu.memory_space<vmem>>, vector<32x64xbf16>,
    %c1_229 = arith.constant 1 : index
    %c0_230 = arith.constant 0 : index
    %c0_231 = arith.constant 0 : index
    %304 = vector.load %arg3[%c1_229, %c0_230, %c0_231] : memref<9x64x64xbf16, #tpu.memory_space<vmem>>, vector<1x64x64xbf16>
    %305 = vector.shape_cast %304 : vector<1x64x64xbf16> to vector<64x64xbf16>
    %cst_232 = arith.constant dense<0.000000e+00> : vector<32x64xf32>
    %306 = tpu.matmul %253, %305, %cst_232 {dimension_numbers = #tpu.dot_dimension_numbers<[1], [0], [0], [1], [0, 0, 1, 1], [], []>} : vector<32x64xbf16>, vector<64x64xbf16>, vector<32x64xf32> -> vector<32x64xf32>
    %307 = arith.truncf %306 : vector<32x64xf32> to vector<32x64xbf16>
    %c32_233 = arith.constant 32 : index
    %c0_234 = arith.constant 0 : index
    %308 = vector.load %arg12[%c32_233, %c0_234] : memref<288x64xbf16, #tpu.memory_space<vmem>>, vector<32x64xbf16>
    tpu.vector_store %arg12[%c32_233, %c0_234], %307 {strides = array<i32>} : memref<288x64xbf16, #tpu.memory_space<vmem>>, vector<32x64xbf16>,
    %c2_235 = arith.constant 2 : index
    %c0_236 = arith.constant 0 : index
    %c0_237 = arith.constant 0 : index
    %309 = vector.load %arg3[%c2_235, %c0_236, %c0_237] : memref<9x64x64xbf16, #tpu.memory_space<vmem>>, vector<1x64x64xbf16>
    %310 = vector.shape_cast %309 : vector<1x64x64xbf16> to vector<64x64xbf16>
    %cst_238 = arith.constant dense<0.000000e+00> : vector<32x64xf32>
    %311 = tpu.matmul %253, %310, %cst_238 {dimension_numbers = #tpu.dot_dimension_numbers<[1], [0], [0], [1], [0, 0, 1, 1], [], []>} : vector<32x64xbf16>, vector<64x64xbf16>, vector<32x64xf32> -> vector<32x64xf32>
    %312 = arith.truncf %311 : vector<32x64xf32> to vector<32x64xbf16>
    %c64_239 = arith.constant 64 : index
    %c0_240 = arith.constant 0 : index
    %313 = vector.load %arg12[%c64_239, %c0_240] : memref<288x64xbf16, #tpu.memory_space<vmem>>, vector<32x64xbf16>
    tpu.vector_store %arg12[%c64_239, %c0_240], %312 {strides = array<i32>} : memref<288x64xbf16, #tpu.memory_space<vmem>>, vector<32x64xbf16>,
    %c3_241 = arith.constant 3 : index
    %c0_242 = arith.constant 0 : index
    %c0_243 = arith.constant 0 : index
    %314 = vector.load %arg3[%c3_241, %c0_242, %c0_243] : memref<9x64x64xbf16, #tpu.memory_space<vmem>>, vector<1x64x64xbf16>
    %315 = vector.shape_cast %314 : vector<1x64x64xbf16> to vector<64x64xbf16>
    %cst_244 = arith.constant dense<0.000000e+00> : vector<32x64xf32>
    %316 = tpu.matmul %253, %315, %cst_244 {dimension_numbers = #tpu.dot_dimension_numbers<[1], [0], [0], [1], [0, 0, 1, 1], [], []>} : vector<32x64xbf16>, vector<64x64xbf16>, vector<32x64xf32> -> vector<32x64xf32>
    %317 = arith.truncf %316 : vector<32x64xf32> to vector<32x64xbf16>
    %c96_245 = arith.constant 96 : index
    %c0_246 = arith.constant 0 : index
    %318 = vector.load %arg12[%c96_245, %c0_246] : memref<288x64xbf16, #tpu.memory_space<vmem>>, vector<32x64xbf16>
    tpu.vector_store %arg12[%c96_245, %c0_246], %317 {strides = array<i32>} : memref<288x64xbf16, #tpu.memory_space<vmem>>, vector<32x64xbf16>,
    %c4_247 = arith.constant 4 : index
    %c0_248 = arith.constant 0 : index
    %c0_249 = arith.constant 0 : index
    %319 = vector.load %arg3[%c4_247, %c0_248, %c0_249] : memref<9x64x64xbf16, #tpu.memory_space<vmem>>, vector<1x64x64xbf16>
    %320 = vector.shape_cast %319 : vector<1x64x64xbf16> to vector<64x64xbf16>
    %cst_250 = arith.constant dense<0.000000e+00> : vector<32x64xf32>
    %321 = tpu.matmul %253, %320, %cst_250 {dimension_numbers = #tpu.dot_dimension_numbers<[1], [0], [0], [1], [0, 0, 1, 1], [], []>} : vector<32x64xbf16>, vector<64x64xbf16>, vector<32x64xf32> -> vector<32x64xf32>
    %322 = arith.truncf %321 : vector<32x64xf32> to vector<32x64xbf16>
    %c128_251 = arith.constant 128 : index
    %c0_252 = arith.constant 0 : index
    %323 = vector.load %arg12[%c128_251, %c0_252] : memref<288x64xbf16, #tpu.memory_space<vmem>>, vector<32x64xbf16>
    tpu.vector_store %arg12[%c128_251, %c0_252], %322 {strides = array<i32>} : memref<288x64xbf16, #tpu.memory_space<vmem>>, vector<32x64xbf16>,
    %c5_253 = arith.constant 5 : index
    %c0_254 = arith.constant 0 : index
    %c0_255 = arith.constant 0 : index
    %324 = vector.load %arg3[%c5_253, %c0_254, %c0_255] : memref<9x64x64xbf16, #tpu.memory_space<vmem>>, vector<1x64x64xbf16>
    %325 = vector.shape_cast %324 : vector<1x64x64xbf16> to vector<64x64xbf16>
    %cst_256 = arith.constant dense<0.000000e+00> : vector<32x64xf32>
    %326 = tpu.matmul %253, %325, %cst_256 {dimension_numbers = #tpu.dot_dimension_numbers<[1], [0], [0], [1], [0, 0, 1, 1], [], []>} : vector<32x64xbf16>, vector<64x64xbf16>, vector<32x64xf32> -> vector<32x64xf32>
    %327 = arith.truncf %326 : vector<32x64xf32> to vector<32x64xbf16>
    %c160_257 = arith.constant 160 : index
    %c0_258 = arith.constant 0 : index
    %328 = vector.load %arg12[%c160_257, %c0_258] : memref<288x64xbf16, #tpu.memory_space<vmem>>, vector<32x64xbf16>
    tpu.vector_store %arg12[%c160_257, %c0_258], %327 {strides = array<i32>} : memref<288x64xbf16, #tpu.memory_space<vmem>>, vector<32x64xbf16>,
    %c6_259 = arith.constant 6 : index
    %c0_260 = arith.constant 0 : index
    %c0_261 = arith.constant 0 : index
    %329 = vector.load %arg3[%c6_259, %c0_260, %c0_261] : memref<9x64x64xbf16, #tpu.memory_space<vmem>>, vector<1x64x64xbf16>
    %330 = vector.shape_cast %329 : vector<1x64x64xbf16> to vector<64x64xbf16>
    %cst_262 = arith.constant dense<0.000000e+00> : vector<32x64xf32>
    %331 = tpu.matmul %253, %330, %cst_262 {dimension_numbers = #tpu.dot_dimension_numbers<[1], [0], [0], [1], [0, 0, 1, 1], [], []>} : vector<32x64xbf16>, vector<64x64xbf16>, vector<32x64xf32> -> vector<32x64xf32>
    %332 = arith.truncf %331 : vector<32x64xf32> to vector<32x64xbf16>
    %c192_263 = arith.constant 192 : index
    %c0_264 = arith.constant 0 : index
    %333 = vector.load %arg12[%c192_263, %c0_264] : memref<288x64xbf16, #tpu.memory_space<vmem>>, vector<32x64xbf16>
    tpu.vector_store %arg12[%c192_263, %c0_264], %332 {strides = array<i32>} : memref<288x64xbf16, #tpu.memory_space<vmem>>, vector<32x64xbf16>,
    %c7_265 = arith.constant 7 : index
    %c0_266 = arith.constant 0 : index
    %c0_267 = arith.constant 0 : index
    %334 = vector.load %arg3[%c7_265, %c0_266, %c0_267] : memref<9x64x64xbf16, #tpu.memory_space<vmem>>, vector<1x64x64xbf16>
    %335 = vector.shape_cast %334 : vector<1x64x64xbf16> to vector<64x64xbf16>
    %cst_268 = arith.constant dense<0.000000e+00> : vector<32x64xf32>
    %336 = tpu.matmul %253, %335, %cst_268 {dimension_numbers = #tpu.dot_dimension_numbers<[1], [0], [0], [1], [0, 0, 1, 1], [], []>} : vector<32x64xbf16>, vector<64x64xbf16>, vector<32x64xf32> -> vector<32x64xf32>
    %337 = arith.truncf %336 : vector<32x64xf32> to vector<32x64xbf16>
    %c224_269 = arith.constant 224 : index
    %c0_270 = arith.constant 0 : index
    %338 = vector.load %arg12[%c224_269, %c0_270] : memref<288x64xbf16, #tpu.memory_space<vmem>>, vector<32x64xbf16>
    tpu.vector_store %arg12[%c224_269, %c0_270], %337 {strides = array<i32>} : memref<288x64xbf16, #tpu.memory_space<vmem>>, vector<32x64xbf16>,
    %c8_271 = arith.constant 8 : index
    %c0_272 = arith.constant 0 : index
    %c0_273 = arith.constant 0 : index
    %339 = vector.load %arg3[%c8_271, %c0_272, %c0_273] : memref<9x64x64xbf16, #tpu.memory_space<vmem>>, vector<1x64x64xbf16>
    %340 = vector.shape_cast %339 : vector<1x64x64xbf16> to vector<64x64xbf16>
    %cst_274 = arith.constant dense<0.000000e+00> : vector<32x64xf32>
    %341 = tpu.matmul %253, %340, %cst_274 {dimension_numbers = #tpu.dot_dimension_numbers<[1], [0], [0], [1], [0, 0, 1, 1], [], []>} : vector<32x64xbf16>, vector<64x64xbf16>, vector<32x64xf32> -> vector<32x64xf32>
    %342 = arith.truncf %341 : vector<32x64xf32> to vector<32x64xbf16>
    %c256_275 = arith.constant 256 : index
    %c0_276 = arith.constant 0 : index
    %343 = vector.load %arg12[%c256_275, %c0_276] : memref<288x64xbf16, #tpu.memory_space<vmem>>, vector<32x64xbf16>
    tpu.vector_store %arg12[%c256_275, %c0_276], %342 {strides = array<i32>} : memref<288x64xbf16, #tpu.memory_space<vmem>>, vector<32x64xbf16>,
    %c0_277 = arith.constant 0 : index
    %c0_278 = arith.constant 0 : index
    %344 = vector.load %arg6[%c0_277, %c0_278] : memref<32x288xbf16, #tpu.memory_space<vmem>>, vector<32x288xbf16>
    %c0_279 = arith.constant 0 : index
    %c0_280 = arith.constant 0 : index
    %345 = vector.load %arg12[%c0_279, %c0_280] : memref<288x64xbf16, #tpu.memory_space<vmem>>, vector<288x64xbf16>
    %cst_281 = arith.constant dense<0.000000e+00> : vector<32x64xf32>
    %346 = tpu.matmul %344, %345, %cst_281 {dimension_numbers = #tpu.dot_dimension_numbers<[1], [0], [0], [1], [0, 0, 1, 1], [], []>} : vector<32x288xbf16>, vector<288x64xbf16>, vector<32x64xf32> -> vector<32x64xf32>
    %c0_282 = arith.constant 0 : index
    %c0_283 = arith.constant 0 : index
    %347 = vector.load %arg7[%c0_282, %c0_283] : memref<32x1xf32, #tpu.memory_space<vmem>>, vector<32x1xf32>
    %348 = vector.broadcast %347 : vector<32x1xf32> to vector<32x64xf32>
    %349 = arith.addf %346, %348 : vector<32x64xf32>
    %350 = arith.truncf %349 : vector<32x64xf32> to vector<32x64xbf16>
    %c0_284 = arith.constant 0 : index
    %c1_285 = arith.constant 1 : index
    %c0_286 = arith.constant 0 : index
    %c0_287 = arith.constant 0 : index
    %351 = vector.load %arg10[%c0_284, %c1_285, %c0_286, %c0_287] : memref<2x2x32x64xbf16, #tpu.memory_space<vmem>>, vector<1x1x32x64xbf16>
    %352 = vector.shape_cast %351 : vector<1x1x32x64xbf16> to vector<32x64xbf16>
    %353 = vector.shape_cast %350 : vector<32x64xbf16> to vector<1x1x32x64xbf16>
    tpu.vector_store %arg10[%c0_284, %c1_285, %c0_286, %c0_287], %353 {strides = array<i32>} : memref<2x2x32x64xbf16, #tpu.memory_space<vmem>>, vector<1x1x32x64xbf16>,
    %cst_288 = arith.constant dense<0.000000e+00> : vector<32xf32>
    %354 = vector.multi_reduction <add>, %349, %cst_288 [1] : vector<32x64xf32> to vector<32xf32>
    %355 = vector.shape_cast %354 : vector<32xf32> to vector<32x1xf32>
    %356 = arith.addf %233, %355 : vector<32x1xf32>
    %357 = arith.mulf %349, %349 : vector<32x64xf32>
    %cst_289 = arith.constant dense<0.000000e+00> : vector<32xf32>
    %358 = vector.multi_reduction <add>, %357, %cst_289 [1] : vector<32x64xf32> to vector<32xf32>
    %359 = vector.shape_cast %358 : vector<32xf32> to vector<32x1xf32>
    %360 = arith.addf %237, %359 : vector<32x1xf32>
    %c1_290 = arith.constant 1 : index
    %c1_291 = arith.constant 1 : index
    %c0_292 = arith.constant 0 : index
    %c0_293 = arith.constant 0 : index
    %361 = vector.load %arg1[%c1_290, %c1_291, %c0_292, %c0_293] : memref<2x2x32x64xf32, #tpu.memory_space<vmem>>, vector<1x1x32x64xf32>
    %362 = vector.shape_cast %361 : vector<1x1x32x64xf32> to vector<32x64xf32>
    %363 = arith.subf %362, %252 : vector<32x64xf32>
    %cst_294 = arith.constant 5.000000e-01 : f32
    %364 = vector.broadcast %cst_294 : f32 to vector<32x64xf32>
    %365 = arith.mulf %363, %364 : vector<32x64xf32>
    %366 = arith.addf %252, %365 : vector<32x64xf32>
    %cst_295 = arith.constant 1.000000e+00 : f32
    %367 = vector.broadcast %cst_295 : f32 to vector<32x64xf32>
    %368 = arith.cmpf oge, %366, %367 : vector<32x64xf32>
    %369 = arith.extui %368 : vector<32x64xi1> to vector<32x64xi32>
    %370 = arith.sitofp %369 : vector<32x64xi32> to vector<32x64xf32>
    %371 = arith.truncf %370 : vector<32x64xf32> to vector<32x64xbf16>
    %c0_296 = arith.constant 0 : index
    %c0_297 = arith.constant 0 : index
    %372 = vector.load %arg2[%c0_296, %c0_297] : memref<64x64xbf16, #tpu.memory_space<vmem>>, vector<64x64xbf16>
    %cst_298 = arith.constant dense<0.000000e+00> : vector<32x64xf32>
    %373 = tpu.matmul %371, %372, %cst_298 {dimension_numbers = #tpu.dot_dimension_numbers<[1], [0], [0], [1], [0, 0, 1, 1], [], []>} : vector<32x64xbf16>, vector<64x64xbf16>, vector<32x64xf32> -> vector<32x64xf32>
    %374 = arith.addf %271, %373 : vector<32x64xf32>
    %cst_299 = arith.constant 1.000000e+00 : f32
    %375 = vector.broadcast %cst_299 : f32 to vector<32x64xf32>
    %376 = arith.cmpf oge, %374, %375 : vector<32x64xf32>
    %cst_300 = arith.constant 1.000000e+00 : f32
    %cst_301 = arith.constant 0.000000e+00 : f32
    %377 = vector.broadcast %cst_300 : f32 to vector<32x64xf32>
    %378 = vector.broadcast %cst_301 : f32 to vector<32x64xf32>
    %379 = arith.select %376, %377, %378 : vector<32x64xi1>, vector<32x64xf32>
    %cst_302 = arith.constant -1.000000e+00 : f32
    %380 = vector.broadcast %cst_302 : f32 to vector<32x64xf32>
    %381 = arith.cmpf ole, %374, %380 : vector<32x64xf32>
    %cst_303 = arith.constant -1.000000e+00 : f32
    %cst_304 = arith.constant 0.000000e+00 : f32
    %382 = vector.broadcast %cst_303 : f32 to vector<32x64xf32>
    %383 = vector.broadcast %cst_304 : f32 to vector<32x64xf32>
    %384 = arith.select %381, %382, %383 : vector<32x64xi1>, vector<32x64xf32>
    %385 = arith.addf %379, %384 : vector<32x64xf32>
    %386 = arith.truncf %385 : vector<32x64xf32> to vector<32x64xbf16>
    %c1_305 = arith.constant 1 : index
    %c1_306 = arith.constant 1 : index
    %c0_307 = arith.constant 0 : index
    %c0_308 = arith.constant 0 : index
    %387 = vector.load %arg8[%c1_305, %c1_306, %c0_307, %c0_308] : memref<2x2x32x64xbf16, #tpu.memory_space<vmem>>, vector<1x1x32x64xbf16>
    %388 = vector.shape_cast %387 : vector<1x1x32x64xbf16> to vector<32x64xbf16>
    %389 = vector.shape_cast %386 : vector<32x64xbf16> to vector<1x1x32x64xbf16>
    tpu.vector_store %arg8[%c1_305, %c1_306, %c0_307, %c0_308], %389 {strides = array<i32>} : memref<2x2x32x64xbf16, #tpu.memory_space<vmem>>, vector<1x1x32x64xbf16>,
    %cst_309 = arith.constant dense<0.000000e+00> : vector<32xf32>
    %390 = vector.multi_reduction <add>, %385, %cst_309 [1] : vector<32x64xf32> to vector<32xf32>
    %391 = vector.shape_cast %390 : vector<32xf32> to vector<32x1xf32>
    %392 = arith.addf %278, %391 : vector<32x1xf32>
    %393 = arith.mulf %385, %385 : vector<32x64xf32>
    %cst_310 = arith.constant dense<0.000000e+00> : vector<32xf32>
    %394 = vector.multi_reduction <add>, %393, %cst_310 [1] : vector<32x64xf32> to vector<32xf32>
    %395 = vector.shape_cast %394 : vector<32xf32> to vector<32x1xf32>
    %396 = arith.addf %282, %395 : vector<32x1xf32>
    %c0_311 = arith.constant 0 : index
    %c0_312 = arith.constant 0 : index
    %397 = vector.load %arg4[%c0_311, %c0_312] : memref<32x32xbf16, #tpu.memory_space<vmem>>, vector<32x32xbf16>
    %cst_313 = arith.constant dense<0.000000e+00> : vector<32x64xf32>
    %398 = tpu.matmul %397, %371, %cst_313 {dimension_numbers = #tpu.dot_dimension_numbers<[1], [0], [0], [1], [0, 0, 1, 1], [], []>} : vector<32x32xbf16>, vector<32x64xbf16>, vector<32x64xf32> -> vector<32x64xf32>
    %c0_314 = arith.constant 0 : index
    %c0_315 = arith.constant 0 : index
    %399 = vector.load %arg5[%c0_314, %c0_315] : memref<32x1xf32, #tpu.memory_space<vmem>>, vector<32x1xf32>
    %400 = vector.broadcast %399 : vector<32x1xf32> to vector<32x64xf32>
    %401 = arith.addf %398, %400 : vector<32x64xf32>
    %402 = arith.truncf %401 : vector<32x64xf32> to vector<32x64xbf16>
    %c1_316 = arith.constant 1 : index
    %c1_317 = arith.constant 1 : index
    %c0_318 = arith.constant 0 : index
    %c0_319 = arith.constant 0 : index
    %403 = vector.load %arg9[%c1_316, %c1_317, %c0_318, %c0_319] : memref<2x2x32x64xbf16, #tpu.memory_space<vmem>>, vector<1x1x32x64xbf16>
    %404 = vector.shape_cast %403 : vector<1x1x32x64xbf16> to vector<32x64xbf16>
    %405 = vector.shape_cast %402 : vector<32x64xbf16> to vector<1x1x32x64xbf16>
    tpu.vector_store %arg9[%c1_316, %c1_317, %c0_318, %c0_319], %405 {strides = array<i32>} : memref<2x2x32x64xbf16, #tpu.memory_space<vmem>>, vector<1x1x32x64xbf16>,
    %cst_320 = arith.constant dense<0.000000e+00> : vector<32xf32>
    %406 = vector.multi_reduction <add>, %401, %cst_320 [1] : vector<32x64xf32> to vector<32xf32>
    %407 = vector.shape_cast %406 : vector<32xf32> to vector<32x1xf32>
    %408 = arith.addf %294, %407 : vector<32x1xf32>
    %409 = arith.mulf %401, %401 : vector<32x64xf32>
    %cst_321 = arith.constant dense<0.000000e+00> : vector<32xf32>
    %410 = vector.multi_reduction <add>, %409, %cst_321 [1] : vector<32x64xf32> to vector<32xf32>
    %411 = vector.shape_cast %410 : vector<32xf32> to vector<32x1xf32>
    %412 = arith.addf %298, %411 : vector<32x1xf32>
    %c0_322 = arith.constant 0 : index
    %c0_323 = arith.constant 0 : index
    %c0_324 = arith.constant 0 : index
    %413 = vector.load %arg3[%c0_322, %c0_323, %c0_324] : memref<9x64x64xbf16, #tpu.memory_space<vmem>>, vector<1x64x64xbf16>
    %414 = vector.shape_cast %413 : vector<1x64x64xbf16> to vector<64x64xbf16>
    %cst_325 = arith.constant dense<0.000000e+00> : vector<32x64xf32>
    %415 = tpu.matmul %371, %414, %cst_325 {dimension_numbers = #tpu.dot_dimension_numbers<[1], [0], [0], [1], [0, 0, 1, 1], [], []>} : vector<32x64xbf16>, vector<64x64xbf16>, vector<32x64xf32> -> vector<32x64xf32>
    %416 = arith.truncf %415 : vector<32x64xf32> to vector<32x64xbf16>
    %c0_326 = arith.constant 0 : index
    %c0_327 = arith.constant 0 : index
    %417 = vector.load %arg12[%c0_326, %c0_327] : memref<288x64xbf16, #tpu.memory_space<vmem>>, vector<32x64xbf16>
    tpu.vector_store %arg12[%c0_326, %c0_327], %416 {strides = array<i32>} : memref<288x64xbf16, #tpu.memory_space<vmem>>, vector<32x64xbf16>,
    %c1_328 = arith.constant 1 : index
    %c0_329 = arith.constant 0 : index
    %c0_330 = arith.constant 0 : index
    %418 = vector.load %arg3[%c1_328, %c0_329, %c0_330] : memref<9x64x64xbf16, #tpu.memory_space<vmem>>, vector<1x64x64xbf16>
    %419 = vector.shape_cast %418 : vector<1x64x64xbf16> to vector<64x64xbf16>
    %cst_331 = arith.constant dense<0.000000e+00> : vector<32x64xf32>
    %420 = tpu.matmul %371, %419, %cst_331 {dimension_numbers = #tpu.dot_dimension_numbers<[1], [0], [0], [1], [0, 0, 1, 1], [], []>} : vector<32x64xbf16>, vector<64x64xbf16>, vector<32x64xf32> -> vector<32x64xf32>
    %421 = arith.truncf %420 : vector<32x64xf32> to vector<32x64xbf16>
    %c32_332 = arith.constant 32 : index
    %c0_333 = arith.constant 0 : index
    %422 = vector.load %arg12[%c32_332, %c0_333] : memref<288x64xbf16, #tpu.memory_space<vmem>>, vector<32x64xbf16>
    tpu.vector_store %arg12[%c32_332, %c0_333], %421 {strides = array<i32>} : memref<288x64xbf16, #tpu.memory_space<vmem>>, vector<32x64xbf16>,
    %c2_334 = arith.constant 2 : index
    %c0_335 = arith.constant 0 : index
    %c0_336 = arith.constant 0 : index
    %423 = vector.load %arg3[%c2_334, %c0_335, %c0_336] : memref<9x64x64xbf16, #tpu.memory_space<vmem>>, vector<1x64x64xbf16>
    %424 = vector.shape_cast %423 : vector<1x64x64xbf16> to vector<64x64xbf16>
    %cst_337 = arith.constant dense<0.000000e+00> : vector<32x64xf32>
    %425 = tpu.matmul %371, %424, %cst_337 {dimension_numbers = #tpu.dot_dimension_numbers<[1], [0], [0], [1], [0, 0, 1, 1], [], []>} : vector<32x64xbf16>, vector<64x64xbf16>, vector<32x64xf32> -> vector<32x64xf32>
    %426 = arith.truncf %425 : vector<32x64xf32> to vector<32x64xbf16>
    %c64_338 = arith.constant 64 : index
    %c0_339 = arith.constant 0 : index
    %427 = vector.load %arg12[%c64_338, %c0_339] : memref<288x64xbf16, #tpu.memory_space<vmem>>, vector<32x64xbf16>
    tpu.vector_store %arg12[%c64_338, %c0_339], %426 {strides = array<i32>} : memref<288x64xbf16, #tpu.memory_space<vmem>>, vector<32x64xbf16>,
    %c3_340 = arith.constant 3 : index
    %c0_341 = arith.constant 0 : index
    %c0_342 = arith.constant 0 : index
    %428 = vector.load %arg3[%c3_340, %c0_341, %c0_342] : memref<9x64x64xbf16, #tpu.memory_space<vmem>>, vector<1x64x64xbf16>
    %429 = vector.shape_cast %428 : vector<1x64x64xbf16> to vector<64x64xbf16>
    %cst_343 = arith.constant dense<0.000000e+00> : vector<32x64xf32>
    %430 = tpu.matmul %371, %429, %cst_343 {dimension_numbers = #tpu.dot_dimension_numbers<[1], [0], [0], [1], [0, 0, 1, 1], [], []>} : vector<32x64xbf16>, vector<64x64xbf16>, vector<32x64xf32> -> vector<32x64xf32>
    %431 = arith.truncf %430 : vector<32x64xf32> to vector<32x64xbf16>
    %c96_344 = arith.constant 96 : index
    %c0_345 = arith.constant 0 : index
    %432 = vector.load %arg12[%c96_344, %c0_345] : memref<288x64xbf16, #tpu.memory_space<vmem>>, vector<32x64xbf16>
    tpu.vector_store %arg12[%c96_344, %c0_345], %431 {strides = array<i32>} : memref<288x64xbf16, #tpu.memory_space<vmem>>, vector<32x64xbf16>,
    %c4_346 = arith.constant 4 : index
    %c0_347 = arith.constant 0 : index
    %c0_348 = arith.constant 0 : index
    %433 = vector.load %arg3[%c4_346, %c0_347, %c0_348] : memref<9x64x64xbf16, #tpu.memory_space<vmem>>, vector<1x64x64xbf16>
    %434 = vector.shape_cast %433 : vector<1x64x64xbf16> to vector<64x64xbf16>
    %cst_349 = arith.constant dense<0.000000e+00> : vector<32x64xf32>
    %435 = tpu.matmul %371, %434, %cst_349 {dimension_numbers = #tpu.dot_dimension_numbers<[1], [0], [0], [1], [0, 0, 1, 1], [], []>} : vector<32x64xbf16>, vector<64x64xbf16>, vector<32x64xf32> -> vector<32x64xf32>
    %436 = arith.truncf %435 : vector<32x64xf32> to vector<32x64xbf16>
    %c128_350 = arith.constant 128 : index
    %c0_351 = arith.constant 0 : index
    %437 = vector.load %arg12[%c128_350, %c0_351] : memref<288x64xbf16, #tpu.memory_space<vmem>>, vector<32x64xbf16>
    tpu.vector_store %arg12[%c128_350, %c0_351], %436 {strides = array<i32>} : memref<288x64xbf16, #tpu.memory_space<vmem>>, vector<32x64xbf16>,
    %c5_352 = arith.constant 5 : index
    %c0_353 = arith.constant 0 : index
    %c0_354 = arith.constant 0 : index
    %438 = vector.load %arg3[%c5_352, %c0_353, %c0_354] : memref<9x64x64xbf16, #tpu.memory_space<vmem>>, vector<1x64x64xbf16>
    %439 = vector.shape_cast %438 : vector<1x64x64xbf16> to vector<64x64xbf16>
    %cst_355 = arith.constant dense<0.000000e+00> : vector<32x64xf32>
    %440 = tpu.matmul %371, %439, %cst_355 {dimension_numbers = #tpu.dot_dimension_numbers<[1], [0], [0], [1], [0, 0, 1, 1], [], []>} : vector<32x64xbf16>, vector<64x64xbf16>, vector<32x64xf32> -> vector<32x64xf32>
    %441 = arith.truncf %440 : vector<32x64xf32> to vector<32x64xbf16>
    %c160_356 = arith.constant 160 : index
    %c0_357 = arith.constant 0 : index
    %442 = vector.load %arg12[%c160_356, %c0_357] : memref<288x64xbf16, #tpu.memory_space<vmem>>, vector<32x64xbf16>
    tpu.vector_store %arg12[%c160_356, %c0_357], %441 {strides = array<i32>} : memref<288x64xbf16, #tpu.memory_space<vmem>>, vector<32x64xbf16>,
    %c6_358 = arith.constant 6 : index
    %c0_359 = arith.constant 0 : index
    %c0_360 = arith.constant 0 : index
    %443 = vector.load %arg3[%c6_358, %c0_359, %c0_360] : memref<9x64x64xbf16, #tpu.memory_space<vmem>>, vector<1x64x64xbf16>
    %444 = vector.shape_cast %443 : vector<1x64x64xbf16> to vector<64x64xbf16>
    %cst_361 = arith.constant dense<0.000000e+00> : vector<32x64xf32>
    %445 = tpu.matmul %371, %444, %cst_361 {dimension_numbers = #tpu.dot_dimension_numbers<[1], [0], [0], [1], [0, 0, 1, 1], [], []>} : vector<32x64xbf16>, vector<64x64xbf16>, vector<32x64xf32> -> vector<32x64xf32>
    %446 = arith.truncf %445 : vector<32x64xf32> to vector<32x64xbf16>
    %c192_362 = arith.constant 192 : index
    %c0_363 = arith.constant 0 : index
    %447 = vector.load %arg12[%c192_362, %c0_363] : memref<288x64xbf16, #tpu.memory_space<vmem>>, vector<32x64xbf16>
    tpu.vector_store %arg12[%c192_362, %c0_363], %446 {strides = array<i32>} : memref<288x64xbf16, #tpu.memory_space<vmem>>, vector<32x64xbf16>,
    %c7_364 = arith.constant 7 : index
    %c0_365 = arith.constant 0 : index
    %c0_366 = arith.constant 0 : index
    %448 = vector.load %arg3[%c7_364, %c0_365, %c0_366] : memref<9x64x64xbf16, #tpu.memory_space<vmem>>, vector<1x64x64xbf16>
    %449 = vector.shape_cast %448 : vector<1x64x64xbf16> to vector<64x64xbf16>
    %cst_367 = arith.constant dense<0.000000e+00> : vector<32x64xf32>
    %450 = tpu.matmul %371, %449, %cst_367 {dimension_numbers = #tpu.dot_dimension_numbers<[1], [0], [0], [1], [0, 0, 1, 1], [], []>} : vector<32x64xbf16>, vector<64x64xbf16>, vector<32x64xf32> -> vector<32x64xf32>
    %451 = arith.truncf %450 : vector<32x64xf32> to vector<32x64xbf16>
    %c224_368 = arith.constant 224 : index
    %c0_369 = arith.constant 0 : index
    %452 = vector.load %arg12[%c224_368, %c0_369] : memref<288x64xbf16, #tpu.memory_space<vmem>>, vector<32x64xbf16>
    tpu.vector_store %arg12[%c224_368, %c0_369], %451 {strides = array<i32>} : memref<288x64xbf16, #tpu.memory_space<vmem>>, vector<32x64xbf16>,
    %c8_370 = arith.constant 8 : index
    %c0_371 = arith.constant 0 : index
    %c0_372 = arith.constant 0 : index
    %453 = vector.load %arg3[%c8_370, %c0_371, %c0_372] : memref<9x64x64xbf16, #tpu.memory_space<vmem>>, vector<1x64x64xbf16>
    %454 = vector.shape_cast %453 : vector<1x64x64xbf16> to vector<64x64xbf16>
    %cst_373 = arith.constant dense<0.000000e+00> : vector<32x64xf32>
    %455 = tpu.matmul %371, %454, %cst_373 {dimension_numbers = #tpu.dot_dimension_numbers<[1], [0], [0], [1], [0, 0, 1, 1], [], []>} : vector<32x64xbf16>, vector<64x64xbf16>, vector<32x64xf32> -> vector<32x64xf32>
    %456 = arith.truncf %455 : vector<32x64xf32> to vector<32x64xbf16>
    %c256_374 = arith.constant 256 : index
    %c0_375 = arith.constant 0 : index
    %457 = vector.load %arg12[%c256_374, %c0_375] : memref<288x64xbf16, #tpu.memory_space<vmem>>, vector<32x64xbf16>
    tpu.vector_store %arg12[%c256_374, %c0_375], %456 {strides = array<i32>} : memref<288x64xbf16, #tpu.memory_space<vmem>>, vector<32x64xbf16>,
    %c0_376 = arith.constant 0 : index
    %c0_377 = arith.constant 0 : index
    %458 = vector.load %arg6[%c0_376, %c0_377] : memref<32x288xbf16, #tpu.memory_space<vmem>>, vector<32x288xbf16>
    %c0_378 = arith.constant 0 : index
    %c0_379 = arith.constant 0 : index
    %459 = vector.load %arg12[%c0_378, %c0_379] : memref<288x64xbf16, #tpu.memory_space<vmem>>, vector<288x64xbf16>
    %cst_380 = arith.constant dense<0.000000e+00> : vector<32x64xf32>
    %460 = tpu.matmul %458, %459, %cst_380 {dimension_numbers = #tpu.dot_dimension_numbers<[1], [0], [0], [1], [0, 0, 1, 1], [], []>} : vector<32x288xbf16>, vector<288x64xbf16>, vector<32x64xf32> -> vector<32x64xf32>
    %c0_381 = arith.constant 0 : index
    %c0_382 = arith.constant 0 : index
    %461 = vector.load %arg7[%c0_381, %c0_382] : memref<32x1xf32, #tpu.memory_space<vmem>>, vector<32x1xf32>
    %462 = vector.broadcast %461 : vector<32x1xf32> to vector<32x64xf32>
    %463 = arith.addf %460, %462 : vector<32x64xf32>
    %464 = arith.truncf %463 : vector<32x64xf32> to vector<32x64xbf16>
    %c1_383 = arith.constant 1 : index
    %c1_384 = arith.constant 1 : index
    %c0_385 = arith.constant 0 : index
    %c0_386 = arith.constant 0 : index
    %465 = vector.load %arg10[%c1_383, %c1_384, %c0_385, %c0_386] : memref<2x2x32x64xbf16, #tpu.memory_space<vmem>>, vector<1x1x32x64xbf16>
    %466 = vector.shape_cast %465 : vector<1x1x32x64xbf16> to vector<32x64xbf16>
    %467 = vector.shape_cast %464 : vector<32x64xbf16> to vector<1x1x32x64xbf16>
    tpu.vector_store %arg10[%c1_383, %c1_384, %c0_385, %c0_386], %467 {strides = array<i32>} : memref<2x2x32x64xbf16, #tpu.memory_space<vmem>>, vector<1x1x32x64xbf16>,
    %cst_387 = arith.constant dense<0.000000e+00> : vector<32xf32>
    %468 = vector.multi_reduction <add>, %463, %cst_387 [1] : vector<32x64xf32> to vector<32xf32>
    %469 = vector.shape_cast %468 : vector<32xf32> to vector<32x1xf32>
    %470 = arith.addf %356, %469 : vector<32x1xf32>
    %471 = arith.mulf %463, %463 : vector<32x64xf32>
    %cst_388 = arith.constant dense<0.000000e+00> : vector<32xf32>
    %472 = vector.multi_reduction <add>, %471, %cst_388 [1] : vector<32x64xf32> to vector<32xf32>
    %473 = vector.shape_cast %472 : vector<32xf32> to vector<32x1xf32>
    %474 = arith.addf %360, %473 : vector<32x1xf32>
    %c0_389 = arith.constant 0 : index
    %c0_390 = arith.constant 0 : index
    %c0_391 = arith.constant 0 : index
    %c0_392 = arith.constant 0 : index
    %475 = vector.load %arg11[%c0_389, %c0_390, %c0_391, %c0_392] : memref<1x6x32x1xf32, #tpu.memory_space<vmem>>, vector<1x1x32x1xf32>
    %476 = vector.shape_cast %475 : vector<1x1x32x1xf32> to vector<32x1xf32>
    %477 = vector.shape_cast %392 : vector<32x1xf32> to vector<1x1x32x1xf32>
    tpu.vector_store %arg11[%c0_389, %c0_390, %c0_391, %c0_392], %477 {strides = array<i32>} : memref<1x6x32x1xf32, #tpu.memory_space<vmem>>, vector<1x1x32x1xf32>,
    %c0_393 = arith.constant 0 : index
    %c1_394 = arith.constant 1 : index
    %c0_395 = arith.constant 0 : index
    %c0_396 = arith.constant 0 : index
    %478 = vector.load %arg11[%c0_393, %c1_394, %c0_395, %c0_396] : memref<1x6x32x1xf32, #tpu.memory_space<vmem>>, vector<1x1x32x1xf32>
    %479 = vector.shape_cast %478 : vector<1x1x32x1xf32> to vector<32x1xf32>
    %480 = vector.shape_cast %396 : vector<32x1xf32> to vector<1x1x32x1xf32>
    tpu.vector_store %arg11[%c0_393, %c1_394, %c0_395, %c0_396], %480 {strides = array<i32>} : memref<1x6x32x1xf32, #tpu.memory_space<vmem>>, vector<1x1x32x1xf32>,
    %c0_397 = arith.constant 0 : index
    %c2_398 = arith.constant 2 : index
    %c0_399 = arith.constant 0 : index
    %c0_400 = arith.constant 0 : index
    %481 = vector.load %arg11[%c0_397, %c2_398, %c0_399, %c0_400] : memref<1x6x32x1xf32, #tpu.memory_space<vmem>>, vector<1x1x32x1xf32>
    %482 = vector.shape_cast %481 : vector<1x1x32x1xf32> to vector<32x1xf32>
    %483 = vector.shape_cast %408 : vector<32x1xf32> to vector<1x1x32x1xf32>
    tpu.vector_store %arg11[%c0_397, %c2_398, %c0_399, %c0_400], %483 {strides = array<i32>} : memref<1x6x32x1xf32, #tpu.memory_space<vmem>>, vector<1x1x32x1xf32>,
    %c0_401 = arith.constant 0 : index
    %c3_402 = arith.constant 3 : index
    %c0_403 = arith.constant 0 : index
    %c0_404 = arith.constant 0 : index
    %484 = vector.load %arg11[%c0_401, %c3_402, %c0_403, %c0_404] : memref<1x6x32x1xf32, #tpu.memory_space<vmem>>, vector<1x1x32x1xf32>
    %485 = vector.shape_cast %484 : vector<1x1x32x1xf32> to vector<32x1xf32>
    %486 = vector.shape_cast %412 : vector<32x1xf32> to vector<1x1x32x1xf32>
    tpu.vector_store %arg11[%c0_401, %c3_402, %c0_403, %c0_404], %486 {strides = array<i32>} : memref<1x6x32x1xf32, #tpu.memory_space<vmem>>, vector<1x1x32x1xf32>,
    %c0_405 = arith.constant 0 : index
    %c4_406 = arith.constant 4 : index
    %c0_407 = arith.constant 0 : index
    %c0_408 = arith.constant 0 : index
    %487 = vector.load %arg11[%c0_405, %c4_406, %c0_407, %c0_408] : memref<1x6x32x1xf32, #tpu.memory_space<vmem>>, vector<1x1x32x1xf32>
    %488 = vector.shape_cast %487 : vector<1x1x32x1xf32> to vector<32x1xf32>
    %489 = vector.shape_cast %470 : vector<32x1xf32> to vector<1x1x32x1xf32>
    tpu.vector_store %arg11[%c0_405, %c4_406, %c0_407, %c0_408], %489 {strides = array<i32>} : memref<1x6x32x1xf32, #tpu.memory_space<vmem>>, vector<1x1x32x1xf32>,
    %c0_409 = arith.constant 0 : index
    %c5_410 = arith.constant 5 : index
    %c0_411 = arith.constant 0 : index
    %c0_412 = arith.constant 0 : index
    %490 = vector.load %arg11[%c0_409, %c5_410, %c0_411, %c0_412] : memref<1x6x32x1xf32, #tpu.memory_space<vmem>>, vector<1x1x32x1xf32>
    %491 = vector.shape_cast %490 : vector<1x1x32x1xf32> to vector<32x1xf32>
    %492 = vector.shape_cast %474 : vector<32x1xf32> to vector<1x1x32x1xf32>
    tpu.vector_store %arg11[%c0_409, %c5_410, %c0_411, %c0_412], %492 {strides = array<i32>} : memref<1x6x32x1xf32, #tpu.memory_space<vmem>>, vector<1x1x32x1xf32>,
    return
  }
  func.func @transform_0(%arg0: i32) -> (i32, i32, i32, i32) {
    %c0_i32 = arith.constant 0 : i32
    %c0_i32_0 = arith.constant 0 : i32
    %c0_i32_1 = arith.constant 0 : i32
    %c0_i32_2 = arith.constant 0 : i32
    return %c0_i32, %arg0, %c0_i32_0, %c0_i32_1 : i32, i32, i32, i32
  }
  func.func @transform_1(%arg0: i32) -> (i32, i32) {
    %c0_i32 = arith.constant 0 : i32
    %c0_i32_0 = arith.constant 0 : i32
    %c0_i32_1 = arith.constant 0 : i32
    return %c0_i32, %c0_i32_0 : i32, i32
  }
  func.func @transform_2(%arg0: i32) -> (i32, i32, i32) {
    %c0_i32 = arith.constant 0 : i32
    %c0_i32_0 = arith.constant 0 : i32
    %c0_i32_1 = arith.constant 0 : i32
    %c0_i32_2 = arith.constant 0 : i32
    return %c0_i32, %c0_i32_0, %c0_i32_1 : i32, i32, i32
  }
  func.func @transform_3(%arg0: i32) -> (i32, i32) {
    %c0_i32 = arith.constant 0 : i32
    %c0_i32_0 = arith.constant 0 : i32
    %c0_i32_1 = arith.constant 0 : i32
    return %c0_i32, %c0_i32_0 : i32, i32
  }
  func.func @transform_4(%arg0: i32) -> (i32, i32) {
    %c0_i32 = arith.constant 0 : i32
    %c0_i32_0 = arith.constant 0 : i32
    %c0_i32_1 = arith.constant 0 : i32
    return %c0_i32, %c0_i32_0 : i32, i32
  }
  func.func @transform_5(%arg0: i32) -> (i32, i32) {
    %c0_i32 = arith.constant 0 : i32
    %c0_i32_0 = arith.constant 0 : i32
    %c0_i32_1 = arith.constant 0 : i32
    return %c0_i32, %c0_i32_0 : i32, i32
  }
  func.func @transform_6(%arg0: i32) -> (i32, i32) {
    %c0_i32 = arith.constant 0 : i32
    %c0_i32_0 = arith.constant 0 : i32
    %c0_i32_1 = arith.constant 0 : i32
    return %c0_i32, %c0_i32_0 : i32, i32
  }
  func.func @transform_7(%arg0: i32) -> (i32, i32, i32, i32) {
    %c0_i32 = arith.constant 0 : i32
    %c0_i32_0 = arith.constant 0 : i32
    %c0_i32_1 = arith.constant 0 : i32
    %c0_i32_2 = arith.constant 0 : i32
    return %c0_i32, %arg0, %c0_i32_0, %c0_i32_1 : i32, i32, i32, i32
  }
  func.func @transform_8(%arg0: i32) -> (i32, i32, i32, i32) {
    %c0_i32 = arith.constant 0 : i32
    %c0_i32_0 = arith.constant 0 : i32
    %c0_i32_1 = arith.constant 0 : i32
    %c0_i32_2 = arith.constant 0 : i32
    return %c0_i32, %arg0, %c0_i32_0, %c0_i32_1 : i32, i32, i32, i32
  }
  func.func @transform_9(%arg0: i32) -> (i32, i32, i32, i32) {
    %c0_i32 = arith.constant 0 : i32
    %c0_i32_0 = arith.constant 0 : i32
    %c0_i32_1 = arith.constant 0 : i32
    %c0_i32_2 = arith.constant 0 : i32
    return %c0_i32, %arg0, %c0_i32_0, %c0_i32_1 : i32, i32, i32, i32
  }
  func.func @transform_10(%arg0: i32) -> (i32, i32, i32, i32) {
    %c0_i32 = arith.constant 0 : i32
    %c0_i32_0 = arith.constant 0 : i32
    %c0_i32_1 = arith.constant 0 : i32
    %c0_i32_2 = arith.constant 0 : i32
    return %arg0, %c0_i32, %c0_i32_0, %c0_i32_1 : i32, i32, i32, i32
  }
}

module attributes {stable_mosaic.version = 11 : i64} {
  func.func @kernel(%arg0: i32, %arg1: memref<2x2x32x64xbf16, #tpu.memory_space<vmem>>, %arg2: memref<32x1xf32, #tpu.memory_space<vmem>>, %arg3: memref<32x1xf32, #tpu.memory_space<vmem>>, %arg4: memref<32x32xbf16, #tpu.memory_space<vmem>>, %arg5: memref<2x2x32x64xbf16, #tpu.memory_space<vmem>>, %arg6: memref<1x2x32x1xf32, #tpu.memory_space<vmem>>) attributes {dimension_semantics = [#tpu.dimension_semantics<parallel>], iteration_bounds = array<i64: 1>, scalar_prefetch = 0 : i64, scratch_operands = 0 : i64, tpu.core_type = #tpu.core_type<tc>, window_params = [{transform_indices = @transform_0, window_bounds = array<i64: 2, 2, 32, 64>}, {pipeline_mode = #tpu.pipeline_mode<synchronous>, transform_indices = @transform_1, window_bounds = array<i64: 32, 1>}, {pipeline_mode = #tpu.pipeline_mode<synchronous>, transform_indices = @transform_2, window_bounds = array<i64: 32, 1>}, {pipeline_mode = #tpu.pipeline_mode<synchronous>, transform_indices = @transform_3, window_bounds = array<i64: 32, 32>}, {transform_indices = @transform_4, window_bounds = array<i64: 2, 2, 32, 64>}, {transform_indices = @transform_5, window_bounds = array<i64: 1, 2, 32, 1>}]} {
    %c0 = arith.constant 0 : index
    %c0_0 = arith.constant 0 : index
    %0 = vector.load %arg2[%c0, %c0_0] : memref<32x1xf32, #tpu.memory_space<vmem>>, vector<32x1xf32>
    %c0_1 = arith.constant 0 : index
    %c0_2 = arith.constant 0 : index
    %1 = vector.load %arg3[%c0_1, %c0_2] : memref<32x1xf32, #tpu.memory_space<vmem>>, vector<32x1xf32>
    %cst = arith.constant 0.000000e+00 : f32
    %2 = vector.broadcast %cst : f32 to vector<32x1xf32>
    %cst_3 = arith.constant 0.000000e+00 : f32
    %3 = vector.broadcast %cst_3 : f32 to vector<32x64xf32>
    %c0_4 = arith.constant 0 : index
    %c0_5 = arith.constant 0 : index
    %c0_6 = arith.constant 0 : index
    %c0_7 = arith.constant 0 : index
    %4 = vector.load %arg1[%c0_4, %c0_5, %c0_6, %c0_7] : memref<2x2x32x64xbf16, #tpu.memory_space<vmem>>, vector<1x1x32x64xbf16>
    %5 = vector.shape_cast %4 : vector<1x1x32x64xbf16> to vector<32x64xbf16>
    %6 = arith.extf %5 : vector<32x64xbf16> to vector<32x64xf32>
    %7 = vector.broadcast %0 : vector<32x1xf32> to vector<32x64xf32>
    %8 = arith.mulf %6, %7 : vector<32x64xf32>
    %9 = vector.broadcast %1 : vector<32x1xf32> to vector<32x64xf32>
    %10 = arith.addf %8, %9 : vector<32x64xf32>
    %11 = arith.subf %10, %3 : vector<32x64xf32>
    %cst_8 = arith.constant 5.000000e-01 : f32
    %12 = vector.broadcast %cst_8 : f32 to vector<32x64xf32>
    %13 = arith.mulf %11, %12 : vector<32x64xf32>
    %14 = arith.addf %3, %13 : vector<32x64xf32>
    %cst_9 = arith.constant 1.000000e+00 : f32
    %15 = vector.broadcast %cst_9 : f32 to vector<32x64xf32>
    %16 = arith.cmpf oge, %14, %15 : vector<32x64xf32>
    %17 = arith.extui %16 : vector<32x64xi1> to vector<32x64xi32>
    %18 = arith.sitofp %17 : vector<32x64xi32> to vector<32x64xf32>
    %cst_10 = arith.constant 1.000000e+00 : f32
    %19 = vector.broadcast %cst_10 : f32 to vector<32x64xf32>
    %20 = arith.subf %19, %18 : vector<32x64xf32>
    %21 = arith.mulf %14, %20 : vector<32x64xf32>
    %c0_11 = arith.constant 0 : index
    %c0_12 = arith.constant 0 : index
    %22 = vector.load %arg4[%c0_11, %c0_12] : memref<32x32xbf16, #tpu.memory_space<vmem>>, vector<32x32xbf16>
    %23 = arith.truncf %18 : vector<32x64xf32> to vector<32x64xbf16>
    %cst_13 = arith.constant dense<0.000000e+00> : vector<32x64xf32>
    %24 = tpu.matmul %22, %23, %cst_13 {dimension_numbers = #tpu.dot_dimension_numbers<[1], [0], [0], [1], [0, 0, 1, 1], [], []>} : vector<32x32xbf16>, vector<32x64xbf16>, vector<32x64xf32> -> vector<32x64xf32>
    %25 = arith.truncf %24 : vector<32x64xf32> to vector<32x64xbf16>
    %c0_14 = arith.constant 0 : index
    %c0_15 = arith.constant 0 : index
    %c0_16 = arith.constant 0 : index
    %c0_17 = arith.constant 0 : index
    %26 = vector.load %arg5[%c0_14, %c0_15, %c0_16, %c0_17] : memref<2x2x32x64xbf16, #tpu.memory_space<vmem>>, vector<1x1x32x64xbf16>
    %27 = vector.shape_cast %26 : vector<1x1x32x64xbf16> to vector<32x64xbf16>
    %28 = vector.shape_cast %25 : vector<32x64xbf16> to vector<1x1x32x64xbf16>
    tpu.vector_store %arg5[%c0_14, %c0_15, %c0_16, %c0_17], %28 {strides = array<i32>} : memref<2x2x32x64xbf16, #tpu.memory_space<vmem>>, vector<1x1x32x64xbf16>,
    %cst_18 = arith.constant dense<0.000000e+00> : vector<32xf32>
    %29 = vector.multi_reduction <add>, %24, %cst_18 [1] : vector<32x64xf32> to vector<32xf32>
    %30 = vector.shape_cast %29 : vector<32xf32> to vector<32x1xf32>
    %31 = arith.addf %2, %30 : vector<32x1xf32>
    %32 = arith.mulf %24, %24 : vector<32x64xf32>
    %cst_19 = arith.constant dense<0.000000e+00> : vector<32xf32>
    %33 = vector.multi_reduction <add>, %32, %cst_19 [1] : vector<32x64xf32> to vector<32xf32>
    %34 = vector.shape_cast %33 : vector<32xf32> to vector<32x1xf32>
    %35 = arith.addf %2, %34 : vector<32x1xf32>
    %c1 = arith.constant 1 : index
    %c0_20 = arith.constant 0 : index
    %c0_21 = arith.constant 0 : index
    %c0_22 = arith.constant 0 : index
    %36 = vector.load %arg1[%c1, %c0_20, %c0_21, %c0_22] : memref<2x2x32x64xbf16, #tpu.memory_space<vmem>>, vector<1x1x32x64xbf16>
    %37 = vector.shape_cast %36 : vector<1x1x32x64xbf16> to vector<32x64xbf16>
    %38 = arith.extf %37 : vector<32x64xbf16> to vector<32x64xf32>
    %39 = vector.broadcast %0 : vector<32x1xf32> to vector<32x64xf32>
    %40 = arith.mulf %38, %39 : vector<32x64xf32>
    %41 = vector.broadcast %1 : vector<32x1xf32> to vector<32x64xf32>
    %42 = arith.addf %40, %41 : vector<32x64xf32>
    %43 = arith.subf %42, %21 : vector<32x64xf32>
    %cst_23 = arith.constant 5.000000e-01 : f32
    %44 = vector.broadcast %cst_23 : f32 to vector<32x64xf32>
    %45 = arith.mulf %43, %44 : vector<32x64xf32>
    %46 = arith.addf %21, %45 : vector<32x64xf32>
    %cst_24 = arith.constant 1.000000e+00 : f32
    %47 = vector.broadcast %cst_24 : f32 to vector<32x64xf32>
    %48 = arith.cmpf oge, %46, %47 : vector<32x64xf32>
    %49 = arith.extui %48 : vector<32x64xi1> to vector<32x64xi32>
    %50 = arith.sitofp %49 : vector<32x64xi32> to vector<32x64xf32>
    %c0_25 = arith.constant 0 : index
    %c0_26 = arith.constant 0 : index
    %51 = vector.load %arg4[%c0_25, %c0_26] : memref<32x32xbf16, #tpu.memory_space<vmem>>, vector<32x32xbf16>
    %52 = arith.truncf %50 : vector<32x64xf32> to vector<32x64xbf16>
    %cst_27 = arith.constant dense<0.000000e+00> : vector<32x64xf32>
    %53 = tpu.matmul %51, %52, %cst_27 {dimension_numbers = #tpu.dot_dimension_numbers<[1], [0], [0], [1], [0, 0, 1, 1], [], []>} : vector<32x32xbf16>, vector<32x64xbf16>, vector<32x64xf32> -> vector<32x64xf32>
    %54 = arith.truncf %53 : vector<32x64xf32> to vector<32x64xbf16>
    %c1_28 = arith.constant 1 : index
    %c0_29 = arith.constant 0 : index
    %c0_30 = arith.constant 0 : index
    %c0_31 = arith.constant 0 : index
    %55 = vector.load %arg5[%c1_28, %c0_29, %c0_30, %c0_31] : memref<2x2x32x64xbf16, #tpu.memory_space<vmem>>, vector<1x1x32x64xbf16>
    %56 = vector.shape_cast %55 : vector<1x1x32x64xbf16> to vector<32x64xbf16>
    %57 = vector.shape_cast %54 : vector<32x64xbf16> to vector<1x1x32x64xbf16>
    tpu.vector_store %arg5[%c1_28, %c0_29, %c0_30, %c0_31], %57 {strides = array<i32>} : memref<2x2x32x64xbf16, #tpu.memory_space<vmem>>, vector<1x1x32x64xbf16>,
    %cst_32 = arith.constant dense<0.000000e+00> : vector<32xf32>
    %58 = vector.multi_reduction <add>, %53, %cst_32 [1] : vector<32x64xf32> to vector<32xf32>
    %59 = vector.shape_cast %58 : vector<32xf32> to vector<32x1xf32>
    %60 = arith.addf %31, %59 : vector<32x1xf32>
    %61 = arith.mulf %53, %53 : vector<32x64xf32>
    %cst_33 = arith.constant dense<0.000000e+00> : vector<32xf32>
    %62 = vector.multi_reduction <add>, %61, %cst_33 [1] : vector<32x64xf32> to vector<32xf32>
    %63 = vector.shape_cast %62 : vector<32xf32> to vector<32x1xf32>
    %64 = arith.addf %35, %63 : vector<32x1xf32>
    %cst_34 = arith.constant 0.000000e+00 : f32
    %65 = vector.broadcast %cst_34 : f32 to vector<32x64xf32>
    %c0_35 = arith.constant 0 : index
    %c1_36 = arith.constant 1 : index
    %c0_37 = arith.constant 0 : index
    %c0_38 = arith.constant 0 : index
    %66 = vector.load %arg1[%c0_35, %c1_36, %c0_37, %c0_38] : memref<2x2x32x64xbf16, #tpu.memory_space<vmem>>, vector<1x1x32x64xbf16>
    %67 = vector.shape_cast %66 : vector<1x1x32x64xbf16> to vector<32x64xbf16>
    %68 = arith.extf %67 : vector<32x64xbf16> to vector<32x64xf32>
    %69 = vector.broadcast %0 : vector<32x1xf32> to vector<32x64xf32>
    %70 = arith.mulf %68, %69 : vector<32x64xf32>
    %71 = vector.broadcast %1 : vector<32x1xf32> to vector<32x64xf32>
    %72 = arith.addf %70, %71 : vector<32x64xf32>
    %73 = arith.subf %72, %65 : vector<32x64xf32>
    %cst_39 = arith.constant 5.000000e-01 : f32
    %74 = vector.broadcast %cst_39 : f32 to vector<32x64xf32>
    %75 = arith.mulf %73, %74 : vector<32x64xf32>
    %76 = arith.addf %65, %75 : vector<32x64xf32>
    %cst_40 = arith.constant 1.000000e+00 : f32
    %77 = vector.broadcast %cst_40 : f32 to vector<32x64xf32>
    %78 = arith.cmpf oge, %76, %77 : vector<32x64xf32>
    %79 = arith.extui %78 : vector<32x64xi1> to vector<32x64xi32>
    %80 = arith.sitofp %79 : vector<32x64xi32> to vector<32x64xf32>
    %cst_41 = arith.constant 1.000000e+00 : f32
    %81 = vector.broadcast %cst_41 : f32 to vector<32x64xf32>
    %82 = arith.subf %81, %80 : vector<32x64xf32>
    %83 = arith.mulf %76, %82 : vector<32x64xf32>
    %c0_42 = arith.constant 0 : index
    %c0_43 = arith.constant 0 : index
    %84 = vector.load %arg4[%c0_42, %c0_43] : memref<32x32xbf16, #tpu.memory_space<vmem>>, vector<32x32xbf16>
    %85 = arith.truncf %80 : vector<32x64xf32> to vector<32x64xbf16>
    %cst_44 = arith.constant dense<0.000000e+00> : vector<32x64xf32>
    %86 = tpu.matmul %84, %85, %cst_44 {dimension_numbers = #tpu.dot_dimension_numbers<[1], [0], [0], [1], [0, 0, 1, 1], [], []>} : vector<32x32xbf16>, vector<32x64xbf16>, vector<32x64xf32> -> vector<32x64xf32>
    %87 = arith.truncf %86 : vector<32x64xf32> to vector<32x64xbf16>
    %c0_45 = arith.constant 0 : index
    %c1_46 = arith.constant 1 : index
    %c0_47 = arith.constant 0 : index
    %c0_48 = arith.constant 0 : index
    %88 = vector.load %arg5[%c0_45, %c1_46, %c0_47, %c0_48] : memref<2x2x32x64xbf16, #tpu.memory_space<vmem>>, vector<1x1x32x64xbf16>
    %89 = vector.shape_cast %88 : vector<1x1x32x64xbf16> to vector<32x64xbf16>
    %90 = vector.shape_cast %87 : vector<32x64xbf16> to vector<1x1x32x64xbf16>
    tpu.vector_store %arg5[%c0_45, %c1_46, %c0_47, %c0_48], %90 {strides = array<i32>} : memref<2x2x32x64xbf16, #tpu.memory_space<vmem>>, vector<1x1x32x64xbf16>,
    %cst_49 = arith.constant dense<0.000000e+00> : vector<32xf32>
    %91 = vector.multi_reduction <add>, %86, %cst_49 [1] : vector<32x64xf32> to vector<32xf32>
    %92 = vector.shape_cast %91 : vector<32xf32> to vector<32x1xf32>
    %93 = arith.addf %60, %92 : vector<32x1xf32>
    %94 = arith.mulf %86, %86 : vector<32x64xf32>
    %cst_50 = arith.constant dense<0.000000e+00> : vector<32xf32>
    %95 = vector.multi_reduction <add>, %94, %cst_50 [1] : vector<32x64xf32> to vector<32xf32>
    %96 = vector.shape_cast %95 : vector<32xf32> to vector<32x1xf32>
    %97 = arith.addf %64, %96 : vector<32x1xf32>
    %c1_51 = arith.constant 1 : index
    %c1_52 = arith.constant 1 : index
    %c0_53 = arith.constant 0 : index
    %c0_54 = arith.constant 0 : index
    %98 = vector.load %arg1[%c1_51, %c1_52, %c0_53, %c0_54] : memref<2x2x32x64xbf16, #tpu.memory_space<vmem>>, vector<1x1x32x64xbf16>
    %99 = vector.shape_cast %98 : vector<1x1x32x64xbf16> to vector<32x64xbf16>
    %100 = arith.extf %99 : vector<32x64xbf16> to vector<32x64xf32>
    %101 = vector.broadcast %0 : vector<32x1xf32> to vector<32x64xf32>
    %102 = arith.mulf %100, %101 : vector<32x64xf32>
    %103 = vector.broadcast %1 : vector<32x1xf32> to vector<32x64xf32>
    %104 = arith.addf %102, %103 : vector<32x64xf32>
    %105 = arith.subf %104, %83 : vector<32x64xf32>
    %cst_55 = arith.constant 5.000000e-01 : f32
    %106 = vector.broadcast %cst_55 : f32 to vector<32x64xf32>
    %107 = arith.mulf %105, %106 : vector<32x64xf32>
    %108 = arith.addf %83, %107 : vector<32x64xf32>
    %cst_56 = arith.constant 1.000000e+00 : f32
    %109 = vector.broadcast %cst_56 : f32 to vector<32x64xf32>
    %110 = arith.cmpf oge, %108, %109 : vector<32x64xf32>
    %111 = arith.extui %110 : vector<32x64xi1> to vector<32x64xi32>
    %112 = arith.sitofp %111 : vector<32x64xi32> to vector<32x64xf32>
    %c0_57 = arith.constant 0 : index
    %c0_58 = arith.constant 0 : index
    %113 = vector.load %arg4[%c0_57, %c0_58] : memref<32x32xbf16, #tpu.memory_space<vmem>>, vector<32x32xbf16>
    %114 = arith.truncf %112 : vector<32x64xf32> to vector<32x64xbf16>
    %cst_59 = arith.constant dense<0.000000e+00> : vector<32x64xf32>
    %115 = tpu.matmul %113, %114, %cst_59 {dimension_numbers = #tpu.dot_dimension_numbers<[1], [0], [0], [1], [0, 0, 1, 1], [], []>} : vector<32x32xbf16>, vector<32x64xbf16>, vector<32x64xf32> -> vector<32x64xf32>
    %116 = arith.truncf %115 : vector<32x64xf32> to vector<32x64xbf16>
    %c1_60 = arith.constant 1 : index
    %c1_61 = arith.constant 1 : index
    %c0_62 = arith.constant 0 : index
    %c0_63 = arith.constant 0 : index
    %117 = vector.load %arg5[%c1_60, %c1_61, %c0_62, %c0_63] : memref<2x2x32x64xbf16, #tpu.memory_space<vmem>>, vector<1x1x32x64xbf16>
    %118 = vector.shape_cast %117 : vector<1x1x32x64xbf16> to vector<32x64xbf16>
    %119 = vector.shape_cast %116 : vector<32x64xbf16> to vector<1x1x32x64xbf16>
    tpu.vector_store %arg5[%c1_60, %c1_61, %c0_62, %c0_63], %119 {strides = array<i32>} : memref<2x2x32x64xbf16, #tpu.memory_space<vmem>>, vector<1x1x32x64xbf16>,
    %cst_64 = arith.constant dense<0.000000e+00> : vector<32xf32>
    %120 = vector.multi_reduction <add>, %115, %cst_64 [1] : vector<32x64xf32> to vector<32xf32>
    %121 = vector.shape_cast %120 : vector<32xf32> to vector<32x1xf32>
    %122 = arith.addf %93, %121 : vector<32x1xf32>
    %123 = arith.mulf %115, %115 : vector<32x64xf32>
    %cst_65 = arith.constant dense<0.000000e+00> : vector<32xf32>
    %124 = vector.multi_reduction <add>, %123, %cst_65 [1] : vector<32x64xf32> to vector<32xf32>
    %125 = vector.shape_cast %124 : vector<32xf32> to vector<32x1xf32>
    %126 = arith.addf %97, %125 : vector<32x1xf32>
    %c0_66 = arith.constant 0 : index
    %c0_67 = arith.constant 0 : index
    %c0_68 = arith.constant 0 : index
    %c0_69 = arith.constant 0 : index
    %127 = vector.load %arg6[%c0_66, %c0_67, %c0_68, %c0_69] : memref<1x2x32x1xf32, #tpu.memory_space<vmem>>, vector<1x1x32x1xf32>
    %128 = vector.shape_cast %127 : vector<1x1x32x1xf32> to vector<32x1xf32>
    %129 = vector.shape_cast %122 : vector<32x1xf32> to vector<1x1x32x1xf32>
    tpu.vector_store %arg6[%c0_66, %c0_67, %c0_68, %c0_69], %129 {strides = array<i32>} : memref<1x2x32x1xf32, #tpu.memory_space<vmem>>, vector<1x1x32x1xf32>,
    %c0_70 = arith.constant 0 : index
    %c1_71 = arith.constant 1 : index
    %c0_72 = arith.constant 0 : index
    %c0_73 = arith.constant 0 : index
    %130 = vector.load %arg6[%c0_70, %c1_71, %c0_72, %c0_73] : memref<1x2x32x1xf32, #tpu.memory_space<vmem>>, vector<1x1x32x1xf32>
    %131 = vector.shape_cast %130 : vector<1x1x32x1xf32> to vector<32x1xf32>
    %132 = vector.shape_cast %126 : vector<32x1xf32> to vector<1x1x32x1xf32>
    tpu.vector_store %arg6[%c0_70, %c1_71, %c0_72, %c0_73], %132 {strides = array<i32>} : memref<1x2x32x1xf32, #tpu.memory_space<vmem>>, vector<1x1x32x1xf32>,
    return
  }
  func.func @transform_0(%arg0: i32) -> (i32, i32, i32, i32) {
    %c0_i32 = arith.constant 0 : i32
    %c0_i32_0 = arith.constant 0 : i32
    %c0_i32_1 = arith.constant 0 : i32
    %c0_i32_2 = arith.constant 0 : i32
    return %c0_i32, %arg0, %c0_i32_0, %c0_i32_1 : i32, i32, i32, i32
  }
  func.func @transform_1(%arg0: i32) -> (i32, i32) {
    %c0_i32 = arith.constant 0 : i32
    %c0_i32_0 = arith.constant 0 : i32
    %c0_i32_1 = arith.constant 0 : i32
    return %c0_i32, %c0_i32_0 : i32, i32
  }
  func.func @transform_2(%arg0: i32) -> (i32, i32) {
    %c0_i32 = arith.constant 0 : i32
    %c0_i32_0 = arith.constant 0 : i32
    %c0_i32_1 = arith.constant 0 : i32
    return %c0_i32, %c0_i32_0 : i32, i32
  }
  func.func @transform_3(%arg0: i32) -> (i32, i32) {
    %c0_i32 = arith.constant 0 : i32
    %c0_i32_0 = arith.constant 0 : i32
    %c0_i32_1 = arith.constant 0 : i32
    return %c0_i32, %c0_i32_0 : i32, i32
  }
  func.func @transform_4(%arg0: i32) -> (i32, i32, i32, i32) {
    %c0_i32 = arith.constant 0 : i32
    %c0_i32_0 = arith.constant 0 : i32
    %c0_i32_1 = arith.constant 0 : i32
    %c0_i32_2 = arith.constant 0 : i32
    return %c0_i32, %arg0, %c0_i32_0, %c0_i32_1 : i32, i32, i32, i32
  }
  func.func @transform_5(%arg0: i32) -> (i32, i32, i32, i32) {
    %c0_i32 = arith.constant 0 : i32
    %c0_i32_0 = arith.constant 0 : i32
    %c0_i32_1 = arith.constant 0 : i32
    %c0_i32_2 = arith.constant 0 : i32
    return %arg0, %c0_i32, %c0_i32_0, %c0_i32_1 : i32, i32, i32, i32
  }
}

module attributes {stable_mosaic.version = 11 : i64} {
  func.func @kernel(%arg0: i32, %arg1: memref<2x2x32x64xbf16, #tpu.memory_space<vmem>>, %arg2: memref<32x1xf32, #tpu.memory_space<vmem>>, %arg3: memref<32x1xf32, #tpu.memory_space<vmem>>, %arg4: memref<64x64xbf16, #tpu.memory_space<vmem>>, %arg5: memref<2x2x32x64xbf16, #tpu.memory_space<vmem>>, %arg6: memref<1x2x32x1xf32, #tpu.memory_space<vmem>>) attributes {dimension_semantics = [#tpu.dimension_semantics<parallel>], iteration_bounds = array<i64: 1>, scalar_prefetch = 0 : i64, scratch_operands = 0 : i64, tpu.core_type = #tpu.core_type<tc>, window_params = [{transform_indices = @transform_0, window_bounds = array<i64: 2, 2, 32, 64>}, {pipeline_mode = #tpu.pipeline_mode<synchronous>, transform_indices = @transform_1, window_bounds = array<i64: 32, 1>}, {pipeline_mode = #tpu.pipeline_mode<synchronous>, transform_indices = @transform_2, window_bounds = array<i64: 32, 1>}, {pipeline_mode = #tpu.pipeline_mode<synchronous>, transform_indices = @transform_3, window_bounds = array<i64: 64, 64>}, {transform_indices = @transform_4, window_bounds = array<i64: 2, 2, 32, 64>}, {transform_indices = @transform_5, window_bounds = array<i64: 1, 2, 32, 1>}]} {
    %c0 = arith.constant 0 : index
    %c0_0 = arith.constant 0 : index
    %0 = vector.load %arg2[%c0, %c0_0] : memref<32x1xf32, #tpu.memory_space<vmem>>, vector<32x1xf32>
    %c0_1 = arith.constant 0 : index
    %c0_2 = arith.constant 0 : index
    %1 = vector.load %arg3[%c0_1, %c0_2] : memref<32x1xf32, #tpu.memory_space<vmem>>, vector<32x1xf32>
    %cst = arith.constant 0.000000e+00 : f32
    %2 = vector.broadcast %cst : f32 to vector<32x1xf32>
    %cst_3 = arith.constant 0.000000e+00 : f32
    %3 = vector.broadcast %cst_3 : f32 to vector<32x64xf32>
    %c0_4 = arith.constant 0 : index
    %c0_5 = arith.constant 0 : index
    %c0_6 = arith.constant 0 : index
    %c0_7 = arith.constant 0 : index
    %4 = vector.load %arg1[%c0_4, %c0_5, %c0_6, %c0_7] : memref<2x2x32x64xbf16, #tpu.memory_space<vmem>>, vector<1x1x32x64xbf16>
    %5 = vector.shape_cast %4 : vector<1x1x32x64xbf16> to vector<32x64xbf16>
    %6 = arith.extf %5 : vector<32x64xbf16> to vector<32x64xf32>
    %7 = vector.broadcast %0 : vector<32x1xf32> to vector<32x64xf32>
    %8 = arith.mulf %6, %7 : vector<32x64xf32>
    %9 = vector.broadcast %1 : vector<32x1xf32> to vector<32x64xf32>
    %10 = arith.addf %8, %9 : vector<32x64xf32>
    %11 = arith.truncf %10 : vector<32x64xf32> to vector<32x64xbf16>
    %c0_8 = arith.constant 0 : index
    %c0_9 = arith.constant 0 : index
    %12 = vector.load %arg4[%c0_8, %c0_9] : memref<64x64xbf16, #tpu.memory_space<vmem>>, vector<64x64xbf16>
    %cst_10 = arith.constant dense<0.000000e+00> : vector<32x64xf32>
    %13 = tpu.matmul %11, %12, %cst_10 {dimension_numbers = #tpu.dot_dimension_numbers<[1], [0], [0], [1], [0, 0, 1, 1], [], []>} : vector<32x64xbf16>, vector<64x64xbf16>, vector<32x64xf32> -> vector<32x64xf32>
    %14 = arith.addf %3, %13 : vector<32x64xf32>
    %cst_11 = arith.constant 1.000000e+00 : f32
    %15 = vector.broadcast %cst_11 : f32 to vector<32x64xf32>
    %16 = arith.cmpf oge, %14, %15 : vector<32x64xf32>
    %cst_12 = arith.constant 1.000000e+00 : f32
    %cst_13 = arith.constant 0.000000e+00 : f32
    %17 = vector.broadcast %cst_12 : f32 to vector<32x64xf32>
    %18 = vector.broadcast %cst_13 : f32 to vector<32x64xf32>
    %19 = arith.select %16, %17, %18 : vector<32x64xi1>, vector<32x64xf32>
    %cst_14 = arith.constant -1.000000e+00 : f32
    %20 = vector.broadcast %cst_14 : f32 to vector<32x64xf32>
    %21 = arith.cmpf ole, %14, %20 : vector<32x64xf32>
    %cst_15 = arith.constant -1.000000e+00 : f32
    %cst_16 = arith.constant 0.000000e+00 : f32
    %22 = vector.broadcast %cst_15 : f32 to vector<32x64xf32>
    %23 = vector.broadcast %cst_16 : f32 to vector<32x64xf32>
    %24 = arith.select %21, %22, %23 : vector<32x64xi1>, vector<32x64xf32>
    %25 = arith.addf %19, %24 : vector<32x64xf32>
    %cst_17 = arith.constant 0.000000e+00 : f32
    %26 = vector.broadcast %cst_17 : f32 to vector<32x64xf32>
    %27 = arith.cmpf one, %25, %26 : vector<32x64xf32>
    %cst_18 = arith.constant 0.000000e+00 : f32
    %28 = vector.broadcast %cst_18 : f32 to vector<32x64xf32>
    %29 = arith.select %27, %28, %14 : vector<32x64xi1>, vector<32x64xf32>
    %30 = arith.truncf %25 : vector<32x64xf32> to vector<32x64xbf16>
    %c0_19 = arith.constant 0 : index
    %c0_20 = arith.constant 0 : index
    %c0_21 = arith.constant 0 : index
    %c0_22 = arith.constant 0 : index
    %31 = vector.load %arg5[%c0_19, %c0_20, %c0_21, %c0_22] : memref<2x2x32x64xbf16, #tpu.memory_space<vmem>>, vector<1x1x32x64xbf16>
    %32 = vector.shape_cast %31 : vector<1x1x32x64xbf16> to vector<32x64xbf16>
    %33 = vector.shape_cast %30 : vector<32x64xbf16> to vector<1x1x32x64xbf16>
    tpu.vector_store %arg5[%c0_19, %c0_20, %c0_21, %c0_22], %33 {strides = array<i32>} : memref<2x2x32x64xbf16, #tpu.memory_space<vmem>>, vector<1x1x32x64xbf16>,
    %cst_23 = arith.constant dense<0.000000e+00> : vector<32xf32>
    %34 = vector.multi_reduction <add>, %25, %cst_23 [1] : vector<32x64xf32> to vector<32xf32>
    %35 = vector.shape_cast %34 : vector<32xf32> to vector<32x1xf32>
    %36 = arith.addf %2, %35 : vector<32x1xf32>
    %37 = arith.mulf %25, %25 : vector<32x64xf32>
    %cst_24 = arith.constant dense<0.000000e+00> : vector<32xf32>
    %38 = vector.multi_reduction <add>, %37, %cst_24 [1] : vector<32x64xf32> to vector<32xf32>
    %39 = vector.shape_cast %38 : vector<32xf32> to vector<32x1xf32>
    %40 = arith.addf %2, %39 : vector<32x1xf32>
    %c1 = arith.constant 1 : index
    %c0_25 = arith.constant 0 : index
    %c0_26 = arith.constant 0 : index
    %c0_27 = arith.constant 0 : index
    %41 = vector.load %arg1[%c1, %c0_25, %c0_26, %c0_27] : memref<2x2x32x64xbf16, #tpu.memory_space<vmem>>, vector<1x1x32x64xbf16>
    %42 = vector.shape_cast %41 : vector<1x1x32x64xbf16> to vector<32x64xbf16>
    %43 = arith.extf %42 : vector<32x64xbf16> to vector<32x64xf32>
    %44 = vector.broadcast %0 : vector<32x1xf32> to vector<32x64xf32>
    %45 = arith.mulf %43, %44 : vector<32x64xf32>
    %46 = vector.broadcast %1 : vector<32x1xf32> to vector<32x64xf32>
    %47 = arith.addf %45, %46 : vector<32x64xf32>
    %48 = arith.truncf %47 : vector<32x64xf32> to vector<32x64xbf16>
    %c0_28 = arith.constant 0 : index
    %c0_29 = arith.constant 0 : index
    %49 = vector.load %arg4[%c0_28, %c0_29] : memref<64x64xbf16, #tpu.memory_space<vmem>>, vector<64x64xbf16>
    %cst_30 = arith.constant dense<0.000000e+00> : vector<32x64xf32>
    %50 = tpu.matmul %48, %49, %cst_30 {dimension_numbers = #tpu.dot_dimension_numbers<[1], [0], [0], [1], [0, 0, 1, 1], [], []>} : vector<32x64xbf16>, vector<64x64xbf16>, vector<32x64xf32> -> vector<32x64xf32>
    %51 = arith.addf %29, %50 : vector<32x64xf32>
    %cst_31 = arith.constant 1.000000e+00 : f32
    %52 = vector.broadcast %cst_31 : f32 to vector<32x64xf32>
    %53 = arith.cmpf oge, %51, %52 : vector<32x64xf32>
    %cst_32 = arith.constant 1.000000e+00 : f32
    %cst_33 = arith.constant 0.000000e+00 : f32
    %54 = vector.broadcast %cst_32 : f32 to vector<32x64xf32>
    %55 = vector.broadcast %cst_33 : f32 to vector<32x64xf32>
    %56 = arith.select %53, %54, %55 : vector<32x64xi1>, vector<32x64xf32>
    %cst_34 = arith.constant -1.000000e+00 : f32
    %57 = vector.broadcast %cst_34 : f32 to vector<32x64xf32>
    %58 = arith.cmpf ole, %51, %57 : vector<32x64xf32>
    %cst_35 = arith.constant -1.000000e+00 : f32
    %cst_36 = arith.constant 0.000000e+00 : f32
    %59 = vector.broadcast %cst_35 : f32 to vector<32x64xf32>
    %60 = vector.broadcast %cst_36 : f32 to vector<32x64xf32>
    %61 = arith.select %58, %59, %60 : vector<32x64xi1>, vector<32x64xf32>
    %62 = arith.addf %56, %61 : vector<32x64xf32>
    %63 = arith.truncf %62 : vector<32x64xf32> to vector<32x64xbf16>
    %c1_37 = arith.constant 1 : index
    %c0_38 = arith.constant 0 : index
    %c0_39 = arith.constant 0 : index
    %c0_40 = arith.constant 0 : index
    %64 = vector.load %arg5[%c1_37, %c0_38, %c0_39, %c0_40] : memref<2x2x32x64xbf16, #tpu.memory_space<vmem>>, vector<1x1x32x64xbf16>
    %65 = vector.shape_cast %64 : vector<1x1x32x64xbf16> to vector<32x64xbf16>
    %66 = vector.shape_cast %63 : vector<32x64xbf16> to vector<1x1x32x64xbf16>
    tpu.vector_store %arg5[%c1_37, %c0_38, %c0_39, %c0_40], %66 {strides = array<i32>} : memref<2x2x32x64xbf16, #tpu.memory_space<vmem>>, vector<1x1x32x64xbf16>,
    %cst_41 = arith.constant dense<0.000000e+00> : vector<32xf32>
    %67 = vector.multi_reduction <add>, %62, %cst_41 [1] : vector<32x64xf32> to vector<32xf32>
    %68 = vector.shape_cast %67 : vector<32xf32> to vector<32x1xf32>
    %69 = arith.addf %36, %68 : vector<32x1xf32>
    %70 = arith.mulf %62, %62 : vector<32x64xf32>
    %cst_42 = arith.constant dense<0.000000e+00> : vector<32xf32>
    %71 = vector.multi_reduction <add>, %70, %cst_42 [1] : vector<32x64xf32> to vector<32xf32>
    %72 = vector.shape_cast %71 : vector<32xf32> to vector<32x1xf32>
    %73 = arith.addf %40, %72 : vector<32x1xf32>
    %cst_43 = arith.constant 0.000000e+00 : f32
    %74 = vector.broadcast %cst_43 : f32 to vector<32x64xf32>
    %c0_44 = arith.constant 0 : index
    %c1_45 = arith.constant 1 : index
    %c0_46 = arith.constant 0 : index
    %c0_47 = arith.constant 0 : index
    %75 = vector.load %arg1[%c0_44, %c1_45, %c0_46, %c0_47] : memref<2x2x32x64xbf16, #tpu.memory_space<vmem>>, vector<1x1x32x64xbf16>
    %76 = vector.shape_cast %75 : vector<1x1x32x64xbf16> to vector<32x64xbf16>
    %77 = arith.extf %76 : vector<32x64xbf16> to vector<32x64xf32>
    %78 = vector.broadcast %0 : vector<32x1xf32> to vector<32x64xf32>
    %79 = arith.mulf %77, %78 : vector<32x64xf32>
    %80 = vector.broadcast %1 : vector<32x1xf32> to vector<32x64xf32>
    %81 = arith.addf %79, %80 : vector<32x64xf32>
    %82 = arith.truncf %81 : vector<32x64xf32> to vector<32x64xbf16>
    %c0_48 = arith.constant 0 : index
    %c0_49 = arith.constant 0 : index
    %83 = vector.load %arg4[%c0_48, %c0_49] : memref<64x64xbf16, #tpu.memory_space<vmem>>, vector<64x64xbf16>
    %cst_50 = arith.constant dense<0.000000e+00> : vector<32x64xf32>
    %84 = tpu.matmul %82, %83, %cst_50 {dimension_numbers = #tpu.dot_dimension_numbers<[1], [0], [0], [1], [0, 0, 1, 1], [], []>} : vector<32x64xbf16>, vector<64x64xbf16>, vector<32x64xf32> -> vector<32x64xf32>
    %85 = arith.addf %74, %84 : vector<32x64xf32>
    %cst_51 = arith.constant 1.000000e+00 : f32
    %86 = vector.broadcast %cst_51 : f32 to vector<32x64xf32>
    %87 = arith.cmpf oge, %85, %86 : vector<32x64xf32>
    %cst_52 = arith.constant 1.000000e+00 : f32
    %cst_53 = arith.constant 0.000000e+00 : f32
    %88 = vector.broadcast %cst_52 : f32 to vector<32x64xf32>
    %89 = vector.broadcast %cst_53 : f32 to vector<32x64xf32>
    %90 = arith.select %87, %88, %89 : vector<32x64xi1>, vector<32x64xf32>
    %cst_54 = arith.constant -1.000000e+00 : f32
    %91 = vector.broadcast %cst_54 : f32 to vector<32x64xf32>
    %92 = arith.cmpf ole, %85, %91 : vector<32x64xf32>
    %cst_55 = arith.constant -1.000000e+00 : f32
    %cst_56 = arith.constant 0.000000e+00 : f32
    %93 = vector.broadcast %cst_55 : f32 to vector<32x64xf32>
    %94 = vector.broadcast %cst_56 : f32 to vector<32x64xf32>
    %95 = arith.select %92, %93, %94 : vector<32x64xi1>, vector<32x64xf32>
    %96 = arith.addf %90, %95 : vector<32x64xf32>
    %cst_57 = arith.constant 0.000000e+00 : f32
    %97 = vector.broadcast %cst_57 : f32 to vector<32x64xf32>
    %98 = arith.cmpf one, %96, %97 : vector<32x64xf32>
    %cst_58 = arith.constant 0.000000e+00 : f32
    %99 = vector.broadcast %cst_58 : f32 to vector<32x64xf32>
    %100 = arith.select %98, %99, %85 : vector<32x64xi1>, vector<32x64xf32>
    %101 = arith.truncf %96 : vector<32x64xf32> to vector<32x64xbf16>
    %c0_59 = arith.constant 0 : index
    %c1_60 = arith.constant 1 : index
    %c0_61 = arith.constant 0 : index
    %c0_62 = arith.constant 0 : index
    %102 = vector.load %arg5[%c0_59, %c1_60, %c0_61, %c0_62] : memref<2x2x32x64xbf16, #tpu.memory_space<vmem>>, vector<1x1x32x64xbf16>
    %103 = vector.shape_cast %102 : vector<1x1x32x64xbf16> to vector<32x64xbf16>
    %104 = vector.shape_cast %101 : vector<32x64xbf16> to vector<1x1x32x64xbf16>
    tpu.vector_store %arg5[%c0_59, %c1_60, %c0_61, %c0_62], %104 {strides = array<i32>} : memref<2x2x32x64xbf16, #tpu.memory_space<vmem>>, vector<1x1x32x64xbf16>,
    %cst_63 = arith.constant dense<0.000000e+00> : vector<32xf32>
    %105 = vector.multi_reduction <add>, %96, %cst_63 [1] : vector<32x64xf32> to vector<32xf32>
    %106 = vector.shape_cast %105 : vector<32xf32> to vector<32x1xf32>
    %107 = arith.addf %69, %106 : vector<32x1xf32>
    %108 = arith.mulf %96, %96 : vector<32x64xf32>
    %cst_64 = arith.constant dense<0.000000e+00> : vector<32xf32>
    %109 = vector.multi_reduction <add>, %108, %cst_64 [1] : vector<32x64xf32> to vector<32xf32>
    %110 = vector.shape_cast %109 : vector<32xf32> to vector<32x1xf32>
    %111 = arith.addf %73, %110 : vector<32x1xf32>
    %c1_65 = arith.constant 1 : index
    %c1_66 = arith.constant 1 : index
    %c0_67 = arith.constant 0 : index
    %c0_68 = arith.constant 0 : index
    %112 = vector.load %arg1[%c1_65, %c1_66, %c0_67, %c0_68] : memref<2x2x32x64xbf16, #tpu.memory_space<vmem>>, vector<1x1x32x64xbf16>
    %113 = vector.shape_cast %112 : vector<1x1x32x64xbf16> to vector<32x64xbf16>
    %114 = arith.extf %113 : vector<32x64xbf16> to vector<32x64xf32>
    %115 = vector.broadcast %0 : vector<32x1xf32> to vector<32x64xf32>
    %116 = arith.mulf %114, %115 : vector<32x64xf32>
    %117 = vector.broadcast %1 : vector<32x1xf32> to vector<32x64xf32>
    %118 = arith.addf %116, %117 : vector<32x64xf32>
    %119 = arith.truncf %118 : vector<32x64xf32> to vector<32x64xbf16>
    %c0_69 = arith.constant 0 : index
    %c0_70 = arith.constant 0 : index
    %120 = vector.load %arg4[%c0_69, %c0_70] : memref<64x64xbf16, #tpu.memory_space<vmem>>, vector<64x64xbf16>
    %cst_71 = arith.constant dense<0.000000e+00> : vector<32x64xf32>
    %121 = tpu.matmul %119, %120, %cst_71 {dimension_numbers = #tpu.dot_dimension_numbers<[1], [0], [0], [1], [0, 0, 1, 1], [], []>} : vector<32x64xbf16>, vector<64x64xbf16>, vector<32x64xf32> -> vector<32x64xf32>
    %122 = arith.addf %100, %121 : vector<32x64xf32>
    %cst_72 = arith.constant 1.000000e+00 : f32
    %123 = vector.broadcast %cst_72 : f32 to vector<32x64xf32>
    %124 = arith.cmpf oge, %122, %123 : vector<32x64xf32>
    %cst_73 = arith.constant 1.000000e+00 : f32
    %cst_74 = arith.constant 0.000000e+00 : f32
    %125 = vector.broadcast %cst_73 : f32 to vector<32x64xf32>
    %126 = vector.broadcast %cst_74 : f32 to vector<32x64xf32>
    %127 = arith.select %124, %125, %126 : vector<32x64xi1>, vector<32x64xf32>
    %cst_75 = arith.constant -1.000000e+00 : f32
    %128 = vector.broadcast %cst_75 : f32 to vector<32x64xf32>
    %129 = arith.cmpf ole, %122, %128 : vector<32x64xf32>
    %cst_76 = arith.constant -1.000000e+00 : f32
    %cst_77 = arith.constant 0.000000e+00 : f32
    %130 = vector.broadcast %cst_76 : f32 to vector<32x64xf32>
    %131 = vector.broadcast %cst_77 : f32 to vector<32x64xf32>
    %132 = arith.select %129, %130, %131 : vector<32x64xi1>, vector<32x64xf32>
    %133 = arith.addf %127, %132 : vector<32x64xf32>
    %134 = arith.truncf %133 : vector<32x64xf32> to vector<32x64xbf16>
    %c1_78 = arith.constant 1 : index
    %c1_79 = arith.constant 1 : index
    %c0_80 = arith.constant 0 : index
    %c0_81 = arith.constant 0 : index
    %135 = vector.load %arg5[%c1_78, %c1_79, %c0_80, %c0_81] : memref<2x2x32x64xbf16, #tpu.memory_space<vmem>>, vector<1x1x32x64xbf16>
    %136 = vector.shape_cast %135 : vector<1x1x32x64xbf16> to vector<32x64xbf16>
    %137 = vector.shape_cast %134 : vector<32x64xbf16> to vector<1x1x32x64xbf16>
    tpu.vector_store %arg5[%c1_78, %c1_79, %c0_80, %c0_81], %137 {strides = array<i32>} : memref<2x2x32x64xbf16, #tpu.memory_space<vmem>>, vector<1x1x32x64xbf16>,
    %cst_82 = arith.constant dense<0.000000e+00> : vector<32xf32>
    %138 = vector.multi_reduction <add>, %133, %cst_82 [1] : vector<32x64xf32> to vector<32xf32>
    %139 = vector.shape_cast %138 : vector<32xf32> to vector<32x1xf32>
    %140 = arith.addf %107, %139 : vector<32x1xf32>
    %141 = arith.mulf %133, %133 : vector<32x64xf32>
    %cst_83 = arith.constant dense<0.000000e+00> : vector<32xf32>
    %142 = vector.multi_reduction <add>, %141, %cst_83 [1] : vector<32x64xf32> to vector<32xf32>
    %143 = vector.shape_cast %142 : vector<32xf32> to vector<32x1xf32>
    %144 = arith.addf %111, %143 : vector<32x1xf32>
    %c0_84 = arith.constant 0 : index
    %c0_85 = arith.constant 0 : index
    %c0_86 = arith.constant 0 : index
    %c0_87 = arith.constant 0 : index
    %145 = vector.load %arg6[%c0_84, %c0_85, %c0_86, %c0_87] : memref<1x2x32x1xf32, #tpu.memory_space<vmem>>, vector<1x1x32x1xf32>
    %146 = vector.shape_cast %145 : vector<1x1x32x1xf32> to vector<32x1xf32>
    %147 = vector.shape_cast %140 : vector<32x1xf32> to vector<1x1x32x1xf32>
    tpu.vector_store %arg6[%c0_84, %c0_85, %c0_86, %c0_87], %147 {strides = array<i32>} : memref<1x2x32x1xf32, #tpu.memory_space<vmem>>, vector<1x1x32x1xf32>,
    %c0_88 = arith.constant 0 : index
    %c1_89 = arith.constant 1 : index
    %c0_90 = arith.constant 0 : index
    %c0_91 = arith.constant 0 : index
    %148 = vector.load %arg6[%c0_88, %c1_89, %c0_90, %c0_91] : memref<1x2x32x1xf32, #tpu.memory_space<vmem>>, vector<1x1x32x1xf32>
    %149 = vector.shape_cast %148 : vector<1x1x32x1xf32> to vector<32x1xf32>
    %150 = vector.shape_cast %144 : vector<32x1xf32> to vector<1x1x32x1xf32>
    tpu.vector_store %arg6[%c0_88, %c1_89, %c0_90, %c0_91], %150 {strides = array<i32>} : memref<1x2x32x1xf32, #tpu.memory_space<vmem>>, vector<1x1x32x1xf32>,
    return
  }
  func.func @transform_0(%arg0: i32) -> (i32, i32, i32, i32) {
    %c0_i32 = arith.constant 0 : i32
    %c0_i32_0 = arith.constant 0 : i32
    %c0_i32_1 = arith.constant 0 : i32
    %c0_i32_2 = arith.constant 0 : i32
    return %c0_i32, %arg0, %c0_i32_0, %c0_i32_1 : i32, i32, i32, i32
  }
  func.func @transform_1(%arg0: i32) -> (i32, i32) {
    %c0_i32 = arith.constant 0 : i32
    %c0_i32_0 = arith.constant 0 : i32
    %c0_i32_1 = arith.constant 0 : i32
    return %c0_i32, %c0_i32_0 : i32, i32
  }
  func.func @transform_2(%arg0: i32) -> (i32, i32) {
    %c0_i32 = arith.constant 0 : i32
    %c0_i32_0 = arith.constant 0 : i32
    %c0_i32_1 = arith.constant 0 : i32
    return %c0_i32, %c0_i32_0 : i32, i32
  }
  func.func @transform_3(%arg0: i32) -> (i32, i32) {
    %c0_i32 = arith.constant 0 : i32
    %c0_i32_0 = arith.constant 0 : i32
    %c0_i32_1 = arith.constant 0 : i32
    return %c0_i32, %c0_i32_0 : i32, i32
  }
  func.func @transform_4(%arg0: i32) -> (i32, i32, i32, i32) {
    %c0_i32 = arith.constant 0 : i32
    %c0_i32_0 = arith.constant 0 : i32
    %c0_i32_1 = arith.constant 0 : i32
    %c0_i32_2 = arith.constant 0 : i32
    return %c0_i32, %arg0, %c0_i32_0, %c0_i32_1 : i32, i32, i32, i32
  }
  func.func @transform_5(%arg0: i32) -> (i32, i32, i32, i32) {
    %c0_i32 = arith.constant 0 : i32
    %c0_i32_0 = arith.constant 0 : i32
    %c0_i32_1 = arith.constant 0 : i32
    %c0_i32_2 = arith.constant 0 : i32
    return %arg0, %c0_i32, %c0_i32_0, %c0_i32_1 : i32, i32, i32, i32
  }
}

module attributes {stable_mosaic.version = 11 : i64} {
  func.func @_final_add_kernel(%arg0: i32, %arg1: memref<4x2048xbf16, #tpu.memory_space<vmem>>, %arg2: memref<4x2048xbf16, #tpu.memory_space<vmem>>, %arg3: memref<4x2048xbf16, #tpu.memory_space<vmem>>, %arg4: memref<4x2048xf32, #tpu.memory_space<vmem>>, %arg5: memref<1x2048xf32, #tpu.memory_space<vmem>>, %arg6: memref<1x2048xf32, #tpu.memory_space<vmem>>, %arg7: memref<1x2048xf32, #tpu.memory_space<vmem>>, %arg8: memref<1x2048xf32, #tpu.memory_space<vmem>>, %arg9: memref<1x2048xf32, #tpu.memory_space<vmem>>, %arg10: memref<1x2048xf32, #tpu.memory_space<vmem>>, %arg11: memref<4x2048xf32, #tpu.memory_space<vmem>>) attributes {dimension_semantics = [#tpu.dimension_semantics<parallel>], iteration_bounds = array<i64: 1>, scalar_prefetch = 0 : i64, scratch_operands = 0 : i64, tpu.core_type = #tpu.core_type<tc>, window_params = [{transform_indices = @transform_0, window_bounds = array<i64: 4, 2048>}, {transform_indices = @transform_1, window_bounds = array<i64: 4, 2048>}, {transform_indices = @transform_2, window_bounds = array<i64: 4, 2048>}, {transform_indices = @transform_3, window_bounds = array<i64: 4, 2048>}, {pipeline_mode = #tpu.pipeline_mode<synchronous>, transform_indices = @transform_4, window_bounds = array<i64: 1, 2048>}, {pipeline_mode = #tpu.pipeline_mode<synchronous>, transform_indices = @transform_5, window_bounds = array<i64: 1, 2048>}, {pipeline_mode = #tpu.pipeline_mode<synchronous>, transform_indices = @transform_6, window_bounds = array<i64: 1, 2048>}, {pipeline_mode = #tpu.pipeline_mode<synchronous>, transform_indices = @transform_7, window_bounds = array<i64: 1, 2048>}, {pipeline_mode = #tpu.pipeline_mode<synchronous>, transform_indices = @transform_8, window_bounds = array<i64: 1, 2048>}, {pipeline_mode = #tpu.pipeline_mode<synchronous>, transform_indices = @transform_9, window_bounds = array<i64: 1, 2048>}, {transform_indices = @transform_10, window_bounds = array<i64: 4, 2048>}]} {
    %c0 = arith.constant 0 : index
    %c0_0 = arith.constant 0 : index
    %0 = vector.load %arg1[%c0, %c0_0] : memref<4x2048xbf16, #tpu.memory_space<vmem>>, vector<4x2048xbf16>
    %1 = arith.extf %0 : vector<4x2048xbf16> to vector<4x2048xf32>
    %c0_1 = arith.constant 0 : index
    %c0_2 = arith.constant 0 : index
    %2 = vector.load %arg5[%c0_1, %c0_2] : memref<1x2048xf32, #tpu.memory_space<vmem>>, vector<1x2048xf32>
    %3 = vector.broadcast %2 : vector<1x2048xf32> to vector<4x2048xf32>
    %4 = arith.mulf %1, %3 : vector<4x2048xf32>
    %c0_3 = arith.constant 0 : index
    %c0_4 = arith.constant 0 : index
    %5 = vector.load %arg6[%c0_3, %c0_4] : memref<1x2048xf32, #tpu.memory_space<vmem>>, vector<1x2048xf32>
    %6 = vector.broadcast %5 : vector<1x2048xf32> to vector<4x2048xf32>
    %7 = arith.addf %4, %6 : vector<4x2048xf32>
    %c0_5 = arith.constant 0 : index
    %c0_6 = arith.constant 0 : index
    %8 = vector.load %arg2[%c0_5, %c0_6] : memref<4x2048xbf16, #tpu.memory_space<vmem>>, vector<4x2048xbf16>
    %9 = arith.extf %8 : vector<4x2048xbf16> to vector<4x2048xf32>
    %c0_7 = arith.constant 0 : index
    %c0_8 = arith.constant 0 : index
    %10 = vector.load %arg7[%c0_7, %c0_8] : memref<1x2048xf32, #tpu.memory_space<vmem>>, vector<1x2048xf32>
    %11 = vector.broadcast %10 : vector<1x2048xf32> to vector<4x2048xf32>
    %12 = arith.mulf %9, %11 : vector<4x2048xf32>
    %13 = arith.addf %7, %12 : vector<4x2048xf32>
    %c0_9 = arith.constant 0 : index
    %c0_10 = arith.constant 0 : index
    %14 = vector.load %arg8[%c0_9, %c0_10] : memref<1x2048xf32, #tpu.memory_space<vmem>>, vector<1x2048xf32>
    %15 = vector.broadcast %14 : vector<1x2048xf32> to vector<4x2048xf32>
    %16 = arith.addf %13, %15 : vector<4x2048xf32>
    %c0_11 = arith.constant 0 : index
    %c0_12 = arith.constant 0 : index
    %17 = vector.load %arg3[%c0_11, %c0_12] : memref<4x2048xbf16, #tpu.memory_space<vmem>>, vector<4x2048xbf16>
    %18 = arith.extf %17 : vector<4x2048xbf16> to vector<4x2048xf32>
    %c0_13 = arith.constant 0 : index
    %c0_14 = arith.constant 0 : index
    %19 = vector.load %arg9[%c0_13, %c0_14] : memref<1x2048xf32, #tpu.memory_space<vmem>>, vector<1x2048xf32>
    %20 = vector.broadcast %19 : vector<1x2048xf32> to vector<4x2048xf32>
    %21 = arith.mulf %18, %20 : vector<4x2048xf32>
    %22 = arith.addf %16, %21 : vector<4x2048xf32>
    %c0_15 = arith.constant 0 : index
    %c0_16 = arith.constant 0 : index
    %23 = vector.load %arg10[%c0_15, %c0_16] : memref<1x2048xf32, #tpu.memory_space<vmem>>, vector<1x2048xf32>
    %24 = vector.broadcast %23 : vector<1x2048xf32> to vector<4x2048xf32>
    %25 = arith.addf %22, %24 : vector<4x2048xf32>
    %c0_17 = arith.constant 0 : index
    %c0_18 = arith.constant 0 : index
    %26 = vector.load %arg4[%c0_17, %c0_18] : memref<4x2048xf32, #tpu.memory_space<vmem>>, vector<4x2048xf32>
    %27 = arith.addf %25, %26 : vector<4x2048xf32>
    %c0_19 = arith.constant 0 : index
    %c0_20 = arith.constant 0 : index
    %28 = vector.load %arg11[%c0_19, %c0_20] : memref<4x2048xf32, #tpu.memory_space<vmem>>, vector<4x2048xf32>
    tpu.vector_store %arg11[%c0_19, %c0_20], %27 {strides = array<i32>} : memref<4x2048xf32, #tpu.memory_space<vmem>>, vector<4x2048xf32>,
    return
  }
  func.func @transform_0(%arg0: i32) -> (i32, i32) {
    %c0_i32 = arith.constant 0 : i32
    %c0_i32_0 = arith.constant 0 : i32
    return %arg0, %c0_i32 : i32, i32
  }
  func.func @transform_1(%arg0: i32) -> (i32, i32) {
    %c0_i32 = arith.constant 0 : i32
    %c0_i32_0 = arith.constant 0 : i32
    return %arg0, %c0_i32 : i32, i32
  }
  func.func @transform_2(%arg0: i32) -> (i32, i32) {
    %c0_i32 = arith.constant 0 : i32
    %c0_i32_0 = arith.constant 0 : i32
    return %arg0, %c0_i32 : i32, i32
  }
  func.func @transform_3(%arg0: i32) -> (i32, i32) {
    %c0_i32 = arith.constant 0 : i32
    %c0_i32_0 = arith.constant 0 : i32
    return %arg0, %c0_i32 : i32, i32
  }
  func.func @transform_4(%arg0: i32) -> (i32, i32) {
    %c0_i32 = arith.constant 0 : i32
    %c0_i32_0 = arith.constant 0 : i32
    %c0_i32_1 = arith.constant 0 : i32
    return %c0_i32, %c0_i32_0 : i32, i32
  }
  func.func @transform_5(%arg0: i32) -> (i32, i32) {
    %c0_i32 = arith.constant 0 : i32
    %c0_i32_0 = arith.constant 0 : i32
    %c0_i32_1 = arith.constant 0 : i32
    return %c0_i32, %c0_i32_0 : i32, i32
  }
  func.func @transform_6(%arg0: i32) -> (i32, i32) {
    %c0_i32 = arith.constant 0 : i32
    %c0_i32_0 = arith.constant 0 : i32
    %c0_i32_1 = arith.constant 0 : i32
    return %c0_i32, %c0_i32_0 : i32, i32
  }
  func.func @transform_7(%arg0: i32) -> (i32, i32) {
    %c0_i32 = arith.constant 0 : i32
    %c0_i32_0 = arith.constant 0 : i32
    %c0_i32_1 = arith.constant 0 : i32
    return %c0_i32, %c0_i32_0 : i32, i32
  }
  func.func @transform_8(%arg0: i32) -> (i32, i32) {
    %c0_i32 = arith.constant 0 : i32
    %c0_i32_0 = arith.constant 0 : i32
    %c0_i32_1 = arith.constant 0 : i32
    return %c0_i32, %c0_i32_0 : i32, i32
  }
  func.func @transform_9(%arg0: i32) -> (i32, i32) {
    %c0_i32 = arith.constant 0 : i32
    %c0_i32_0 = arith.constant 0 : i32
    %c0_i32_1 = arith.constant 0 : i32
    return %c0_i32, %c0_i32_0 : i32, i32
  }
  func.func @transform_10(%arg0: i32) -> (i32, i32) {
    %c0_i32 = arith.constant 0 : i32
    %c0_i32_0 = arith.constant 0 : i32
    return %arg0, %c0_i32 : i32, i32
  }
}

</mosaic_0001>

<llo_original>
// kernel: tile.13
$region0: #{tile.13}
  #allocation0 [shape = 's32[1]{0}', space=sflag, size = 0x4, scoped, tag = 'scoped memory for tile.13']
  %s0 = inlined_call_operand.vmem [shape: f32[8], index: 0, kind: input, shape index: {}]
  %s1 = inlined_call_operand.vmem [shape: f32[4,8], index: 1, kind: output, shape index: {}]
  // Predicated region
  $region2: #{tile.13} parent=0 // pred_check
    _
  $region3: #{tile.13} parent=0 // pred_check_branch
    %3 = sbr.rel (0) target = $region5
  $region4: #{tile.13} parent=0 // pred_region
    _
  $region5: #{tile.13} parent=0 // pred_fallthru
    _
  %v4 = vld [vmem:[%s0] ss:$0 sm:$0xff]
  %5 = vst [vmem:[%s1] sm:$0xf] %v4

// kernel: tile.1
$region0: #{tile.1}
  %s0 = inlined_call_operand.vmem [shape: f32[4,8], index: 0, kind: input, shape index: {}]
  %s1 = inlined_call_operand.vmem [shape: f32[32,1], index: 1, kind: output, shape index: {}]
  $region1: #{tile.1} parent=0
    #allocation0 [shape = 'u8[4096]{0}', space=vmem, size = 0x1000, scoped, tag = 'scoped mem for input reshape']
    %s3 = sshllo.u32 0, 4
    %v4 = vld [vmem:[%s0] sm:%s3]
    %5 = vst [vmem:[#allocation0] sm:%s3] %v4
    %v6 = vld [vmem:[#allocation0] sm:$0xf]
    %vm7 = vcmask 7168
    %8 = vst.msk [vmem:[%s1] ss:$8 sm:$0xf] %vm7, %v6
    %v9 = vld [vmem:[#allocation0] sm:$0xf]
    %10 = vrot.lane.b32.xlu0 %v9, 127
    %v11 = vpop.permute.xlu0 %10
    %vm12 = vcmask 7168
    %s13 = scalar_lea.vmem %s1, 1
    %14 = vst.msk [vmem:[%s13] ss:$8 sm:$0xf] %vm12, %v11
    %v15 = vld [vmem:[#allocation0] sm:$0xf]
    %16 = vrot.lane.b32.xlu0 %v15, 126
    %v17 = vpop.permute.xlu0 %16
    %vm18 = vcmask 7168
    %s19 = scalar_lea.vmem %s1, 2
    %20 = vst.msk [vmem:[%s19] ss:$8 sm:$0xf] %vm18, %v17
    %v21 = vld [vmem:[#allocation0] sm:$0xf]
    %22 = vrot.lane.b32.xlu0 %v21, 125
    %v23 = vpop.permute.xlu0 %22
    %vm24 = vcmask 7168
    %s25 = scalar_lea.vmem %s1, 3
    %26 = vst.msk [vmem:[%s25] ss:$8 sm:$0xf] %vm24, %v23
    %v27 = vld [vmem:[#allocation0] sm:$0xf]
    %28 = vrot.lane.b32.xlu0 %v27, 124
    %v29 = vpop.permute.xlu0 %28
    %vm30 = vcmask 7168
    %s31 = scalar_lea.vmem %s1, 4
    %32 = vst.msk [vmem:[%s31] ss:$8 sm:$0xf] %vm30, %v29
    %v33 = vld [vmem:[#allocation0] sm:$0xf]
    %34 = vrot.lane.b32.xlu0 %v33, 123
    %v35 = vpop.permute.xlu0 %34
    %vm36 = vcmask 7168
    %s37 = scalar_lea.vmem %s1, 5
    %38 = vst.msk [vmem:[%s37] ss:$8 sm:$0xf] %vm36, %v35
    %v39 = vld [vmem:[#allocation0] sm:$0xf]
    %40 = vrot.lane.b32.xlu0 %v39, 122
    %v41 = vpop.permute.xlu0 %40
    %vm42 = vcmask 7168
    %s43 = scalar_lea.vmem %s1, 6
    %44 = vst.msk [vmem:[%s43] ss:$8 sm:$0xf] %vm42, %v41
    %v45 = vld [vmem:[#allocation0] sm:$0xf]
    %46 = vrot.lane.b32.xlu0 %v45, 121
    %v47 = vpop.permute.xlu0 %46
    %vm48 = vcmask 7168
    %s49 = scalar_lea.vmem %s1, 7
    %50 = vst.msk [vmem:[%s49] ss:$8 sm:$0xf] %vm48, %v47

// kernel: fatm_forward.6
$region0: #{fatm_forward.6}
  #allocation0 [shape = 'u32[]', space=smem, size = 0x4, offset = 0x4, fixed_abs, tag = 'smem constant byte address 0x4 - core index']
  #allocation1 [shape = 'u32[144,128]{1,0:T(1,128)}', space=vmem, size = 0x12000, scoped, tag = 'internal scratch']
  %s0 = inlined_call_operand.vmem [shape: bf16[2,2,32,64], index: 0, kind: input, shape index: {}]
  %s1 = inlined_call_operand.vmem [shape: f32[32,1], index: 1, kind: input, shape index: {}]
  %s2 = inlined_call_operand.vmem [shape: f32[32,1], index: 2, kind: input, shape index: {}]
  %s3 = inlined_call_operand.vmem [shape: bf16[64,64], index: 3, kind: input, shape index: {}]
  %s4 = inlined_call_operand.vmem [shape: bf16[2,2,32,64], index: 4, kind: output, shape index: {0}]
  %s5 = inlined_call_operand.vmem [shape: f32[1,2,32,1], index: 5, kind: output, shape index: {1}]
  %6 = xla_tuple %s4, %s5
  %s7 = sld [smem:[#allocation0]]
  $region34: #{fatm_forward.6} parent=0
    _
  %s9 = ssub.s32 1, %s7
  %s10 = scalar_select 0, %s9, %s7
  // Predicated region
  $region2: #{fatm_forward.6} parent=0 // pred_check
    _
  $region3: #{fatm_forward.6} parent=0 // pred_check_branch
    %12 = sbr.rel (0) target = $region5
  $region4: #{fatm_forward.6} parent=0 // pred_region
    _
  $region5: #{fatm_forward.6} parent=0 // pred_fallthru
    _
  // Predicated region
  $region6: #{fatm_forward.6} parent=0 // pred_check
    _
  $region7: #{fatm_forward.6} parent=0 // pred_check_branch
    %14 = sbr.rel (0) target = $region9
  $region8: #{fatm_forward.6} parent=0 // pred_region
    _
  $region9: #{fatm_forward.6} parent=0 // pred_fallthru
    _
  // Predicated region
  $region10: #{fatm_forward.6} parent=0 // pred_check
    _
  $region11: #{fatm_forward.6} parent=0 // pred_check_branch
    %16 = sbr.rel (0) target = $region13
  $region12: #{fatm_forward.6} parent=0 // pred_region
    _
  $region13: #{fatm_forward.6} parent=0 // pred_fallthru
    _
  // Predicated region
  $region14: #{fatm_forward.6} parent=0 // pred_check
    _
  $region15: #{fatm_forward.6} parent=0 // pred_check_branch
    %18 = sbr.rel (0) target = $region17
  $region16: #{fatm_forward.6} parent=0 // pred_region
    _
  $region17: #{fatm_forward.6} parent=0 // pred_fallthru
    _
  %v20 = vld [vmem:[%s1] sm:$0xff]
  %v21 = vld [vmem:[%s1 + $0x8] sm:$0xff]
  %v22 = vld [vmem:[%s1 + $0x10] sm:$0xff]
  %v23 = vld [vmem:[%s1 + $0x18] sm:$0xff]
  %v24 = vld [vmem:[%s2] sm:$0xff]
  %v25 = vld [vmem:[%s2 + $0x8] sm:$0xff]
  %v26 = vld [vmem:[%s2 + $0x10] sm:$0xff]
  %v27 = vld [vmem:[%s2 + $0x18] sm:$0xff]
  %v28 = vld [vmem:[%s0] sm:$0xf]
  %v29 = vld [vmem:[%s0 + $0x4] sm:$0xf]
  %v30 = vld [vmem:[%s0 + $0x8] sm:$0xf]
  %v31 = vld [vmem:[%s0 + $0xc] sm:$0xf]
  %v32 = vunpack.c.l.bf16 %v28
  %v33 = vunpack.c.l.bf16 %v29
  %v34 = vunpack.c.l.bf16 %v30
  %v35 = vunpack.c.l.bf16 %v31
  %37 = vset.pattern.permute.xlu0 0
  %38 = vperm.xlu0 %37, %v20
  %v39 = vpop.permute.xlu0 %38
  %42 = vset.pattern.permute.xlu0 0
  %43 = vperm.xlu0 %42, %v21
  %v44 = vpop.permute.xlu0 %43
  %47 = vset.pattern.permute.xlu0 0
  %48 = vperm.xlu0 %47, %v22
  %v49 = vpop.permute.xlu0 %48
  %52 = vset.pattern.permute.xlu0 0
  %53 = vperm.xlu0 %52, %v23
  %v54 = vpop.permute.xlu0 %53
  %v56 = vmul.f32 %v32, %v39
  %v57 = vmul.f32 %v33, %v44
  %v58 = vmul.f32 %v34, %v49
  %v59 = vmul.f32 %v35, %v54
  %61 = vset.pattern.permute.xlu0 0
  %62 = vperm.xlu0 %61, %v24
  %v63 = vpop.permute.xlu0 %62
  %66 = vset.pattern.permute.xlu0 0
  %67 = vperm.xlu0 %66, %v25
  %v68 = vpop.permute.xlu0 %67
  %71 = vset.pattern.permute.xlu0 0
  %72 = vperm.xlu0 %71, %v26
  %v73 = vpop.permute.xlu0 %72
  %76 = vset.pattern.permute.xlu0 0
  %77 = vperm.xlu0 %76, %v27
  %v78 = vpop.permute.xlu0 %77
  %v80 = vadd.f32 %v56, %v63
  %v81 = vadd.f32 %v57, %v68
  %v82 = vadd.f32 %v58, %v73
  %v83 = vadd.f32 %v59, %v78
  %v84 = vpack.c.bf16 %v81, %v80
  %v85 = vpack.c.bf16 %v83, %v82
  %v86 = vld [vmem:[%s3] sm:$0xf]
  %v87 = vld [vmem:[%s3 + $0x4] sm:$0xf]
  %v88 = vld [vmem:[%s3 + $0x8] sm:$0xf]
  %v89 = vld [vmem:[%s3 + $0xc] sm:$0xf]
  %v90 = vld [vmem:[%s3 + $0x10] sm:$0xf]
  %v91 = vld [vmem:[%s3 + $0x14] sm:$0xf]
  %v92 = vld [vmem:[%s3 + $0x18] sm:$0xf]
  %v93 = vld [vmem:[%s3 + $0x1c] sm:$0xf]
  %v102 = vunpack.c.l.b16 %v86
  %v103 = vunpack.c.l.b16 %v87
  %v104 = vunpack.c.l.b16 %v88
  %v105 = vunpack.c.l.b16 %v89
  %v106 = vunpack.c.l.b16 %v90
  %v107 = vunpack.c.l.b16 %v91
  %v108 = vunpack.c.l.b16 %v92
  %v109 = vunpack.c.l.b16 %v93
  %v110 = vpack.c.b16 %v103, %v102
  %v111 = vpack.c.b16 %v105, %v104
  %v112 = vpack.c.b16 %v107, %v106
  %v113 = vpack.c.b16 %v109, %v108
  %vm118 = vcmask 523264
  %v120 = vsel %vm118, %v84, 0
  %v123 = vsel %vm118, %v85, 0
  %125 = vmatprep.subr.bf16.mxu0 0
  %126 = vmatpush1.bf16.msra.mxu0 %v110
  %127 = vmatprep.subr.bf16.mxu0 0
  %128 = vmatpush1.bf16.msra.mxu0 %v111
  %129 = vmatprep.subr.bf16.mxu0 0
  %130 = vmatpush1.bf16.msra.mxu0 %v112
  %131 = vmatprep.subr.bf16.mxu0 0
  %132 = vmatpush1.bf16.msra.mxu0 %v113
  %133 = vmatprep.subr.bf16.mxu0 0
  %134 = vmatpush1.bf16.msra.mxu0 0
  %135 = vmatprep.subr.bf16.mxu0 0
  %136 = vmatpush1.bf16.msra.mxu0 0
  %137 = vmatprep.subr.bf16.mxu0 0
  %138 = vmatpush1.bf16.msra.mxu0 0
  %139 = vmatprep.subr.bf16.mxu0 0
  %140 = vmatpush1.bf16.msra.mxu0 0
  %141 = vmatprep.subr.bf16.mxu0 0
  %142 = vmatpush1.bf16.msra.mxu0 0
  %143 = vmatprep.subr.bf16.mxu0 0
  %144 = vmatpush1.bf16.msra.mxu0 0
  %145 = vmatprep.subr.bf16.mxu0 0
  %146 = vmatpush1.bf16.msra.mxu0 0
  %147 = vmatprep.subr.bf16.mxu0 0
  %148 = vmatpush1.bf16.msra.mxu0 0
  %149 = vmatprep.subr.bf16.mxu0 0
  %150 = vmatpush1.bf16.msra.mxu0 0
  %151 = vmatprep.subr.bf16.mxu0 0
  %152 = vmatpush1.bf16.msra.mxu0 0
  %153 = vmatprep.subr.bf16.mxu0 0
  %154 = vmatpush1.bf16.msra.mxu0 0
  %155 = vmatprep.subr.bf16.mxu0 0
  %156 = vmatpush1.bf16.msra.mxu0 0
  %157 = vmatprep.mubr.bf16.mxu0 0
  %158 = vmatmul.mubr.bf16.gmra.mrb[0].mxu0 %v120
  %v159 = vpop.f32.mrb[0].mxu0
  %v160 = vadd.f32 0.0, %v159
  %v161 = vpop.f32.mrb[0].mxu0
  %v162 = vpop.f32.mrb[0].mxu0
  %v163 = vadd.f32 0.0, %v162
  %v164 = vpop.f32.mrb[0].mxu0
  %165 = vmatprep.mubr.bf16.mxu0 0
  %166 = vmatmul.mubr.bf16.gmra.mrb[0].mxu0 %v123
  %v167 = vpop.f32.mrb[0].mxu0
  %v168 = vadd.f32 0.0, %v167
  %v169 = vpop.f32.mrb[0].mxu0
  %v170 = vpop.f32.mrb[0].mxu0
  %v171 = vadd.f32 0.0, %v170
  %v172 = vpop.f32.mrb[0].mxu0
  %173 = vdwg.mxu0
  %vm174 = vcmp.ge.f32.partialorder %v160, 1.0
  %vm175 = vcmp.ge.f32.partialorder %v163, 1.0
  %vm176 = vcmp.ge.f32.partialorder %v168, 1.0
  %vm177 = vcmp.ge.f32.partialorder %v171, 1.0
  %v178 = vsel %vm174, 1.0, 0.0
  %v179 = vsel %vm175, 1.0, 0.0
  %v180 = vsel %vm176, 1.0, 0.0
  %v181 = vsel %vm177, 1.0, 0.0
  %vm182 = vcmp.le.f32.partialorder %v160, -1.0
  %vm183 = vcmp.le.f32.partialorder %v163, -1.0
  %vm184 = vcmp.le.f32.partialorder %v168, -1.0
  %vm185 = vcmp.le.f32.partialorder %v171, -1.0
  %v186 = vsel %vm182, -1.0, 0.0
  %v187 = vsel %vm183, -1.0, 0.0
  %v188 = vsel %vm184, -1.0, 0.0
  %v189 = vsel %vm185, -1.0, 0.0
  %v190 = vadd.f32 %v178, %v186
  %v191 = vadd.f32 %v179, %v187
  %v192 = vadd.f32 %v180, %v188
  %v193 = vadd.f32 %v181, %v189
  %vm194 = vcmp.ne.f32.partialorder %v190, 0.0
  %vm195 = vcmp.ne.f32.partialorder %v191, 0.0
  %vm196 = vcmp.ne.f32.partialorder %v192, 0.0
  %vm197 = vcmp.ne.f32.partialorder %v193, 0.0
  %v198 = vsel %vm194, 0.0, %v160
  %v199 = vsel %vm195, 0.0, %v163
  %v200 = vsel %vm196, 0.0, %v168
  %v201 = vsel %vm197, 0.0, %v171
  %v202 = vpack.c.bf16 %v191, %v190
  %v203 = vpack.c.bf16 %v193, %v192
  %v206 = vunpack.c.l.b16 %v202
  %v207 = vunpack.c.h.b16 %v202
  %v208 = vunpack.c.l.b16 %v203
  %v209 = vunpack.c.h.b16 %v203
  %v210 = vpack.c.b16 %v206, %v206
  %v211 = vpack.c.b16 %v207, %v207
  %v212 = vpack.c.b16 %v208, %v208
  %v213 = vpack.c.b16 %v209, %v209
  %vm218 = vcmask 519168
  %219 = vst.msk [vmem:[%s4] sm:$0xf] %vm218, %v210
  %220 = vst.msk [vmem:[%s4 + $0x4] sm:$0xf] %vm218, %v211
  %221 = vst.msk [vmem:[%s4 + $0x8] sm:$0xf] %vm218, %v212
  %222 = vst.msk [vmem:[%s4 + $0xc] sm:$0xf] %vm218, %v213
  %v223 = vsel %vm118, %v190, 0.0
  %224 = vadd.xlane.f32.xlu0 %v223
  %v225 = vpop.xlane.xlu0 %224
  %v226 = vsel %vm118, %v191, 0.0
  %227 = vadd.xlane.f32.xlu0 %v226
  %v228 = vpop.xlane.xlu0 %227
  %v229 = vsel %vm118, %v192, 0.0
  %230 = vadd.xlane.f32.xlu0 %v229
  %v231 = vpop.xlane.xlu0 %230
  %v232 = vsel %vm118, %v193, 0.0
  %233 = vadd.xlane.f32.xlu0 %v232
  %v234 = vpop.xlane.xlu0 %233
  %v235 = vadd.f32 %v225, 0.0
  %v236 = vadd.f32 %v228, 0.0
  %v237 = vadd.f32 %v231, 0.0
  %v238 = vadd.f32 %v234, 0.0
  %v239 = vmul.f32 %v190, %v190
  %v240 = vmul.f32 %v191, %v191
  %v241 = vmul.f32 %v192, %v192
  %v242 = vmul.f32 %v193, %v193
  %v243 = vsel %vm118, %v239, 0.0
  %244 = vadd.xlane.f32.xlu0 %v243
  %v245 = vpop.xlane.xlu0 %244
  %v246 = vsel %vm118, %v240, 0.0
  %247 = vadd.xlane.f32.xlu0 %v246
  %v248 = vpop.xlane.xlu0 %247
  %v249 = vsel %vm118, %v241, 0.0
  %250 = vadd.xlane.f32.xlu0 %v249
  %v251 = vpop.xlane.xlu0 %250
  %v252 = vsel %vm118, %v242, 0.0
  %253 = vadd.xlane.f32.xlu0 %v252
  %v254 = vpop.xlane.xlu0 %253
  %v255 = vadd.f32 %v245, 0.0
  %v256 = vadd.f32 %v248, 0.0
  %v257 = vadd.f32 %v251, 0.0
  %v258 = vadd.f32 %v254, 0.0
  %s259 = scalar_lea.vmem %s0, 32
  %v260 = vld [vmem:[%s259] sm:$0xf]
  %v261 = vld [vmem:[%s259 + $0x4] sm:$0xf]
  %v262 = vld [vmem:[%s259 + $0x8] sm:$0xf]
  %v263 = vld [vmem:[%s259 + $0xc] sm:$0xf]
  %v264 = vunpack.c.l.bf16 %v260
  %v265 = vunpack.c.l.bf16 %v261
  %v266 = vunpack.c.l.bf16 %v262
  %v267 = vunpack.c.l.bf16 %v263
  %v268 = vmul.f32 %v264, %v39
  %v269 = vmul.f32 %v265, %v44
  %v270 = vmul.f32 %v266, %v49
  %v271 = vmul.f32 %v267, %v54
  %v272 = vadd.f32 %v268, %v63
  %v273 = vadd.f32 %v269, %v68
  %v274 = vadd.f32 %v270, %v73
  %v275 = vadd.f32 %v271, %v78
  %v276 = vpack.c.bf16 %v273, %v272
  %v277 = vpack.c.bf16 %v275, %v274
  %v278 = vld [vmem:[%s3] sm:$0xf]
  %v279 = vld [vmem:[%s3 + $0x4] sm:$0xf]
  %v280 = vld [vmem:[%s3 + $0x8] sm:$0xf]
  %v281 = vld [vmem:[%s3 + $0xc] sm:$0xf]
  %v282 = vld [vmem:[%s3 + $0x10] sm:$0xf]
  %v283 = vld [vmem:[%s3 + $0x14] sm:$0xf]
  %v284 = vld [vmem:[%s3 + $0x18] sm:$0xf]
  %v285 = vld [vmem:[%s3 + $0x1c] sm:$0xf]
  %v294 = vunpack.c.l.b16 %v278
  %v295 = vunpack.c.l.b16 %v279
  %v296 = vunpack.c.l.b16 %v280
  %v297 = vunpack.c.l.b16 %v281
  %v298 = vunpack.c.l.b16 %v282
  %v299 = vunpack.c.l.b16 %v283
  %v300 = vunpack.c.l.b16 %v284
  %v301 = vunpack.c.l.b16 %v285
  %v302 = vpack.c.b16 %v295, %v294
  %v303 = vpack.c.b16 %v297, %v296
  %v304 = vpack.c.b16 %v299, %v298
  %v305 = vpack.c.b16 %v301, %v300
  %v311 = vsel %vm118, %v276, 0
  %v314 = vsel %vm118, %v277, 0
  %316 = vmatprep.subr.bf16.mxu0 0
  %317 = vmatpush1.bf16.msra.mxu0 %v302
  %318 = vmatprep.subr.bf16.mxu0 0
  %319 = vmatpush1.bf16.msra.mxu0 %v303
  %320 = vmatprep.subr.bf16.mxu0 0
  %321 = vmatpush1.bf16.msra.mxu0 %v304
  %322 = vmatprep.subr.bf16.mxu0 0
  %323 = vmatpush1.bf16.msra.mxu0 %v305
  %324 = vmatprep.subr.bf16.mxu0 0
  %325 = vmatpush1.bf16.msra.mxu0 0
  %326 = vmatprep.subr.bf16.mxu0 0
  %327 = vmatpush1.bf16.msra.mxu0 0
  %328 = vmatprep.subr.bf16.mxu0 0
  %329 = vmatpush1.bf16.msra.mxu0 0
  %330 = vmatprep.subr.bf16.mxu0 0
  %331 = vmatpush1.bf16.msra.mxu0 0
  %332 = vmatprep.subr.bf16.mxu0 0
  %333 = vmatpush1.bf16.msra.mxu0 0
  %334 = vmatprep.subr.bf16.mxu0 0
  %335 = vmatpush1.bf16.msra.mxu0 0
  %336 = vmatprep.subr.bf16.mxu0 0
  %337 = vmatpush1.bf16.msra.mxu0 0
  %338 = vmatprep.subr.bf16.mxu0 0
  %339 = vmatpush1.bf16.msra.mxu0 0
  %340 = vmatprep.subr.bf16.mxu0 0
  %341 = vmatpush1.bf16.msra.mxu0 0
  %342 = vmatprep.subr.bf16.mxu0 0
  %343 = vmatpush1.bf16.msra.mxu0 0
  %344 = vmatprep.subr.bf16.mxu0 0
  %345 = vmatpush1.bf16.msra.mxu0 0
  %346 = vmatprep.subr.bf16.mxu0 0
  %347 = vmatpush1.bf16.msra.mxu0 0
  %348 = vmatprep.mubr.bf16.mxu0 0
  %349 = vmatmul.mubr.bf16.gmra.mrb[0].mxu0 %v311
  %v350 = vpop.f32.mrb[0].mxu0
  %v351 = vadd.f32 0.0, %v350
  %v352 = vpop.f32.mrb[0].mxu0
  %v353 = vpop.f32.mrb[0].mxu0
  %v354 = vadd.f32 0.0, %v353
  %v355 = vpop.f32.mrb[0].mxu0
  %356 = vmatprep.mubr.bf16.mxu0 0
  %357 = vmatmul.mubr.bf16.gmra.mrb[0].mxu0 %v314
  %v358 = vpop.f32.mrb[0].mxu0
  %v359 = vadd.f32 0.0, %v358
  %v360 = vpop.f32.mrb[0].mxu0
  %v361 = vpop.f32.mrb[0].mxu0
  %v362 = vadd.f32 0.0, %v361
  %v363 = vpop.f32.mrb[0].mxu0
  %364 = vdwg.mxu0
  %v365 = vadd.f32 %v198, %v351
  %v366 = vadd.f32 %v199, %v354
  %v367 = vadd.f32 %v200, %v359
  %v368 = vadd.f32 %v201, %v362
  %vm369 = vcmp.ge.f32.partialorder %v365, 1.0
  %vm370 = vcmp.ge.f32.partialorder %v366, 1.0
  %vm371 = vcmp.ge.f32.partialorder %v367, 1.0
  %vm372 = vcmp.ge.f32.partialorder %v368, 1.0
  %v373 = vsel %vm369, 1.0, 0.0
  %v374 = vsel %vm370, 1.0, 0.0
  %v375 = vsel %vm371, 1.0, 0.0
  %v376 = vsel %vm372, 1.0, 0.0
  %vm377 = vcmp.le.f32.partialorder %v365, -1.0
  %vm378 = vcmp.le.f32.partialorder %v366, -1.0
  %vm379 = vcmp.le.f32.partialorder %v367, -1.0
  %vm380 = vcmp.le.f32.partialorder %v368, -1.0
  %v381 = vsel %vm377, -1.0, 0.0
  %v382 = vsel %vm378, -1.0, 0.0
  %v383 = vsel %vm379, -1.0, 0.0
  %v384 = vsel %vm380, -1.0, 0.0
  %v385 = vadd.f32 %v373, %v381
  %v386 = vadd.f32 %v374, %v382
  %v387 = vadd.f32 %v375, %v383
  %v388 = vadd.f32 %v376, %v384
  %v389 = vpack.c.bf16 %v386, %v385
  %v390 = vpack.c.bf16 %v388, %v387
  %v393 = vunpack.c.l.b16 %v389
  %v394 = vunpack.c.h.b16 %v389
  %v395 = vunpack.c.l.b16 %v390
  %v396 = vunpack.c.h.b16 %v390
  %v397 = vpack.c.b16 %v393, %v393
  %v398 = vpack.c.b16 %v394, %v394
  %v399 = vpack.c.b16 %v395, %v395
  %v400 = vpack.c.b16 %v396, %v396
  %s405 = scalar_lea.vmem %s4, 32
  %406 = vst.msk [vmem:[%s405] sm:$0xf] %vm218, %v397
  %407 = vst.msk [vmem:[%s405 + $0x4] sm:$0xf] %vm218, %v398
  %408 = vst.msk [vmem:[%s405 + $0x8] sm:$0xf] %vm218, %v399
  %409 = vst.msk [vmem:[%s405 + $0xc] sm:$0xf] %vm218, %v400
  %v410 = vsel %vm118, %v385, 0.0
  %411 = vadd.xlane.f32.xlu0 %v410
  %v412 = vpop.xlane.xlu0 %411
  %v413 = vsel %vm118, %v386, 0.0
  %414 = vadd.xlane.f32.xlu0 %v413
  %v415 = vpop.xlane.xlu0 %414
  %v416 = vsel %vm118, %v387, 0.0
  %417 = vadd.xlane.f32.xlu0 %v416
  %v418 = vpop.xlane.xlu0 %417
  %v419 = vsel %vm118, %v388, 0.0
  %420 = vadd.xlane.f32.xlu0 %v419
  %v421 = vpop.xlane.xlu0 %420
  %v422 = vadd.f32 %v235, %v412
  %v423 = vadd.f32 %v236, %v415
  %v424 = vadd.f32 %v237, %v418
  %v425 = vadd.f32 %v238, %v421
  %v426 = vmul.f32 %v385, %v385
  %v427 = vmul.f32 %v386, %v386
  %v428 = vmul.f32 %v387, %v387
  %v429 = vmul.f32 %v388, %v388
  %v430 = vsel %vm118, %v426, 0.0
  %431 = vadd.xlane.f32.xlu0 %v430
  %v432 = vpop.xlane.xlu0 %431
  %v433 = vsel %vm118, %v427, 0.0
  %434 = vadd.xlane.f32.xlu0 %v433
  %v435 = vpop.xlane.xlu0 %434
  %v436 = vsel %vm118, %v428, 0.0
  %437 = vadd.xlane.f32.xlu0 %v436
  %v438 = vpop.xlane.xlu0 %437
  %v439 = vsel %vm118, %v429, 0.0
  %440 = vadd.xlane.f32.xlu0 %v439
  %v441 = vpop.xlane.xlu0 %440
  %v442 = vadd.f32 %v255, %v432
  %v443 = vadd.f32 %v256, %v435
  %v444 = vadd.f32 %v257, %v438
  %v445 = vadd.f32 %v258, %v441
  %s446 = scalar_lea.vmem %s0, 16
  %v447 = vld [vmem:[%s446] sm:$0xf]
  %v448 = vld [vmem:[%s446 + $0x4] sm:$0xf]
  %v449 = vld [vmem:[%s446 + $0x8] sm:$0xf]
  %v450 = vld [vmem:[%s446 + $0xc] sm:$0xf]
  %v451 = vunpack.c.l.bf16 %v447
  %v452 = vunpack.c.l.bf16 %v448
  %v453 = vunpack.c.l.bf16 %v449
  %v454 = vunpack.c.l.bf16 %v450
  %v455 = vmul.f32 %v451, %v39
  %v456 = vmul.f32 %v452, %v44
  %v457 = vmul.f32 %v453, %v49
  %v458 = vmul.f32 %v454, %v54
  %v459 = vadd.f32 %v455, %v63
  %v460 = vadd.f32 %v456, %v68
  %v461 = vadd.f32 %v457, %v73
  %v462 = vadd.f32 %v458, %v78
  %v463 = vpack.c.bf16 %v460, %v459
  %v464 = vpack.c.bf16 %v462, %v461
  %v465 = vld [vmem:[%s3] sm:$0xf]
  %v466 = vld [vmem:[%s3 + $0x4] sm:$0xf]
  %v467 = vld [vmem:[%s3 + $0x8] sm:$0xf]
  %v468 = vld [vmem:[%s3 + $0xc] sm:$0xf]
  %v469 = vld [vmem:[%s3 + $0x10] sm:$0xf]
  %v470 = vld [vmem:[%s3 + $0x14] sm:$0xf]
  %v471 = vld [vmem:[%s3 + $0x18] sm:$0xf]
  %v472 = vld [vmem:[%s3 + $0x1c] sm:$0xf]
  %v481 = vunpack.c.l.b16 %v465
  %v482 = vunpack.c.l.b16 %v466
  %v483 = vunpack.c.l.b16 %v467
  %v484 = vunpack.c.l.b16 %v468
  %v485 = vunpack.c.l.b16 %v469
  %v486 = vunpack.c.l.b16 %v470
  %v487 = vunpack.c.l.b16 %v471
  %v488 = vunpack.c.l.b16 %v472
  %v489 = vpack.c.b16 %v482, %v481
  %v490 = vpack.c.b16 %v484, %v483
  %v491 = vpack.c.b16 %v486, %v485
  %v492 = vpack.c.b16 %v488, %v487
  %v498 = vsel %vm118, %v463, 0
  %v501 = vsel %vm118, %v464, 0
  %503 = vmatprep.subr.bf16.mxu0 0
  %504 = vmatpush1.bf16.msra.mxu0 %v489
  %505 = vmatprep.subr.bf16.mxu0 0
  %506 = vmatpush1.bf16.msra.mxu0 %v490
  %507 = vmatprep.subr.bf16.mxu0 0
  %508 = vmatpush1.bf16.msra.mxu0 %v491
  %509 = vmatprep.subr.bf16.mxu0 0
  %510 = vmatpush1.bf16.msra.mxu0 %v492
  %511 = vmatprep.subr.bf16.mxu0 0
  %512 = vmatpush1.bf16.msra.mxu0 0
  %513 = vmatprep.subr.bf16.mxu0 0
  %514 = vmatpush1.bf16.msra.mxu0 0
  %515 = vmatprep.subr.bf16.mxu0 0
  %516 = vmatpush1.bf16.msra.mxu0 0
  %517 = vmatprep.subr.bf16.mxu0 0
  %518 = vmatpush1.bf16.msra.mxu0 0
  %519 = vmatprep.subr.bf16.mxu0 0
  %520 = vmatpush1.bf16.msra.mxu0 0
  %521 = vmatprep.subr.bf16.mxu0 0
  %522 = vmatpush1.bf16.msra.mxu0 0
  %523 = vmatprep.subr.bf16.mxu0 0
  %524 = vmatpush1.bf16.msra.mxu0 0
  %525 = vmatprep.subr.bf16.mxu0 0
  %526 = vmatpush1.bf16.msra.mxu0 0
  %527 = vmatprep.subr.bf16.mxu0 0
  %528 = vmatpush1.bf16.msra.mxu0 0
  %529 = vmatprep.subr.bf16.mxu0 0
  %530 = vmatpush1.bf16.msra.mxu0 0
  %531 = vmatprep.subr.bf16.mxu0 0
  %532 = vmatpush1.bf16.msra.mxu0 0
  %533 = vmatprep.subr.bf16.mxu0 0
  %534 = vmatpush1.bf16.msra.mxu0 0
  %535 = vmatprep.mubr.bf16.mxu0 0
  %536 = vmatmul.mubr.bf16.gmra.mrb[0].mxu0 %v498
  %v537 = vpop.f32.mrb[0].mxu0
  %v538 = vadd.f32 0.0, %v537
  %v539 = vpop.f32.mrb[0].mxu0
  %v540 = vpop.f32.mrb[0].mxu0
  %v541 = vadd.f32 0.0, %v540
  %v542 = vpop.f32.mrb[0].mxu0
  %543 = vmatprep.mubr.bf16.mxu0 0
  %544 = vmatmul.mubr.bf16.gmra.mrb[0].mxu0 %v501
  %v545 = vpop.f32.mrb[0].mxu0
  %v546 = vadd.f32 0.0, %v545
  %v547 = vpop.f32.mrb[0].mxu0
  %v548 = vpop.f32.mrb[0].mxu0
  %v549 = vadd.f32 0.0, %v548
  %v550 = vpop.f32.mrb[0].mxu0
  %551 = vdwg.mxu0
  %vm552 = vcmp.ge.f32.partialorder %v538, 1.0
  %vm553 = vcmp.ge.f32.partialorder %v541, 1.0
  %vm554 = vcmp.ge.f32.partialorder %v546, 1.0
  %vm555 = vcmp.ge.f32.partialorder %v549, 1.0
  %v556 = vsel %vm552, 1.0, 0.0
  %v557 = vsel %vm553, 1.0, 0.0
  %v558 = vsel %vm554, 1.0, 0.0
  %v559 = vsel %vm555, 1.0, 0.0
  %vm560 = vcmp.le.f32.partialorder %v538, -1.0
  %vm561 = vcmp.le.f32.partialorder %v541, -1.0
  %vm562 = vcmp.le.f32.partialorder %v546, -1.0
  %vm563 = vcmp.le.f32.partialorder %v549, -1.0
  %v564 = vsel %vm560, -1.0, 0.0
  %v565 = vsel %vm561, -1.0, 0.0
  %v566 = vsel %vm562, -1.0, 0.0
  %v567 = vsel %vm563, -1.0, 0.0
  %v568 = vadd.f32 %v556, %v564
  %v569 = vadd.f32 %v557, %v565
  %v570 = vadd.f32 %v558, %v566
  %v571 = vadd.f32 %v559, %v567
  %vm572 = vcmp.ne.f32.partialorder %v568, 0.0
  %vm573 = vcmp.ne.f32.partialorder %v569, 0.0
  %vm574 = vcmp.ne.f32.partialorder %v570, 0.0
  %vm575 = vcmp.ne.f32.partialorder %v571, 0.0
  %v576 = vsel %vm572, 0.0, %v538
  %v577 = vsel %vm573, 0.0, %v541
  %v578 = vsel %vm574, 0.0, %v546
  %v579 = vsel %vm575, 0.0, %v549
  %v580 = vpack.c.bf16 %v569, %v568
  %v581 = vpack.c.bf16 %v571, %v570
  %v584 = vunpack.c.l.b16 %v580
  %v585 = vunpack.c.h.b16 %v580
  %v586 = vunpack.c.l.b16 %v581
  %v587 = vunpack.c.h.b16 %v581
  %v588 = vpack.c.b16 %v584, %v584
  %v589 = vpack.c.b16 %v585, %v585
  %v590 = vpack.c.b16 %v586, %v586
  %v591 = vpack.c.b16 %v587, %v587
  %s596 = scalar_lea.vmem %s4, 16
  %597 = vst.msk [vmem:[%s596] sm:$0xf] %vm218, %v588
  %598 = vst.msk [vmem:[%s596 + $0x4] sm:$0xf] %vm218, %v589
  %599 = vst.msk [vmem:[%s596 + $0x8] sm:$0xf] %vm218, %v590
  %600 = vst.msk [vmem:[%s596 + $0xc] sm:$0xf] %vm218, %v591
  %v601 = vsel %vm118, %v568, 0.0
  %602 = vadd.xlane.f32.xlu0 %v601
  %v603 = vpop.xlane.xlu0 %602
  %v604 = vsel %vm118, %v569, 0.0
  %605 = vadd.xlane.f32.xlu0 %v604
  %v606 = vpop.xlane.xlu0 %605
  %v607 = vsel %vm118, %v570, 0.0
  %608 = vadd.xlane.f32.xlu0 %v607
  %v609 = vpop.xlane.xlu0 %608
  %v610 = vsel %vm118, %v571, 0.0
  %611 = vadd.xlane.f32.xlu0 %v610
  %v612 = vpop.xlane.xlu0 %611
  %v613 = vadd.f32 %v422, %v603
  %v614 = vadd.f32 %v423, %v606
  %v615 = vadd.f32 %v424, %v609
  %v616 = vadd.f32 %v425, %v612
  %v617 = vmul.f32 %v568, %v568
  %v618 = vmul.f32 %v569, %v569
  %v619 = vmul.f32 %v570, %v570
  %v620 = vmul.f32 %v571, %v571
  %v621 = vsel %vm118, %v617, 0.0
  %622 = vadd.xlane.f32.xlu0 %v621
  %v623 = vpop.xlane.xlu0 %622
  %v624 = vsel %vm118, %v618, 0.0
  %625 = vadd.xlane.f32.xlu0 %v624
  %v626 = vpop.xlane.xlu0 %625
  %v627 = vsel %vm118, %v619, 0.0
  %628 = vadd.xlane.f32.xlu0 %v627
  %v629 = vpop.xlane.xlu0 %628
  %v630 = vsel %vm118, %v620, 0.0
  %631 = vadd.xlane.f32.xlu0 %v630
  %v632 = vpop.xlane.xlu0 %631
  %v633 = vadd.f32 %v442, %v623
  %v634 = vadd.f32 %v443, %v626
  %v635 = vadd.f32 %v444, %v629
  %v636 = vadd.f32 %v445, %v632
  %s637 = scalar_lea.vmem %s0, 48
  %v638 = vld [vmem:[%s637] sm:$0xf]
  %v639 = vld [vmem:[%s637 + $0x4] sm:$0xf]
  %v640 = vld [vmem:[%s637 + $0x8] sm:$0xf]
  %v641 = vld [vmem:[%s637 + $0xc] sm:$0xf]
  %v642 = vunpack.c.l.bf16 %v638
  %v643 = vunpack.c.l.bf16 %v639
  %v644 = vunpack.c.l.bf16 %v640
  %v645 = vunpack.c.l.bf16 %v641
  %v646 = vmul.f32 %v642, %v39
  %v647 = vmul.f32 %v643, %v44
  %v648 = vmul.f32 %v644, %v49
  %v649 = vmul.f32 %v645, %v54
  %v650 = vadd.f32 %v646, %v63
  %v651 = vadd.f32 %v647, %v68
  %v652 = vadd.f32 %v648, %v73
  %v653 = vadd.f32 %v649, %v78
  %v654 = vpack.c.bf16 %v651, %v650
  %v655 = vpack.c.bf16 %v653, %v652
  %v656 = vld [vmem:[%s3] sm:$0xf]
  %v657 = vld [vmem:[%s3 + $0x4] sm:$0xf]
  %v658 = vld [vmem:[%s3 + $0x8] sm:$0xf]
  %v659 = vld [vmem:[%s3 + $0xc] sm:$0xf]
  %v660 = vld [vmem:[%s3 + $0x10] sm:$0xf]
  %v661 = vld [vmem:[%s3 + $0x14] sm:$0xf]
  %v662 = vld [vmem:[%s3 + $0x18] sm:$0xf]
  %v663 = vld [vmem:[%s3 + $0x1c] sm:$0xf]
  %v672 = vunpack.c.l.b16 %v656
  %v673 = vunpack.c.l.b16 %v657
  %v674 = vunpack.c.l.b16 %v658
  %v675 = vunpack.c.l.b16 %v659
  %v676 = vunpack.c.l.b16 %v660
  %v677 = vunpack.c.l.b16 %v661
  %v678 = vunpack.c.l.b16 %v662
  %v679 = vunpack.c.l.b16 %v663
  %v680 = vpack.c.b16 %v673, %v672
  %v681 = vpack.c.b16 %v675, %v674
  %v682 = vpack.c.b16 %v677, %v676
  %v683 = vpack.c.b16 %v679, %v678
  %v689 = vsel %vm118, %v654, 0
  %v692 = vsel %vm118, %v655, 0
  %694 = vmatprep.subr.bf16.mxu0 0
  %695 = vmatpush1.bf16.msra.mxu0 %v680
  %696 = vmatprep.subr.bf16.mxu0 0
  %697 = vmatpush1.bf16.msra.mxu0 %v681
  %698 = vmatprep.subr.bf16.mxu0 0
  %699 = vmatpush1.bf16.msra.mxu0 %v682
  %700 = vmatprep.subr.bf16.mxu0 0
  %701 = vmatpush1.bf16.msra.mxu0 %v683
  %702 = vmatprep.subr.bf16.mxu0 0
  %703 = vmatpush1.bf16.msra.mxu0 0
  %704 = vmatprep.subr.bf16.mxu0 0
  %705 = vmatpush1.bf16.msra.mxu0 0
  %706 = vmatprep.subr.bf16.mxu0 0
  %707 = vmatpush1.bf16.msra.mxu0 0
  %708 = vmatprep.subr.bf16.mxu0 0
  %709 = vmatpush1.bf16.msra.mxu0 0
  %710 = vmatprep.subr.bf16.mxu0 0
  %711 = vmatpush1.bf16.msra.mxu0 0
  %712 = vmatprep.subr.bf16.mxu0 0
  %713 = vmatpush1.bf16.msra.mxu0 0
  %714 = vmatprep.subr.bf16.mxu0 0
  %715 = vmatpush1.bf16.msra.mxu0 0
  %716 = vmatprep.subr.bf16.mxu0 0
  %717 = vmatpush1.bf16.msra.mxu0 0
  %718 = vmatprep.subr.bf16.mxu0 0
  %719 = vmatpush1.bf16.msra.mxu0 0
  %720 = vmatprep.subr.bf16.mxu0 0
  %721 = vmatpush1.bf16.msra.mxu0 0
  %722 = vmatprep.subr.bf16.mxu0 0
  %723 = vmatpush1.bf16.msra.mxu0 0
  %724 = vmatprep.subr.bf16.mxu0 0
  %725 = vmatpush1.bf16.msra.mxu0 0
  %726 = vmatprep.mubr.bf16.mxu0 0
  %727 = vmatmul.mubr.bf16.gmra.mrb[0].mxu0 %v689
  %v728 = vpop.f32.mrb[0].mxu0
  %v729 = vadd.f32 0.0, %v728
  %v730 = vpop.f32.mrb[0].mxu0
  %v731 = vpop.f32.mrb[0].mxu0
  %v732 = vadd.f32 0.0, %v731
  %v733 = vpop.f32.mrb[0].mxu0
  %734 = vmatprep.mubr.bf16.mxu0 0
  %735 = vmatmul.mubr.bf16.gmra.mrb[0].mxu0 %v692
  %v736 = vpop.f32.mrb[0].mxu0
  %v737 = vadd.f32 0.0, %v736
  %v738 = vpop.f32.mrb[0].mxu0
  %v739 = vpop.f32.mrb[0].mxu0
  %v740 = vadd.f32 0.0, %v739
  %v741 = vpop.f32.mrb[0].mxu0
  %742 = vdwg.mxu0
  %v743 = vadd.f32 %v576, %v729
  %v744 = vadd.f32 %v577, %v732
  %v745 = vadd.f32 %v578, %v737
  %v746 = vadd.f32 %v579, %v740
  %vm747 = vcmp.ge.f32.partialorder %v743, 1.0
  %vm748 = vcmp.ge.f32.partialorder %v744, 1.0
  %vm749 = vcmp.ge.f32.partialorder %v745, 1.0
  %vm750 = vcmp.ge.f32.partialorder %v746, 1.0
  %v751 = vsel %vm747, 1.0, 0.0
  %v752 = vsel %vm748, 1.0, 0.0
  %v753 = vsel %vm749, 1.0, 0.0
  %v754 = vsel %vm750, 1.0, 0.0
  %vm755 = vcmp.le.f32.partialorder %v743, -1.0
  %vm756 = vcmp.le.f32.partialorder %v744, -1.0
  %vm757 = vcmp.le.f32.partialorder %v745, -1.0
  %vm758 = vcmp.le.f32.partialorder %v746, -1.0
  %v759 = vsel %vm755, -1.0, 0.0
  %v760 = vsel %vm756, -1.0, 0.0
  %v761 = vsel %vm757, -1.0, 0.0
  %v762 = vsel %vm758, -1.0, 0.0
  %v763 = vadd.f32 %v751, %v759
  %v764 = vadd.f32 %v752, %v760
  %v765 = vadd.f32 %v753, %v761
  %v766 = vadd.f32 %v754, %v762
  %v767 = vpack.c.bf16 %v764, %v763
  %v768 = vpack.c.bf16 %v766, %v765
  %v771 = vunpack.c.l.b16 %v767
  %v772 = vunpack.c.h.b16 %v767
  %v773 = vunpack.c.l.b16 %v768
  %v774 = vunpack.c.h.b16 %v768
  %v775 = vpack.c.b16 %v771, %v771
  %v776 = vpack.c.b16 %v772, %v772
  %v777 = vpack.c.b16 %v773, %v773
  %v778 = vpack.c.b16 %v774, %v774
  %s783 = scalar_lea.vmem %s4, 48
  %784 = vst.msk [vmem:[%s783] sm:$0xf] %vm218, %v775
  %785 = vst.msk [vmem:[%s783 + $0x4] sm:$0xf] %vm218, %v776
  %786 = vst.msk [vmem:[%s783 + $0x8] sm:$0xf] %vm218, %v777
  %787 = vst.msk [vmem:[%s783 + $0xc] sm:$0xf] %vm218, %v778
  %v788 = vsel %vm118, %v763, 0.0
  %789 = vadd.xlane.f32.xlu0 %v788
  %v790 = vpop.xlane.xlu0 %789
  %v791 = vsel %vm118, %v764, 0.0
  %792 = vadd.xlane.f32.xlu0 %v791
  %v793 = vpop.xlane.xlu0 %792
  %v794 = vsel %vm118, %v765, 0.0
  %795 = vadd.xlane.f32.xlu0 %v794
  %v796 = vpop.xlane.xlu0 %795
  %v797 = vsel %vm118, %v766, 0.0
  %798 = vadd.xlane.f32.xlu0 %v797
  %v799 = vpop.xlane.xlu0 %798
  %v800 = vadd.f32 %v613, %v790
  %v801 = vadd.f32 %v614, %v793
  %v802 = vadd.f32 %v615, %v796
  %v803 = vadd.f32 %v616, %v799
  %v804 = vmul.f32 %v763, %v763
  %v805 = vmul.f32 %v764, %v764
  %v806 = vmul.f32 %v765, %v765
  %v807 = vmul.f32 %v766, %v766
  %v808 = vsel %vm118, %v804, 0.0
  %809 = vadd.xlane.f32.xlu0 %v808
  %v810 = vpop.xlane.xlu0 %809
  %v811 = vsel %vm118, %v805, 0.0
  %812 = vadd.xlane.f32.xlu0 %v811
  %v813 = vpop.xlane.xlu0 %812
  %v814 = vsel %vm118, %v806, 0.0
  %815 = vadd.xlane.f32.xlu0 %v814
  %v816 = vpop.xlane.xlu0 %815
  %v817 = vsel %vm118, %v807, 0.0
  %818 = vadd.xlane.f32.xlu0 %v817
  %v819 = vpop.xlane.xlu0 %818
  %v820 = vadd.f32 %v633, %v810
  %v821 = vadd.f32 %v634, %v813
  %v822 = vadd.f32 %v635, %v816
  %v823 = vadd.f32 %v636, %v819
  %vm824 = vcmask 7168
  %825 = vst.msk [vmem:[%s5] sm:$0xff] %vm824, %v800
  %826 = vst.msk [vmem:[%s5 + $0x8] sm:$0xff] %vm824, %v801
  %827 = vst.msk [vmem:[%s5 + $0x10] sm:$0xff] %vm824, %v802
  %828 = vst.msk [vmem:[%s5 + $0x18] sm:$0xff] %vm824, %v803
  %s829 = scalar_lea.vmem %s5, 32
  %830 = vst.msk [vmem:[%s829] sm:$0xff] %vm824, %v820
  %831 = vst.msk [vmem:[%s829 + $0x8] sm:$0xff] %vm824, %v821
  %832 = vst.msk [vmem:[%s829 + $0x10] sm:$0xff] %vm824, %v822
  %833 = vst.msk [vmem:[%s829 + $0x18] sm:$0xff] %vm824, %v823
  // Predicated region
  $region18: #{fatm_forward.6} parent=0 // pred_check
    _
  $region19: #{fatm_forward.6} parent=0 // pred_check_branch
    %835 = sbr.rel (0) target = $region21
  $region20: #{fatm_forward.6} parent=0 // pred_region
    _
  $region21: #{fatm_forward.6} parent=0 // pred_fallthru
    _
  // Predicated region
  $region22: #{fatm_forward.6} parent=0 // pred_check
    _
  $region23: #{fatm_forward.6} parent=0 // pred_check_branch
    %837 = sbr.rel (0) target = $region25
  $region24: #{fatm_forward.6} parent=0 // pred_region
    _
  $region25: #{fatm_forward.6} parent=0 // pred_fallthru
    _
  // Predicated region
  $region26: #{fatm_forward.6} parent=0 // pred_check
    _
  $region27: #{fatm_forward.6} parent=0 // pred_check_branch
    %839 = sbr.rel (0) target = $region29
  $region28: #{fatm_forward.6} parent=0 // pred_region
    _
  $region29: #{fatm_forward.6} parent=0 // pred_fallthru
    _
  // Predicated region
  $region30: #{fatm_forward.6} parent=0 // pred_check
    _
  $region31: #{fatm_forward.6} parent=0 // pred_check_branch
    %841 = sbr.rel (0) target = $region33
  $region32: #{fatm_forward.6} parent=0 // pred_region
    _
  $region33: #{fatm_forward.6} parent=0 // pred_fallthru
    _

// kernel: fatm_forward.5
$region0: #{fatm_forward.5}
  #allocation0 [shape = 'u32[]', space=smem, size = 0x4, offset = 0x4, fixed_abs, tag = 'smem constant byte address 0x4 - core index']
  #allocation1 [shape = 'u32[144,128]{1,0:T(1,128)}', space=vmem, size = 0x12000, scoped, tag = 'internal scratch']
  %s0 = inlined_call_operand.vmem [shape: bf16[2,2,32,64], index: 0, kind: input, shape index: {}]
  %s1 = inlined_call_operand.vmem [shape: f32[32,1], index: 1, kind: input, shape index: {}]
  %s2 = inlined_call_operand.vmem [shape: f32[32,1], index: 2, kind: input, shape index: {}]
  %s3 = inlined_call_operand.vmem [shape: bf16[32,32], index: 3, kind: input, shape index: {}]
  %s4 = inlined_call_operand.vmem [shape: bf16[2,2,32,64], index: 4, kind: output, shape index: {0}]
  %s5 = inlined_call_operand.vmem [shape: f32[1,2,32,1], index: 5, kind: output, shape index: {1}]
  %6 = xla_tuple %s4, %s5
  %s7 = sld [smem:[#allocation0]]
  $region34: #{fatm_forward.5} parent=0
    _
  %s9 = ssub.s32 1, %s7
  %s10 = scalar_select 0, %s9, %s7
  // Predicated region
  $region2: #{fatm_forward.5} parent=0 // pred_check
    _
  $region3: #{fatm_forward.5} parent=0 // pred_check_branch
    %12 = sbr.rel (0) target = $region5
  $region4: #{fatm_forward.5} parent=0 // pred_region
    _
  $region5: #{fatm_forward.5} parent=0 // pred_fallthru
    _
  // Predicated region
  $region6: #{fatm_forward.5} parent=0 // pred_check
    _
  $region7: #{fatm_forward.5} parent=0 // pred_check_branch
    %14 = sbr.rel (0) target = $region9
  $region8: #{fatm_forward.5} parent=0 // pred_region
    _
  $region9: #{fatm_forward.5} parent=0 // pred_fallthru
    _
  // Predicated region
  $region10: #{fatm_forward.5} parent=0 // pred_check
    _
  $region11: #{fatm_forward.5} parent=0 // pred_check_branch
    %16 = sbr.rel (0) target = $region13
  $region12: #{fatm_forward.5} parent=0 // pred_region
    _
  $region13: #{fatm_forward.5} parent=0 // pred_fallthru
    _
  // Predicated region
  $region14: #{fatm_forward.5} parent=0 // pred_check
    _
  $region15: #{fatm_forward.5} parent=0 // pred_check_branch
    %18 = sbr.rel (0) target = $region17
  $region16: #{fatm_forward.5} parent=0 // pred_region
    _
  $region17: #{fatm_forward.5} parent=0 // pred_fallthru
    _
  %v20 = vld [vmem:[%s1] sm:$0xff]
  %v21 = vld [vmem:[%s1 + $0x8] sm:$0xff]
  %v22 = vld [vmem:[%s1 + $0x10] sm:$0xff]
  %v23 = vld [vmem:[%s1 + $0x18] sm:$0xff]
  %v24 = vld [vmem:[%s2] sm:$0xff]
  %v25 = vld [vmem:[%s2 + $0x8] sm:$0xff]
  %v26 = vld [vmem:[%s2 + $0x10] sm:$0xff]
  %v27 = vld [vmem:[%s2 + $0x18] sm:$0xff]
  %v28 = vld [vmem:[%s0] sm:$0xf]
  %v29 = vld [vmem:[%s0 + $0x4] sm:$0xf]
  %v30 = vld [vmem:[%s0 + $0x8] sm:$0xf]
  %v31 = vld [vmem:[%s0 + $0xc] sm:$0xf]
  %v32 = vunpack.c.l.bf16 %v28
  %v33 = vunpack.c.l.bf16 %v29
  %v34 = vunpack.c.l.bf16 %v30
  %v35 = vunpack.c.l.bf16 %v31
  %37 = vset.pattern.permute.xlu0 0
  %38 = vperm.xlu0 %37, %v20
  %v39 = vpop.permute.xlu0 %38
  %42 = vset.pattern.permute.xlu0 0
  %43 = vperm.xlu0 %42, %v21
  %v44 = vpop.permute.xlu0 %43
  %47 = vset.pattern.permute.xlu0 0
  %48 = vperm.xlu0 %47, %v22
  %v49 = vpop.permute.xlu0 %48
  %52 = vset.pattern.permute.xlu0 0
  %53 = vperm.xlu0 %52, %v23
  %v54 = vpop.permute.xlu0 %53
  %v56 = vmul.f32 %v32, %v39
  %v57 = vmul.f32 %v33, %v44
  %v58 = vmul.f32 %v34, %v49
  %v59 = vmul.f32 %v35, %v54
  %61 = vset.pattern.permute.xlu0 0
  %62 = vperm.xlu0 %61, %v24
  %v63 = vpop.permute.xlu0 %62
  %66 = vset.pattern.permute.xlu0 0
  %67 = vperm.xlu0 %66, %v25
  %v68 = vpop.permute.xlu0 %67
  %71 = vset.pattern.permute.xlu0 0
  %72 = vperm.xlu0 %71, %v26
  %v73 = vpop.permute.xlu0 %72
  %76 = vset.pattern.permute.xlu0 0
  %77 = vperm.xlu0 %76, %v27
  %v78 = vpop.permute.xlu0 %77
  %v80 = vadd.f32 %v56, %v63
  %v81 = vadd.f32 %v57, %v68
  %v82 = vadd.f32 %v58, %v73
  %v83 = vadd.f32 %v59, %v78
  %v84 = vmul.f32 %v80, 0.5
  %v85 = vmul.f32 %v81, 0.5
  %v86 = vmul.f32 %v82, 0.5
  %v87 = vmul.f32 %v83, 0.5
  %v88 = vadd.f32 %v84, 0.0
  %v89 = vadd.f32 %v85, 0.0
  %v90 = vadd.f32 %v86, 0.0
  %v91 = vadd.f32 %v87, 0.0
  %vm92 = vcmp.ge.f32.partialorder %v88, 1.0
  %vm93 = vcmp.ge.f32.partialorder %v89, 1.0
  %vm94 = vcmp.ge.f32.partialorder %v90, 1.0
  %vm95 = vcmp.ge.f32.partialorder %v91, 1.0
  %v96 = vsel %vm92, 1, 0
  %v97 = vsel %vm93, 1, 0
  %v98 = vsel %vm94, 1, 0
  %v99 = vsel %vm95, 1, 0
  %v100 = vcvt.s32.f32 %v96
  %v101 = vcvt.s32.f32 %v97
  %v102 = vcvt.s32.f32 %v98
  %v103 = vcvt.s32.f32 %v99
  %v104 = vsub.f32 1.0, %v100
  %v105 = vsub.f32 1.0, %v101
  %v106 = vsub.f32 1.0, %v102
  %v107 = vsub.f32 1.0, %v103
  %v108 = vmul.f32 %v88, %v104
  %v109 = vmul.f32 %v89, %v105
  %v110 = vmul.f32 %v90, %v106
  %v111 = vmul.f32 %v91, %v107
  %v112 = vld [vmem:[%s3] sm:$0xf]
  %v113 = vld [vmem:[%s3 + $0x4] sm:$0xf]
  %v114 = vld [vmem:[%s3 + $0x8] sm:$0xf]
  %v115 = vld [vmem:[%s3 + $0xc] sm:$0xf]
  %v116 = vpack.c.bf16 %v101, %v100
  %v117 = vpack.c.bf16 %v103, %v102
  %v122 = vunpack.c.l.b16 %v112
  %v123 = vunpack.c.l.b16 %v113
  %v124 = vunpack.c.l.b16 %v114
  %v125 = vunpack.c.l.b16 %v115
  %v126 = vpack.c.b16 %v123, %v122
  %v127 = vpack.c.b16 %v125, %v124
  %vm128 = vcmask 261120
  %v130 = vsel %vm128, %v126, 0
  %v133 = vsel %vm128, %v127, 0
  %135 = vmatprep.subr.bf16.mxu0 0
  %136 = vmatpush1.bf16.msra.mxu0 %v116
  %137 = vmatprep.subr.bf16.mxu0 0
  %138 = vmatpush1.bf16.msra.mxu0 %v117
  %139 = vmatprep.subr.bf16.mxu0 0
  %140 = vmatpush1.bf16.msra.mxu0 0
  %141 = vmatprep.subr.bf16.mxu0 0
  %142 = vmatpush1.bf16.msra.mxu0 0
  %143 = vmatprep.subr.bf16.mxu0 0
  %144 = vmatpush1.bf16.msra.mxu0 0
  %145 = vmatprep.subr.bf16.mxu0 0
  %146 = vmatpush1.bf16.msra.mxu0 0
  %147 = vmatprep.subr.bf16.mxu0 0
  %148 = vmatpush1.bf16.msra.mxu0 0
  %149 = vmatprep.subr.bf16.mxu0 0
  %150 = vmatpush1.bf16.msra.mxu0 0
  %151 = vmatprep.subr.bf16.mxu0 0
  %152 = vmatpush1.bf16.msra.mxu0 0
  %153 = vmatprep.subr.bf16.mxu0 0
  %154 = vmatpush1.bf16.msra.mxu0 0
  %155 = vmatprep.subr.bf16.mxu0 0
  %156 = vmatpush1.bf16.msra.mxu0 0
  %157 = vmatprep.subr.bf16.mxu0 0
  %158 = vmatpush1.bf16.msra.mxu0 0
  %159 = vmatprep.subr.bf16.mxu0 0
  %160 = vmatpush1.bf16.msra.mxu0 0
  %161 = vmatprep.subr.bf16.mxu0 0
  %162 = vmatpush1.bf16.msra.mxu0 0
  %163 = vmatprep.subr.bf16.mxu0 0
  %164 = vmatpush1.bf16.msra.mxu0 0
  %165 = vmatprep.subr.bf16.mxu0 0
  %166 = vmatpush1.bf16.msra.mxu0 0
  %167 = vmatprep.mubr.bf16.mxu0 0
  %168 = vmatmul.mubr.bf16.gmra.mrb[0].mxu0 %v130
  %v169 = vpop.f32.mrb[0].mxu0
  %v170 = vadd.f32 0.0, %v169
  %v171 = vpop.f32.mrb[0].mxu0
  %v172 = vpop.f32.mrb[0].mxu0
  %v173 = vadd.f32 0.0, %v172
  %v174 = vpop.f32.mrb[0].mxu0
  %175 = vmatprep.mubr.bf16.mxu0 0
  %176 = vmatmul.mubr.bf16.gmra.mrb[0].mxu0 %v133
  %v177 = vpop.f32.mrb[0].mxu0
  %v178 = vadd.f32 0.0, %v177
  %v179 = vpop.f32.mrb[0].mxu0
  %v180 = vpop.f32.mrb[0].mxu0
  %v181 = vadd.f32 0.0, %v180
  %v182 = vpop.f32.mrb[0].mxu0
  %183 = vdwg.mxu0
  %v184 = vpack.c.bf16 %v173, %v170
  %v185 = vpack.c.bf16 %v181, %v178
  %v188 = vunpack.c.l.b16 %v184
  %v189 = vunpack.c.h.b16 %v184
  %v190 = vunpack.c.l.b16 %v185
  %v191 = vunpack.c.h.b16 %v185
  %v192 = vpack.c.b16 %v188, %v188
  %v193 = vpack.c.b16 %v189, %v189
  %v194 = vpack.c.b16 %v190, %v190
  %v195 = vpack.c.b16 %v191, %v191
  %vm200 = vcmask 519168
  %201 = vst.msk [vmem:[%s4] sm:$0xf] %vm200, %v192
  %202 = vst.msk [vmem:[%s4 + $0x4] sm:$0xf] %vm200, %v193
  %203 = vst.msk [vmem:[%s4 + $0x8] sm:$0xf] %vm200, %v194
  %204 = vst.msk [vmem:[%s4 + $0xc] sm:$0xf] %vm200, %v195
  %vm205 = vcmask 523264
  %v206 = vsel %vm205, %v170, 0.0
  %207 = vadd.xlane.f32.xlu0 %v206
  %v208 = vpop.xlane.xlu0 %207
  %v209 = vsel %vm205, %v173, 0.0
  %210 = vadd.xlane.f32.xlu0 %v209
  %v211 = vpop.xlane.xlu0 %210
  %v212 = vsel %vm205, %v178, 0.0
  %213 = vadd.xlane.f32.xlu0 %v212
  %v214 = vpop.xlane.xlu0 %213
  %v215 = vsel %vm205, %v181, 0.0
  %216 = vadd.xlane.f32.xlu0 %v215
  %v217 = vpop.xlane.xlu0 %216
  %v218 = vadd.f32 %v208, 0.0
  %v219 = vadd.f32 %v211, 0.0
  %v220 = vadd.f32 %v214, 0.0
  %v221 = vadd.f32 %v217, 0.0
  %v222 = vmul.f32 %v170, %v170
  %v223 = vmul.f32 %v173, %v173
  %v224 = vmul.f32 %v178, %v178
  %v225 = vmul.f32 %v181, %v181
  %v226 = vsel %vm205, %v222, 0.0
  %227 = vadd.xlane.f32.xlu0 %v226
  %v228 = vpop.xlane.xlu0 %227
  %v229 = vsel %vm205, %v223, 0.0
  %230 = vadd.xlane.f32.xlu0 %v229
  %v231 = vpop.xlane.xlu0 %230
  %v232 = vsel %vm205, %v224, 0.0
  %233 = vadd.xlane.f32.xlu0 %v232
  %v234 = vpop.xlane.xlu0 %233
  %v235 = vsel %vm205, %v225, 0.0
  %236 = vadd.xlane.f32.xlu0 %v235
  %v237 = vpop.xlane.xlu0 %236
  %v238 = vadd.f32 %v228, 0.0
  %v239 = vadd.f32 %v231, 0.0
  %v240 = vadd.f32 %v234, 0.0
  %v241 = vadd.f32 %v237, 0.0
  %s242 = scalar_lea.vmem %s0, 32
  %v243 = vld [vmem:[%s242] sm:$0xf]
  %v244 = vld [vmem:[%s242 + $0x4] sm:$0xf]
  %v245 = vld [vmem:[%s242 + $0x8] sm:$0xf]
  %v246 = vld [vmem:[%s242 + $0xc] sm:$0xf]
  %v247 = vunpack.c.l.bf16 %v243
  %v248 = vunpack.c.l.bf16 %v244
  %v249 = vunpack.c.l.bf16 %v245
  %v250 = vunpack.c.l.bf16 %v246
  %v251 = vmul.f32 %v247, %v39
  %v252 = vmul.f32 %v248, %v44
  %v253 = vmul.f32 %v249, %v49
  %v254 = vmul.f32 %v250, %v54
  %v255 = vadd.f32 %v251, %v63
  %v256 = vadd.f32 %v252, %v68
  %v257 = vadd.f32 %v253, %v73
  %v258 = vadd.f32 %v254, %v78
  %v259 = vsub.f32 %v255, %v108
  %v260 = vsub.f32 %v256, %v109
  %v261 = vsub.f32 %v257, %v110
  %v262 = vsub.f32 %v258, %v111
  %v263 = vmul.f32 %v259, 0.5
  %v264 = vmul.f32 %v260, 0.5
  %v265 = vmul.f32 %v261, 0.5
  %v266 = vmul.f32 %v262, 0.5
  %v267 = vadd.f32 %v108, %v263
  %v268 = vadd.f32 %v109, %v264
  %v269 = vadd.f32 %v110, %v265
  %v270 = vadd.f32 %v111, %v266
  %vm271 = vcmp.ge.f32.partialorder %v267, 1.0
  %vm272 = vcmp.ge.f32.partialorder %v268, 1.0
  %vm273 = vcmp.ge.f32.partialorder %v269, 1.0
  %vm274 = vcmp.ge.f32.partialorder %v270, 1.0
  %v275 = vld [vmem:[%s3] sm:$0xf]
  %v276 = vld [vmem:[%s3 + $0x4] sm:$0xf]
  %v277 = vld [vmem:[%s3 + $0x8] sm:$0xf]
  %v278 = vld [vmem:[%s3 + $0xc] sm:$0xf]
  %v279 = vsel %vm271, 1, 0
  %v280 = vsel %vm272, 1, 0
  %v281 = vsel %vm273, 1, 0
  %v282 = vsel %vm274, 1, 0
  %v283 = vcvt.s32.f32 %v279
  %v284 = vcvt.s32.f32 %v280
  %v285 = vcvt.s32.f32 %v281
  %v286 = vcvt.s32.f32 %v282
  %v287 = vpack.c.bf16 %v284, %v283
  %v288 = vpack.c.bf16 %v286, %v285
  %v293 = vunpack.c.l.b16 %v275
  %v294 = vunpack.c.l.b16 %v276
  %v295 = vunpack.c.l.b16 %v277
  %v296 = vunpack.c.l.b16 %v278
  %v297 = vpack.c.b16 %v294, %v293
  %v298 = vpack.c.b16 %v296, %v295
  %v300 = vsel %vm128, %v297, 0
  %v303 = vsel %vm128, %v298, 0
  %305 = vmatprep.subr.bf16.mxu0 0
  %306 = vmatpush1.bf16.msra.mxu0 %v287
  %307 = vmatprep.subr.bf16.mxu0 0
  %308 = vmatpush1.bf16.msra.mxu0 %v288
  %309 = vmatprep.subr.bf16.mxu0 0
  %310 = vmatpush1.bf16.msra.mxu0 0
  %311 = vmatprep.subr.bf16.mxu0 0
  %312 = vmatpush1.bf16.msra.mxu0 0
  %313 = vmatprep.subr.bf16.mxu0 0
  %314 = vmatpush1.bf16.msra.mxu0 0
  %315 = vmatprep.subr.bf16.mxu0 0
  %316 = vmatpush1.bf16.msra.mxu0 0
  %317 = vmatprep.subr.bf16.mxu0 0
  %318 = vmatpush1.bf16.msra.mxu0 0
  %319 = vmatprep.subr.bf16.mxu0 0
  %320 = vmatpush1.bf16.msra.mxu0 0
  %321 = vmatprep.subr.bf16.mxu0 0
  %322 = vmatpush1.bf16.msra.mxu0 0
  %323 = vmatprep.subr.bf16.mxu0 0
  %324 = vmatpush1.bf16.msra.mxu0 0
  %325 = vmatprep.subr.bf16.mxu0 0
  %326 = vmatpush1.bf16.msra.mxu0 0
  %327 = vmatprep.subr.bf16.mxu0 0
  %328 = vmatpush1.bf16.msra.mxu0 0
  %329 = vmatprep.subr.bf16.mxu0 0
  %330 = vmatpush1.bf16.msra.mxu0 0
  %331 = vmatprep.subr.bf16.mxu0 0
  %332 = vmatpush1.bf16.msra.mxu0 0
  %333 = vmatprep.subr.bf16.mxu0 0
  %334 = vmatpush1.bf16.msra.mxu0 0
  %335 = vmatprep.subr.bf16.mxu0 0
  %336 = vmatpush1.bf16.msra.mxu0 0
  %337 = vmatprep.mubr.bf16.mxu0 0
  %338 = vmatmul.mubr.bf16.gmra.mrb[0].mxu0 %v300
  %v339 = vpop.f32.mrb[0].mxu0
  %v340 = vadd.f32 0.0, %v339
  %v341 = vpop.f32.mrb[0].mxu0
  %v342 = vpop.f32.mrb[0].mxu0
  %v343 = vadd.f32 0.0, %v342
  %v344 = vpop.f32.mrb[0].mxu0
  %345 = vmatprep.mubr.bf16.mxu0 0
  %346 = vmatmul.mubr.bf16.gmra.mrb[0].mxu0 %v303
  %v347 = vpop.f32.mrb[0].mxu0
  %v348 = vadd.f32 0.0, %v347
  %v349 = vpop.f32.mrb[0].mxu0
  %v350 = vpop.f32.mrb[0].mxu0
  %v351 = vadd.f32 0.0, %v350
  %v352 = vpop.f32.mrb[0].mxu0
  %353 = vdwg.mxu0
  %v354 = vpack.c.bf16 %v343, %v340
  %v355 = vpack.c.bf16 %v351, %v348
  %v358 = vunpack.c.l.b16 %v354
  %v359 = vunpack.c.h.b16 %v354
  %v360 = vunpack.c.l.b16 %v355
  %v361 = vunpack.c.h.b16 %v355
  %v362 = vpack.c.b16 %v358, %v358
  %v363 = vpack.c.b16 %v359, %v359
  %v364 = vpack.c.b16 %v360, %v360
  %v365 = vpack.c.b16 %v361, %v361
  %s370 = scalar_lea.vmem %s4, 32
  %371 = vst.msk [vmem:[%s370] sm:$0xf] %vm200, %v362
  %372 = vst.msk [vmem:[%s370 + $0x4] sm:$0xf] %vm200, %v363
  %373 = vst.msk [vmem:[%s370 + $0x8] sm:$0xf] %vm200, %v364
  %374 = vst.msk [vmem:[%s370 + $0xc] sm:$0xf] %vm200, %v365
  %v375 = vsel %vm205, %v340, 0.0
  %376 = vadd.xlane.f32.xlu0 %v375
  %v377 = vpop.xlane.xlu0 %376
  %v378 = vsel %vm205, %v343, 0.0
  %379 = vadd.xlane.f32.xlu0 %v378
  %v380 = vpop.xlane.xlu0 %379
  %v381 = vsel %vm205, %v348, 0.0
  %382 = vadd.xlane.f32.xlu0 %v381
  %v383 = vpop.xlane.xlu0 %382
  %v384 = vsel %vm205, %v351, 0.0
  %385 = vadd.xlane.f32.xlu0 %v384
  %v386 = vpop.xlane.xlu0 %385
  %v387 = vadd.f32 %v218, %v377
  %v388 = vadd.f32 %v219, %v380
  %v389 = vadd.f32 %v220, %v383
  %v390 = vadd.f32 %v221, %v386
  %v391 = vmul.f32 %v340, %v340
  %v392 = vmul.f32 %v343, %v343
  %v393 = vmul.f32 %v348, %v348
  %v394 = vmul.f32 %v351, %v351
  %v395 = vsel %vm205, %v391, 0.0
  %396 = vadd.xlane.f32.xlu0 %v395
  %v397 = vpop.xlane.xlu0 %396
  %v398 = vsel %vm205, %v392, 0.0
  %399 = vadd.xlane.f32.xlu0 %v398
  %v400 = vpop.xlane.xlu0 %399
  %v401 = vsel %vm205, %v393, 0.0
  %402 = vadd.xlane.f32.xlu0 %v401
  %v403 = vpop.xlane.xlu0 %402
  %v404 = vsel %vm205, %v394, 0.0
  %405 = vadd.xlane.f32.xlu0 %v404
  %v406 = vpop.xlane.xlu0 %405
  %v407 = vadd.f32 %v238, %v397
  %v408 = vadd.f32 %v239, %v400
  %v409 = vadd.f32 %v240, %v403
  %v410 = vadd.f32 %v241, %v406
  %s411 = scalar_lea.vmem %s0, 16
  %v412 = vld [vmem:[%s411] sm:$0xf]
  %v413 = vld [vmem:[%s411 + $0x4] sm:$0xf]
  %v414 = vld [vmem:[%s411 + $0x8] sm:$0xf]
  %v415 = vld [vmem:[%s411 + $0xc] sm:$0xf]
  %v416 = vunpack.c.l.bf16 %v412
  %v417 = vunpack.c.l.bf16 %v413
  %v418 = vunpack.c.l.bf16 %v414
  %v419 = vunpack.c.l.bf16 %v415
  %v420 = vmul.f32 %v416, %v39
  %v421 = vmul.f32 %v417, %v44
  %v422 = vmul.f32 %v418, %v49
  %v423 = vmul.f32 %v419, %v54
  %v424 = vadd.f32 %v420, %v63
  %v425 = vadd.f32 %v421, %v68
  %v426 = vadd.f32 %v422, %v73
  %v427 = vadd.f32 %v423, %v78
  %v428 = vmul.f32 %v424, 0.5
  %v429 = vmul.f32 %v425, 0.5
  %v430 = vmul.f32 %v426, 0.5
  %v431 = vmul.f32 %v427, 0.5
  %v432 = vadd.f32 %v428, 0.0
  %v433 = vadd.f32 %v429, 0.0
  %v434 = vadd.f32 %v430, 0.0
  %v435 = vadd.f32 %v431, 0.0
  %vm436 = vcmp.ge.f32.partialorder %v432, 1.0
  %vm437 = vcmp.ge.f32.partialorder %v433, 1.0
  %vm438 = vcmp.ge.f32.partialorder %v434, 1.0
  %vm439 = vcmp.ge.f32.partialorder %v435, 1.0
  %v440 = vsel %vm436, 1, 0
  %v441 = vsel %vm437, 1, 0
  %v442 = vsel %vm438, 1, 0
  %v443 = vsel %vm439, 1, 0
  %v444 = vcvt.s32.f32 %v440
  %v445 = vcvt.s32.f32 %v441
  %v446 = vcvt.s32.f32 %v442
  %v447 = vcvt.s32.f32 %v443
  %v448 = vsub.f32 1.0, %v444
  %v449 = vsub.f32 1.0, %v445
  %v450 = vsub.f32 1.0, %v446
  %v451 = vsub.f32 1.0, %v447
  %v452 = vmul.f32 %v432, %v448
  %v453 = vmul.f32 %v433, %v449
  %v454 = vmul.f32 %v434, %v450
  %v455 = vmul.f32 %v435, %v451
  %v456 = vld [vmem:[%s3] sm:$0xf]
  %v457 = vld [vmem:[%s3 + $0x4] sm:$0xf]
  %v458 = vld [vmem:[%s3 + $0x8] sm:$0xf]
  %v459 = vld [vmem:[%s3 + $0xc] sm:$0xf]
  %v460 = vpack.c.bf16 %v445, %v444
  %v461 = vpack.c.bf16 %v447, %v446
  %v466 = vunpack.c.l.b16 %v456
  %v467 = vunpack.c.l.b16 %v457
  %v468 = vunpack.c.l.b16 %v458
  %v469 = vunpack.c.l.b16 %v459
  %v470 = vpack.c.b16 %v467, %v466
  %v471 = vpack.c.b16 %v469, %v468
  %v473 = vsel %vm128, %v470, 0
  %v476 = vsel %vm128, %v471, 0
  %478 = vmatprep.subr.bf16.mxu0 0
  %479 = vmatpush1.bf16.msra.mxu0 %v460
  %480 = vmatprep.subr.bf16.mxu0 0
  %481 = vmatpush1.bf16.msra.mxu0 %v461
  %482 = vmatprep.subr.bf16.mxu0 0
  %483 = vmatpush1.bf16.msra.mxu0 0
  %484 = vmatprep.subr.bf16.mxu0 0
  %485 = vmatpush1.bf16.msra.mxu0 0
  %486 = vmatprep.subr.bf16.mxu0 0
  %487 = vmatpush1.bf16.msra.mxu0 0
  %488 = vmatprep.subr.bf16.mxu0 0
  %489 = vmatpush1.bf16.msra.mxu0 0
  %490 = vmatprep.subr.bf16.mxu0 0
  %491 = vmatpush1.bf16.msra.mxu0 0
  %492 = vmatprep.subr.bf16.mxu0 0
  %493 = vmatpush1.bf16.msra.mxu0 0
  %494 = vmatprep.subr.bf16.mxu0 0
  %495 = vmatpush1.bf16.msra.mxu0 0
  %496 = vmatprep.subr.bf16.mxu0 0
  %497 = vmatpush1.bf16.msra.mxu0 0
  %498 = vmatprep.subr.bf16.mxu0 0
  %499 = vmatpush1.bf16.msra.mxu0 0
  %500 = vmatprep.subr.bf16.mxu0 0
  %501 = vmatpush1.bf16.msra.mxu0 0
  %502 = vmatprep.subr.bf16.mxu0 0
  %503 = vmatpush1.bf16.msra.mxu0 0
  %504 = vmatprep.subr.bf16.mxu0 0
  %505 = vmatpush1.bf16.msra.mxu0 0
  %506 = vmatprep.subr.bf16.mxu0 0
  %507 = vmatpush1.bf16.msra.mxu0 0
  %508 = vmatprep.subr.bf16.mxu0 0
  %509 = vmatpush1.bf16.msra.mxu0 0
  %510 = vmatprep.mubr.bf16.mxu0 0
  %511 = vmatmul.mubr.bf16.gmra.mrb[0].mxu0 %v473
  %v512 = vpop.f32.mrb[0].mxu0
  %v513 = vadd.f32 0.0, %v512
  %v514 = vpop.f32.mrb[0].mxu0
  %v515 = vpop.f32.mrb[0].mxu0
  %v516 = vadd.f32 0.0, %v515
  %v517 = vpop.f32.mrb[0].mxu0
  %518 = vmatprep.mubr.bf16.mxu0 0
  %519 = vmatmul.mubr.bf16.gmra.mrb[0].mxu0 %v476
  %v520 = vpop.f32.mrb[0].mxu0
  %v521 = vadd.f32 0.0, %v520
  %v522 = vpop.f32.mrb[0].mxu0
  %v523 = vpop.f32.mrb[0].mxu0
  %v524 = vadd.f32 0.0, %v523
  %v525 = vpop.f32.mrb[0].mxu0
  %526 = vdwg.mxu0
  %v527 = vpack.c.bf16 %v516, %v513
  %v528 = vpack.c.bf16 %v524, %v521
  %v531 = vunpack.c.l.b16 %v527
  %v532 = vunpack.c.h.b16 %v527
  %v533 = vunpack.c.l.b16 %v528
  %v534 = vunpack.c.h.b16 %v528
  %v535 = vpack.c.b16 %v531, %v531
  %v536 = vpack.c.b16 %v532, %v532
  %v537 = vpack.c.b16 %v533, %v533
  %v538 = vpack.c.b16 %v534, %v534
  %s543 = scalar_lea.vmem %s4, 16
  %544 = vst.msk [vmem:[%s543] sm:$0xf] %vm200, %v535
  %545 = vst.msk [vmem:[%s543 + $0x4] sm:$0xf] %vm200, %v536
  %546 = vst.msk [vmem:[%s543 + $0x8] sm:$0xf] %vm200, %v537
  %547 = vst.msk [vmem:[%s543 + $0xc] sm:$0xf] %vm200, %v538
  %v548 = vsel %vm205, %v513, 0.0
  %549 = vadd.xlane.f32.xlu0 %v548
  %v550 = vpop.xlane.xlu0 %549
  %v551 = vsel %vm205, %v516, 0.0
  %552 = vadd.xlane.f32.xlu0 %v551
  %v553 = vpop.xlane.xlu0 %552
  %v554 = vsel %vm205, %v521, 0.0
  %555 = vadd.xlane.f32.xlu0 %v554
  %v556 = vpop.xlane.xlu0 %555
  %v557 = vsel %vm205, %v524, 0.0
  %558 = vadd.xlane.f32.xlu0 %v557
  %v559 = vpop.xlane.xlu0 %558
  %v560 = vadd.f32 %v387, %v550
  %v561 = vadd.f32 %v388, %v553
  %v562 = vadd.f32 %v389, %v556
  %v563 = vadd.f32 %v390, %v559
  %v564 = vmul.f32 %v513, %v513
  %v565 = vmul.f32 %v516, %v516
  %v566 = vmul.f32 %v521, %v521
  %v567 = vmul.f32 %v524, %v524
  %v568 = vsel %vm205, %v564, 0.0
  %569 = vadd.xlane.f32.xlu0 %v568
  %v570 = vpop.xlane.xlu0 %569
  %v571 = vsel %vm205, %v565, 0.0
  %572 = vadd.xlane.f32.xlu0 %v571
  %v573 = vpop.xlane.xlu0 %572
  %v574 = vsel %vm205, %v566, 0.0
  %575 = vadd.xlane.f32.xlu0 %v574
  %v576 = vpop.xlane.xlu0 %575
  %v577 = vsel %vm205, %v567, 0.0
  %578 = vadd.xlane.f32.xlu0 %v577
  %v579 = vpop.xlane.xlu0 %578
  %v580 = vadd.f32 %v407, %v570
  %v581 = vadd.f32 %v408, %v573
  %v582 = vadd.f32 %v409, %v576
  %v583 = vadd.f32 %v410, %v579
  %s584 = scalar_lea.vmem %s0, 48
  %v585 = vld [vmem:[%s584] sm:$0xf]
  %v586 = vld [vmem:[%s584 + $0x4] sm:$0xf]
  %v587 = vld [vmem:[%s584 + $0x8] sm:$0xf]
  %v588 = vld [vmem:[%s584 + $0xc] sm:$0xf]
  %v589 = vunpack.c.l.bf16 %v585
  %v590 = vunpack.c.l.bf16 %v586
  %v591 = vunpack.c.l.bf16 %v587
  %v592 = vunpack.c.l.bf16 %v588
  %v593 = vmul.f32 %v589, %v39
  %v594 = vmul.f32 %v590, %v44
  %v595 = vmul.f32 %v591, %v49
  %v596 = vmul.f32 %v592, %v54
  %v597 = vadd.f32 %v593, %v63
  %v598 = vadd.f32 %v594, %v68
  %v599 = vadd.f32 %v595, %v73
  %v600 = vadd.f32 %v596, %v78
  %v601 = vsub.f32 %v597, %v452
  %v602 = vsub.f32 %v598, %v453
  %v603 = vsub.f32 %v599, %v454
  %v604 = vsub.f32 %v600, %v455
  %v605 = vmul.f32 %v601, 0.5
  %v606 = vmul.f32 %v602, 0.5
  %v607 = vmul.f32 %v603, 0.5
  %v608 = vmul.f32 %v604, 0.5
  %v609 = vadd.f32 %v452, %v605
  %v610 = vadd.f32 %v453, %v606
  %v611 = vadd.f32 %v454, %v607
  %v612 = vadd.f32 %v455, %v608
  %vm613 = vcmp.ge.f32.partialorder %v609, 1.0
  %vm614 = vcmp.ge.f32.partialorder %v610, 1.0
  %vm615 = vcmp.ge.f32.partialorder %v611, 1.0
  %vm616 = vcmp.ge.f32.partialorder %v612, 1.0
  %v617 = vld [vmem:[%s3] sm:$0xf]
  %v618 = vld [vmem:[%s3 + $0x4] sm:$0xf]
  %v619 = vld [vmem:[%s3 + $0x8] sm:$0xf]
  %v620 = vld [vmem:[%s3 + $0xc] sm:$0xf]
  %v621 = vsel %vm613, 1, 0
  %v622 = vsel %vm614, 1, 0
  %v623 = vsel %vm615, 1, 0
  %v624 = vsel %vm616, 1, 0
  %v625 = vcvt.s32.f32 %v621
  %v626 = vcvt.s32.f32 %v622
  %v627 = vcvt.s32.f32 %v623
  %v628 = vcvt.s32.f32 %v624
  %v629 = vpack.c.bf16 %v626, %v625
  %v630 = vpack.c.bf16 %v628, %v627
  %v635 = vunpack.c.l.b16 %v617
  %v636 = vunpack.c.l.b16 %v618
  %v637 = vunpack.c.l.b16 %v619
  %v638 = vunpack.c.l.b16 %v620
  %v639 = vpack.c.b16 %v636, %v635
  %v640 = vpack.c.b16 %v638, %v637
  %v642 = vsel %vm128, %v639, 0
  %v645 = vsel %vm128, %v640, 0
  %647 = vmatprep.subr.bf16.mxu0 0
  %648 = vmatpush1.bf16.msra.mxu0 %v629
  %649 = vmatprep.subr.bf16.mxu0 0
  %650 = vmatpush1.bf16.msra.mxu0 %v630
  %651 = vmatprep.subr.bf16.mxu0 0
  %652 = vmatpush1.bf16.msra.mxu0 0
  %653 = vmatprep.subr.bf16.mxu0 0
  %654 = vmatpush1.bf16.msra.mxu0 0
  %655 = vmatprep.subr.bf16.mxu0 0
  %656 = vmatpush1.bf16.msra.mxu0 0
  %657 = vmatprep.subr.bf16.mxu0 0
  %658 = vmatpush1.bf16.msra.mxu0 0
  %659 = vmatprep.subr.bf16.mxu0 0
  %660 = vmatpush1.bf16.msra.mxu0 0
  %661 = vmatprep.subr.bf16.mxu0 0
  %662 = vmatpush1.bf16.msra.mxu0 0
  %663 = vmatprep.subr.bf16.mxu0 0
  %664 = vmatpush1.bf16.msra.mxu0 0
  %665 = vmatprep.subr.bf16.mxu0 0
  %666 = vmatpush1.bf16.msra.mxu0 0
  %667 = vmatprep.subr.bf16.mxu0 0
  %668 = vmatpush1.bf16.msra.mxu0 0
  %669 = vmatprep.subr.bf16.mxu0 0
  %670 = vmatpush1.bf16.msra.mxu0 0
  %671 = vmatprep.subr.bf16.mxu0 0
  %672 = vmatpush1.bf16.msra.mxu0 0
  %673 = vmatprep.subr.bf16.mxu0 0
  %674 = vmatpush1.bf16.msra.mxu0 0
  %675 = vmatprep.subr.bf16.mxu0 0
  %676 = vmatpush1.bf16.msra.mxu0 0
  %677 = vmatprep.subr.bf16.mxu0 0
  %678 = vmatpush1.bf16.msra.mxu0 0
  %679 = vmatprep.mubr.bf16.mxu0 0
  %680 = vmatmul.mubr.bf16.gmra.mrb[0].mxu0 %v642
  %v681 = vpop.f32.mrb[0].mxu0
  %v682 = vadd.f32 0.0, %v681
  %v683 = vpop.f32.mrb[0].mxu0
  %v684 = vpop.f32.mrb[0].mxu0
  %v685 = vadd.f32 0.0, %v684
  %v686 = vpop.f32.mrb[0].mxu0
  %687 = vmatprep.mubr.bf16.mxu0 0
  %688 = vmatmul.mubr.bf16.gmra.mrb[0].mxu0 %v645
  %v689 = vpop.f32.mrb[0].mxu0
  %v690 = vadd.f32 0.0, %v689
  %v691 = vpop.f32.mrb[0].mxu0
  %v692 = vpop.f32.mrb[0].mxu0
  %v693 = vadd.f32 0.0, %v692
  %v694 = vpop.f32.mrb[0].mxu0
  %695 = vdwg.mxu0
  %v696 = vpack.c.bf16 %v685, %v682
  %v697 = vpack.c.bf16 %v693, %v690
  %v700 = vunpack.c.l.b16 %v696
  %v701 = vunpack.c.h.b16 %v696
  %v702 = vunpack.c.l.b16 %v697
  %v703 = vunpack.c.h.b16 %v697
  %v704 = vpack.c.b16 %v700, %v700
  %v705 = vpack.c.b16 %v701, %v701
  %v706 = vpack.c.b16 %v702, %v702
  %v707 = vpack.c.b16 %v703, %v703
  %s712 = scalar_lea.vmem %s4, 48
  %713 = vst.msk [vmem:[%s712] sm:$0xf] %vm200, %v704
  %714 = vst.msk [vmem:[%s712 + $0x4] sm:$0xf] %vm200, %v705
  %715 = vst.msk [vmem:[%s712 + $0x8] sm:$0xf] %vm200, %v706
  %716 = vst.msk [vmem:[%s712 + $0xc] sm:$0xf] %vm200, %v707
  %v717 = vsel %vm205, %v682, 0.0
  %718 = vadd.xlane.f32.xlu0 %v717
  %v719 = vpop.xlane.xlu0 %718
  %v720 = vsel %vm205, %v685, 0.0
  %721 = vadd.xlane.f32.xlu0 %v720
  %v722 = vpop.xlane.xlu0 %721
  %v723 = vsel %vm205, %v690, 0.0
  %724 = vadd.xlane.f32.xlu0 %v723
  %v725 = vpop.xlane.xlu0 %724
  %v726 = vsel %vm205, %v693, 0.0
  %727 = vadd.xlane.f32.xlu0 %v726
  %v728 = vpop.xlane.xlu0 %727
  %v729 = vadd.f32 %v560, %v719
  %v730 = vadd.f32 %v561, %v722
  %v731 = vadd.f32 %v562, %v725
  %v732 = vadd.f32 %v563, %v728
  %v733 = vmul.f32 %v682, %v682
  %v734 = vmul.f32 %v685, %v685
  %v735 = vmul.f32 %v690, %v690
  %v736 = vmul.f32 %v693, %v693
  %v737 = vsel %vm205, %v733, 0.0
  %738 = vadd.xlane.f32.xlu0 %v737
  %v739 = vpop.xlane.xlu0 %738
  %v740 = vsel %vm205, %v734, 0.0
  %741 = vadd.xlane.f32.xlu0 %v740
  %v742 = vpop.xlane.xlu0 %741
  %v743 = vsel %vm205, %v735, 0.0
  %744 = vadd.xlane.f32.xlu0 %v743
  %v745 = vpop.xlane.xlu0 %744
  %v746 = vsel %vm205, %v736, 0.0
  %747 = vadd.xlane.f32.xlu0 %v746
  %v748 = vpop.xlane.xlu0 %747
  %v749 = vadd.f32 %v580, %v739
  %v750 = vadd.f32 %v581, %v742
  %v751 = vadd.f32 %v582, %v745
  %v752 = vadd.f32 %v583, %v748
  %vm753 = vcmask 7168
  %754 = vst.msk [vmem:[%s5] sm:$0xff] %vm753, %v729
  %755 = vst.msk [vmem:[%s5 + $0x8] sm:$0xff] %vm753, %v730
  %756 = vst.msk [vmem:[%s5 + $0x10] sm:$0xff] %vm753, %v731
  %757 = vst.msk [vmem:[%s5 + $0x18] sm:$0xff] %vm753, %v732
  %s758 = scalar_lea.vmem %s5, 32
  %759 = vst.msk [vmem:[%s758] sm:$0xff] %vm753, %v749
  %760 = vst.msk [vmem:[%s758 + $0x8] sm:$0xff] %vm753, %v750
  %761 = vst.msk [vmem:[%s758 + $0x10] sm:$0xff] %vm753, %v751
  %762 = vst.msk [vmem:[%s758 + $0x18] sm:$0xff] %vm753, %v752
  // Predicated region
  $region18: #{fatm_forward.5} parent=0 // pred_check
    _
  $region19: #{fatm_forward.5} parent=0 // pred_check_branch
    %764 = sbr.rel (0) target = $region21
  $region20: #{fatm_forward.5} parent=0 // pred_region
    _
  $region21: #{fatm_forward.5} parent=0 // pred_fallthru
    _
  // Predicated region
  $region22: #{fatm_forward.5} parent=0 // pred_check
    _
  $region23: #{fatm_forward.5} parent=0 // pred_check_branch
    %766 = sbr.rel (0) target = $region25
  $region24: #{fatm_forward.5} parent=0 // pred_region
    _
  $region25: #{fatm_forward.5} parent=0 // pred_fallthru
    _
  // Predicated region
  $region26: #{fatm_forward.5} parent=0 // pred_check
    _
  $region27: #{fatm_forward.5} parent=0 // pred_check_branch
    %768 = sbr.rel (0) target = $region29
  $region28: #{fatm_forward.5} parent=0 // pred_region
    _
  $region29: #{fatm_forward.5} parent=0 // pred_fallthru
    _
  // Predicated region
  $region30: #{fatm_forward.5} parent=0 // pred_check
    _
  $region31: #{fatm_forward.5} parent=0 // pred_check_branch
    %770 = sbr.rel (0) target = $region33
  $region32: #{fatm_forward.5} parent=0 // pred_region
    _
  $region33: #{fatm_forward.5} parent=0 // pred_fallthru
    _

// kernel: fatm_forward.7
$region0: #{fatm_forward.7}
  #allocation0 [shape = 'u32[]', space=smem, size = 0x4, offset = 0x4, fixed_abs, tag = 'smem constant byte address 0x4 - core index']
  #allocation1 [shape = 'u32[144,128]{1,0:T(1,128)}', space=vmem, size = 0x12000, scoped, tag = 'internal scratch']
  %s0 = inlined_call_operand.vmem [shape: bf16[4,2048], index: 0, kind: input, shape index: {}]
  %s1 = inlined_call_operand.vmem [shape: bf16[4,2048], index: 1, kind: input, shape index: {}]
  %s2 = inlined_call_operand.vmem [shape: bf16[4,2048], index: 2, kind: input, shape index: {}]
  %s3 = inlined_call_operand.vmem [shape: f32[4,2048], index: 3, kind: input, shape index: {}]
  %s4 = inlined_call_operand.vmem [shape: f32[1,2048], index: 4, kind: input, shape index: {}]
  %s5 = inlined_call_operand.vmem [shape: f32[1,2048], index: 5, kind: input, shape index: {}]
  %s6 = inlined_call_operand.vmem [shape: f32[1,2048], index: 6, kind: input, shape index: {}]
  %s7 = inlined_call_operand.vmem [shape: f32[1,2048], index: 7, kind: input, shape index: {}]
  %s8 = inlined_call_operand.vmem [shape: f32[1,2048], index: 8, kind: input, shape index: {}]
  %s9 = inlined_call_operand.vmem [shape: f32[1,2048], index: 9, kind: input, shape index: {}]
  %s10 = inlined_call_operand.vmem [shape: f32[4,2048], index: 10, kind: output, shape index: {}]
  %s11 = sld [smem:[#allocation0]]
  $region50: #{fatm_forward.7} parent=0
    _
  %s13 = ssub.s32 1, %s11
  %s14 = scalar_select 0, %s13, %s11
  // Predicated region
  $region2: #{fatm_forward.7} parent=0 // pred_check
    _
  $region3: #{fatm_forward.7} parent=0 // pred_check_branch
    %16 = sbr.rel (0) target = $region5
  $region4: #{fatm_forward.7} parent=0 // pred_region
    _
  $region5: #{fatm_forward.7} parent=0 // pred_fallthru
    _
  // Predicated region
  $region6: #{fatm_forward.7} parent=0 // pred_check
    _
  $region7: #{fatm_forward.7} parent=0 // pred_check_branch
    %18 = sbr.rel (0) target = $region9
  $region8: #{fatm_forward.7} parent=0 // pred_region
    _
  $region9: #{fatm_forward.7} parent=0 // pred_fallthru
    _
  // Predicated region
  $region10: #{fatm_forward.7} parent=0 // pred_check
    _
  $region11: #{fatm_forward.7} parent=0 // pred_check_branch
    %20 = sbr.rel (0) target = $region13
  $region12: #{fatm_forward.7} parent=0 // pred_region
    _
  $region13: #{fatm_forward.7} parent=0 // pred_fallthru
    _
  // Predicated region
  $region14: #{fatm_forward.7} parent=0 // pred_check
    _
  $region15: #{fatm_forward.7} parent=0 // pred_check_branch
    %22 = sbr.rel (0) target = $region17
  $region16: #{fatm_forward.7} parent=0 // pred_region
    _
  $region17: #{fatm_forward.7} parent=0 // pred_fallthru
    _
  // Predicated region
  $region18: #{fatm_forward.7} parent=0 // pred_check
    _
  $region19: #{fatm_forward.7} parent=0 // pred_check_branch
    %24 = sbr.rel (0) target = $region21
  $region20: #{fatm_forward.7} parent=0 // pred_region
    _
  $region21: #{fatm_forward.7} parent=0 // pred_fallthru
    _
  // Predicated region
  $region22: #{fatm_forward.7} parent=0 // pred_check
    _
  $region23: #{fatm_forward.7} parent=0 // pred_check_branch
    %26 = sbr.rel (0) target = $region25
  $region24: #{fatm_forward.7} parent=0 // pred_region
    _
  $region25: #{fatm_forward.7} parent=0 // pred_fallthru
    _
  // Predicated region
  $region26: #{fatm_forward.7} parent=0 // pred_check
    _
  $region27: #{fatm_forward.7} parent=0 // pred_check_branch
    %28 = sbr.rel (0) target = $region29
  $region28: #{fatm_forward.7} parent=0 // pred_region
    _
  $region29: #{fatm_forward.7} parent=0 // pred_fallthru
    _
  // Predicated region
  $region30: #{fatm_forward.7} parent=0 // pred_check
    _
  $region31: #{fatm_forward.7} parent=0 // pred_check_branch
    %30 = sbr.rel (0) target = $region33
  $region32: #{fatm_forward.7} parent=0 // pred_region
    _
  $region33: #{fatm_forward.7} parent=0 // pred_fallthru
    _
  // Predicated region
  $region34: #{fatm_forward.7} parent=0 // pred_check
    _
  $region35: #{fatm_forward.7} parent=0 // pred_check_branch
    %32 = sbr.rel (0) target = $region37
  $region36: #{fatm_forward.7} parent=0 // pred_region
    _
  $region37: #{fatm_forward.7} parent=0 // pred_fallthru
    _
  // Predicated region
  $region38: #{fatm_forward.7} parent=0 // pred_check
    _
  $region39: #{fatm_forward.7} parent=0 // pred_check_branch
    %34 = sbr.rel (0) target = $region41
  $region40: #{fatm_forward.7} parent=0 // pred_region
    _
  $region41: #{fatm_forward.7} parent=0 // pred_fallthru
    _
  %v35 = vld [vmem:[%s0] sm:$0xff]
  %v36 = vld [vmem:[%s0 + $0x8] sm:$0xff]
  %v37 = vld [vmem:[%s0 + $0x10] sm:$0xff]
  %v38 = vld [vmem:[%s0 + $0x18] sm:$0xff]
  %v39 = vunpack.c.l.bf16 %v35
  %v40 = vunpack.c.h.bf16 %v35
  %v41 = vunpack.c.l.bf16 %v36
  %v42 = vunpack.c.h.bf16 %v36
  %v43 = vunpack.c.l.bf16 %v37
  %v44 = vunpack.c.h.bf16 %v37
  %v45 = vunpack.c.l.bf16 %v38
  %v46 = vunpack.c.h.bf16 %v38
  %v47 = vld [vmem:[%s4] sm:$0xff]
  %v48 = vld [vmem:[%s4 + $0x8] sm:$0xff]
  %v51 = vlaneseq
  %v52 = vshrl.u32 %v51, 7
  %v53 = vsub.s32 0, %v52
  %v54 = vrot.slane %v47, %v53
  %v55 = vlaneseq
  %v56 = vshrl.u32 %v55, 7
  %v57 = vsub.s32 1, %v56
  %v58 = vrot.slane %v47, %v57
  %v59 = vlaneseq
  %v60 = vshrl.u32 %v59, 7
  %v61 = vsub.s32 2, %v60
  %v62 = vrot.slane %v47, %v61
  %v63 = vlaneseq
  %v64 = vshrl.u32 %v63, 7
  %v65 = vsub.s32 3, %v64
  %v66 = vrot.slane %v47, %v65
  %v67 = vlaneseq
  %v68 = vshrl.u32 %v67, 7
  %v69 = vsub.s32 4, %v68
  %v70 = vrot.slane %v47, %v69
  %v71 = vlaneseq
  %v72 = vshrl.u32 %v71, 7
  %v73 = vsub.s32 5, %v72
  %v74 = vrot.slane %v47, %v73
  %v75 = vlaneseq
  %v76 = vshrl.u32 %v75, 7
  %v77 = vsub.s32 6, %v76
  %v78 = vrot.slane %v47, %v77
  %v79 = vlaneseq
  %v80 = vshrl.u32 %v79, 7
  %v81 = vsub.s32 7, %v80
  %v82 = vrot.slane %v47, %v81
  %v83 = vlaneseq
  %v84 = vshrl.u32 %v83, 7
  %v85 = vsub.s32 0, %v84
  %v86 = vrot.slane %v48, %v85
  %v87 = vlaneseq
  %v88 = vshrl.u32 %v87, 7
  %v89 = vsub.s32 1, %v88
  %v90 = vrot.slane %v48, %v89
  %v91 = vlaneseq
  %v92 = vshrl.u32 %v91, 7
  %v93 = vsub.s32 2, %v92
  %v94 = vrot.slane %v48, %v93
  %v95 = vlaneseq
  %v96 = vshrl.u32 %v95, 7
  %v97 = vsub.s32 3, %v96
  %v98 = vrot.slane %v48, %v97
  %v99 = vlaneseq
  %v100 = vshrl.u32 %v99, 7
  %v101 = vsub.s32 4, %v100
  %v102 = vrot.slane %v48, %v101
  %v103 = vlaneseq
  %v104 = vshrl.u32 %v103, 7
  %v105 = vsub.s32 5, %v104
  %v106 = vrot.slane %v48, %v105
  %v107 = vlaneseq
  %v108 = vshrl.u32 %v107, 7
  %v109 = vsub.s32 6, %v108
  %v110 = vrot.slane %v48, %v109
  %v111 = vlaneseq
  %v112 = vshrl.u32 %v111, 7
  %v113 = vsub.s32 7, %v112
  %v114 = vrot.slane %v48, %v113
  %v115 = vcombine.low %v54, %v58
  %v116 = vcombine.low %v62, %v66
  %v117 = vcombine.low %v70, %v74
  %v118 = vcombine.low %v78, %v82
  %v119 = vcombine.low %v86, %v90
  %v120 = vcombine.low %v94, %v98
  %v121 = vcombine.low %v102, %v106
  %v122 = vcombine.low %v110, %v114
  %v131 = vmul.f32 %v39, %v115
  %v132 = vmul.f32 %v40, %v116
  %v133 = vmul.f32 %v41, %v117
  %v134 = vmul.f32 %v42, %v118
  %v135 = vmul.f32 %v43, %v119
  %v136 = vmul.f32 %v44, %v120
  %v137 = vmul.f32 %v45, %v121
  %v138 = vmul.f32 %v46, %v122
  %v139 = vld [vmem:[%s5] sm:$0xff]
  %v140 = vld [vmem:[%s5 + $0x8] sm:$0xff]
  %v143 = vlaneseq
  %v144 = vshrl.u32 %v143, 7
  %v145 = vsub.s32 0, %v144
  %v146 = vrot.slane %v139, %v145
  %v147 = vlaneseq
  %v148 = vshrl.u32 %v147, 7
  %v149 = vsub.s32 1, %v148
  %v150 = vrot.slane %v139, %v149
  %v151 = vlaneseq
  %v152 = vshrl.u32 %v151, 7
  %v153 = vsub.s32 2, %v152
  %v154 = vrot.slane %v139, %v153
  %v155 = vlaneseq
  %v156 = vshrl.u32 %v155, 7
  %v157 = vsub.s32 3, %v156
  %v158 = vrot.slane %v139, %v157
  %v159 = vlaneseq
  %v160 = vshrl.u32 %v159, 7
  %v161 = vsub.s32 4, %v160
  %v162 = vrot.slane %v139, %v161
  %v163 = vlaneseq
  %v164 = vshrl.u32 %v163, 7
  %v165 = vsub.s32 5, %v164
  %v166 = vrot.slane %v139, %v165
  %v167 = vlaneseq
  %v168 = vshrl.u32 %v167, 7
  %v169 = vsub.s32 6, %v168
  %v170 = vrot.slane %v139, %v169
  %v171 = vlaneseq
  %v172 = vshrl.u32 %v171, 7
  %v173 = vsub.s32 7, %v172
  %v174 = vrot.slane %v139, %v173
  %v175 = vlaneseq
  %v176 = vshrl.u32 %v175, 7
  %v177 = vsub.s32 0, %v176
  %v178 = vrot.slane %v140, %v177
  %v179 = vlaneseq
  %v180 = vshrl.u32 %v179, 7
  %v181 = vsub.s32 1, %v180
  %v182 = vrot.slane %v140, %v181
  %v183 = vlaneseq
  %v184 = vshrl.u32 %v183, 7
  %v185 = vsub.s32 2, %v184
  %v186 = vrot.slane %v140, %v185
  %v187 = vlaneseq
  %v188 = vshrl.u32 %v187, 7
  %v189 = vsub.s32 3, %v188
  %v190 = vrot.slane %v140, %v189
  %v191 = vlaneseq
  %v192 = vshrl.u32 %v191, 7
  %v193 = vsub.s32 4, %v192
  %v194 = vrot.slane %v140, %v193
  %v195 = vlaneseq
  %v196 = vshrl.u32 %v195, 7
  %v197 = vsub.s32 5, %v196
  %v198 = vrot.slane %v140, %v197
  %v199 = vlaneseq
  %v200 = vshrl.u32 %v199, 7
  %v201 = vsub.s32 6, %v200
  %v202 = vrot.slane %v140, %v201
  %v203 = vlaneseq
  %v204 = vshrl.u32 %v203, 7
  %v205 = vsub.s32 7, %v204
  %v206 = vrot.slane %v140, %v205
  %v207 = vcombine.low %v146, %v150
  %v208 = vcombine.low %v154, %v158
  %v209 = vcombine.low %v162, %v166
  %v210 = vcombine.low %v170, %v174
  %v211 = vcombine.low %v178, %v182
  %v212 = vcombine.low %v186, %v190
  %v213 = vcombine.low %v194, %v198
  %v214 = vcombine.low %v202, %v206
  %v223 = vadd.f32 %v131, %v207
  %v224 = vadd.f32 %v132, %v208
  %v225 = vadd.f32 %v133, %v209
  %v226 = vadd.f32 %v134, %v210
  %v227 = vadd.f32 %v135, %v211
  %v228 = vadd.f32 %v136, %v212
  %v229 = vadd.f32 %v137, %v213
  %v230 = vadd.f32 %v138, %v214
  %v231 = vld [vmem:[%s1] sm:$0xff]
  %v232 = vld [vmem:[%s1 + $0x8] sm:$0xff]
  %v233 = vld [vmem:[%s1 + $0x10] sm:$0xff]
  %v234 = vld [vmem:[%s1 + $0x18] sm:$0xff]
  %v235 = vunpack.c.l.bf16 %v231
  %v236 = vunpack.c.h.bf16 %v231
  %v237 = vunpack.c.l.bf16 %v232
  %v238 = vunpack.c.h.bf16 %v232
  %v239 = vunpack.c.l.bf16 %v233
  %v240 = vunpack.c.h.bf16 %v233
  %v241 = vunpack.c.l.bf16 %v234
  %v242 = vunpack.c.h.bf16 %v234
  %v243 = vld [vmem:[%s6] sm:$0xff]
  %v244 = vld [vmem:[%s6 + $0x8] sm:$0xff]
  %v247 = vlaneseq
  %v248 = vshrl.u32 %v247, 7
  %v249 = vsub.s32 0, %v248
  %v250 = vrot.slane %v243, %v249
  %v251 = vlaneseq
  %v252 = vshrl.u32 %v251, 7
  %v253 = vsub.s32 1, %v252
  %v254 = vrot.slane %v243, %v253
  %v255 = vlaneseq
  %v256 = vshrl.u32 %v255, 7
  %v257 = vsub.s32 2, %v256
  %v258 = vrot.slane %v243, %v257
  %v259 = vlaneseq
  %v260 = vshrl.u32 %v259, 7
  %v261 = vsub.s32 3, %v260
  %v262 = vrot.slane %v243, %v261
  %v263 = vlaneseq
  %v264 = vshrl.u32 %v263, 7
  %v265 = vsub.s32 4, %v264
  %v266 = vrot.slane %v243, %v265
  %v267 = vlaneseq
  %v268 = vshrl.u32 %v267, 7
  %v269 = vsub.s32 5, %v268
  %v270 = vrot.slane %v243, %v269
  %v271 = vlaneseq
  %v272 = vshrl.u32 %v271, 7
  %v273 = vsub.s32 6, %v272
  %v274 = vrot.slane %v243, %v273
  %v275 = vlaneseq
  %v276 = vshrl.u32 %v275, 7
  %v277 = vsub.s32 7, %v276
  %v278 = vrot.slane %v243, %v277
  %v279 = vlaneseq
  %v280 = vshrl.u32 %v279, 7
  %v281 = vsub.s32 0, %v280
  %v282 = vrot.slane %v244, %v281
  %v283 = vlaneseq
  %v284 = vshrl.u32 %v283, 7
  %v285 = vsub.s32 1, %v284
  %v286 = vrot.slane %v244, %v285
  %v287 = vlaneseq
  %v288 = vshrl.u32 %v287, 7
  %v289 = vsub.s32 2, %v288
  %v290 = vrot.slane %v244, %v289
  %v291 = vlaneseq
  %v292 = vshrl.u32 %v291, 7
  %v293 = vsub.s32 3, %v292
  %v294 = vrot.slane %v244, %v293
  %v295 = vlaneseq
  %v296 = vshrl.u32 %v295, 7
  %v297 = vsub.s32 4, %v296
  %v298 = vrot.slane %v244, %v297
  %v299 = vlaneseq
  %v300 = vshrl.u32 %v299, 7
  %v301 = vsub.s32 5, %v300
  %v302 = vrot.slane %v244, %v301
  %v303 = vlaneseq
  %v304 = vshrl.u32 %v303, 7
  %v305 = vsub.s32 6, %v304
  %v306 = vrot.slane %v244, %v305
  %v307 = vlaneseq
  %v308 = vshrl.u32 %v307, 7
  %v309 = vsub.s32 7, %v308
  %v310 = vrot.slane %v244, %v309
  %v311 = vcombine.low %v250, %v254
  %v312 = vcombine.low %v258, %v262
  %v313 = vcombine.low %v266, %v270
  %v314 = vcombine.low %v274, %v278
  %v315 = vcombine.low %v282, %v286
  %v316 = vcombine.low %v290, %v294
  %v317 = vcombine.low %v298, %v302
  %v318 = vcombine.low %v306, %v310
  %v327 = vmul.f32 %v235, %v311
  %v328 = vmul.f32 %v236, %v312
  %v329 = vmul.f32 %v237, %v313
  %v330 = vmul.f32 %v238, %v314
  %v331 = vmul.f32 %v239, %v315
  %v332 = vmul.f32 %v240, %v316
  %v333 = vmul.f32 %v241, %v317
  %v334 = vmul.f32 %v242, %v318
  %v335 = vadd.f32 %v223, %v327
  %v336 = vadd.f32 %v224, %v328
  %v337 = vadd.f32 %v225, %v329
  %v338 = vadd.f32 %v226, %v330
  %v339 = vadd.f32 %v227, %v331
  %v340 = vadd.f32 %v228, %v332
  %v341 = vadd.f32 %v229, %v333
  %v342 = vadd.f32 %v230, %v334
  %v343 = vld [vmem:[%s7] sm:$0xff]
  %v344 = vld [vmem:[%s7 + $0x8] sm:$0xff]
  %v347 = vlaneseq
  %v348 = vshrl.u32 %v347, 7
  %v349 = vsub.s32 0, %v348
  %v350 = vrot.slane %v343, %v349
  %v351 = vlaneseq
  %v352 = vshrl.u32 %v351, 7
  %v353 = vsub.s32 1, %v352
  %v354 = vrot.slane %v343, %v353
  %v355 = vlaneseq
  %v356 = vshrl.u32 %v355, 7
  %v357 = vsub.s32 2, %v356
  %v358 = vrot.slane %v343, %v357
  %v359 = vlaneseq
  %v360 = vshrl.u32 %v359, 7
  %v361 = vsub.s32 3, %v360
  %v362 = vrot.slane %v343, %v361
  %v363 = vlaneseq
  %v364 = vshrl.u32 %v363, 7
  %v365 = vsub.s32 4, %v364
  %v366 = vrot.slane %v343, %v365
  %v367 = vlaneseq
  %v368 = vshrl.u32 %v367, 7
  %v369 = vsub.s32 5, %v368
  %v370 = vrot.slane %v343, %v369
  %v371 = vlaneseq
  %v372 = vshrl.u32 %v371, 7
  %v373 = vsub.s32 6, %v372
  %v374 = vrot.slane %v343, %v373
  %v375 = vlaneseq
  %v376 = vshrl.u32 %v375, 7
  %v377 = vsub.s32 7, %v376
  %v378 = vrot.slane %v343, %v377
  %v379 = vlaneseq
  %v380 = vshrl.u32 %v379, 7
  %v381 = vsub.s32 0, %v380
  %v382 = vrot.slane %v344, %v381
  %v383 = vlaneseq
  %v384 = vshrl.u32 %v383, 7
  %v385 = vsub.s32 1, %v384
  %v386 = vrot.slane %v344, %v385
  %v387 = vlaneseq
  %v388 = vshrl.u32 %v387, 7
  %v389 = vsub.s32 2, %v388
  %v390 = vrot.slane %v344, %v389
  %v391 = vlaneseq
  %v392 = vshrl.u32 %v391, 7
  %v393 = vsub.s32 3, %v392
  %v394 = vrot.slane %v344, %v393
  %v395 = vlaneseq
  %v396 = vshrl.u32 %v395, 7
  %v397 = vsub.s32 4, %v396
  %v398 = vrot.slane %v344, %v397
  %v399 = vlaneseq
  %v400 = vshrl.u32 %v399, 7
  %v401 = vsub.s32 5, %v400
  %v402 = vrot.slane %v344, %v401
  %v403 = vlaneseq
  %v404 = vshrl.u32 %v403, 7
  %v405 = vsub.s32 6, %v404
  %v406 = vrot.slane %v344, %v405
  %v407 = vlaneseq
  %v408 = vshrl.u32 %v407, 7
  %v409 = vsub.s32 7, %v408
  %v410 = vrot.slane %v344, %v409
  %v411 = vcombine.low %v350, %v354
  %v412 = vcombine.low %v358, %v362
  %v413 = vcombine.low %v366, %v370
  %v414 = vcombine.low %v374, %v378
  %v415 = vcombine.low %v382, %v386
  %v416 = vcombine.low %v390, %v394
  %v417 = vcombine.low %v398, %v402
  %v418 = vcombine.low %v406, %v410
  %v427 = vadd.f32 %v335, %v411
  %v428 = vadd.f32 %v336, %v412
  %v429 = vadd.f32 %v337, %v413
  %v430 = vadd.f32 %v338, %v414
  %v431 = vadd.f32 %v339, %v415
  %v432 = vadd.f32 %v340, %v416
  %v433 = vadd.f32 %v341, %v417
  %v434 = vadd.f32 %v342, %v418
  %v435 = vld [vmem:[%s2] sm:$0xff]
  %v436 = vld [vmem:[%s2 + $0x8] sm:$0xff]
  %v437 = vld [vmem:[%s2 + $0x10] sm:$0xff]
  %v438 = vld [vmem:[%s2 + $0x18] sm:$0xff]
  %v439 = vunpack.c.l.bf16 %v435
  %v440 = vunpack.c.h.bf16 %v435
  %v441 = vunpack.c.l.bf16 %v436
  %v442 = vunpack.c.h.bf16 %v436
  %v443 = vunpack.c.l.bf16 %v437
  %v444 = vunpack.c.h.bf16 %v437
  %v445 = vunpack.c.l.bf16 %v438
  %v446 = vunpack.c.h.bf16 %v438
  %v447 = vld [vmem:[%s8] sm:$0xff]
  %v448 = vld [vmem:[%s8 + $0x8] sm:$0xff]
  %v451 = vlaneseq
  %v452 = vshrl.u32 %v451, 7
  %v453 = vsub.s32 0, %v452
  %v454 = vrot.slane %v447, %v453
  %v455 = vlaneseq
  %v456 = vshrl.u32 %v455, 7
  %v457 = vsub.s32 1, %v456
  %v458 = vrot.slane %v447, %v457
  %v459 = vlaneseq
  %v460 = vshrl.u32 %v459, 7
  %v461 = vsub.s32 2, %v460
  %v462 = vrot.slane %v447, %v461
  %v463 = vlaneseq
  %v464 = vshrl.u32 %v463, 7
  %v465 = vsub.s32 3, %v464
  %v466 = vrot.slane %v447, %v465
  %v467 = vlaneseq
  %v468 = vshrl.u32 %v467, 7
  %v469 = vsub.s32 4, %v468
  %v470 = vrot.slane %v447, %v469
  %v471 = vlaneseq
  %v472 = vshrl.u32 %v471, 7
  %v473 = vsub.s32 5, %v472
  %v474 = vrot.slane %v447, %v473
  %v475 = vlaneseq
  %v476 = vshrl.u32 %v475, 7
  %v477 = vsub.s32 6, %v476
  %v478 = vrot.slane %v447, %v477
  %v479 = vlaneseq
  %v480 = vshrl.u32 %v479, 7
  %v481 = vsub.s32 7, %v480
  %v482 = vrot.slane %v447, %v481
  %v483 = vlaneseq
  %v484 = vshrl.u32 %v483, 7
  %v485 = vsub.s32 0, %v484
  %v486 = vrot.slane %v448, %v485
  %v487 = vlaneseq
  %v488 = vshrl.u32 %v487, 7
  %v489 = vsub.s32 1, %v488
  %v490 = vrot.slane %v448, %v489
  %v491 = vlaneseq
  %v492 = vshrl.u32 %v491, 7
  %v493 = vsub.s32 2, %v492
  %v494 = vrot.slane %v448, %v493
  %v495 = vlaneseq
  %v496 = vshrl.u32 %v495, 7
  %v497 = vsub.s32 3, %v496
  %v498 = vrot.slane %v448, %v497
  %v499 = vlaneseq
  %v500 = vshrl.u32 %v499, 7
  %v501 = vsub.s32 4, %v500
  %v502 = vrot.slane %v448, %v501
  %v503 = vlaneseq
  %v504 = vshrl.u32 %v503, 7
  %v505 = vsub.s32 5, %v504
  %v506 = vrot.slane %v448, %v505
  %v507 = vlaneseq
  %v508 = vshrl.u32 %v507, 7
  %v509 = vsub.s32 6, %v508
  %v510 = vrot.slane %v448, %v509
  %v511 = vlaneseq
  %v512 = vshrl.u32 %v511, 7
  %v513 = vsub.s32 7, %v512
  %v514 = vrot.slane %v448, %v513
  %v515 = vcombine.low %v454, %v458
  %v516 = vcombine.low %v462, %v466
  %v517 = vcombine.low %v470, %v474
  %v518 = vcombine.low %v478, %v482
  %v519 = vcombine.low %v486, %v490
  %v520 = vcombine.low %v494, %v498
  %v521 = vcombine.low %v502, %v506
  %v522 = vcombine.low %v510, %v514
  %v531 = vmul.f32 %v439, %v515
  %v532 = vmul.f32 %v440, %v516
  %v533 = vmul.f32 %v441, %v517
  %v534 = vmul.f32 %v442, %v518
  %v535 = vmul.f32 %v443, %v519
  %v536 = vmul.f32 %v444, %v520
  %v537 = vmul.f32 %v445, %v521
  %v538 = vmul.f32 %v446, %v522
  %v539 = vadd.f32 %v427, %v531
  %v540 = vadd.f32 %v428, %v532
  %v541 = vadd.f32 %v429, %v533
  %v542 = vadd.f32 %v430, %v534
  %v543 = vadd.f32 %v431, %v535
  %v544 = vadd.f32 %v432, %v536
  %v545 = vadd.f32 %v433, %v537
  %v546 = vadd.f32 %v434, %v538
  %v547 = vld [vmem:[%s9] sm:$0xff]
  %v548 = vld [vmem:[%s9 + $0x8] sm:$0xff]
  %v551 = vlaneseq
  %v552 = vshrl.u32 %v551, 7
  %v553 = vsub.s32 0, %v552
  %v554 = vrot.slane %v547, %v553
  %v555 = vlaneseq
  %v556 = vshrl.u32 %v555, 7
  %v557 = vsub.s32 1, %v556
  %v558 = vrot.slane %v547, %v557
  %v559 = vlaneseq
  %v560 = vshrl.u32 %v559, 7
  %v561 = vsub.s32 2, %v560
  %v562 = vrot.slane %v547, %v561
  %v563 = vlaneseq
  %v564 = vshrl.u32 %v563, 7
  %v565 = vsub.s32 3, %v564
  %v566 = vrot.slane %v547, %v565
  %v567 = vlaneseq
  %v568 = vshrl.u32 %v567, 7
  %v569 = vsub.s32 4, %v568
  %v570 = vrot.slane %v547, %v569
  %v571 = vlaneseq
  %v572 = vshrl.u32 %v571, 7
  %v573 = vsub.s32 5, %v572
  %v574 = vrot.slane %v547, %v573
  %v575 = vlaneseq
  %v576 = vshrl.u32 %v575, 7
  %v577 = vsub.s32 6, %v576
  %v578 = vrot.slane %v547, %v577
  %v579 = vlaneseq
  %v580 = vshrl.u32 %v579, 7
  %v581 = vsub.s32 7, %v580
  %v582 = vrot.slane %v547, %v581
  %v583 = vlaneseq
  %v584 = vshrl.u32 %v583, 7
  %v585 = vsub.s32 0, %v584
  %v586 = vrot.slane %v548, %v585
  %v587 = vlaneseq
  %v588 = vshrl.u32 %v587, 7
  %v589 = vsub.s32 1, %v588
  %v590 = vrot.slane %v548, %v589
  %v591 = vlaneseq
  %v592 = vshrl.u32 %v591, 7
  %v593 = vsub.s32 2, %v592
  %v594 = vrot.slane %v548, %v593
  %v595 = vlaneseq
  %v596 = vshrl.u32 %v595, 7
  %v597 = vsub.s32 3, %v596
  %v598 = vrot.slane %v548, %v597
  %v599 = vlaneseq
  %v600 = vshrl.u32 %v599, 7
  %v601 = vsub.s32 4, %v600
  %v602 = vrot.slane %v548, %v601
  %v603 = vlaneseq
  %v604 = vshrl.u32 %v603, 7
  %v605 = vsub.s32 5, %v604
  %v606 = vrot.slane %v548, %v605
  %v607 = vlaneseq
  %v608 = vshrl.u32 %v607, 7
  %v609 = vsub.s32 6, %v608
  %v610 = vrot.slane %v548, %v609
  %v611 = vlaneseq
  %v612 = vshrl.u32 %v611, 7
  %v613 = vsub.s32 7, %v612
  %v614 = vrot.slane %v548, %v613
  %v615 = vcombine.low %v554, %v558
  %v616 = vcombine.low %v562, %v566
  %v617 = vcombine.low %v570, %v574
  %v618 = vcombine.low %v578, %v582
  %v619 = vcombine.low %v586, %v590
  %v620 = vcombine.low %v594, %v598
  %v621 = vcombine.low %v602, %v606
  %v622 = vcombine.low %v610, %v614
  %v631 = vadd.f32 %v539, %v615
  %v632 = vadd.f32 %v540, %v616
  %v633 = vadd.f32 %v541, %v617
  %v634 = vadd.f32 %v542, %v618
  %v635 = vadd.f32 %v543, %v619
  %v636 = vadd.f32 %v544, %v620
  %v637 = vadd.f32 %v545, %v621
  %v638 = vadd.f32 %v546, %v622
  %v639 = vld [vmem:[%s3] sm:$0xff]
  %v640 = vld [vmem:[%s3 + $0x8] sm:$0xff]
  %v641 = vld [vmem:[%s3 + $0x10] sm:$0xff]
  %v642 = vld [vmem:[%s3 + $0x18] sm:$0xff]
  %v643 = vld [vmem:[%s3 + $0x20] sm:$0xff]
  %v644 = vld [vmem:[%s3 + $0x28] sm:$0xff]
  %v645 = vld [vmem:[%s3 + $0x30] sm:$0xff]
  %v646 = vld [vmem:[%s3 + $0x38] sm:$0xff]
  %v647 = vadd.f32 %v631, %v639
  %v648 = vadd.f32 %v632, %v640
  %v649 = vadd.f32 %v633, %v641
  %v650 = vadd.f32 %v634, %v642
  %v651 = vadd.f32 %v635, %v643
  %v652 = vadd.f32 %v636, %v644
  %v653 = vadd.f32 %v637, %v645
  %v654 = vadd.f32 %v638, %v646
  %655 = vst [vmem:[%s10] sm:$0xff] %v647
  %656 = vst [vmem:[%s10 + $0x8] sm:$0xff] %v648
  %657 = vst [vmem:[%s10 + $0x10] sm:$0xff] %v649
  %658 = vst [vmem:[%s10 + $0x18] sm:$0xff] %v650
  %659 = vst [vmem:[%s10 + $0x20] sm:$0xff] %v651
  %660 = vst [vmem:[%s10 + $0x28] sm:$0xff] %v652
  %661 = vst [vmem:[%s10 + $0x30] sm:$0xff] %v653
  %662 = vst [vmem:[%s10 + $0x38] sm:$0xff] %v654
  // Predicated region
  $region42: #{fatm_forward.7} parent=0 // pred_check
    _
  $region43: #{fatm_forward.7} parent=0 // pred_check_branch
    %664 = sbr.rel (0) target = $region45
  $region44: #{fatm_forward.7} parent=0 // pred_region
    _
  $region45: #{fatm_forward.7} parent=0 // pred_fallthru
    _
  // Predicated region
  $region46: #{fatm_forward.7} parent=0 // pred_check
    _
  $region47: #{fatm_forward.7} parent=0 // pred_check_branch
    %666 = sbr.rel (0) target = $region49
  $region48: #{fatm_forward.7} parent=0 // pred_region
    _
  $region49: #{fatm_forward.7} parent=0 // pred_fallthru
    _

// kernel: fatm_forward.4
$region0: #{fatm_forward.4}
  #allocation0 [shape = 'u32[]', space=smem, size = 0x4, offset = 0x4, fixed_abs, tag = 'smem constant byte address 0x4 - core index']
  #allocation1 [shape = 'u32[144,128]{1,0:T(1,128)}', space=vmem, size = 0x12000, scoped, tag = 'internal scratch']
  #allocation2 [shape = 'bf16[288,64]{1,0:T(16,128)(2,1)}', space=vmem, size = 0x12000, scoped, tag = 'scratch operand']
  %s0 = inlined_call_operand.vmem [shape: f32[2,2,32,64], index: 0, kind: input, shape index: {}]
  %s1 = inlined_call_operand.vmem [shape: bf16[64,64], index: 1, kind: input, shape index: {}]
  %s2 = inlined_call_operand.vmem [shape: bf16[9,64,64], index: 2, kind: input, shape index: {}]
  %s3 = inlined_call_operand.vmem [shape: bf16[32,32], index: 3, kind: input, shape index: {}]
  %s4 = inlined_call_operand.vmem [shape: f32[32,1], index: 4, kind: input, shape index: {}]
  %s5 = inlined_call_operand.vmem [shape: bf16[32,288], index: 5, kind: input, shape index: {}]
  %s6 = inlined_call_operand.vmem [shape: f32[32,1], index: 6, kind: input, shape index: {}]
  %s7 = inlined_call_operand.vmem [shape: bf16[2,2,32,64], index: 7, kind: output, shape index: {0}]
  %s8 = inlined_call_operand.vmem [shape: bf16[2,2,32,64], index: 8, kind: output, shape index: {1}]
  %s9 = inlined_call_operand.vmem [shape: bf16[2,2,32,64], index: 9, kind: output, shape index: {2}]
  %s10 = inlined_call_operand.vmem [shape: f32[1,6,32,1], index: 10, kind: output, shape index: {3}]
  %11 = xla_tuple %s7, %s8, %s9, %s10
  %s12 = sld [smem:[#allocation0]]
  $region62: #{fatm_forward.4} parent=0
    _
  %s14 = ssub.s32 1, %s12
  %s15 = scalar_select 0, %s14, %s12
  // Predicated region
  $region2: #{fatm_forward.4} parent=0 // pred_check
    _
  $region3: #{fatm_forward.4} parent=0 // pred_check_branch
    %17 = sbr.rel (0) target = $region5
  $region4: #{fatm_forward.4} parent=0 // pred_region
    _
  $region5: #{fatm_forward.4} parent=0 // pred_fallthru
    _
  // Predicated region
  $region6: #{fatm_forward.4} parent=0 // pred_check
    _
  $region7: #{fatm_forward.4} parent=0 // pred_check_branch
    %19 = sbr.rel (0) target = $region9
  $region8: #{fatm_forward.4} parent=0 // pred_region
    _
  $region9: #{fatm_forward.4} parent=0 // pred_fallthru
    _
  // Predicated region
  $region10: #{fatm_forward.4} parent=0 // pred_check
    _
  $region11: #{fatm_forward.4} parent=0 // pred_check_branch
    %21 = sbr.rel (0) target = $region13
  $region12: #{fatm_forward.4} parent=0 // pred_region
    _
  $region13: #{fatm_forward.4} parent=0 // pred_fallthru
    _
  // Predicated region
  $region14: #{fatm_forward.4} parent=0 // pred_check
    _
  $region15: #{fatm_forward.4} parent=0 // pred_check_branch
    %23 = sbr.rel (0) target = $region17
  $region16: #{fatm_forward.4} parent=0 // pred_region
    _
  $region17: #{fatm_forward.4} parent=0 // pred_fallthru
    _
  // Predicated region
  $region18: #{fatm_forward.4} parent=0 // pred_check
    _
  $region19: #{fatm_forward.4} parent=0 // pred_check_branch
    %25 = sbr.rel (0) target = $region21
  $region20: #{fatm_forward.4} parent=0 // pred_region
    _
  $region21: #{fatm_forward.4} parent=0 // pred_fallthru
    _
  // Predicated region
  $region22: #{fatm_forward.4} parent=0 // pred_check
    _
  $region23: #{fatm_forward.4} parent=0 // pred_check_branch
    %27 = sbr.rel (0) target = $region25
  $region24: #{fatm_forward.4} parent=0 // pred_region
    _
  $region25: #{fatm_forward.4} parent=0 // pred_fallthru
    _
  // Predicated region
  $region26: #{fatm_forward.4} parent=0 // pred_check
    _
  $region27: #{fatm_forward.4} parent=0 // pred_check_branch
    %29 = sbr.rel (0) target = $region29
  $region28: #{fatm_forward.4} parent=0 // pred_region
    _
  $region29: #{fatm_forward.4} parent=0 // pred_fallthru
    _
  %v31 = vld [vmem:[%s0] sm:$0xff]
  %v32 = vld [vmem:[%s0 + $0x8] sm:$0xff]
  %v33 = vld [vmem:[%s0 + $0x10] sm:$0xff]
  %v34 = vld [vmem:[%s0 + $0x18] sm:$0xff]
  %v35 = vmul.f32 %v31, 0.5
  %v36 = vmul.f32 %v32, 0.5
  %v37 = vmul.f32 %v33, 0.5
  %v38 = vmul.f32 %v34, 0.5
  %v39 = vadd.f32 %v35, 0.0
  %v40 = vadd.f32 %v36, 0.0
  %v41 = vadd.f32 %v37, 0.0
  %v42 = vadd.f32 %v38, 0.0
  %vm43 = vcmp.ge.f32.partialorder %v39, 1.0
  %vm44 = vcmp.ge.f32.partialorder %v40, 1.0
  %vm45 = vcmp.ge.f32.partialorder %v41, 1.0
  %vm46 = vcmp.ge.f32.partialorder %v42, 1.0
  %v47 = vsel %vm43, 1, 0
  %v48 = vsel %vm44, 1, 0
  %v49 = vsel %vm45, 1, 0
  %v50 = vsel %vm46, 1, 0
  %v51 = vcvt.s32.f32 %v47
  %v52 = vcvt.s32.f32 %v48
  %v53 = vcvt.s32.f32 %v49
  %v54 = vcvt.s32.f32 %v50
  %v55 = vsub.f32 1.0, %v51
  %v56 = vsub.f32 1.0, %v52
  %v57 = vsub.f32 1.0, %v53
  %v58 = vsub.f32 1.0, %v54
  %v59 = vmul.f32 %v39, %v55
  %v60 = vmul.f32 %v40, %v56
  %v61 = vmul.f32 %v41, %v57
  %v62 = vmul.f32 %v42, %v58
  %v63 = vpack.c.bf16 %v52, %v51
  %v64 = vpack.c.bf16 %v54, %v53
  %v65 = vld [vmem:[%s1] sm:$0xf]
  %v66 = vld [vmem:[%s1 + $0x4] sm:$0xf]
  %v67 = vld [vmem:[%s1 + $0x8] sm:$0xf]
  %v68 = vld [vmem:[%s1 + $0xc] sm:$0xf]
  %v69 = vld [vmem:[%s1 + $0x10] sm:$0xf]
  %v70 = vld [vmem:[%s1 + $0x14] sm:$0xf]
  %v71 = vld [vmem:[%s1 + $0x18] sm:$0xf]
  %v72 = vld [vmem:[%s1 + $0x1c] sm:$0xf]
  %v81 = vunpack.c.l.b16 %v65
  %v82 = vunpack.c.l.b16 %v66
  %v83 = vunpack.c.l.b16 %v67
  %v84 = vunpack.c.l.b16 %v68
  %v85 = vunpack.c.l.b16 %v69
  %v86 = vunpack.c.l.b16 %v70
  %v87 = vunpack.c.l.b16 %v71
  %v88 = vunpack.c.l.b16 %v72
  %v89 = vpack.c.b16 %v82, %v81
  %v90 = vpack.c.b16 %v84, %v83
  %v91 = vpack.c.b16 %v86, %v85
  %v92 = vpack.c.b16 %v88, %v87
  %vm97 = vcmask 523264
  %v99 = vsel %vm97, %v63, 0
  %v102 = vsel %vm97, %v64, 0
  %104 = vmatprep.subr.bf16.mxu0 0
  %105 = vmatpush1.bf16.msra.mxu0 %v89
  %106 = vmatprep.subr.bf16.mxu0 0
  %107 = vmatpush1.bf16.msra.mxu0 %v90
  %108 = vmatprep.subr.bf16.mxu0 0
  %109 = vmatpush1.bf16.msra.mxu0 %v91
  %110 = vmatprep.subr.bf16.mxu0 0
  %111 = vmatpush1.bf16.msra.mxu0 %v92
  %112 = vmatprep.subr.bf16.mxu0 0
  %113 = vmatpush1.bf16.msra.mxu0 0
  %114 = vmatprep.subr.bf16.mxu0 0
  %115 = vmatpush1.bf16.msra.mxu0 0
  %116 = vmatprep.subr.bf16.mxu0 0
  %117 = vmatpush1.bf16.msra.mxu0 0
  %118 = vmatprep.subr.bf16.mxu0 0
  %119 = vmatpush1.bf16.msra.mxu0 0
  %120 = vmatprep.subr.bf16.mxu0 0
  %121 = vmatpush1.bf16.msra.mxu0 0
  %122 = vmatprep.subr.bf16.mxu0 0
  %123 = vmatpush1.bf16.msra.mxu0 0
  %124 = vmatprep.subr.bf16.mxu0 0
  %125 = vmatpush1.bf16.msra.mxu0 0
  %126 = vmatprep.subr.bf16.mxu0 0
  %127 = vmatpush1.bf16.msra.mxu0 0
  %128 = vmatprep.subr.bf16.mxu0 0
  %129 = vmatpush1.bf16.msra.mxu0 0
  %130 = vmatprep.subr.bf16.mxu0 0
  %131 = vmatpush1.bf16.msra.mxu0 0
  %132 = vmatprep.subr.bf16.mxu0 0
  %133 = vmatpush1.bf16.msra.mxu0 0
  %134 = vmatprep.subr.bf16.mxu0 0
  %135 = vmatpush1.bf16.msra.mxu0 0
  %136 = vmatprep.mubr.bf16.mxu0 0
  %137 = vmatmul.mubr.bf16.gmra.mrb[0].mxu0 %v99
  %v138 = vpop.f32.mrb[0].mxu0
  %v139 = vadd.f32 0.0, %v138
  %v140 = vpop.f32.mrb[0].mxu0
  %v141 = vpop.f32.mrb[0].mxu0
  %v142 = vadd.f32 0.0, %v141
  %v143 = vpop.f32.mrb[0].mxu0
  %144 = vmatprep.mubr.bf16.mxu0 0
  %145 = vmatmul.mubr.bf16.gmra.mrb[0].mxu0 %v102
  %v146 = vpop.f32.mrb[0].mxu0
  %v147 = vadd.f32 0.0, %v146
  %v148 = vpop.f32.mrb[0].mxu0
  %v149 = vpop.f32.mrb[0].mxu0
  %v150 = vadd.f32 0.0, %v149
  %v151 = vpop.f32.mrb[0].mxu0
  %152 = vdwg.mxu0
  %vm153 = vcmp.ge.f32.partialorder %v139, 1.0
  %vm154 = vcmp.ge.f32.partialorder %v142, 1.0
  %vm155 = vcmp.ge.f32.partialorder %v147, 1.0
  %vm156 = vcmp.ge.f32.partialorder %v150, 1.0
  %v157 = vsel %vm153, 1.0, 0.0
  %v158 = vsel %vm154, 1.0, 0.0
  %v159 = vsel %vm155, 1.0, 0.0
  %v160 = vsel %vm156, 1.0, 0.0
  %vm161 = vcmp.le.f32.partialorder %v139, -1.0
  %vm162 = vcmp.le.f32.partialorder %v142, -1.0
  %vm163 = vcmp.le.f32.partialorder %v147, -1.0
  %vm164 = vcmp.le.f32.partialorder %v150, -1.0
  %v165 = vsel %vm161, -1.0, 0.0
  %v166 = vsel %vm162, -1.0, 0.0
  %v167 = vsel %vm163, -1.0, 0.0
  %v168 = vsel %vm164, -1.0, 0.0
  %v169 = vadd.f32 %v157, %v165
  %v170 = vadd.f32 %v158, %v166
  %v171 = vadd.f32 %v159, %v167
  %v172 = vadd.f32 %v160, %v168
  %vm173 = vcmp.ne.f32.partialorder %v169, 0.0
  %vm174 = vcmp.ne.f32.partialorder %v170, 0.0
  %vm175 = vcmp.ne.f32.partialorder %v171, 0.0
  %vm176 = vcmp.ne.f32.partialorder %v172, 0.0
  %v177 = vsel %vm173, 0.0, %v139
  %v178 = vsel %vm174, 0.0, %v142
  %v179 = vsel %vm175, 0.0, %v147
  %v180 = vsel %vm176, 0.0, %v150
  %v181 = vpack.c.bf16 %v170, %v169
  %v182 = vpack.c.bf16 %v172, %v171
  %v185 = vunpack.c.l.b16 %v181
  %v186 = vunpack.c.h.b16 %v181
  %v187 = vunpack.c.l.b16 %v182
  %v188 = vunpack.c.h.b16 %v182
  %v189 = vpack.c.b16 %v185, %v185
  %v190 = vpack.c.b16 %v186, %v186
  %v191 = vpack.c.b16 %v187, %v187
  %v192 = vpack.c.b16 %v188, %v188
  %vm197 = vcmask 519168
  %198 = vst.msk [vmem:[%s7] sm:$0xf] %vm197, %v189
  %199 = vst.msk [vmem:[%s7 + $0x4] sm:$0xf] %vm197, %v190
  %200 = vst.msk [vmem:[%s7 + $0x8] sm:$0xf] %vm197, %v191
  %201 = vst.msk [vmem:[%s7 + $0xc] sm:$0xf] %vm197, %v192
  %v202 = vsel %vm97, %v169, 0.0
  %203 = vadd.xlane.f32.xlu0 %v202
  %v204 = vpop.xlane.xlu0 %203
  %v205 = vsel %vm97, %v170, 0.0
  %206 = vadd.xlane.f32.xlu0 %v205
  %v207 = vpop.xlane.xlu0 %206
  %v208 = vsel %vm97, %v171, 0.0
  %209 = vadd.xlane.f32.xlu0 %v208
  %v210 = vpop.xlane.xlu0 %209
  %v211 = vsel %vm97, %v172, 0.0
  %212 = vadd.xlane.f32.xlu0 %v211
  %v213 = vpop.xlane.xlu0 %212
  %v214 = vadd.f32 %v204, 0.0
  %v215 = vadd.f32 %v207, 0.0
  %v216 = vadd.f32 %v210, 0.0
  %v217 = vadd.f32 %v213, 0.0
  %v218 = vmul.f32 %v169, %v169
  %v219 = vmul.f32 %v170, %v170
  %v220 = vmul.f32 %v171, %v171
  %v221 = vmul.f32 %v172, %v172
  %v222 = vsel %vm97, %v218, 0.0
  %223 = vadd.xlane.f32.xlu0 %v222
  %v224 = vpop.xlane.xlu0 %223
  %v225 = vsel %vm97, %v219, 0.0
  %226 = vadd.xlane.f32.xlu0 %v225
  %v227 = vpop.xlane.xlu0 %226
  %v228 = vsel %vm97, %v220, 0.0
  %229 = vadd.xlane.f32.xlu0 %v228
  %v230 = vpop.xlane.xlu0 %229
  %v231 = vsel %vm97, %v221, 0.0
  %232 = vadd.xlane.f32.xlu0 %v231
  %v233 = vpop.xlane.xlu0 %232
  %v234 = vadd.f32 %v224, 0.0
  %v235 = vadd.f32 %v227, 0.0
  %v236 = vadd.f32 %v230, 0.0
  %v237 = vadd.f32 %v233, 0.0
  %v238 = vld [vmem:[%s3] sm:$0xf]
  %v239 = vld [vmem:[%s3 + $0x4] sm:$0xf]
  %v240 = vld [vmem:[%s3 + $0x8] sm:$0xf]
  %v241 = vld [vmem:[%s3 + $0xc] sm:$0xf]
  %v242 = vld [vmem:[%s4] sm:$0xff]
  %v243 = vld [vmem:[%s4 + $0x8] sm:$0xff]
  %v244 = vld [vmem:[%s4 + $0x10] sm:$0xff]
  %v245 = vld [vmem:[%s4 + $0x18] sm:$0xff]
  %247 = vset.pattern.permute.xlu0 0
  %248 = vperm.xlu0 %247, %v242
  %v249 = vpop.permute.xlu0 %248
  %252 = vset.pattern.permute.xlu0 0
  %253 = vperm.xlu0 %252, %v243
  %v254 = vpop.permute.xlu0 %253
  %257 = vset.pattern.permute.xlu0 0
  %258 = vperm.xlu0 %257, %v244
  %v259 = vpop.permute.xlu0 %258
  %262 = vset.pattern.permute.xlu0 0
  %263 = vperm.xlu0 %262, %v245
  %v264 = vpop.permute.xlu0 %263
  %v270 = vunpack.c.l.b16 %v238
  %v271 = vunpack.c.l.b16 %v239
  %v272 = vunpack.c.l.b16 %v240
  %v273 = vunpack.c.l.b16 %v241
  %v274 = vpack.c.b16 %v271, %v270
  %v275 = vpack.c.b16 %v273, %v272
  %vm276 = vcmask 261120
  %v278 = vsel %vm276, %v274, 0
  %v281 = vsel %vm276, %v275, 0
  %283 = vmatprep.subr.bf16.mxu0 0
  %284 = vmatpush1.bf16.msra.mxu0 %v63
  %285 = vmatprep.subr.bf16.mxu0 0
  %286 = vmatpush1.bf16.msra.mxu0 %v64
  %287 = vmatprep.subr.bf16.mxu0 0
  %288 = vmatpush1.bf16.msra.mxu0 0
  %289 = vmatprep.subr.bf16.mxu0 0
  %290 = vmatpush1.bf16.msra.mxu0 0
  %291 = vmatprep.subr.bf16.mxu0 0
  %292 = vmatpush1.bf16.msra.mxu0 0
  %293 = vmatprep.subr.bf16.mxu0 0
  %294 = vmatpush1.bf16.msra.mxu0 0
  %295 = vmatprep.subr.bf16.mxu0 0
  %296 = vmatpush1.bf16.msra.mxu0 0
  %297 = vmatprep.subr.bf16.mxu0 0
  %298 = vmatpush1.bf16.msra.mxu0 0
  %299 = vmatprep.subr.bf16.mxu0 0
  %300 = vmatpush1.bf16.msra.mxu0 0
  %301 = vmatprep.subr.bf16.mxu0 0
  %302 = vmatpush1.bf16.msra.mxu0 0
  %303 = vmatprep.subr.bf16.mxu0 0
  %304 = vmatpush1.bf16.msra.mxu0 0
  %305 = vmatprep.subr.bf16.mxu0 0
  %306 = vmatpush1.bf16.msra.mxu0 0
  %307 = vmatprep.subr.bf16.mxu0 0
  %308 = vmatpush1.bf16.msra.mxu0 0
  %309 = vmatprep.subr.bf16.mxu0 0
  %310 = vmatpush1.bf16.msra.mxu0 0
  %311 = vmatprep.subr.bf16.mxu0 0
  %312 = vmatpush1.bf16.msra.mxu0 0
  %313 = vmatprep.subr.bf16.mxu0 0
  %314 = vmatpush1.bf16.msra.mxu0 0
  %315 = vmatprep.mubr.bf16.mxu0 0
  %316 = vmatmul.mubr.bf16.gmra.mrb[0].mxu0 %v278
  %v317 = vpop.f32.mrb[0].mxu0
  %v318 = vadd.f32 %v249, %v317
  %v319 = vpop.f32.mrb[0].mxu0
  %v320 = vpop.f32.mrb[0].mxu0
  %v321 = vadd.f32 %v254, %v320
  %v322 = vpop.f32.mrb[0].mxu0
  %323 = vmatprep.mubr.bf16.mxu0 0
  %324 = vmatmul.mubr.bf16.gmra.mrb[0].mxu0 %v281
  %v325 = vpop.f32.mrb[0].mxu0
  %v326 = vadd.f32 %v259, %v325
  %v327 = vpop.f32.mrb[0].mxu0
  %v328 = vpop.f32.mrb[0].mxu0
  %v329 = vadd.f32 %v264, %v328
  %v330 = vpop.f32.mrb[0].mxu0
  %331 = vdwg.mxu0
  %v332 = vpack.c.bf16 %v321, %v318
  %v333 = vpack.c.bf16 %v329, %v326
  %v336 = vunpack.c.l.b16 %v332
  %v337 = vunpack.c.h.b16 %v332
  %v338 = vunpack.c.l.b16 %v333
  %v339 = vunpack.c.h.b16 %v333
  %v340 = vpack.c.b16 %v336, %v336
  %v341 = vpack.c.b16 %v337, %v337
  %v342 = vpack.c.b16 %v338, %v338
  %v343 = vpack.c.b16 %v339, %v339
  %348 = vst.msk [vmem:[%s8] sm:$0xf] %vm197, %v340
  %349 = vst.msk [vmem:[%s8 + $0x4] sm:$0xf] %vm197, %v341
  %350 = vst.msk [vmem:[%s8 + $0x8] sm:$0xf] %vm197, %v342
  %351 = vst.msk [vmem:[%s8 + $0xc] sm:$0xf] %vm197, %v343
  %v352 = vsel %vm97, %v318, 0.0
  %353 = vadd.xlane.f32.xlu0 %v352
  %v354 = vpop.xlane.xlu0 %353
  %v355 = vsel %vm97, %v321, 0.0
  %356 = vadd.xlane.f32.xlu0 %v355
  %v357 = vpop.xlane.xlu0 %356
  %v358 = vsel %vm97, %v326, 0.0
  %359 = vadd.xlane.f32.xlu0 %v358
  %v360 = vpop.xlane.xlu0 %359
  %v361 = vsel %vm97, %v329, 0.0
  %362 = vadd.xlane.f32.xlu0 %v361
  %v363 = vpop.xlane.xlu0 %362
  %v364 = vadd.f32 %v354, 0.0
  %v365 = vadd.f32 %v357, 0.0
  %v366 = vadd.f32 %v360, 0.0
  %v367 = vadd.f32 %v363, 0.0
  %v368 = vmul.f32 %v318, %v318
  %v369 = vmul.f32 %v321, %v321
  %v370 = vmul.f32 %v326, %v326
  %v371 = vmul.f32 %v329, %v329
  %v372 = vsel %vm97, %v368, 0.0
  %373 = vadd.xlane.f32.xlu0 %v372
  %v374 = vpop.xlane.xlu0 %373
  %v375 = vsel %vm97, %v369, 0.0
  %376 = vadd.xlane.f32.xlu0 %v375
  %v377 = vpop.xlane.xlu0 %376
  %v378 = vsel %vm97, %v370, 0.0
  %379 = vadd.xlane.f32.xlu0 %v378
  %v380 = vpop.xlane.xlu0 %379
  %v381 = vsel %vm97, %v371, 0.0
  %382 = vadd.xlane.f32.xlu0 %v381
  %v383 = vpop.xlane.xlu0 %382
  %v384 = vadd.f32 %v374, 0.0
  %v385 = vadd.f32 %v377, 0.0
  %v386 = vadd.f32 %v380, 0.0
  %v387 = vadd.f32 %v383, 0.0
  %v388 = vld [vmem:[%s2] sm:$0xf]
  %v389 = vld [vmem:[%s2 + $0x4] sm:$0xf]
  %v390 = vld [vmem:[%s2 + $0x8] sm:$0xf]
  %v391 = vld [vmem:[%s2 + $0xc] sm:$0xf]
  %v392 = vld [vmem:[%s2 + $0x10] sm:$0xf]
  %v393 = vld [vmem:[%s2 + $0x14] sm:$0xf]
  %v394 = vld [vmem:[%s2 + $0x18] sm:$0xf]
  %v395 = vld [vmem:[%s2 + $0x1c] sm:$0xf]
  %v404 = vunpack.c.l.b16 %v388
  %v405 = vunpack.c.l.b16 %v389
  %v406 = vunpack.c.l.b16 %v390
  %v407 = vunpack.c.l.b16 %v391
  %v408 = vunpack.c.l.b16 %v392
  %v409 = vunpack.c.l.b16 %v393
  %v410 = vunpack.c.l.b16 %v394
  %v411 = vunpack.c.l.b16 %v395
  %v412 = vpack.c.b16 %v405, %v404
  %v413 = vpack.c.b16 %v407, %v406
  %v414 = vpack.c.b16 %v409, %v408
  %v415 = vpack.c.b16 %v411, %v410
  %420 = vmatprep.subr.bf16.mxu0 0
  %421 = vmatpush1.bf16.msra.mxu0 %v412
  %422 = vmatprep.subr.bf16.mxu0 0
  %423 = vmatpush1.bf16.msra.mxu0 %v413
  %424 = vmatprep.subr.bf16.mxu0 0
  %425 = vmatpush1.bf16.msra.mxu0 %v414
  %426 = vmatprep.subr.bf16.mxu0 0
  %427 = vmatpush1.bf16.msra.mxu0 %v415
  %428 = vmatprep.subr.bf16.mxu0 0
  %429 = vmatpush1.bf16.msra.mxu0 0
  %430 = vmatprep.subr.bf16.mxu0 0
  %431 = vmatpush1.bf16.msra.mxu0 0
  %432 = vmatprep.subr.bf16.mxu0 0
  %433 = vmatpush1.bf16.msra.mxu0 0
  %434 = vmatprep.subr.bf16.mxu0 0
  %435 = vmatpush1.bf16.msra.mxu0 0
  %436 = vmatprep.subr.bf16.mxu0 0
  %437 = vmatpush1.bf16.msra.mxu0 0
  %438 = vmatprep.subr.bf16.mxu0 0
  %439 = vmatpush1.bf16.msra.mxu0 0
  %440 = vmatprep.subr.bf16.mxu0 0
  %441 = vmatpush1.bf16.msra.mxu0 0
  %442 = vmatprep.subr.bf16.mxu0 0
  %443 = vmatpush1.bf16.msra.mxu0 0
  %444 = vmatprep.subr.bf16.mxu0 0
  %445 = vmatpush1.bf16.msra.mxu0 0
  %446 = vmatprep.subr.bf16.mxu0 0
  %447 = vmatpush1.bf16.msra.mxu0 0
  %448 = vmatprep.subr.bf16.mxu0 0
  %449 = vmatpush1.bf16.msra.mxu0 0
  %450 = vmatprep.subr.bf16.mxu0 0
  %451 = vmatpush1.bf16.msra.mxu0 0
  %452 = vmatprep.mubr.bf16.mxu0 0
  %453 = vmatmul.mubr.bf16.gmra.mrb[0].mxu0 %v99
  %v454 = vpop.f32.mrb[0].mxu0
  %v455 = vadd.f32 0.0, %v454
  %v456 = vpop.f32.mrb[0].mxu0
  %v457 = vpop.f32.mrb[0].mxu0
  %v458 = vadd.f32 0.0, %v457
  %v459 = vpop.f32.mrb[0].mxu0
  %460 = vmatprep.mubr.bf16.mxu0 0
  %461 = vmatmul.mubr.bf16.gmra.mrb[0].mxu0 %v102
  %v462 = vpop.f32.mrb[0].mxu0
  %v463 = vadd.f32 0.0, %v462
  %v464 = vpop.f32.mrb[0].mxu0
  %v465 = vpop.f32.mrb[0].mxu0
  %v466 = vadd.f32 0.0, %v465
  %v467 = vpop.f32.mrb[0].mxu0
  %468 = vdwg.mxu0
  %v469 = vpack.c.bf16 %v458, %v455
  %v470 = vpack.c.bf16 %v466, %v463
  %471 = vst.msk [vmem:[#allocation2] sm:$0xff] %vm97, %v469
  %472 = vst.msk [vmem:[#allocation2 + $0x8] sm:$0xff] %vm97, %v470
  %s473 = scalar_lea.vmem %s2, 32
  %v474 = vld [vmem:[%s473] sm:$0xf]
  %v475 = vld [vmem:[%s473 + $0x4] sm:$0xf]
  %v476 = vld [vmem:[%s473 + $0x8] sm:$0xf]
  %v477 = vld [vmem:[%s473 + $0xc] sm:$0xf]
  %v478 = vld [vmem:[%s473 + $0x10] sm:$0xf]
  %v479 = vld [vmem:[%s473 + $0x14] sm:$0xf]
  %v480 = vld [vmem:[%s473 + $0x18] sm:$0xf]
  %v481 = vld [vmem:[%s473 + $0x1c] sm:$0xf]
  %v490 = vunpack.c.l.b16 %v474
  %v491 = vunpack.c.l.b16 %v475
  %v492 = vunpack.c.l.b16 %v476
  %v493 = vunpack.c.l.b16 %v477
  %v494 = vunpack.c.l.b16 %v478
  %v495 = vunpack.c.l.b16 %v479
  %v496 = vunpack.c.l.b16 %v480
  %v497 = vunpack.c.l.b16 %v481
  %v498 = vpack.c.b16 %v491, %v490
  %v499 = vpack.c.b16 %v493, %v492
  %v500 = vpack.c.b16 %v495, %v494
  %v501 = vpack.c.b16 %v497, %v496
  %506 = vmatprep.subr.bf16.mxu0 0
  %507 = vmatpush1.bf16.msra.mxu0 %v498
  %508 = vmatprep.subr.bf16.mxu0 0
  %509 = vmatpush1.bf16.msra.mxu0 %v499
  %510 = vmatprep.subr.bf16.mxu0 0
  %511 = vmatpush1.bf16.msra.mxu0 %v500
  %512 = vmatprep.subr.bf16.mxu0 0
  %513 = vmatpush1.bf16.msra.mxu0 %v501
  %514 = vmatprep.subr.bf16.mxu0 0
  %515 = vmatpush1.bf16.msra.mxu0 0
  %516 = vmatprep.subr.bf16.mxu0 0
  %517 = vmatpush1.bf16.msra.mxu0 0
  %518 = vmatprep.subr.bf16.mxu0 0
  %519 = vmatpush1.bf16.msra.mxu0 0
  %520 = vmatprep.subr.bf16.mxu0 0
  %521 = vmatpush1.bf16.msra.mxu0 0
  %522 = vmatprep.subr.bf16.mxu0 0
  %523 = vmatpush1.bf16.msra.mxu0 0
  %524 = vmatprep.subr.bf16.mxu0 0
  %525 = vmatpush1.bf16.msra.mxu0 0
  %526 = vmatprep.subr.bf16.mxu0 0
  %527 = vmatpush1.bf16.msra.mxu0 0
  %528 = vmatprep.subr.bf16.mxu0 0
  %529 = vmatpush1.bf16.msra.mxu0 0
  %530 = vmatprep.subr.bf16.mxu0 0
  %531 = vmatpush1.bf16.msra.mxu0 0
  %532 = vmatprep.subr.bf16.mxu0 0
  %533 = vmatpush1.bf16.msra.mxu0 0
  %534 = vmatprep.subr.bf16.mxu0 0
  %535 = vmatpush1.bf16.msra.mxu0 0
  %536 = vmatprep.subr.bf16.mxu0 0
  %537 = vmatpush1.bf16.msra.mxu0 0
  %538 = vmatprep.mubr.bf16.mxu0 0
  %539 = vmatmul.mubr.bf16.gmra.mrb[0].mxu0 %v99
  %v540 = vpop.f32.mrb[0].mxu0
  %v541 = vadd.f32 0.0, %v540
  %v542 = vpop.f32.mrb[0].mxu0
  %v543 = vpop.f32.mrb[0].mxu0
  %v544 = vadd.f32 0.0, %v543
  %v545 = vpop.f32.mrb[0].mxu0
  %546 = vmatprep.mubr.bf16.mxu0 0
  %547 = vmatmul.mubr.bf16.gmra.mrb[0].mxu0 %v102
  %v548 = vpop.f32.mrb[0].mxu0
  %v549 = vadd.f32 0.0, %v548
  %v550 = vpop.f32.mrb[0].mxu0
  %v551 = vpop.f32.mrb[0].mxu0
  %v552 = vadd.f32 0.0, %v551
  %v553 = vpop.f32.mrb[0].mxu0
  %554 = vdwg.mxu0
  %v555 = vpack.c.bf16 %v544, %v541
  %v556 = vpack.c.bf16 %v552, %v549
  %557 = vst.msk [vmem:[#allocation2 + $0x10] sm:$0xff] %vm97, %v555
  %558 = vst.msk [vmem:[#allocation2 + $0x18] sm:$0xff] %vm97, %v556
  %s559 = scalar_lea.vmem %s2, 64
  %v560 = vld [vmem:[%s559] sm:$0xf]
  %v561 = vld [vmem:[%s559 + $0x4] sm:$0xf]
  %v562 = vld [vmem:[%s559 + $0x8] sm:$0xf]
  %v563 = vld [vmem:[%s559 + $0xc] sm:$0xf]
  %v564 = vld [vmem:[%s559 + $0x10] sm:$0xf]
  %v565 = vld [vmem:[%s559 + $0x14] sm:$0xf]
  %v566 = vld [vmem:[%s559 + $0x18] sm:$0xf]
  %v567 = vld [vmem:[%s559 + $0x1c] sm:$0xf]
  %v576 = vunpack.c.l.b16 %v560
  %v577 = vunpack.c.l.b16 %v561
  %v578 = vunpack.c.l.b16 %v562
  %v579 = vunpack.c.l.b16 %v563
  %v580 = vunpack.c.l.b16 %v564
  %v581 = vunpack.c.l.b16 %v565
  %v582 = vunpack.c.l.b16 %v566
  %v583 = vunpack.c.l.b16 %v567
  %v584 = vpack.c.b16 %v577, %v576
  %v585 = vpack.c.b16 %v579, %v578
  %v586 = vpack.c.b16 %v581, %v580
  %v587 = vpack.c.b16 %v583, %v582
  %592 = vmatprep.subr.bf16.mxu0 0
  %593 = vmatpush1.bf16.msra.mxu0 %v584
  %594 = vmatprep.subr.bf16.mxu0 0
  %595 = vmatpush1.bf16.msra.mxu0 %v585
  %596 = vmatprep.subr.bf16.mxu0 0
  %597 = vmatpush1.bf16.msra.mxu0 %v586
  %598 = vmatprep.subr.bf16.mxu0 0
  %599 = vmatpush1.bf16.msra.mxu0 %v587
  %600 = vmatprep.subr.bf16.mxu0 0
  %601 = vmatpush1.bf16.msra.mxu0 0
  %602 = vmatprep.subr.bf16.mxu0 0
  %603 = vmatpush1.bf16.msra.mxu0 0
  %604 = vmatprep.subr.bf16.mxu0 0
  %605 = vmatpush1.bf16.msra.mxu0 0
  %606 = vmatprep.subr.bf16.mxu0 0
  %607 = vmatpush1.bf16.msra.mxu0 0
  %608 = vmatprep.subr.bf16.mxu0 0
  %609 = vmatpush1.bf16.msra.mxu0 0
  %610 = vmatprep.subr.bf16.mxu0 0
  %611 = vmatpush1.bf16.msra.mxu0 0
  %612 = vmatprep.subr.bf16.mxu0 0
  %613 = vmatpush1.bf16.msra.mxu0 0
  %614 = vmatprep.subr.bf16.mxu0 0
  %615 = vmatpush1.bf16.msra.mxu0 0
  %616 = vmatprep.subr.bf16.mxu0 0
  %617 = vmatpush1.bf16.msra.mxu0 0
  %618 = vmatprep.subr.bf16.mxu0 0
  %619 = vmatpush1.bf16.msra.mxu0 0
  %620 = vmatprep.subr.bf16.mxu0 0
  %621 = vmatpush1.bf16.msra.mxu0 0
  %622 = vmatprep.subr.bf16.mxu0 0
  %623 = vmatpush1.bf16.msra.mxu0 0
  %624 = vmatprep.mubr.bf16.mxu0 0
  %625 = vmatmul.mubr.bf16.gmra.mrb[0].mxu0 %v99
  %v626 = vpop.f32.mrb[0].mxu0
  %v627 = vadd.f32 0.0, %v626
  %v628 = vpop.f32.mrb[0].mxu0
  %v629 = vpop.f32.mrb[0].mxu0
  %v630 = vadd.f32 0.0, %v629
  %v631 = vpop.f32.mrb[0].mxu0
  %632 = vmatprep.mubr.bf16.mxu0 0
  %633 = vmatmul.mubr.bf16.gmra.mrb[0].mxu0 %v102
  %v634 = vpop.f32.mrb[0].mxu0
  %v635 = vadd.f32 0.0, %v634
  %v636 = vpop.f32.mrb[0].mxu0
  %v637 = vpop.f32.mrb[0].mxu0
  %v638 = vadd.f32 0.0, %v637
  %v639 = vpop.f32.mrb[0].mxu0
  %640 = vdwg.mxu0
  %v641 = vpack.c.bf16 %v630, %v627
  %v642 = vpack.c.bf16 %v638, %v635
  %643 = vst.msk [vmem:[#allocation2 + $0x20] sm:$0xff] %vm97, %v641
  %644 = vst.msk [vmem:[#allocation2 + $0x28] sm:$0xff] %vm97, %v642
  %s645 = scalar_lea.vmem %s2, 96
  %v646 = vld [vmem:[%s645] sm:$0xf]
  %v647 = vld [vmem:[%s645 + $0x4] sm:$0xf]
  %v648 = vld [vmem:[%s645 + $0x8] sm:$0xf]
  %v649 = vld [vmem:[%s645 + $0xc] sm:$0xf]
  %v650 = vld [vmem:[%s645 + $0x10] sm:$0xf]
  %v651 = vld [vmem:[%s645 + $0x14] sm:$0xf]
  %v652 = vld [vmem:[%s645 + $0x18] sm:$0xf]
  %v653 = vld [vmem:[%s645 + $0x1c] sm:$0xf]
  %v662 = vunpack.c.l.b16 %v646
  %v663 = vunpack.c.l.b16 %v647
  %v664 = vunpack.c.l.b16 %v648
  %v665 = vunpack.c.l.b16 %v649
  %v666 = vunpack.c.l.b16 %v650
  %v667 = vunpack.c.l.b16 %v651
  %v668 = vunpack.c.l.b16 %v652
  %v669 = vunpack.c.l.b16 %v653
  %v670 = vpack.c.b16 %v663, %v662
  %v671 = vpack.c.b16 %v665, %v664
  %v672 = vpack.c.b16 %v667, %v666
  %v673 = vpack.c.b16 %v669, %v668
  %678 = vmatprep.subr.bf16.mxu0 0
  %679 = vmatpush1.bf16.msra.mxu0 %v670
  %680 = vmatprep.subr.bf16.mxu0 0
  %681 = vmatpush1.bf16.msra.mxu0 %v671
  %682 = vmatprep.subr.bf16.mxu0 0
  %683 = vmatpush1.bf16.msra.mxu0 %v672
  %684 = vmatprep.subr.bf16.mxu0 0
  %685 = vmatpush1.bf16.msra.mxu0 %v673
  %686 = vmatprep.subr.bf16.mxu0 0
  %687 = vmatpush1.bf16.msra.mxu0 0
  %688 = vmatprep.subr.bf16.mxu0 0
  %689 = vmatpush1.bf16.msra.mxu0 0
  %690 = vmatprep.subr.bf16.mxu0 0
  %691 = vmatpush1.bf16.msra.mxu0 0
  %692 = vmatprep.subr.bf16.mxu0 0
  %693 = vmatpush1.bf16.msra.mxu0 0
  %694 = vmatprep.subr.bf16.mxu0 0
  %695 = vmatpush1.bf16.msra.mxu0 0
  %696 = vmatprep.subr.bf16.mxu0 0
  %697 = vmatpush1.bf16.msra.mxu0 0
  %698 = vmatprep.subr.bf16.mxu0 0
  %699 = vmatpush1.bf16.msra.mxu0 0
  %700 = vmatprep.subr.bf16.mxu0 0
  %701 = vmatpush1.bf16.msra.mxu0 0
  %702 = vmatprep.subr.bf16.mxu0 0
  %703 = vmatpush1.bf16.msra.mxu0 0
  %704 = vmatprep.subr.bf16.mxu0 0
  %705 = vmatpush1.bf16.msra.mxu0 0
  %706 = vmatprep.subr.bf16.mxu0 0
  %707 = vmatpush1.bf16.msra.mxu0 0
  %708 = vmatprep.subr.bf16.mxu0 0
  %709 = vmatpush1.bf16.msra.mxu0 0
  %710 = vmatprep.mubr.bf16.mxu0 0
  %711 = vmatmul.mubr.bf16.gmra.mrb[0].mxu0 %v99
  %v712 = vpop.f32.mrb[0].mxu0
  %v713 = vadd.f32 0.0, %v712
  %v714 = vpop.f32.mrb[0].mxu0
  %v715 = vpop.f32.mrb[0].mxu0
  %v716 = vadd.f32 0.0, %v715
  %v717 = vpop.f32.mrb[0].mxu0
  %718 = vmatprep.mubr.bf16.mxu0 0
  %719 = vmatmul.mubr.bf16.gmra.mrb[0].mxu0 %v102
  %v720 = vpop.f32.mrb[0].mxu0
  %v721 = vadd.f32 0.0, %v720
  %v722 = vpop.f32.mrb[0].mxu0
  %v723 = vpop.f32.mrb[0].mxu0
  %v724 = vadd.f32 0.0, %v723
  %v725 = vpop.f32.mrb[0].mxu0
  %726 = vdwg.mxu0
  %v727 = vpack.c.bf16 %v716, %v713
  %v728 = vpack.c.bf16 %v724, %v721
  %729 = vst.msk [vmem:[#allocation2 + $0x30] sm:$0xff] %vm97, %v727
  %730 = vst.msk [vmem:[#allocation2 + $0x38] sm:$0xff] %vm97, %v728
  %s731 = scalar_lea.vmem %s2, 128
  %v732 = vld [vmem:[%s731] sm:$0xf]
  %v733 = vld [vmem:[%s731 + $0x4] sm:$0xf]
  %v734 = vld [vmem:[%s731 + $0x8] sm:$0xf]
  %v735 = vld [vmem:[%s731 + $0xc] sm:$0xf]
  %v736 = vld [vmem:[%s731 + $0x10] sm:$0xf]
  %v737 = vld [vmem:[%s731 + $0x14] sm:$0xf]
  %v738 = vld [vmem:[%s731 + $0x18] sm:$0xf]
  %v739 = vld [vmem:[%s731 + $0x1c] sm:$0xf]
  %v748 = vunpack.c.l.b16 %v732
  %v749 = vunpack.c.l.b16 %v733
  %v750 = vunpack.c.l.b16 %v734
  %v751 = vunpack.c.l.b16 %v735
  %v752 = vunpack.c.l.b16 %v736
  %v753 = vunpack.c.l.b16 %v737
  %v754 = vunpack.c.l.b16 %v738
  %v755 = vunpack.c.l.b16 %v739
  %v756 = vpack.c.b16 %v749, %v748
  %v757 = vpack.c.b16 %v751, %v750
  %v758 = vpack.c.b16 %v753, %v752
  %v759 = vpack.c.b16 %v755, %v754
  %764 = vmatprep.subr.bf16.mxu0 0
  %765 = vmatpush1.bf16.msra.mxu0 %v756
  %766 = vmatprep.subr.bf16.mxu0 0
  %767 = vmatpush1.bf16.msra.mxu0 %v757
  %768 = vmatprep.subr.bf16.mxu0 0
  %769 = vmatpush1.bf16.msra.mxu0 %v758
  %770 = vmatprep.subr.bf16.mxu0 0
  %771 = vmatpush1.bf16.msra.mxu0 %v759
  %772 = vmatprep.subr.bf16.mxu0 0
  %773 = vmatpush1.bf16.msra.mxu0 0
  %774 = vmatprep.subr.bf16.mxu0 0
  %775 = vmatpush1.bf16.msra.mxu0 0
  %776 = vmatprep.subr.bf16.mxu0 0
  %777 = vmatpush1.bf16.msra.mxu0 0
  %778 = vmatprep.subr.bf16.mxu0 0
  %779 = vmatpush1.bf16.msra.mxu0 0
  %780 = vmatprep.subr.bf16.mxu0 0
  %781 = vmatpush1.bf16.msra.mxu0 0
  %782 = vmatprep.subr.bf16.mxu0 0
  %783 = vmatpush1.bf16.msra.mxu0 0
  %784 = vmatprep.subr.bf16.mxu0 0
  %785 = vmatpush1.bf16.msra.mxu0 0
  %786 = vmatprep.subr.bf16.mxu0 0
  %787 = vmatpush1.bf16.msra.mxu0 0
  %788 = vmatprep.subr.bf16.mxu0 0
  %789 = vmatpush1.bf16.msra.mxu0 0
  %790 = vmatprep.subr.bf16.mxu0 0
  %791 = vmatpush1.bf16.msra.mxu0 0
  %792 = vmatprep.subr.bf16.mxu0 0
  %793 = vmatpush1.bf16.msra.mxu0 0
  %794 = vmatprep.subr.bf16.mxu0 0
  %795 = vmatpush1.bf16.msra.mxu0 0
  %796 = vmatprep.mubr.bf16.mxu0 0
  %797 = vmatmul.mubr.bf16.gmra.mrb[0].mxu0 %v99
  %v798 = vpop.f32.mrb[0].mxu0
  %v799 = vadd.f32 0.0, %v798
  %v800 = vpop.f32.mrb[0].mxu0
  %v801 = vpop.f32.mrb[0].mxu0
  %v802 = vadd.f32 0.0, %v801
  %v803 = vpop.f32.mrb[0].mxu0
  %804 = vmatprep.mubr.bf16.mxu0 0
  %805 = vmatmul.mubr.bf16.gmra.mrb[0].mxu0 %v102
  %v806 = vpop.f32.mrb[0].mxu0
  %v807 = vadd.f32 0.0, %v806
  %v808 = vpop.f32.mrb[0].mxu0
  %v809 = vpop.f32.mrb[0].mxu0
  %v810 = vadd.f32 0.0, %v809
  %v811 = vpop.f32.mrb[0].mxu0
  %812 = vdwg.mxu0
  %v813 = vpack.c.bf16 %v802, %v799
  %v814 = vpack.c.bf16 %v810, %v807
  %815 = vst.msk [vmem:[#allocation2 + $0x40] sm:$0xff] %vm97, %v813
  %816 = vst.msk [vmem:[#allocation2 + $0x48] sm:$0xff] %vm97, %v814
  %s817 = scalar_lea.vmem %s2, 160
  %v818 = vld [vmem:[%s817] sm:$0xf]
  %v819 = vld [vmem:[%s817 + $0x4] sm:$0xf]
  %v820 = vld [vmem:[%s817 + $0x8] sm:$0xf]
  %v821 = vld [vmem:[%s817 + $0xc] sm:$0xf]
  %v822 = vld [vmem:[%s817 + $0x10] sm:$0xf]
  %v823 = vld [vmem:[%s817 + $0x14] sm:$0xf]
  %v824 = vld [vmem:[%s817 + $0x18] sm:$0xf]
  %v825 = vld [vmem:[%s817 + $0x1c] sm:$0xf]
  %v834 = vunpack.c.l.b16 %v818
  %v835 = vunpack.c.l.b16 %v819
  %v836 = vunpack.c.l.b16 %v820
  %v837 = vunpack.c.l.b16 %v821
  %v838 = vunpack.c.l.b16 %v822
  %v839 = vunpack.c.l.b16 %v823
  %v840 = vunpack.c.l.b16 %v824
  %v841 = vunpack.c.l.b16 %v825
  %v842 = vpack.c.b16 %v835, %v834
  %v843 = vpack.c.b16 %v837, %v836
  %v844 = vpack.c.b16 %v839, %v838
  %v845 = vpack.c.b16 %v841, %v840
  %850 = vmatprep.subr.bf16.mxu0 0
  %851 = vmatpush1.bf16.msra.mxu0 %v842
  %852 = vmatprep.subr.bf16.mxu0 0
  %853 = vmatpush1.bf16.msra.mxu0 %v843
  %854 = vmatprep.subr.bf16.mxu0 0
  %855 = vmatpush1.bf16.msra.mxu0 %v844
  %856 = vmatprep.subr.bf16.mxu0 0
  %857 = vmatpush1.bf16.msra.mxu0 %v845
  %858 = vmatprep.subr.bf16.mxu0 0
  %859 = vmatpush1.bf16.msra.mxu0 0
  %860 = vmatprep.subr.bf16.mxu0 0
  %861 = vmatpush1.bf16.msra.mxu0 0
  %862 = vmatprep.subr.bf16.mxu0 0
  %863 = vmatpush1.bf16.msra.mxu0 0
  %864 = vmatprep.subr.bf16.mxu0 0
  %865 = vmatpush1.bf16.msra.mxu0 0
  %866 = vmatprep.subr.bf16.mxu0 0
  %867 = vmatpush1.bf16.msra.mxu0 0
  %868 = vmatprep.subr.bf16.mxu0 0
  %869 = vmatpush1.bf16.msra.mxu0 0
  %870 = vmatprep.subr.bf16.mxu0 0
  %871 = vmatpush1.bf16.msra.mxu0 0
  %872 = vmatprep.subr.bf16.mxu0 0
  %873 = vmatpush1.bf16.msra.mxu0 0
  %874 = vmatprep.subr.bf16.mxu0 0
  %875 = vmatpush1.bf16.msra.mxu0 0
  %876 = vmatprep.subr.bf16.mxu0 0
  %877 = vmatpush1.bf16.msra.mxu0 0
  %878 = vmatprep.subr.bf16.mxu0 0
  %879 = vmatpush1.bf16.msra.mxu0 0
  %880 = vmatprep.subr.bf16.mxu0 0
  %881 = vmatpush1.bf16.msra.mxu0 0
  %882 = vmatprep.mubr.bf16.mxu0 0
  %883 = vmatmul.mubr.bf16.gmra.mrb[0].mxu0 %v99
  %v884 = vpop.f32.mrb[0].mxu0
  %v885 = vadd.f32 0.0, %v884
  %v886 = vpop.f32.mrb[0].mxu0
  %v887 = vpop.f32.mrb[0].mxu0
  %v888 = vadd.f32 0.0, %v887
  %v889 = vpop.f32.mrb[0].mxu0
  %890 = vmatprep.mubr.bf16.mxu0 0
  %891 = vmatmul.mubr.bf16.gmra.mrb[0].mxu0 %v102
  %v892 = vpop.f32.mrb[0].mxu0
  %v893 = vadd.f32 0.0, %v892
  %v894 = vpop.f32.mrb[0].mxu0
  %v895 = vpop.f32.mrb[0].mxu0
  %v896 = vadd.f32 0.0, %v895
  %v897 = vpop.f32.mrb[0].mxu0
  %898 = vdwg.mxu0
  %v899 = vpack.c.bf16 %v888, %v885
  %v900 = vpack.c.bf16 %v896, %v893
  %901 = vst.msk [vmem:[#allocation2 + $0x50] sm:$0xff] %vm97, %v899
  %902 = vst.msk [vmem:[#allocation2 + $0x58] sm:$0xff] %vm97, %v900
  %s903 = scalar_lea.vmem %s2, 192
  %v904 = vld [vmem:[%s903] sm:$0xf]
  %v905 = vld [vmem:[%s903 + $0x4] sm:$0xf]
  %v906 = vld [vmem:[%s903 + $0x8] sm:$0xf]
  %v907 = vld [vmem:[%s903 + $0xc] sm:$0xf]
  %v908 = vld [vmem:[%s903 + $0x10] sm:$0xf]
  %v909 = vld [vmem:[%s903 + $0x14] sm:$0xf]
  %v910 = vld [vmem:[%s903 + $0x18] sm:$0xf]
  %v911 = vld [vmem:[%s903 + $0x1c] sm:$0xf]
  %v920 = vunpack.c.l.b16 %v904
  %v921 = vunpack.c.l.b16 %v905
  %v922 = vunpack.c.l.b16 %v906
  %v923 = vunpack.c.l.b16 %v907
  %v924 = vunpack.c.l.b16 %v908
  %v925 = vunpack.c.l.b16 %v909
  %v926 = vunpack.c.l.b16 %v910
  %v927 = vunpack.c.l.b16 %v911
  %v928 = vpack.c.b16 %v921, %v920
  %v929 = vpack.c.b16 %v923, %v922
  %v930 = vpack.c.b16 %v925, %v924
  %v931 = vpack.c.b16 %v927, %v926
  %936 = vmatprep.subr.bf16.mxu0 0
  %937 = vmatpush1.bf16.msra.mxu0 %v928
  %938 = vmatprep.subr.bf16.mxu0 0
  %939 = vmatpush1.bf16.msra.mxu0 %v929
  %940 = vmatprep.subr.bf16.mxu0 0
  %941 = vmatpush1.bf16.msra.mxu0 %v930
  %942 = vmatprep.subr.bf16.mxu0 0
  %943 = vmatpush1.bf16.msra.mxu0 %v931
  %944 = vmatprep.subr.bf16.mxu0 0
  %945 = vmatpush1.bf16.msra.mxu0 0
  %946 = vmatprep.subr.bf16.mxu0 0
  %947 = vmatpush1.bf16.msra.mxu0 0
  %948 = vmatprep.subr.bf16.mxu0 0
  %949 = vmatpush1.bf16.msra.mxu0 0
  %950 = vmatprep.subr.bf16.mxu0 0
  %951 = vmatpush1.bf16.msra.mxu0 0
  %952 = vmatprep.subr.bf16.mxu0 0
  %953 = vmatpush1.bf16.msra.mxu0 0
  %954 = vmatprep.subr.bf16.mxu0 0
  %955 = vmatpush1.bf16.msra.mxu0 0
  %956 = vmatprep.subr.bf16.mxu0 0
  %957 = vmatpush1.bf16.msra.mxu0 0
  %958 = vmatprep.subr.bf16.mxu0 0
  %959 = vmatpush1.bf16.msra.mxu0 0
  %960 = vmatprep.subr.bf16.mxu0 0
  %961 = vmatpush1.bf16.msra.mxu0 0
  %962 = vmatprep.subr.bf16.mxu0 0
  %963 = vmatpush1.bf16.msra.mxu0 0
  %964 = vmatprep.subr.bf16.mxu0 0
  %965 = vmatpush1.bf16.msra.mxu0 0
  %966 = vmatprep.subr.bf16.mxu0 0
  %967 = vmatpush1.bf16.msra.mxu0 0
  %968 = vmatprep.mubr.bf16.mxu0 0
  %969 = vmatmul.mubr.bf16.gmra.mrb[0].mxu0 %v99
  %v970 = vpop.f32.mrb[0].mxu0
  %v971 = vadd.f32 0.0, %v970
  %v972 = vpop.f32.mrb[0].mxu0
  %v973 = vpop.f32.mrb[0].mxu0
  %v974 = vadd.f32 0.0, %v973
  %v975 = vpop.f32.mrb[0].mxu0
  %976 = vmatprep.mubr.bf16.mxu0 0
  %977 = vmatmul.mubr.bf16.gmra.mrb[0].mxu0 %v102
  %v978 = vpop.f32.mrb[0].mxu0
  %v979 = vadd.f32 0.0, %v978
  %v980 = vpop.f32.mrb[0].mxu0
  %v981 = vpop.f32.mrb[0].mxu0
  %v982 = vadd.f32 0.0, %v981
  %v983 = vpop.f32.mrb[0].mxu0
  %984 = vdwg.mxu0
  %v985 = vpack.c.bf16 %v974, %v971
  %v986 = vpack.c.bf16 %v982, %v979
  %987 = vst.msk [vmem:[#allocation2 + $0x60] sm:$0xff] %vm97, %v985
  %988 = vst.msk [vmem:[#allocation2 + $0x68] sm:$0xff] %vm97, %v986
  %s989 = scalar_lea.vmem %s2, 224
  %v990 = vld [vmem:[%s989] sm:$0xf]
  %v991 = vld [vmem:[%s989 + $0x4] sm:$0xf]
  %v992 = vld [vmem:[%s989 + $0x8] sm:$0xf]
  %v993 = vld [vmem:[%s989 + $0xc] sm:$0xf]
  %v994 = vld [vmem:[%s989 + $0x10] sm:$0xf]
  %v995 = vld [vmem:[%s989 + $0x14] sm:$0xf]
  %v996 = vld [vmem:[%s989 + $0x18] sm:$0xf]
  %v997 = vld [vmem:[%s989 + $0x1c] sm:$0xf]
  %v1006 = vunpack.c.l.b16 %v990
  %v1007 = vunpack.c.l.b16 %v991
  %v1008 = vunpack.c.l.b16 %v992
  %v1009 = vunpack.c.l.b16 %v993
  %v1010 = vunpack.c.l.b16 %v994
  %v1011 = vunpack.c.l.b16 %v995
  %v1012 = vunpack.c.l.b16 %v996
  %v1013 = vunpack.c.l.b16 %v997
  %v1014 = vpack.c.b16 %v1007, %v1006
  %v1015 = vpack.c.b16 %v1009, %v1008
  %v1016 = vpack.c.b16 %v1011, %v1010
  %v1017 = vpack.c.b16 %v1013, %v1012
  %1022 = vmatprep.subr.bf16.mxu0 0
  %1023 = vmatpush1.bf16.msra.mxu0 %v1014
  %1024 = vmatprep.subr.bf16.mxu0 0
  %1025 = vmatpush1.bf16.msra.mxu0 %v1015
  %1026 = vmatprep.subr.bf16.mxu0 0
  %1027 = vmatpush1.bf16.msra.mxu0 %v1016
  %1028 = vmatprep.subr.bf16.mxu0 0
  %1029 = vmatpush1.bf16.msra.mxu0 %v1017
  %1030 = vmatprep.subr.bf16.mxu0 0
  %1031 = vmatpush1.bf16.msra.mxu0 0
  %1032 = vmatprep.subr.bf16.mxu0 0
  %1033 = vmatpush1.bf16.msra.mxu0 0
  %1034 = vmatprep.subr.bf16.mxu0 0
  %1035 = vmatpush1.bf16.msra.mxu0 0
  %1036 = vmatprep.subr.bf16.mxu0 0
  %1037 = vmatpush1.bf16.msra.mxu0 0
  %1038 = vmatprep.subr.bf16.mxu0 0
  %1039 = vmatpush1.bf16.msra.mxu0 0
  %1040 = vmatprep.subr.bf16.mxu0 0
  %1041 = vmatpush1.bf16.msra.mxu0 0
  %1042 = vmatprep.subr.bf16.mxu0 0
  %1043 = vmatpush1.bf16.msra.mxu0 0
  %1044 = vmatprep.subr.bf16.mxu0 0
  %1045 = vmatpush1.bf16.msra.mxu0 0
  %1046 = vmatprep.subr.bf16.mxu0 0
  %1047 = vmatpush1.bf16.msra.mxu0 0
  %1048 = vmatprep.subr.bf16.mxu0 0
  %1049 = vmatpush1.bf16.msra.mxu0 0
  %1050 = vmatprep.subr.bf16.mxu0 0
  %1051 = vmatpush1.bf16.msra.mxu0 0
  %1052 = vmatprep.subr.bf16.mxu0 0
  %1053 = vmatpush1.bf16.msra.mxu0 0
  %1054 = vmatprep.mubr.bf16.mxu0 0
  %1055 = vmatmul.mubr.bf16.gmra.mrb[0].mxu0 %v99
  %v1056 = vpop.f32.mrb[0].mxu0
  %v1057 = vadd.f32 0.0, %v1056
  %v1058 = vpop.f32.mrb[0].mxu0
  %v1059 = vpop.f32.mrb[0].mxu0
  %v1060 = vadd.f32 0.0, %v1059
  %v1061 = vpop.f32.mrb[0].mxu0
  %1062 = vmatprep.mubr.bf16.mxu0 0
  %1063 = vmatmul.mubr.bf16.gmra.mrb[0].mxu0 %v102
  %v1064 = vpop.f32.mrb[0].mxu0
  %v1065 = vadd.f32 0.0, %v1064
  %v1066 = vpop.f32.mrb[0].mxu0
  %v1067 = vpop.f32.mrb[0].mxu0
  %v1068 = vadd.f32 0.0, %v1067
  %v1069 = vpop.f32.mrb[0].mxu0
  %1070 = vdwg.mxu0
  %v1071 = vpack.c.bf16 %v1060, %v1057
  %v1072 = vpack.c.bf16 %v1068, %v1065
  %1073 = vst.msk [vmem:[#allocation2 + $0x70] sm:$0xff] %vm97, %v1071
  %1074 = vst.msk [vmem:[#allocation2 + $0x78] sm:$0xff] %vm97, %v1072
  %s1075 = scalar_lea.vmem %s2, 256
  %v1076 = vld [vmem:[%s1075] sm:$0xf]
  %v1077 = vld [vmem:[%s1075 + $0x4] sm:$0xf]
  %v1078 = vld [vmem:[%s1075 + $0x8] sm:$0xf]
  %v1079 = vld [vmem:[%s1075 + $0xc] sm:$0xf]
  %v1080 = vld [vmem:[%s1075 + $0x10] sm:$0xf]
  %v1081 = vld [vmem:[%s1075 + $0x14] sm:$0xf]
  %v1082 = vld [vmem:[%s1075 + $0x18] sm:$0xf]
  %v1083 = vld [vmem:[%s1075 + $0x1c] sm:$0xf]
  %v1092 = vunpack.c.l.b16 %v1076
  %v1093 = vunpack.c.l.b16 %v1077
  %v1094 = vunpack.c.l.b16 %v1078
  %v1095 = vunpack.c.l.b16 %v1079
  %v1096 = vunpack.c.l.b16 %v1080
  %v1097 = vunpack.c.l.b16 %v1081
  %v1098 = vunpack.c.l.b16 %v1082
  %v1099 = vunpack.c.l.b16 %v1083
  %v1100 = vpack.c.b16 %v1093, %v1092
  %v1101 = vpack.c.b16 %v1095, %v1094
  %v1102 = vpack.c.b16 %v1097, %v1096
  %v1103 = vpack.c.b16 %v1099, %v1098
  %1108 = vmatprep.subr.bf16.mxu0 0
  %1109 = vmatpush1.bf16.msra.mxu0 %v1100
  %1110 = vmatprep.subr.bf16.mxu0 0
  %1111 = vmatpush1.bf16.msra.mxu0 %v1101
  %1112 = vmatprep.subr.bf16.mxu0 0
  %1113 = vmatpush1.bf16.msra.mxu0 %v1102
  %1114 = vmatprep.subr.bf16.mxu0 0
  %1115 = vmatpush1.bf16.msra.mxu0 %v1103
  %1116 = vmatprep.subr.bf16.mxu0 0
  %1117 = vmatpush1.bf16.msra.mxu0 0
  %1118 = vmatprep.subr.bf16.mxu0 0
  %1119 = vmatpush1.bf16.msra.mxu0 0
  %1120 = vmatprep.subr.bf16.mxu0 0
  %1121 = vmatpush1.bf16.msra.mxu0 0
  %1122 = vmatprep.subr.bf16.mxu0 0
  %1123 = vmatpush1.bf16.msra.mxu0 0
  %1124 = vmatprep.subr.bf16.mxu0 0
  %1125 = vmatpush1.bf16.msra.mxu0 0
  %1126 = vmatprep.subr.bf16.mxu0 0
  %1127 = vmatpush1.bf16.msra.mxu0 0
  %1128 = vmatprep.subr.bf16.mxu0 0
  %1129 = vmatpush1.bf16.msra.mxu0 0
  %1130 = vmatprep.subr.bf16.mxu0 0
  %1131 = vmatpush1.bf16.msra.mxu0 0
  %1132 = vmatprep.subr.bf16.mxu0 0
  %1133 = vmatpush1.bf16.msra.mxu0 0
  %1134 = vmatprep.subr.bf16.mxu0 0
  %1135 = vmatpush1.bf16.msra.mxu0 0
  %1136 = vmatprep.subr.bf16.mxu0 0
  %1137 = vmatpush1.bf16.msra.mxu0 0
  %1138 = vmatprep.subr.bf16.mxu0 0
  %1139 = vmatpush1.bf16.msra.mxu0 0
  %1140 = vmatprep.mubr.bf16.mxu0 0
  %1141 = vmatmul.mubr.bf16.gmra.mrb[0].mxu0 %v99
  %v1142 = vpop.f32.mrb[0].mxu0
  %v1143 = vadd.f32 0.0, %v1142
  %v1144 = vpop.f32.mrb[0].mxu0
  %v1145 = vpop.f32.mrb[0].mxu0
  %v1146 = vadd.f32 0.0, %v1145
  %v1147 = vpop.f32.mrb[0].mxu0
  %1148 = vmatprep.mubr.bf16.mxu0 0
  %1149 = vmatmul.mubr.bf16.gmra.mrb[0].mxu0 %v102
  %v1150 = vpop.f32.mrb[0].mxu0
  %v1151 = vadd.f32 0.0, %v1150
  %v1152 = vpop.f32.mrb[0].mxu0
  %v1153 = vpop.f32.mrb[0].mxu0
  %v1154 = vadd.f32 0.0, %v1153
  %v1155 = vpop.f32.mrb[0].mxu0
  %1156 = vdwg.mxu0
  %v1157 = vpack.c.bf16 %v1146, %v1143
  %v1158 = vpack.c.bf16 %v1154, %v1151
  %1159 = vst.msk [vmem:[#allocation2 + $0x80] sm:$0xff] %vm97, %v1157
  %1160 = vst.msk [vmem:[#allocation2 + $0x88] sm:$0xff] %vm97, %v1158
  %v1161 = vld [vmem:[%s5] sm:$0xff]
  %v1162 = vld [vmem:[%s5 + $0x8] sm:$0xf]
  %v1163 = vld [vmem:[%s5 + $0xc] sm:$0xff]
  %v1164 = vld [vmem:[%s5 + $0x14] sm:$0xf]
  %v1165 = vld [vmem:[%s5 + $0x18] sm:$0xff]
  %v1166 = vld [vmem:[%s5 + $0x20] sm:$0xf]
  %v1167 = vld [vmem:[%s5 + $0x24] sm:$0xff]
  %v1168 = vld [vmem:[%s5 + $0x2c] sm:$0xf]
  %v1169 = vld [vmem:[#allocation2] sm:$0xff]
  %v1170 = vld [vmem:[#allocation2 + $0x8] sm:$0xff]
  %v1171 = vld [vmem:[#allocation2 + $0x10] sm:$0xff]
  %v1172 = vld [vmem:[#allocation2 + $0x18] sm:$0xff]
  %v1173 = vld [vmem:[#allocation2 + $0x20] sm:$0xff]
  %v1174 = vld [vmem:[#allocation2 + $0x28] sm:$0xff]
  %v1175 = vld [vmem:[#allocation2 + $0x30] sm:$0xff]
  %v1176 = vld [vmem:[#allocation2 + $0x38] sm:$0xff]
  %v1177 = vld [vmem:[#allocation2 + $0x40] sm:$0xff]
  %v1178 = vld [vmem:[#allocation2 + $0x48] sm:$0xff]
  %v1179 = vld [vmem:[#allocation2 + $0x50] sm:$0xff]
  %v1180 = vld [vmem:[#allocation2 + $0x58] sm:$0xff]
  %v1181 = vld [vmem:[#allocation2 + $0x60] sm:$0xff]
  %v1182 = vld [vmem:[#allocation2 + $0x68] sm:$0xff]
  %v1183 = vld [vmem:[#allocation2 + $0x70] sm:$0xff]
  %v1184 = vld [vmem:[#allocation2 + $0x78] sm:$0xff]
  %v1185 = vld [vmem:[#allocation2 + $0x80] sm:$0xff]
  %v1186 = vld [vmem:[#allocation2 + $0x88] sm:$0xff]
  %v1187 = vld [vmem:[%s6] sm:$0xff]
  %v1188 = vld [vmem:[%s6 + $0x8] sm:$0xff]
  %v1189 = vld [vmem:[%s6 + $0x10] sm:$0xff]
  %v1190 = vld [vmem:[%s6 + $0x18] sm:$0xff]
  %1192 = vset.pattern.permute.xlu0 0
  %1193 = vperm.xlu0 %1192, %v1187
  %v1194 = vpop.permute.xlu0 %1193
  %1197 = vset.pattern.permute.xlu0 0
  %1198 = vperm.xlu0 %1197, %v1188
  %v1199 = vpop.permute.xlu0 %1198
  %1202 = vset.pattern.permute.xlu0 0
  %1203 = vperm.xlu0 %1202, %v1189
  %v1204 = vpop.permute.xlu0 %1203
  %1207 = vset.pattern.permute.xlu0 0
  %1208 = vperm.xlu0 %1207, %v1190
  %v1209 = vpop.permute.xlu0 %1208
  %v1219 = vunpack.c.l.b16 %v1161
  %v1220 = vunpack.c.h.b16 %v1161
  %v1221 = vunpack.c.l.b16 %v1162
  %v1222 = vunpack.c.l.b16 %v1163
  %v1223 = vunpack.c.h.b16 %v1163
  %v1224 = vunpack.c.l.b16 %v1164
  %v1225 = vunpack.c.l.b16 %v1165
  %v1226 = vunpack.c.h.b16 %v1165
  %v1227 = vunpack.c.l.b16 %v1166
  %v1228 = vunpack.c.l.b16 %v1167
  %v1229 = vunpack.c.h.b16 %v1167
  %v1230 = vunpack.c.l.b16 %v1168
  %v1231 = vpack.c.b16 %v1222, %v1219
  %v1232 = vpack.c.b16 %v1223, %v1220
  %v1233 = vpack.c.b16 %v1224, %v1221
  %v1234 = vpack.c.b16 %v1228, %v1225
  %v1235 = vpack.c.b16 %v1229, %v1226
  %v1236 = vpack.c.b16 %v1230, %v1227
  %v1242 = vsel %vm276, %v1233, 0
  %v1245 = vsel %vm276, %v1236, 0
  %1247 = vmatprep.subr.bf16.mxu0 0
  %1248 = vmatpush1.bf16.msra.mxu0 %v1169
  %1249 = vmatprep.subr.bf16.mxu0 0
  %1250 = vmatpush1.bf16.msra.mxu0 %v1170
  %1251 = vmatprep.subr.bf16.mxu0 0
  %1252 = vmatpush1.bf16.msra.mxu0 %v1171
  %1253 = vmatprep.subr.bf16.mxu0 0
  %1254 = vmatpush1.bf16.msra.mxu0 %v1172
  %1255 = vmatprep.subr.bf16.mxu0 0
  %1256 = vmatpush1.bf16.msra.mxu0 %v1173
  %1257 = vmatprep.subr.bf16.mxu0 0
  %1258 = vmatpush1.bf16.msra.mxu0 %v1174
  %1259 = vmatprep.subr.bf16.mxu0 0
  %1260 = vmatpush1.bf16.msra.mxu0 %v1175
  %1261 = vmatprep.subr.bf16.mxu0 0
  %1262 = vmatpush1.bf16.msra.mxu0 %v1176
  %1263 = vmatprep.subr.bf16.mxu0 0
  %1264 = vmatpush1.bf16.msra.mxu0 %v1177
  %1265 = vmatprep.subr.bf16.mxu0 0
  %1266 = vmatpush1.bf16.msra.mxu0 %v1178
  %1267 = vmatprep.subr.bf16.mxu0 0
  %1268 = vmatpush1.bf16.msra.mxu0 %v1179
  %1269 = vmatprep.subr.bf16.mxu0 0
  %1270 = vmatpush1.bf16.msra.mxu0 %v1180
  %1271 = vmatprep.subr.bf16.mxu0 0
  %1272 = vmatpush1.bf16.msra.mxu0 %v1181
  %1273 = vmatprep.subr.bf16.mxu0 0
  %1274 = vmatpush1.bf16.msra.mxu0 %v1182
  %1275 = vmatprep.subr.bf16.mxu0 0
  %1276 = vmatpush1.bf16.msra.mxu0 %v1183
  %1277 = vmatprep.subr.bf16.mxu0 0
  %1278 = vmatpush1.bf16.msra.mxu0 %v1184
  %1279 = vmatprep.mubr.bf16.mxu0 %v1232
  %1280 = vmatmul.mubr.bf16.gmra.mrb[0].mxu0 %v1231
  %v1281 = vpop.f32.mrb[0].mxu0
  %v1282 = vadd.f32 %v1194, %v1281
  %v1283 = vpop.f32.mrb[0].mxu0
  %v1284 = vpop.f32.mrb[0].mxu0
  %v1285 = vadd.f32 %v1199, %v1284
  %v1286 = vpop.f32.mrb[0].mxu0
  %1287 = vmatprep.mubr.bf16.mxu0 %v1235
  %1288 = vmatmul.mubr.bf16.gmra.mrb[0].mxu0 %v1234
  %v1289 = vpop.f32.mrb[0].mxu0
  %v1290 = vadd.f32 %v1204, %v1289
  %v1291 = vpop.f32.mrb[0].mxu0
  %v1292 = vpop.f32.mrb[0].mxu0
  %v1293 = vadd.f32 %v1209, %v1292
  %v1294 = vpop.f32.mrb[0].mxu0
  %1295 = vdwg.mxu0
  %1296 = vmatprep.subr.bf16.mxu0 0
  %1297 = vmatpush1.bf16.msra.mxu0 %v1185
  %1298 = vmatprep.subr.bf16.mxu0 0
  %1299 = vmatpush1.bf16.msra.mxu0 %v1186
  %1300 = vmatprep.subr.bf16.mxu0 0
  %1301 = vmatpush1.bf16.msra.mxu0 0
  %1302 = vmatprep.subr.bf16.mxu0 0
  %1303 = vmatpush1.bf16.msra.mxu0 0
  %1304 = vmatprep.subr.bf16.mxu0 0
  %1305 = vmatpush1.bf16.msra.mxu0 0
  %1306 = vmatprep.subr.bf16.mxu0 0
  %1307 = vmatpush1.bf16.msra.mxu0 0
  %1308 = vmatprep.subr.bf16.mxu0 0
  %1309 = vmatpush1.bf16.msra.mxu0 0
  %1310 = vmatprep.subr.bf16.mxu0 0
  %1311 = vmatpush1.bf16.msra.mxu0 0
  %1312 = vmatprep.subr.bf16.mxu0 0
  %1313 = vmatpush1.bf16.msra.mxu0 0
  %1314 = vmatprep.subr.bf16.mxu0 0
  %1315 = vmatpush1.bf16.msra.mxu0 0
  %1316 = vmatprep.subr.bf16.mxu0 0
  %1317 = vmatpush1.bf16.msra.mxu0 0
  %1318 = vmatprep.subr.bf16.mxu0 0
  %1319 = vmatpush1.bf16.msra.mxu0 0
  %1320 = vmatprep.subr.bf16.mxu0 0
  %1321 = vmatpush1.bf16.msra.mxu0 0
  %1322 = vmatprep.subr.bf16.mxu0 0
  %1323 = vmatpush1.bf16.msra.mxu0 0
  %1324 = vmatprep.subr.bf16.mxu0 0
  %1325 = vmatpush1.bf16.msra.mxu0 0
  %1326 = vmatprep.subr.bf16.mxu0 0
  %1327 = vmatpush1.bf16.msra.mxu0 0
  %1328 = vmatprep.mubr.bf16.mxu0 0
  %1329 = vmatmul.mubr.bf16.gmra.mrb[0].mxu0 %v1242
  %v1330 = vpop.f32.mrb[0].mxu0
  %v1331 = vadd.f32 %v1282, %v1330
  %v1332 = vpop.f32.mrb[0].mxu0
  %v1333 = vpop.f32.mrb[0].mxu0
  %v1334 = vadd.f32 %v1285, %v1333
  %v1335 = vpop.f32.mrb[0].mxu0
  %1336 = vmatprep.mubr.bf16.mxu0 0
  %1337 = vmatmul.mubr.bf16.gmra.mrb[0].mxu0 %v1245
  %v1338 = vpop.f32.mrb[0].mxu0
  %v1339 = vadd.f32 %v1290, %v1338
  %v1340 = vpop.f32.mrb[0].mxu0
  %v1341 = vpop.f32.mrb[0].mxu0
  %v1342 = vadd.f32 %v1293, %v1341
  %v1343 = vpop.f32.mrb[0].mxu0
  %1344 = vdwg.mxu0
  %v1345 = vpack.c.bf16 %v1334, %v1331
  %v1346 = vpack.c.bf16 %v1342, %v1339
  %v1349 = vunpack.c.l.b16 %v1345
  %v1350 = vunpack.c.h.b16 %v1345
  %v1351 = vunpack.c.l.b16 %v1346
  %v1352 = vunpack.c.h.b16 %v1346
  %v1353 = vpack.c.b16 %v1349, %v1349
  %v1354 = vpack.c.b16 %v1350, %v1350
  %v1355 = vpack.c.b16 %v1351, %v1351
  %v1356 = vpack.c.b16 %v1352, %v1352
  %1361 = vst.msk [vmem:[%s9] sm:$0xf] %vm197, %v1353
  %1362 = vst.msk [vmem:[%s9 + $0x4] sm:$0xf] %vm197, %v1354
  %1363 = vst.msk [vmem:[%s9 + $0x8] sm:$0xf] %vm197, %v1355
  %1364 = vst.msk [vmem:[%s9 + $0xc] sm:$0xf] %vm197, %v1356
  %v1365 = vsel %vm97, %v1331, 0.0
  %1366 = vadd.xlane.f32.xlu0 %v1365
  %v1367 = vpop.xlane.xlu0 %1366
  %v1368 = vsel %vm97, %v1334, 0.0
  %1369 = vadd.xlane.f32.xlu0 %v1368
  %v1370 = vpop.xlane.xlu0 %1369
  %v1371 = vsel %vm97, %v1339, 0.0
  %1372 = vadd.xlane.f32.xlu0 %v1371
  %v1373 = vpop.xlane.xlu0 %1372
  %v1374 = vsel %vm97, %v1342, 0.0
  %1375 = vadd.xlane.f32.xlu0 %v1374
  %v1376 = vpop.xlane.xlu0 %1375
  %v1377 = vadd.f32 %v1367, 0.0
  %v1378 = vadd.f32 %v1370, 0.0
  %v1379 = vadd.f32 %v1373, 0.0
  %v1380 = vadd.f32 %v1376, 0.0
  %v1381 = vmul.f32 %v1331, %v1331
  %v1382 = vmul.f32 %v1334, %v1334
  %v1383 = vmul.f32 %v1339, %v1339
  %v1384 = vmul.f32 %v1342, %v1342
  %v1385 = vsel %vm97, %v1381, 0.0
  %1386 = vadd.xlane.f32.xlu0 %v1385
  %v1387 = vpop.xlane.xlu0 %1386
  %v1388 = vsel %vm97, %v1382, 0.0
  %1389 = vadd.xlane.f32.xlu0 %v1388
  %v1390 = vpop.xlane.xlu0 %1389
  %v1391 = vsel %vm97, %v1383, 0.0
  %1392 = vadd.xlane.f32.xlu0 %v1391
  %v1393 = vpop.xlane.xlu0 %1392
  %v1394 = vsel %vm97, %v1384, 0.0
  %1395 = vadd.xlane.f32.xlu0 %v1394
  %v1396 = vpop.xlane.xlu0 %1395
  %v1397 = vadd.f32 %v1387, 0.0
  %v1398 = vadd.f32 %v1390, 0.0
  %v1399 = vadd.f32 %v1393, 0.0
  %v1400 = vadd.f32 %v1396, 0.0
  %s1401 = scalar_lea.vmem %s0, 64
  %v1402 = vld [vmem:[%s1401] sm:$0xff]
  %v1403 = vld [vmem:[%s1401 + $0x8] sm:$0xff]
  %v1404 = vld [vmem:[%s1401 + $0x10] sm:$0xff]
  %v1405 = vld [vmem:[%s1401 + $0x18] sm:$0xff]
  %v1406 = vsub.f32 %v1402, %v59
  %v1407 = vsub.f32 %v1403, %v60
  %v1408 = vsub.f32 %v1404, %v61
  %v1409 = vsub.f32 %v1405, %v62
  %v1410 = vmul.f32 %v1406, 0.5
  %v1411 = vmul.f32 %v1407, 0.5
  %v1412 = vmul.f32 %v1408, 0.5
  %v1413 = vmul.f32 %v1409, 0.5
  %v1414 = vadd.f32 %v59, %v1410
  %v1415 = vadd.f32 %v60, %v1411
  %v1416 = vadd.f32 %v61, %v1412
  %v1417 = vadd.f32 %v62, %v1413
  %vm1418 = vcmp.ge.f32.partialorder %v1414, 1.0
  %vm1419 = vcmp.ge.f32.partialorder %v1415, 1.0
  %vm1420 = vcmp.ge.f32.partialorder %v1416, 1.0
  %vm1421 = vcmp.ge.f32.partialorder %v1417, 1.0
  %v1422 = vsel %vm1418, 1, 0
  %v1423 = vsel %vm1419, 1, 0
  %v1424 = vsel %vm1420, 1, 0
  %v1425 = vsel %vm1421, 1, 0
  %v1426 = vcvt.s32.f32 %v1422
  %v1427 = vcvt.s32.f32 %v1423
  %v1428 = vcvt.s32.f32 %v1424
  %v1429 = vcvt.s32.f32 %v1425
  %v1430 = vpack.c.bf16 %v1427, %v1426
  %v1431 = vpack.c.bf16 %v1429, %v1428
  %v1432 = vld [vmem:[%s1] sm:$0xf]
  %v1433 = vld [vmem:[%s1 + $0x4] sm:$0xf]
  %v1434 = vld [vmem:[%s1 + $0x8] sm:$0xf]
  %v1435 = vld [vmem:[%s1 + $0xc] sm:$0xf]
  %v1436 = vld [vmem:[%s1 + $0x10] sm:$0xf]
  %v1437 = vld [vmem:[%s1 + $0x14] sm:$0xf]
  %v1438 = vld [vmem:[%s1 + $0x18] sm:$0xf]
  %v1439 = vld [vmem:[%s1 + $0x1c] sm:$0xf]
  %v1448 = vunpack.c.l.b16 %v1432
  %v1449 = vunpack.c.l.b16 %v1433
  %v1450 = vunpack.c.l.b16 %v1434
  %v1451 = vunpack.c.l.b16 %v1435
  %v1452 = vunpack.c.l.b16 %v1436
  %v1453 = vunpack.c.l.b16 %v1437
  %v1454 = vunpack.c.l.b16 %v1438
  %v1455 = vunpack.c.l.b16 %v1439
  %v1456 = vpack.c.b16 %v1449, %v1448
  %v1457 = vpack.c.b16 %v1451, %v1450
  %v1458 = vpack.c.b16 %v1453, %v1452
  %v1459 = vpack.c.b16 %v1455, %v1454
  %v1465 = vsel %vm97, %v1430, 0
  %v1468 = vsel %vm97, %v1431, 0
  %1470 = vmatprep.subr.bf16.mxu0 0
  %1471 = vmatpush1.bf16.msra.mxu0 %v1456
  %1472 = vmatprep.subr.bf16.mxu0 0
  %1473 = vmatpush1.bf16.msra.mxu0 %v1457
  %1474 = vmatprep.subr.bf16.mxu0 0
  %1475 = vmatpush1.bf16.msra.mxu0 %v1458
  %1476 = vmatprep.subr.bf16.mxu0 0
  %1477 = vmatpush1.bf16.msra.mxu0 %v1459
  %1478 = vmatprep.subr.bf16.mxu0 0
  %1479 = vmatpush1.bf16.msra.mxu0 0
  %1480 = vmatprep.subr.bf16.mxu0 0
  %1481 = vmatpush1.bf16.msra.mxu0 0
  %1482 = vmatprep.subr.bf16.mxu0 0
  %1483 = vmatpush1.bf16.msra.mxu0 0
  %1484 = vmatprep.subr.bf16.mxu0 0
  %1485 = vmatpush1.bf16.msra.mxu0 0
  %1486 = vmatprep.subr.bf16.mxu0 0
  %1487 = vmatpush1.bf16.msra.mxu0 0
  %1488 = vmatprep.subr.bf16.mxu0 0
  %1489 = vmatpush1.bf16.msra.mxu0 0
  %1490 = vmatprep.subr.bf16.mxu0 0
  %1491 = vmatpush1.bf16.msra.mxu0 0
  %1492 = vmatprep.subr.bf16.mxu0 0
  %1493 = vmatpush1.bf16.msra.mxu0 0
  %1494 = vmatprep.subr.bf16.mxu0 0
  %1495 = vmatpush1.bf16.msra.mxu0 0
  %1496 = vmatprep.subr.bf16.mxu0 0
  %1497 = vmatpush1.bf16.msra.mxu0 0
  %1498 = vmatprep.subr.bf16.mxu0 0
  %1499 = vmatpush1.bf16.msra.mxu0 0
  %1500 = vmatprep.subr.bf16.mxu0 0
  %1501 = vmatpush1.bf16.msra.mxu0 0
  %1502 = vmatprep.mubr.bf16.mxu0 0
  %1503 = vmatmul.mubr.bf16.gmra.mrb[0].mxu0 %v1465
  %v1504 = vpop.f32.mrb[0].mxu0
  %v1505 = vadd.f32 0.0, %v1504
  %v1506 = vpop.f32.mrb[0].mxu0
  %v1507 = vpop.f32.mrb[0].mxu0
  %v1508 = vadd.f32 0.0, %v1507
  %v1509 = vpop.f32.mrb[0].mxu0
  %1510 = vmatprep.mubr.bf16.mxu0 0
  %1511 = vmatmul.mubr.bf16.gmra.mrb[0].mxu0 %v1468
  %v1512 = vpop.f32.mrb[0].mxu0
  %v1513 = vadd.f32 0.0, %v1512
  %v1514 = vpop.f32.mrb[0].mxu0
  %v1515 = vpop.f32.mrb[0].mxu0
  %v1516 = vadd.f32 0.0, %v1515
  %v1517 = vpop.f32.mrb[0].mxu0
  %1518 = vdwg.mxu0
  %v1519 = vadd.f32 %v177, %v1505
  %v1520 = vadd.f32 %v178, %v1508
  %v1521 = vadd.f32 %v179, %v1513
  %v1522 = vadd.f32 %v180, %v1516
  %vm1523 = vcmp.ge.f32.partialorder %v1519, 1.0
  %vm1524 = vcmp.ge.f32.partialorder %v1520, 1.0
  %vm1525 = vcmp.ge.f32.partialorder %v1521, 1.0
  %vm1526 = vcmp.ge.f32.partialorder %v1522, 1.0
  %v1527 = vsel %vm1523, 1.0, 0.0
  %v1528 = vsel %vm1524, 1.0, 0.0
  %v1529 = vsel %vm1525, 1.0, 0.0
  %v1530 = vsel %vm1526, 1.0, 0.0
  %vm1531 = vcmp.le.f32.partialorder %v1519, -1.0
  %vm1532 = vcmp.le.f32.partialorder %v1520, -1.0
  %vm1533 = vcmp.le.f32.partialorder %v1521, -1.0
  %vm1534 = vcmp.le.f32.partialorder %v1522, -1.0
  %v1535 = vsel %vm1531, -1.0, 0.0
  %v1536 = vsel %vm1532, -1.0, 0.0
  %v1537 = vsel %vm1533, -1.0, 0.0
  %v1538 = vsel %vm1534, -1.0, 0.0
  %v1539 = vadd.f32 %v1527, %v1535
  %v1540 = vadd.f32 %v1528, %v1536
  %v1541 = vadd.f32 %v1529, %v1537
  %v1542 = vadd.f32 %v1530, %v1538
  %v1543 = vpack.c.bf16 %v1540, %v1539
  %v1544 = vpack.c.bf16 %v1542, %v1541
  %v1547 = vunpack.c.l.b16 %v1543
  %v1548 = vunpack.c.h.b16 %v1543
  %v1549 = vunpack.c.l.b16 %v1544
  %v1550 = vunpack.c.h.b16 %v1544
  %v1551 = vpack.c.b16 %v1547, %v1547
  %v1552 = vpack.c.b16 %v1548, %v1548
  %v1553 = vpack.c.b16 %v1549, %v1549
  %v1554 = vpack.c.b16 %v1550, %v1550
  %s1559 = scalar_lea.vmem %s7, 32
  %1560 = vst.msk [vmem:[%s1559] sm:$0xf] %vm197, %v1551
  %1561 = vst.msk [vmem:[%s1559 + $0x4] sm:$0xf] %vm197, %v1552
  %1562 = vst.msk [vmem:[%s1559 + $0x8] sm:$0xf] %vm197, %v1553
  %1563 = vst.msk [vmem:[%s1559 + $0xc] sm:$0xf] %vm197, %v1554
  %v1564 = vsel %vm97, %v1539, 0.0
  %1565 = vadd.xlane.f32.xlu0 %v1564
  %v1566 = vpop.xlane.xlu0 %1565
  %v1567 = vsel %vm97, %v1540, 0.0
  %1568 = vadd.xlane.f32.xlu0 %v1567
  %v1569 = vpop.xlane.xlu0 %1568
  %v1570 = vsel %vm97, %v1541, 0.0
  %1571 = vadd.xlane.f32.xlu0 %v1570
  %v1572 = vpop.xlane.xlu0 %1571
  %v1573 = vsel %vm97, %v1542, 0.0
  %1574 = vadd.xlane.f32.xlu0 %v1573
  %v1575 = vpop.xlane.xlu0 %1574
  %v1576 = vadd.f32 %v214, %v1566
  %v1577 = vadd.f32 %v215, %v1569
  %v1578 = vadd.f32 %v216, %v1572
  %v1579 = vadd.f32 %v217, %v1575
  %v1580 = vmul.f32 %v1539, %v1539
  %v1581 = vmul.f32 %v1540, %v1540
  %v1582 = vmul.f32 %v1541, %v1541
  %v1583 = vmul.f32 %v1542, %v1542
  %v1584 = vsel %vm97, %v1580, 0.0
  %1585 = vadd.xlane.f32.xlu0 %v1584
  %v1586 = vpop.xlane.xlu0 %1585
  %v1587 = vsel %vm97, %v1581, 0.0
  %1588 = vadd.xlane.f32.xlu0 %v1587
  %v1589 = vpop.xlane.xlu0 %1588
  %v1590 = vsel %vm97, %v1582, 0.0
  %1591 = vadd.xlane.f32.xlu0 %v1590
  %v1592 = vpop.xlane.xlu0 %1591
  %v1593 = vsel %vm97, %v1583, 0.0
  %1594 = vadd.xlane.f32.xlu0 %v1593
  %v1595 = vpop.xlane.xlu0 %1594
  %v1596 = vadd.f32 %v234, %v1586
  %v1597 = vadd.f32 %v235, %v1589
  %v1598 = vadd.f32 %v236, %v1592
  %v1599 = vadd.f32 %v237, %v1595
  %v1600 = vld [vmem:[%s3] sm:$0xf]
  %v1601 = vld [vmem:[%s3 + $0x4] sm:$0xf]
  %v1602 = vld [vmem:[%s3 + $0x8] sm:$0xf]
  %v1603 = vld [vmem:[%s3 + $0xc] sm:$0xf]
  %v1604 = vld [vmem:[%s4] sm:$0xff]
  %v1605 = vld [vmem:[%s4 + $0x8] sm:$0xff]
  %v1606 = vld [vmem:[%s4 + $0x10] sm:$0xff]
  %v1607 = vld [vmem:[%s4 + $0x18] sm:$0xff]
  %1609 = vset.pattern.permute.xlu0 0
  %1610 = vperm.xlu0 %1609, %v1604
  %v1611 = vpop.permute.xlu0 %1610
  %1614 = vset.pattern.permute.xlu0 0
  %1615 = vperm.xlu0 %1614, %v1605
  %v1616 = vpop.permute.xlu0 %1615
  %1619 = vset.pattern.permute.xlu0 0
  %1620 = vperm.xlu0 %1619, %v1606
  %v1621 = vpop.permute.xlu0 %1620
  %1624 = vset.pattern.permute.xlu0 0
  %1625 = vperm.xlu0 %1624, %v1607
  %v1626 = vpop.permute.xlu0 %1625
  %v1632 = vunpack.c.l.b16 %v1600
  %v1633 = vunpack.c.l.b16 %v1601
  %v1634 = vunpack.c.l.b16 %v1602
  %v1635 = vunpack.c.l.b16 %v1603
  %v1636 = vpack.c.b16 %v1633, %v1632
  %v1637 = vpack.c.b16 %v1635, %v1634
  %v1639 = vsel %vm276, %v1636, 0
  %v1642 = vsel %vm276, %v1637, 0
  %1644 = vmatprep.subr.bf16.mxu0 0
  %1645 = vmatpush1.bf16.msra.mxu0 %v1430
  %1646 = vmatprep.subr.bf16.mxu0 0
  %1647 = vmatpush1.bf16.msra.mxu0 %v1431
  %1648 = vmatprep.subr.bf16.mxu0 0
  %1649 = vmatpush1.bf16.msra.mxu0 0
  %1650 = vmatprep.subr.bf16.mxu0 0
  %1651 = vmatpush1.bf16.msra.mxu0 0
  %1652 = vmatprep.subr.bf16.mxu0 0
  %1653 = vmatpush1.bf16.msra.mxu0 0
  %1654 = vmatprep.subr.bf16.mxu0 0
  %1655 = vmatpush1.bf16.msra.mxu0 0
  %1656 = vmatprep.subr.bf16.mxu0 0
  %1657 = vmatpush1.bf16.msra.mxu0 0
  %1658 = vmatprep.subr.bf16.mxu0 0
  %1659 = vmatpush1.bf16.msra.mxu0 0
  %1660 = vmatprep.subr.bf16.mxu0 0
  %1661 = vmatpush1.bf16.msra.mxu0 0
  %1662 = vmatprep.subr.bf16.mxu0 0
  %1663 = vmatpush1.bf16.msra.mxu0 0
  %1664 = vmatprep.subr.bf16.mxu0 0
  %1665 = vmatpush1.bf16.msra.mxu0 0
  %1666 = vmatprep.subr.bf16.mxu0 0
  %1667 = vmatpush1.bf16.msra.mxu0 0
  %1668 = vmatprep.subr.bf16.mxu0 0
  %1669 = vmatpush1.bf16.msra.mxu0 0
  %1670 = vmatprep.subr.bf16.mxu0 0
  %1671 = vmatpush1.bf16.msra.mxu0 0
  %1672 = vmatprep.subr.bf16.mxu0 0
  %1673 = vmatpush1.bf16.msra.mxu0 0
  %1674 = vmatprep.subr.bf16.mxu0 0
  %1675 = vmatpush1.bf16.msra.mxu0 0
  %1676 = vmatprep.mubr.bf16.mxu0 0
  %1677 = vmatmul.mubr.bf16.gmra.mrb[0].mxu0 %v1639
  %v1678 = vpop.f32.mrb[0].mxu0
  %v1679 = vadd.f32 %v1611, %v1678
  %v1680 = vpop.f32.mrb[0].mxu0
  %v1681 = vpop.f32.mrb[0].mxu0
  %v1682 = vadd.f32 %v1616, %v1681
  %v1683 = vpop.f32.mrb[0].mxu0
  %1684 = vmatprep.mubr.bf16.mxu0 0
  %1685 = vmatmul.mubr.bf16.gmra.mrb[0].mxu0 %v1642
  %v1686 = vpop.f32.mrb[0].mxu0
  %v1687 = vadd.f32 %v1621, %v1686
  %v1688 = vpop.f32.mrb[0].mxu0
  %v1689 = vpop.f32.mrb[0].mxu0
  %v1690 = vadd.f32 %v1626, %v1689
  %v1691 = vpop.f32.mrb[0].mxu0
  %1692 = vdwg.mxu0
  %v1693 = vpack.c.bf16 %v1682, %v1679
  %v1694 = vpack.c.bf16 %v1690, %v1687
  %v1697 = vunpack.c.l.b16 %v1693
  %v1698 = vunpack.c.h.b16 %v1693
  %v1699 = vunpack.c.l.b16 %v1694
  %v1700 = vunpack.c.h.b16 %v1694
  %v1701 = vpack.c.b16 %v1697, %v1697
  %v1702 = vpack.c.b16 %v1698, %v1698
  %v1703 = vpack.c.b16 %v1699, %v1699
  %v1704 = vpack.c.b16 %v1700, %v1700
  %s1709 = scalar_lea.vmem %s8, 32
  %1710 = vst.msk [vmem:[%s1709] sm:$0xf] %vm197, %v1701
  %1711 = vst.msk [vmem:[%s1709 + $0x4] sm:$0xf] %vm197, %v1702
  %1712 = vst.msk [vmem:[%s1709 + $0x8] sm:$0xf] %vm197, %v1703
  %1713 = vst.msk [vmem:[%s1709 + $0xc] sm:$0xf] %vm197, %v1704
  %v1714 = vsel %vm97, %v1679, 0.0
  %1715 = vadd.xlane.f32.xlu0 %v1714
  %v1716 = vpop.xlane.xlu0 %1715
  %v1717 = vsel %vm97, %v1682, 0.0
  %1718 = vadd.xlane.f32.xlu0 %v1717
  %v1719 = vpop.xlane.xlu0 %1718
  %v1720 = vsel %vm97, %v1687, 0.0
  %1721 = vadd.xlane.f32.xlu0 %v1720
  %v1722 = vpop.xlane.xlu0 %1721
  %v1723 = vsel %vm97, %v1690, 0.0
  %1724 = vadd.xlane.f32.xlu0 %v1723
  %v1725 = vpop.xlane.xlu0 %1724
  %v1726 = vadd.f32 %v364, %v1716
  %v1727 = vadd.f32 %v365, %v1719
  %v1728 = vadd.f32 %v366, %v1722
  %v1729 = vadd.f32 %v367, %v1725
  %v1730 = vmul.f32 %v1679, %v1679
  %v1731 = vmul.f32 %v1682, %v1682
  %v1732 = vmul.f32 %v1687, %v1687
  %v1733 = vmul.f32 %v1690, %v1690
  %v1734 = vsel %vm97, %v1730, 0.0
  %1735 = vadd.xlane.f32.xlu0 %v1734
  %v1736 = vpop.xlane.xlu0 %1735
  %v1737 = vsel %vm97, %v1731, 0.0
  %1738 = vadd.xlane.f32.xlu0 %v1737
  %v1739 = vpop.xlane.xlu0 %1738
  %v1740 = vsel %vm97, %v1732, 0.0
  %1741 = vadd.xlane.f32.xlu0 %v1740
  %v1742 = vpop.xlane.xlu0 %1741
  %v1743 = vsel %vm97, %v1733, 0.0
  %1744 = vadd.xlane.f32.xlu0 %v1743
  %v1745 = vpop.xlane.xlu0 %1744
  %v1746 = vadd.f32 %v384, %v1736
  %v1747 = vadd.f32 %v385, %v1739
  %v1748 = vadd.f32 %v386, %v1742
  %v1749 = vadd.f32 %v387, %v1745
  %v1750 = vld [vmem:[%s2] sm:$0xf]
  %v1751 = vld [vmem:[%s2 + $0x4] sm:$0xf]
  %v1752 = vld [vmem:[%s2 + $0x8] sm:$0xf]
  %v1753 = vld [vmem:[%s2 + $0xc] sm:$0xf]
  %v1754 = vld [vmem:[%s2 + $0x10] sm:$0xf]
  %v1755 = vld [vmem:[%s2 + $0x14] sm:$0xf]
  %v1756 = vld [vmem:[%s2 + $0x18] sm:$0xf]
  %v1757 = vld [vmem:[%s2 + $0x1c] sm:$0xf]
  %v1766 = vunpack.c.l.b16 %v1750
  %v1767 = vunpack.c.l.b16 %v1751
  %v1768 = vunpack.c.l.b16 %v1752
  %v1769 = vunpack.c.l.b16 %v1753
  %v1770 = vunpack.c.l.b16 %v1754
  %v1771 = vunpack.c.l.b16 %v1755
  %v1772 = vunpack.c.l.b16 %v1756
  %v1773 = vunpack.c.l.b16 %v1757
  %v1774 = vpack.c.b16 %v1767, %v1766
  %v1775 = vpack.c.b16 %v1769, %v1768
  %v1776 = vpack.c.b16 %v1771, %v1770
  %v1777 = vpack.c.b16 %v1773, %v1772
  %1782 = vmatprep.subr.bf16.mxu0 0
  %1783 = vmatpush1.bf16.msra.mxu0 %v1774
  %1784 = vmatprep.subr.bf16.mxu0 0
  %1785 = vmatpush1.bf16.msra.mxu0 %v1775
  %1786 = vmatprep.subr.bf16.mxu0 0
  %1787 = vmatpush1.bf16.msra.mxu0 %v1776
  %1788 = vmatprep.subr.bf16.mxu0 0
  %1789 = vmatpush1.bf16.msra.mxu0 %v1777
  %1790 = vmatprep.subr.bf16.mxu0 0
  %1791 = vmatpush1.bf16.msra.mxu0 0
  %1792 = vmatprep.subr.bf16.mxu0 0
  %1793 = vmatpush1.bf16.msra.mxu0 0
  %1794 = vmatprep.subr.bf16.mxu0 0
  %1795 = vmatpush1.bf16.msra.mxu0 0
  %1796 = vmatprep.subr.bf16.mxu0 0
  %1797 = vmatpush1.bf16.msra.mxu0 0
  %1798 = vmatprep.subr.bf16.mxu0 0
  %1799 = vmatpush1.bf16.msra.mxu0 0
  %1800 = vmatprep.subr.bf16.mxu0 0
  %1801 = vmatpush1.bf16.msra.mxu0 0
  %1802 = vmatprep.subr.bf16.mxu0 0
  %1803 = vmatpush1.bf16.msra.mxu0 0
  %1804 = vmatprep.subr.bf16.mxu0 0
  %1805 = vmatpush1.bf16.msra.mxu0 0
  %1806 = vmatprep.subr.bf16.mxu0 0
  %1807 = vmatpush1.bf16.msra.mxu0 0
  %1808 = vmatprep.subr.bf16.mxu0 0
  %1809 = vmatpush1.bf16.msra.mxu0 0
  %1810 = vmatprep.subr.bf16.mxu0 0
  %1811 = vmatpush1.bf16.msra.mxu0 0
  %1812 = vmatprep.subr.bf16.mxu0 0
  %1813 = vmatpush1.bf16.msra.mxu0 0
  %1814 = vmatprep.mubr.bf16.mxu0 0
  %1815 = vmatmul.mubr.bf16.gmra.mrb[0].mxu0 %v1465
  %v1816 = vpop.f32.mrb[0].mxu0
  %v1817 = vadd.f32 0.0, %v1816
  %v1818 = vpop.f32.mrb[0].mxu0
  %v1819 = vpop.f32.mrb[0].mxu0
  %v1820 = vadd.f32 0.0, %v1819
  %v1821 = vpop.f32.mrb[0].mxu0
  %1822 = vmatprep.mubr.bf16.mxu0 0
  %1823 = vmatmul.mubr.bf16.gmra.mrb[0].mxu0 %v1468
  %v1824 = vpop.f32.mrb[0].mxu0
  %v1825 = vadd.f32 0.0, %v1824
  %v1826 = vpop.f32.mrb[0].mxu0
  %v1827 = vpop.f32.mrb[0].mxu0
  %v1828 = vadd.f32 0.0, %v1827
  %v1829 = vpop.f32.mrb[0].mxu0
  %1830 = vdwg.mxu0
  %v1831 = vpack.c.bf16 %v1820, %v1817
  %v1832 = vpack.c.bf16 %v1828, %v1825
  %1833 = vst.msk [vmem:[#allocation2] sm:$0xff] %vm97, %v1831
  %1834 = vst.msk [vmem:[#allocation2 + $0x8] sm:$0xff] %vm97, %v1832
  %v1835 = vld [vmem:[%s473] sm:$0xf]
  %v1836 = vld [vmem:[%s473 + $0x4] sm:$0xf]
  %v1837 = vld [vmem:[%s473 + $0x8] sm:$0xf]
  %v1838 = vld [vmem:[%s473 + $0xc] sm:$0xf]
  %v1839 = vld [vmem:[%s473 + $0x10] sm:$0xf]
  %v1840 = vld [vmem:[%s473 + $0x14] sm:$0xf]
  %v1841 = vld [vmem:[%s473 + $0x18] sm:$0xf]
  %v1842 = vld [vmem:[%s473 + $0x1c] sm:$0xf]
  %v1851 = vunpack.c.l.b16 %v1835
  %v1852 = vunpack.c.l.b16 %v1836
  %v1853 = vunpack.c.l.b16 %v1837
  %v1854 = vunpack.c.l.b16 %v1838
  %v1855 = vunpack.c.l.b16 %v1839
  %v1856 = vunpack.c.l.b16 %v1840
  %v1857 = vunpack.c.l.b16 %v1841
  %v1858 = vunpack.c.l.b16 %v1842
  %v1859 = vpack.c.b16 %v1852, %v1851
  %v1860 = vpack.c.b16 %v1854, %v1853
  %v1861 = vpack.c.b16 %v1856, %v1855
  %v1862 = vpack.c.b16 %v1858, %v1857
  %1867 = vmatprep.subr.bf16.mxu0 0
  %1868 = vmatpush1.bf16.msra.mxu0 %v1859
  %1869 = vmatprep.subr.bf16.mxu0 0
  %1870 = vmatpush1.bf16.msra.mxu0 %v1860
  %1871 = vmatprep.subr.bf16.mxu0 0
  %1872 = vmatpush1.bf16.msra.mxu0 %v1861
  %1873 = vmatprep.subr.bf16.mxu0 0
  %1874 = vmatpush1.bf16.msra.mxu0 %v1862
  %1875 = vmatprep.subr.bf16.mxu0 0
  %1876 = vmatpush1.bf16.msra.mxu0 0
  %1877 = vmatprep.subr.bf16.mxu0 0
  %1878 = vmatpush1.bf16.msra.mxu0 0
  %1879 = vmatprep.subr.bf16.mxu0 0
  %1880 = vmatpush1.bf16.msra.mxu0 0
  %1881 = vmatprep.subr.bf16.mxu0 0
  %1882 = vmatpush1.bf16.msra.mxu0 0
  %1883 = vmatprep.subr.bf16.mxu0 0
  %1884 = vmatpush1.bf16.msra.mxu0 0
  %1885 = vmatprep.subr.bf16.mxu0 0
  %1886 = vmatpush1.bf16.msra.mxu0 0
  %1887 = vmatprep.subr.bf16.mxu0 0
  %1888 = vmatpush1.bf16.msra.mxu0 0
  %1889 = vmatprep.subr.bf16.mxu0 0
  %1890 = vmatpush1.bf16.msra.mxu0 0
  %1891 = vmatprep.subr.bf16.mxu0 0
  %1892 = vmatpush1.bf16.msra.mxu0 0
  %1893 = vmatprep.subr.bf16.mxu0 0
  %1894 = vmatpush1.bf16.msra.mxu0 0
  %1895 = vmatprep.subr.bf16.mxu0 0
  %1896 = vmatpush1.bf16.msra.mxu0 0
  %1897 = vmatprep.subr.bf16.mxu0 0
  %1898 = vmatpush1.bf16.msra.mxu0 0
  %1899 = vmatprep.mubr.bf16.mxu0 0
  %1900 = vmatmul.mubr.bf16.gmra.mrb[0].mxu0 %v1465
  %v1901 = vpop.f32.mrb[0].mxu0
  %v1902 = vadd.f32 0.0, %v1901
  %v1903 = vpop.f32.mrb[0].mxu0
  %v1904 = vpop.f32.mrb[0].mxu0
  %v1905 = vadd.f32 0.0, %v1904
  %v1906 = vpop.f32.mrb[0].mxu0
  %1907 = vmatprep.mubr.bf16.mxu0 0
  %1908 = vmatmul.mubr.bf16.gmra.mrb[0].mxu0 %v1468
  %v1909 = vpop.f32.mrb[0].mxu0
  %v1910 = vadd.f32 0.0, %v1909
  %v1911 = vpop.f32.mrb[0].mxu0
  %v1912 = vpop.f32.mrb[0].mxu0
  %v1913 = vadd.f32 0.0, %v1912
  %v1914 = vpop.f32.mrb[0].mxu0
  %1915 = vdwg.mxu0
  %v1916 = vpack.c.bf16 %v1905, %v1902
  %v1917 = vpack.c.bf16 %v1913, %v1910
  %1918 = vst.msk [vmem:[#allocation2 + $0x10] sm:$0xff] %vm97, %v1916
  %1919 = vst.msk [vmem:[#allocation2 + $0x18] sm:$0xff] %vm97, %v1917
  %v1920 = vld [vmem:[%s559] sm:$0xf]
  %v1921 = vld [vmem:[%s559 + $0x4] sm:$0xf]
  %v1922 = vld [vmem:[%s559 + $0x8] sm:$0xf]
  %v1923 = vld [vmem:[%s559 + $0xc] sm:$0xf]
  %v1924 = vld [vmem:[%s559 + $0x10] sm:$0xf]
  %v1925 = vld [vmem:[%s559 + $0x14] sm:$0xf]
  %v1926 = vld [vmem:[%s559 + $0x18] sm:$0xf]
  %v1927 = vld [vmem:[%s559 + $0x1c] sm:$0xf]
  %v1936 = vunpack.c.l.b16 %v1920
  %v1937 = vunpack.c.l.b16 %v1921
  %v1938 = vunpack.c.l.b16 %v1922
  %v1939 = vunpack.c.l.b16 %v1923
  %v1940 = vunpack.c.l.b16 %v1924
  %v1941 = vunpack.c.l.b16 %v1925
  %v1942 = vunpack.c.l.b16 %v1926
  %v1943 = vunpack.c.l.b16 %v1927
  %v1944 = vpack.c.b16 %v1937, %v1936
  %v1945 = vpack.c.b16 %v1939, %v1938
  %v1946 = vpack.c.b16 %v1941, %v1940
  %v1947 = vpack.c.b16 %v1943, %v1942
  %1952 = vmatprep.subr.bf16.mxu0 0
  %1953 = vmatpush1.bf16.msra.mxu0 %v1944
  %1954 = vmatprep.subr.bf16.mxu0 0
  %1955 = vmatpush1.bf16.msra.mxu0 %v1945
  %1956 = vmatprep.subr.bf16.mxu0 0
  %1957 = vmatpush1.bf16.msra.mxu0 %v1946
  %1958 = vmatprep.subr.bf16.mxu0 0
  %1959 = vmatpush1.bf16.msra.mxu0 %v1947
  %1960 = vmatprep.subr.bf16.mxu0 0
  %1961 = vmatpush1.bf16.msra.mxu0 0
  %1962 = vmatprep.subr.bf16.mxu0 0
  %1963 = vmatpush1.bf16.msra.mxu0 0
  %1964 = vmatprep.subr.bf16.mxu0 0
  %1965 = vmatpush1.bf16.msra.mxu0 0
  %1966 = vmatprep.subr.bf16.mxu0 0
  %1967 = vmatpush1.bf16.msra.mxu0 0
  %1968 = vmatprep.subr.bf16.mxu0 0
  %1969 = vmatpush1.bf16.msra.mxu0 0
  %1970 = vmatprep.subr.bf16.mxu0 0
  %1971 = vmatpush1.bf16.msra.mxu0 0
  %1972 = vmatprep.subr.bf16.mxu0 0
  %1973 = vmatpush1.bf16.msra.mxu0 0
  %1974 = vmatprep.subr.bf16.mxu0 0
  %1975 = vmatpush1.bf16.msra.mxu0 0
  %1976 = vmatprep.subr.bf16.mxu0 0
  %1977 = vmatpush1.bf16.msra.mxu0 0
  %1978 = vmatprep.subr.bf16.mxu0 0
  %1979 = vmatpush1.bf16.msra.mxu0 0
  %1980 = vmatprep.subr.bf16.mxu0 0
  %1981 = vmatpush1.bf16.msra.mxu0 0
  %1982 = vmatprep.subr.bf16.mxu0 0
  %1983 = vmatpush1.bf16.msra.mxu0 0
  %1984 = vmatprep.mubr.bf16.mxu0 0
  %1985 = vmatmul.mubr.bf16.gmra.mrb[0].mxu0 %v1465
  %v1986 = vpop.f32.mrb[0].mxu0
  %v1987 = vadd.f32 0.0, %v1986
  %v1988 = vpop.f32.mrb[0].mxu0
  %v1989 = vpop.f32.mrb[0].mxu0
  %v1990 = vadd.f32 0.0, %v1989
  %v1991 = vpop.f32.mrb[0].mxu0
  %1992 = vmatprep.mubr.bf16.mxu0 0
  %1993 = vmatmul.mubr.bf16.gmra.mrb[0].mxu0 %v1468
  %v1994 = vpop.f32.mrb[0].mxu0
  %v1995 = vadd.f32 0.0, %v1994
  %v1996 = vpop.f32.mrb[0].mxu0
  %v1997 = vpop.f32.mrb[0].mxu0
  %v1998 = vadd.f32 0.0, %v1997
  %v1999 = vpop.f32.mrb[0].mxu0
  %2000 = vdwg.mxu0
  %v2001 = vpack.c.bf16 %v1990, %v1987
  %v2002 = vpack.c.bf16 %v1998, %v1995
  %2003 = vst.msk [vmem:[#allocation2 + $0x20] sm:$0xff] %vm97, %v2001
  %2004 = vst.msk [vmem:[#allocation2 + $0x28] sm:$0xff] %vm97, %v2002
  %v2005 = vld [vmem:[%s645] sm:$0xf]
  %v2006 = vld [vmem:[%s645 + $0x4] sm:$0xf]
  %v2007 = vld [vmem:[%s645 + $0x8] sm:$0xf]
  %v2008 = vld [vmem:[%s645 + $0xc] sm:$0xf]
  %v2009 = vld [vmem:[%s645 + $0x10] sm:$0xf]
  %v2010 = vld [vmem:[%s645 + $0x14] sm:$0xf]
  %v2011 = vld [vmem:[%s645 + $0x18] sm:$0xf]
  %v2012 = vld [vmem:[%s645 + $0x1c] sm:$0xf]
  %v2021 = vunpack.c.l.b16 %v2005
  %v2022 = vunpack.c.l.b16 %v2006
  %v2023 = vunpack.c.l.b16 %v2007
  %v2024 = vunpack.c.l.b16 %v2008
  %v2025 = vunpack.c.l.b16 %v2009
  %v2026 = vunpack.c.l.b16 %v2010
  %v2027 = vunpack.c.l.b16 %v2011
  %v2028 = vunpack.c.l.b16 %v2012
  %v2029 = vpack.c.b16 %v2022, %v2021
  %v2030 = vpack.c.b16 %v2024, %v2023
  %v2031 = vpack.c.b16 %v2026, %v2025
  %v2032 = vpack.c.b16 %v2028, %v2027
  %2037 = vmatprep.subr.bf16.mxu0 0
  %2038 = vmatpush1.bf16.msra.mxu0 %v2029
  %2039 = vmatprep.subr.bf16.mxu0 0
  %2040 = vmatpush1.bf16.msra.mxu0 %v2030
  %2041 = vmatprep.subr.bf16.mxu0 0
  %2042 = vmatpush1.bf16.msra.mxu0 %v2031
  %2043 = vmatprep.subr.bf16.mxu0 0
  %2044 = vmatpush1.bf16.msra.mxu0 %v2032
  %2045 = vmatprep.subr.bf16.mxu0 0
  %2046 = vmatpush1.bf16.msra.mxu0 0
  %2047 = vmatprep.subr.bf16.mxu0 0
  %2048 = vmatpush1.bf16.msra.mxu0 0
  %2049 = vmatprep.subr.bf16.mxu0 0
  %2050 = vmatpush1.bf16.msra.mxu0 0
  %2051 = vmatprep.subr.bf16.mxu0 0
  %2052 = vmatpush1.bf16.msra.mxu0 0
  %2053 = vmatprep.subr.bf16.mxu0 0
  %2054 = vmatpush1.bf16.msra.mxu0 0
  %2055 = vmatprep.subr.bf16.mxu0 0
  %2056 = vmatpush1.bf16.msra.mxu0 0
  %2057 = vmatprep.subr.bf16.mxu0 0
  %2058 = vmatpush1.bf16.msra.mxu0 0
  %2059 = vmatprep.subr.bf16.mxu0 0
  %2060 = vmatpush1.bf16.msra.mxu0 0
  %2061 = vmatprep.subr.bf16.mxu0 0
  %2062 = vmatpush1.bf16.msra.mxu0 0
  %2063 = vmatprep.subr.bf16.mxu0 0
  %2064 = vmatpush1.bf16.msra.mxu0 0
  %2065 = vmatprep.subr.bf16.mxu0 0
  %2066 = vmatpush1.bf16.msra.mxu0 0
  %2067 = vmatprep.subr.bf16.mxu0 0
  %2068 = vmatpush1.bf16.msra.mxu0 0
  %2069 = vmatprep.mubr.bf16.mxu0 0
  %2070 = vmatmul.mubr.bf16.gmra.mrb[0].mxu0 %v1465
  %v2071 = vpop.f32.mrb[0].mxu0
  %v2072 = vadd.f32 0.0, %v2071
  %v2073 = vpop.f32.mrb[0].mxu0
  %v2074 = vpop.f32.mrb[0].mxu0
  %v2075 = vadd.f32 0.0, %v2074
  %v2076 = vpop.f32.mrb[0].mxu0
  %2077 = vmatprep.mubr.bf16.mxu0 0
  %2078 = vmatmul.mubr.bf16.gmra.mrb[0].mxu0 %v1468
  %v2079 = vpop.f32.mrb[0].mxu0
  %v2080 = vadd.f32 0.0, %v2079
  %v2081 = vpop.f32.mrb[0].mxu0
  %v2082 = vpop.f32.mrb[0].mxu0
  %v2083 = vadd.f32 0.0, %v2082
  %v2084 = vpop.f32.mrb[0].mxu0
  %2085 = vdwg.mxu0
  %v2086 = vpack.c.bf16 %v2075, %v2072
  %v2087 = vpack.c.bf16 %v2083, %v2080
  %2088 = vst.msk [vmem:[#allocation2 + $0x30] sm:$0xff] %vm97, %v2086
  %2089 = vst.msk [vmem:[#allocation2 + $0x38] sm:$0xff] %vm97, %v2087
  %v2090 = vld [vmem:[%s731] sm:$0xf]
  %v2091 = vld [vmem:[%s731 + $0x4] sm:$0xf]
  %v2092 = vld [vmem:[%s731 + $0x8] sm:$0xf]
  %v2093 = vld [vmem:[%s731 + $0xc] sm:$0xf]
  %v2094 = vld [vmem:[%s731 + $0x10] sm:$0xf]
  %v2095 = vld [vmem:[%s731 + $0x14] sm:$0xf]
  %v2096 = vld [vmem:[%s731 + $0x18] sm:$0xf]
  %v2097 = vld [vmem:[%s731 + $0x1c] sm:$0xf]
  %v2106 = vunpack.c.l.b16 %v2090
  %v2107 = vunpack.c.l.b16 %v2091
  %v2108 = vunpack.c.l.b16 %v2092
  %v2109 = vunpack.c.l.b16 %v2093
  %v2110 = vunpack.c.l.b16 %v2094
  %v2111 = vunpack.c.l.b16 %v2095
  %v2112 = vunpack.c.l.b16 %v2096
  %v2113 = vunpack.c.l.b16 %v2097
  %v2114 = vpack.c.b16 %v2107, %v2106
  %v2115 = vpack.c.b16 %v2109, %v2108
  %v2116 = vpack.c.b16 %v2111, %v2110
  %v2117 = vpack.c.b16 %v2113, %v2112
  %2122 = vmatprep.subr.bf16.mxu0 0
  %2123 = vmatpush1.bf16.msra.mxu0 %v2114
  %2124 = vmatprep.subr.bf16.mxu0 0
  %2125 = vmatpush1.bf16.msra.mxu0 %v2115
  %2126 = vmatprep.subr.bf16.mxu0 0
  %2127 = vmatpush1.bf16.msra.mxu0 %v2116
  %2128 = vmatprep.subr.bf16.mxu0 0
  %2129 = vmatpush1.bf16.msra.mxu0 %v2117
  %2130 = vmatprep.subr.bf16.mxu0 0
  %2131 = vmatpush1.bf16.msra.mxu0 0
  %2132 = vmatprep.subr.bf16.mxu0 0
  %2133 = vmatpush1.bf16.msra.mxu0 0
  %2134 = vmatprep.subr.bf16.mxu0 0
  %2135 = vmatpush1.bf16.msra.mxu0 0
  %2136 = vmatprep.subr.bf16.mxu0 0
  %2137 = vmatpush1.bf16.msra.mxu0 0
  %2138 = vmatprep.subr.bf16.mxu0 0
  %2139 = vmatpush1.bf16.msra.mxu0 0
  %2140 = vmatprep.subr.bf16.mxu0 0
  %2141 = vmatpush1.bf16.msra.mxu0 0
  %2142 = vmatprep.subr.bf16.mxu0 0
  %2143 = vmatpush1.bf16.msra.mxu0 0
  %2144 = vmatprep.subr.bf16.mxu0 0
  %2145 = vmatpush1.bf16.msra.mxu0 0
  %2146 = vmatprep.subr.bf16.mxu0 0
  %2147 = vmatpush1.bf16.msra.mxu0 0
  %2148 = vmatprep.subr.bf16.mxu0 0
  %2149 = vmatpush1.bf16.msra.mxu0 0
  %2150 = vmatprep.subr.bf16.mxu0 0
  %2151 = vmatpush1.bf16.msra.mxu0 0
  %2152 = vmatprep.subr.bf16.mxu0 0
  %2153 = vmatpush1.bf16.msra.mxu0 0
  %2154 = vmatprep.mubr.bf16.mxu0 0
  %2155 = vmatmul.mubr.bf16.gmra.mrb[0].mxu0 %v1465
  %v2156 = vpop.f32.mrb[0].mxu0
  %v2157 = vadd.f32 0.0, %v2156
  %v2158 = vpop.f32.mrb[0].mxu0
  %v2159 = vpop.f32.mrb[0].mxu0
  %v2160 = vadd.f32 0.0, %v2159
  %v2161 = vpop.f32.mrb[0].mxu0
  %2162 = vmatprep.mubr.bf16.mxu0 0
  %2163 = vmatmul.mubr.bf16.gmra.mrb[0].mxu0 %v1468
  %v2164 = vpop.f32.mrb[0].mxu0
  %v2165 = vadd.f32 0.0, %v2164
  %v2166 = vpop.f32.mrb[0].mxu0
  %v2167 = vpop.f32.mrb[0].mxu0
  %v2168 = vadd.f32 0.0, %v2167
  %v2169 = vpop.f32.mrb[0].mxu0
  %2170 = vdwg.mxu0
  %v2171 = vpack.c.bf16 %v2160, %v2157
  %v2172 = vpack.c.bf16 %v2168, %v2165
  %2173 = vst.msk [vmem:[#allocation2 + $0x40] sm:$0xff] %vm97, %v2171
  %2174 = vst.msk [vmem:[#allocation2 + $0x48] sm:$0xff] %vm97, %v2172
  %v2175 = vld [vmem:[%s817] sm:$0xf]
  %v2176 = vld [vmem:[%s817 + $0x4] sm:$0xf]
  %v2177 = vld [vmem:[%s817 + $0x8] sm:$0xf]
  %v2178 = vld [vmem:[%s817 + $0xc] sm:$0xf]
  %v2179 = vld [vmem:[%s817 + $0x10] sm:$0xf]
  %v2180 = vld [vmem:[%s817 + $0x14] sm:$0xf]
  %v2181 = vld [vmem:[%s817 + $0x18] sm:$0xf]
  %v2182 = vld [vmem:[%s817 + $0x1c] sm:$0xf]
  %v2191 = vunpack.c.l.b16 %v2175
  %v2192 = vunpack.c.l.b16 %v2176
  %v2193 = vunpack.c.l.b16 %v2177
  %v2194 = vunpack.c.l.b16 %v2178
  %v2195 = vunpack.c.l.b16 %v2179
  %v2196 = vunpack.c.l.b16 %v2180
  %v2197 = vunpack.c.l.b16 %v2181
  %v2198 = vunpack.c.l.b16 %v2182
  %v2199 = vpack.c.b16 %v2192, %v2191
  %v2200 = vpack.c.b16 %v2194, %v2193
  %v2201 = vpack.c.b16 %v2196, %v2195
  %v2202 = vpack.c.b16 %v2198, %v2197
  %2207 = vmatprep.subr.bf16.mxu0 0
  %2208 = vmatpush1.bf16.msra.mxu0 %v2199
  %2209 = vmatprep.subr.bf16.mxu0 0
  %2210 = vmatpush1.bf16.msra.mxu0 %v2200
  %2211 = vmatprep.subr.bf16.mxu0 0
  %2212 = vmatpush1.bf16.msra.mxu0 %v2201
  %2213 = vmatprep.subr.bf16.mxu0 0
  %2214 = vmatpush1.bf16.msra.mxu0 %v2202
  %2215 = vmatprep.subr.bf16.mxu0 0
  %2216 = vmatpush1.bf16.msra.mxu0 0
  %2217 = vmatprep.subr.bf16.mxu0 0
  %2218 = vmatpush1.bf16.msra.mxu0 0
  %2219 = vmatprep.subr.bf16.mxu0 0
  %2220 = vmatpush1.bf16.msra.mxu0 0
  %2221 = vmatprep.subr.bf16.mxu0 0
  %2222 = vmatpush1.bf16.msra.mxu0 0
  %2223 = vmatprep.subr.bf16.mxu0 0
  %2224 = vmatpush1.bf16.msra.mxu0 0
  %2225 = vmatprep.subr.bf16.mxu0 0
  %2226 = vmatpush1.bf16.msra.mxu0 0
  %2227 = vmatprep.subr.bf16.mxu0 0
  %2228 = vmatpush1.bf16.msra.mxu0 0
  %2229 = vmatprep.subr.bf16.mxu0 0
  %2230 = vmatpush1.bf16.msra.mxu0 0
  %2231 = vmatprep.subr.bf16.mxu0 0
  %2232 = vmatpush1.bf16.msra.mxu0 0
  %2233 = vmatprep.subr.bf16.mxu0 0
  %2234 = vmatpush1.bf16.msra.mxu0 0
  %2235 = vmatprep.subr.bf16.mxu0 0
  %2236 = vmatpush1.bf16.msra.mxu0 0
  %2237 = vmatprep.subr.bf16.mxu0 0
  %2238 = vmatpush1.bf16.msra.mxu0 0
  %2239 = vmatprep.mubr.bf16.mxu0 0
  %2240 = vmatmul.mubr.bf16.gmra.mrb[0].mxu0 %v1465
  %v2241 = vpop.f32.mrb[0].mxu0
  %v2242 = vadd.f32 0.0, %v2241
  %v2243 = vpop.f32.mrb[0].mxu0
  %v2244 = vpop.f32.mrb[0].mxu0
  %v2245 = vadd.f32 0.0, %v2244
  %v2246 = vpop.f32.mrb[0].mxu0
  %2247 = vmatprep.mubr.bf16.mxu0 0
  %2248 = vmatmul.mubr.bf16.gmra.mrb[0].mxu0 %v1468
  %v2249 = vpop.f32.mrb[0].mxu0
  %v2250 = vadd.f32 0.0, %v2249
  %v2251 = vpop.f32.mrb[0].mxu0
  %v2252 = vpop.f32.mrb[0].mxu0
  %v2253 = vadd.f32 0.0, %v2252
  %v2254 = vpop.f32.mrb[0].mxu0
  %2255 = vdwg.mxu0
  %v2256 = vpack.c.bf16 %v2245, %v2242
  %v2257 = vpack.c.bf16 %v2253, %v2250
  %2258 = vst.msk [vmem:[#allocation2 + $0x50] sm:$0xff] %vm97, %v2256
  %2259 = vst.msk [vmem:[#allocation2 + $0x58] sm:$0xff] %vm97, %v2257
  %v2260 = vld [vmem:[%s903] sm:$0xf]
  %v2261 = vld [vmem:[%s903 + $0x4] sm:$0xf]
  %v2262 = vld [vmem:[%s903 + $0x8] sm:$0xf]
  %v2263 = vld [vmem:[%s903 + $0xc] sm:$0xf]
  %v2264 = vld [vmem:[%s903 + $0x10] sm:$0xf]
  %v2265 = vld [vmem:[%s903 + $0x14] sm:$0xf]
  %v2266 = vld [vmem:[%s903 + $0x18] sm:$0xf]
  %v2267 = vld [vmem:[%s903 + $0x1c] sm:$0xf]
  %v2276 = vunpack.c.l.b16 %v2260
  %v2277 = vunpack.c.l.b16 %v2261
  %v2278 = vunpack.c.l.b16 %v2262
  %v2279 = vunpack.c.l.b16 %v2263
  %v2280 = vunpack.c.l.b16 %v2264
  %v2281 = vunpack.c.l.b16 %v2265
  %v2282 = vunpack.c.l.b16 %v2266
  %v2283 = vunpack.c.l.b16 %v2267
  %v2284 = vpack.c.b16 %v2277, %v2276
  %v2285 = vpack.c.b16 %v2279, %v2278
  %v2286 = vpack.c.b16 %v2281, %v2280
  %v2287 = vpack.c.b16 %v2283, %v2282
  %2292 = vmatprep.subr.bf16.mxu0 0
  %2293 = vmatpush1.bf16.msra.mxu0 %v2284
  %2294 = vmatprep.subr.bf16.mxu0 0
  %2295 = vmatpush1.bf16.msra.mxu0 %v2285
  %2296 = vmatprep.subr.bf16.mxu0 0
  %2297 = vmatpush1.bf16.msra.mxu0 %v2286
  %2298 = vmatprep.subr.bf16.mxu0 0
  %2299 = vmatpush1.bf16.msra.mxu0 %v2287
  %2300 = vmatprep.subr.bf16.mxu0 0
  %2301 = vmatpush1.bf16.msra.mxu0 0
  %2302 = vmatprep.subr.bf16.mxu0 0
  %2303 = vmatpush1.bf16.msra.mxu0 0
  %2304 = vmatprep.subr.bf16.mxu0 0
  %2305 = vmatpush1.bf16.msra.mxu0 0
  %2306 = vmatprep.subr.bf16.mxu0 0
  %2307 = vmatpush1.bf16.msra.mxu0 0
  %2308 = vmatprep.subr.bf16.mxu0 0
  %2309 = vmatpush1.bf16.msra.mxu0 0
  %2310 = vmatprep.subr.bf16.mxu0 0
  %2311 = vmatpush1.bf16.msra.mxu0 0
  %2312 = vmatprep.subr.bf16.mxu0 0
  %2313 = vmatpush1.bf16.msra.mxu0 0
  %2314 = vmatprep.subr.bf16.mxu0 0
  %2315 = vmatpush1.bf16.msra.mxu0 0
  %2316 = vmatprep.subr.bf16.mxu0 0
  %2317 = vmatpush1.bf16.msra.mxu0 0
  %2318 = vmatprep.subr.bf16.mxu0 0
  %2319 = vmatpush1.bf16.msra.mxu0 0
  %2320 = vmatprep.subr.bf16.mxu0 0
  %2321 = vmatpush1.bf16.msra.mxu0 0
  %2322 = vmatprep.subr.bf16.mxu0 0
  %2323 = vmatpush1.bf16.msra.mxu0 0
  %2324 = vmatprep.mubr.bf16.mxu0 0
  %2325 = vmatmul.mubr.bf16.gmra.mrb[0].mxu0 %v1465
  %v2326 = vpop.f32.mrb[0].mxu0
  %v2327 = vadd.f32 0.0, %v2326
  %v2328 = vpop.f32.mrb[0].mxu0
  %v2329 = vpop.f32.mrb[0].mxu0
  %v2330 = vadd.f32 0.0, %v2329
  %v2331 = vpop.f32.mrb[0].mxu0
  %2332 = vmatprep.mubr.bf16.mxu0 0
  %2333 = vmatmul.mubr.bf16.gmra.mrb[0].mxu0 %v1468
  %v2334 = vpop.f32.mrb[0].mxu0
  %v2335 = vadd.f32 0.0, %v2334
  %v2336 = vpop.f32.mrb[0].mxu0
  %v2337 = vpop.f32.mrb[0].mxu0
  %v2338 = vadd.f32 0.0, %v2337
  %v2339 = vpop.f32.mrb[0].mxu0
  %2340 = vdwg.mxu0
  %v2341 = vpack.c.bf16 %v2330, %v2327
  %v2342 = vpack.c.bf16 %v2338, %v2335
  %2343 = vst.msk [vmem:[#allocation2 + $0x60] sm:$0xff] %vm97, %v2341
  %2344 = vst.msk [vmem:[#allocation2 + $0x68] sm:$0xff] %vm97, %v2342
  %v2345 = vld [vmem:[%s989] sm:$0xf]
  %v2346 = vld [vmem:[%s989 + $0x4] sm:$0xf]
  %v2347 = vld [vmem:[%s989 + $0x8] sm:$0xf]
  %v2348 = vld [vmem:[%s989 + $0xc] sm:$0xf]
  %v2349 = vld [vmem:[%s989 + $0x10] sm:$0xf]
  %v2350 = vld [vmem:[%s989 + $0x14] sm:$0xf]
  %v2351 = vld [vmem:[%s989 + $0x18] sm:$0xf]
  %v2352 = vld [vmem:[%s989 + $0x1c] sm:$0xf]
  %v2361 = vunpack.c.l.b16 %v2345
  %v2362 = vunpack.c.l.b16 %v2346
  %v2363 = vunpack.c.l.b16 %v2347
  %v2364 = vunpack.c.l.b16 %v2348
  %v2365 = vunpack.c.l.b16 %v2349
  %v2366 = vunpack.c.l.b16 %v2350
  %v2367 = vunpack.c.l.b16 %v2351
  %v2368 = vunpack.c.l.b16 %v2352
  %v2369 = vpack.c.b16 %v2362, %v2361
  %v2370 = vpack.c.b16 %v2364, %v2363
  %v2371 = vpack.c.b16 %v2366, %v2365
  %v2372 = vpack.c.b16 %v2368, %v2367
  %2377 = vmatprep.subr.bf16.mxu0 0
  %2378 = vmatpush1.bf16.msra.mxu0 %v2369
  %2379 = vmatprep.subr.bf16.mxu0 0
  %2380 = vmatpush1.bf16.msra.mxu0 %v2370
  %2381 = vmatprep.subr.bf16.mxu0 0
  %2382 = vmatpush1.bf16.msra.mxu0 %v2371
  %2383 = vmatprep.subr.bf16.mxu0 0
  %2384 = vmatpush1.bf16.msra.mxu0 %v2372
  %2385 = vmatprep.subr.bf16.mxu0 0
  %2386 = vmatpush1.bf16.msra.mxu0 0
  %2387 = vmatprep.subr.bf16.mxu0 0
  %2388 = vmatpush1.bf16.msra.mxu0 0
  %2389 = vmatprep.subr.bf16.mxu0 0
  %2390 = vmatpush1.bf16.msra.mxu0 0
  %2391 = vmatprep.subr.bf16.mxu0 0
  %2392 = vmatpush1.bf16.msra.mxu0 0
  %2393 = vmatprep.subr.bf16.mxu0 0
  %2394 = vmatpush1.bf16.msra.mxu0 0
  %2395 = vmatprep.subr.bf16.mxu0 0
  %2396 = vmatpush1.bf16.msra.mxu0 0
  %2397 = vmatprep.subr.bf16.mxu0 0
  %2398 = vmatpush1.bf16.msra.mxu0 0
  %2399 = vmatprep.subr.bf16.mxu0 0
  %2400 = vmatpush1.bf16.msra.mxu0 0
  %2401 = vmatprep.subr.bf16.mxu0 0
  %2402 = vmatpush1.bf16.msra.mxu0 0
  %2403 = vmatprep.subr.bf16.mxu0 0
  %2404 = vmatpush1.bf16.msra.mxu0 0
  %2405 = vmatprep.subr.bf16.mxu0 0
  %2406 = vmatpush1.bf16.msra.mxu0 0
  %2407 = vmatprep.subr.bf16.mxu0 0
  %2408 = vmatpush1.bf16.msra.mxu0 0
  %2409 = vmatprep.mubr.bf16.mxu0 0
  %2410 = vmatmul.mubr.bf16.gmra.mrb[0].mxu0 %v1465
  %v2411 = vpop.f32.mrb[0].mxu0
  %v2412 = vadd.f32 0.0, %v2411
  %v2413 = vpop.f32.mrb[0].mxu0
  %v2414 = vpop.f32.mrb[0].mxu0
  %v2415 = vadd.f32 0.0, %v2414
  %v2416 = vpop.f32.mrb[0].mxu0
  %2417 = vmatprep.mubr.bf16.mxu0 0
  %2418 = vmatmul.mubr.bf16.gmra.mrb[0].mxu0 %v1468
  %v2419 = vpop.f32.mrb[0].mxu0
  %v2420 = vadd.f32 0.0, %v2419
  %v2421 = vpop.f32.mrb[0].mxu0
  %v2422 = vpop.f32.mrb[0].mxu0
  %v2423 = vadd.f32 0.0, %v2422
  %v2424 = vpop.f32.mrb[0].mxu0
  %2425 = vdwg.mxu0
  %v2426 = vpack.c.bf16 %v2415, %v2412
  %v2427 = vpack.c.bf16 %v2423, %v2420
  %2428 = vst.msk [vmem:[#allocation2 + $0x70] sm:$0xff] %vm97, %v2426
  %2429 = vst.msk [vmem:[#allocation2 + $0x78] sm:$0xff] %vm97, %v2427
  %v2430 = vld [vmem:[%s1075] sm:$0xf]
  %v2431 = vld [vmem:[%s1075 + $0x4] sm:$0xf]
  %v2432 = vld [vmem:[%s1075 + $0x8] sm:$0xf]
  %v2433 = vld [vmem:[%s1075 + $0xc] sm:$0xf]
  %v2434 = vld [vmem:[%s1075 + $0x10] sm:$0xf]
  %v2435 = vld [vmem:[%s1075 + $0x14] sm:$0xf]
  %v2436 = vld [vmem:[%s1075 + $0x18] sm:$0xf]
  %v2437 = vld [vmem:[%s1075 + $0x1c] sm:$0xf]
  %v2446 = vunpack.c.l.b16 %v2430
  %v2447 = vunpack.c.l.b16 %v2431
  %v2448 = vunpack.c.l.b16 %v2432
  %v2449 = vunpack.c.l.b16 %v2433
  %v2450 = vunpack.c.l.b16 %v2434
  %v2451 = vunpack.c.l.b16 %v2435
  %v2452 = vunpack.c.l.b16 %v2436
  %v2453 = vunpack.c.l.b16 %v2437
  %v2454 = vpack.c.b16 %v2447, %v2446
  %v2455 = vpack.c.b16 %v2449, %v2448
  %v2456 = vpack.c.b16 %v2451, %v2450
  %v2457 = vpack.c.b16 %v2453, %v2452
  %2462 = vmatprep.subr.bf16.mxu0 0
  %2463 = vmatpush1.bf16.msra.mxu0 %v2454
  %2464 = vmatprep.subr.bf16.mxu0 0
  %2465 = vmatpush1.bf16.msra.mxu0 %v2455
  %2466 = vmatprep.subr.bf16.mxu0 0
  %2467 = vmatpush1.bf16.msra.mxu0 %v2456
  %2468 = vmatprep.subr.bf16.mxu0 0
  %2469 = vmatpush1.bf16.msra.mxu0 %v2457
  %2470 = vmatprep.subr.bf16.mxu0 0
  %2471 = vmatpush1.bf16.msra.mxu0 0
  %2472 = vmatprep.subr.bf16.mxu0 0
  %2473 = vmatpush1.bf16.msra.mxu0 0
  %2474 = vmatprep.subr.bf16.mxu0 0
  %2475 = vmatpush1.bf16.msra.mxu0 0
  %2476 = vmatprep.subr.bf16.mxu0 0
  %2477 = vmatpush1.bf16.msra.mxu0 0
  %2478 = vmatprep.subr.bf16.mxu0 0
  %2479 = vmatpush1.bf16.msra.mxu0 0
  %2480 = vmatprep.subr.bf16.mxu0 0
  %2481 = vmatpush1.bf16.msra.mxu0 0
  %2482 = vmatprep.subr.bf16.mxu0 0
  %2483 = vmatpush1.bf16.msra.mxu0 0
  %2484 = vmatprep.subr.bf16.mxu0 0
  %2485 = vmatpush1.bf16.msra.mxu0 0
  %2486 = vmatprep.subr.bf16.mxu0 0
  %2487 = vmatpush1.bf16.msra.mxu0 0
  %2488 = vmatprep.subr.bf16.mxu0 0
  %2489 = vmatpush1.bf16.msra.mxu0 0
  %2490 = vmatprep.subr.bf16.mxu0 0
  %2491 = vmatpush1.bf16.msra.mxu0 0
  %2492 = vmatprep.subr.bf16.mxu0 0
  %2493 = vmatpush1.bf16.msra.mxu0 0
  %2494 = vmatprep.mubr.bf16.mxu0 0
  %2495 = vmatmul.mubr.bf16.gmra.mrb[0].mxu0 %v1465
  %v2496 = vpop.f32.mrb[0].mxu0
  %v2497 = vadd.f32 0.0, %v2496
  %v2498 = vpop.f32.mrb[0].mxu0
  %v2499 = vpop.f32.mrb[0].mxu0
  %v2500 = vadd.f32 0.0, %v2499
  %v2501 = vpop.f32.mrb[0].mxu0
  %2502 = vmatprep.mubr.bf16.mxu0 0
  %2503 = vmatmul.mubr.bf16.gmra.mrb[0].mxu0 %v1468
  %v2504 = vpop.f32.mrb[0].mxu0
  %v2505 = vadd.f32 0.0, %v2504
  %v2506 = vpop.f32.mrb[0].mxu0
  %v2507 = vpop.f32.mrb[0].mxu0
  %v2508 = vadd.f32 0.0, %v2507
  %v2509 = vpop.f32.mrb[0].mxu0
  %2510 = vdwg.mxu0
  %v2511 = vpack.c.bf16 %v2500, %v2497
  %v2512 = vpack.c.bf16 %v2508, %v2505
  %2513 = vst.msk [vmem:[#allocation2 + $0x80] sm:$0xff] %vm97, %v2511
  %2514 = vst.msk [vmem:[#allocation2 + $0x88] sm:$0xff] %vm97, %v2512
  %v2515 = vld [vmem:[%s5] sm:$0xff]
  %v2516 = vld [vmem:[%s5 + $0x8] sm:$0xf]
  %v2517 = vld [vmem:[%s5 + $0xc] sm:$0xff]
  %v2518 = vld [vmem:[%s5 + $0x14] sm:$0xf]
  %v2519 = vld [vmem:[%s5 + $0x18] sm:$0xff]
  %v2520 = vld [vmem:[%s5 + $0x20] sm:$0xf]
  %v2521 = vld [vmem:[%s5 + $0x24] sm:$0xff]
  %v2522 = vld [vmem:[%s5 + $0x2c] sm:$0xf]
  %v2523 = vld [vmem:[#allocation2] sm:$0xff]
  %v2524 = vld [vmem:[#allocation2 + $0x8] sm:$0xff]
  %v2525 = vld [vmem:[#allocation2 + $0x10] sm:$0xff]
  %v2526 = vld [vmem:[#allocation2 + $0x18] sm:$0xff]
  %v2527 = vld [vmem:[#allocation2 + $0x20] sm:$0xff]
  %v2528 = vld [vmem:[#allocation2 + $0x28] sm:$0xff]
  %v2529 = vld [vmem:[#allocation2 + $0x30] sm:$0xff]
  %v2530 = vld [vmem:[#allocation2 + $0x38] sm:$0xff]
  %v2531 = vld [vmem:[#allocation2 + $0x40] sm:$0xff]
  %v2532 = vld [vmem:[#allocation2 + $0x48] sm:$0xff]
  %v2533 = vld [vmem:[#allocation2 + $0x50] sm:$0xff]
  %v2534 = vld [vmem:[#allocation2 + $0x58] sm:$0xff]
  %v2535 = vld [vmem:[#allocation2 + $0x60] sm:$0xff]
  %v2536 = vld [vmem:[#allocation2 + $0x68] sm:$0xff]
  %v2537 = vld [vmem:[#allocation2 + $0x70] sm:$0xff]
  %v2538 = vld [vmem:[#allocation2 + $0x78] sm:$0xff]
  %v2539 = vld [vmem:[#allocation2 + $0x80] sm:$0xff]
  %v2540 = vld [vmem:[#allocation2 + $0x88] sm:$0xff]
  %v2541 = vld [vmem:[%s6] sm:$0xff]
  %v2542 = vld [vmem:[%s6 + $0x8] sm:$0xff]
  %v2543 = vld [vmem:[%s6 + $0x10] sm:$0xff]
  %v2544 = vld [vmem:[%s6 + $0x18] sm:$0xff]
  %2546 = vset.pattern.permute.xlu0 0
  %2547 = vperm.xlu0 %2546, %v2541
  %v2548 = vpop.permute.xlu0 %2547
  %2551 = vset.pattern.permute.xlu0 0
  %2552 = vperm.xlu0 %2551, %v2542
  %v2553 = vpop.permute.xlu0 %2552
  %2556 = vset.pattern.permute.xlu0 0
  %2557 = vperm.xlu0 %2556, %v2543
  %v2558 = vpop.permute.xlu0 %2557
  %2561 = vset.pattern.permute.xlu0 0
  %2562 = vperm.xlu0 %2561, %v2544
  %v2563 = vpop.permute.xlu0 %2562
  %v2573 = vunpack.c.l.b16 %v2515
  %v2574 = vunpack.c.h.b16 %v2515
  %v2575 = vunpack.c.l.b16 %v2516
  %v2576 = vunpack.c.l.b16 %v2517
  %v2577 = vunpack.c.h.b16 %v2517
  %v2578 = vunpack.c.l.b16 %v2518
  %v2579 = vunpack.c.l.b16 %v2519
  %v2580 = vunpack.c.h.b16 %v2519
  %v2581 = vunpack.c.l.b16 %v2520
  %v2582 = vunpack.c.l.b16 %v2521
  %v2583 = vunpack.c.h.b16 %v2521
  %v2584 = vunpack.c.l.b16 %v2522
  %v2585 = vpack.c.b16 %v2576, %v2573
  %v2586 = vpack.c.b16 %v2577, %v2574
  %v2587 = vpack.c.b16 %v2578, %v2575
  %v2588 = vpack.c.b16 %v2582, %v2579
  %v2589 = vpack.c.b16 %v2583, %v2580
  %v2590 = vpack.c.b16 %v2584, %v2581
  %v2596 = vsel %vm276, %v2587, 0
  %v2599 = vsel %vm276, %v2590, 0
  %2601 = vmatprep.subr.bf16.mxu0 0
  %2602 = vmatpush1.bf16.msra.mxu0 %v2523
  %2603 = vmatprep.subr.bf16.mxu0 0
  %2604 = vmatpush1.bf16.msra.mxu0 %v2524
  %2605 = vmatprep.subr.bf16.mxu0 0
  %2606 = vmatpush1.bf16.msra.mxu0 %v2525
  %2607 = vmatprep.subr.bf16.mxu0 0
  %2608 = vmatpush1.bf16.msra.mxu0 %v2526
  %2609 = vmatprep.subr.bf16.mxu0 0
  %2610 = vmatpush1.bf16.msra.mxu0 %v2527
  %2611 = vmatprep.subr.bf16.mxu0 0
  %2612 = vmatpush1.bf16.msra.mxu0 %v2528
  %2613 = vmatprep.subr.bf16.mxu0 0
  %2614 = vmatpush1.bf16.msra.mxu0 %v2529
  %2615 = vmatprep.subr.bf16.mxu0 0
  %2616 = vmatpush1.bf16.msra.mxu0 %v2530
  %2617 = vmatprep.subr.bf16.mxu0 0
  %2618 = vmatpush1.bf16.msra.mxu0 %v2531
  %2619 = vmatprep.subr.bf16.mxu0 0
  %2620 = vmatpush1.bf16.msra.mxu0 %v2532
  %2621 = vmatprep.subr.bf16.mxu0 0
  %2622 = vmatpush1.bf16.msra.mxu0 %v2533
  %2623 = vmatprep.subr.bf16.mxu0 0
  %2624 = vmatpush1.bf16.msra.mxu0 %v2534
  %2625 = vmatprep.subr.bf16.mxu0 0
  %2626 = vmatpush1.bf16.msra.mxu0 %v2535
  %2627 = vmatprep.subr.bf16.mxu0 0
  %2628 = vmatpush1.bf16.msra.mxu0 %v2536
  %2629 = vmatprep.subr.bf16.mxu0 0
  %2630 = vmatpush1.bf16.msra.mxu0 %v2537
  %2631 = vmatprep.subr.bf16.mxu0 0
  %2632 = vmatpush1.bf16.msra.mxu0 %v2538
  %2633 = vmatprep.mubr.bf16.mxu0 %v2586
  %2634 = vmatmul.mubr.bf16.gmra.mrb[0].mxu0 %v2585
  %v2635 = vpop.f32.mrb[0].mxu0
  %v2636 = vadd.f32 %v2548, %v2635
  %v2637 = vpop.f32.mrb[0].mxu0
  %v2638 = vpop.f32.mrb[0].mxu0
  %v2639 = vadd.f32 %v2553, %v2638
  %v2640 = vpop.f32.mrb[0].mxu0
  %2641 = vmatprep.mubr.bf16.mxu0 %v2589
  %2642 = vmatmul.mubr.bf16.gmra.mrb[0].mxu0 %v2588
  %v2643 = vpop.f32.mrb[0].mxu0
  %v2644 = vadd.f32 %v2558, %v2643
  %v2645 = vpop.f32.mrb[0].mxu0
  %v2646 = vpop.f32.mrb[0].mxu0
  %v2647 = vadd.f32 %v2563, %v2646
  %v2648 = vpop.f32.mrb[0].mxu0
  %2649 = vdwg.mxu0
  %2650 = vmatprep.subr.bf16.mxu0 0
  %2651 = vmatpush1.bf16.msra.mxu0 %v2539
  %2652 = vmatprep.subr.bf16.mxu0 0
  %2653 = vmatpush1.bf16.msra.mxu0 %v2540
  %2654 = vmatprep.subr.bf16.mxu0 0
  %2655 = vmatpush1.bf16.msra.mxu0 0
  %2656 = vmatprep.subr.bf16.mxu0 0
  %2657 = vmatpush1.bf16.msra.mxu0 0
  %2658 = vmatprep.subr.bf16.mxu0 0
  %2659 = vmatpush1.bf16.msra.mxu0 0
  %2660 = vmatprep.subr.bf16.mxu0 0
  %2661 = vmatpush1.bf16.msra.mxu0 0
  %2662 = vmatprep.subr.bf16.mxu0 0
  %2663 = vmatpush1.bf16.msra.mxu0 0
  %2664 = vmatprep.subr.bf16.mxu0 0
  %2665 = vmatpush1.bf16.msra.mxu0 0
  %2666 = vmatprep.subr.bf16.mxu0 0
  %2667 = vmatpush1.bf16.msra.mxu0 0
  %2668 = vmatprep.subr.bf16.mxu0 0
  %2669 = vmatpush1.bf16.msra.mxu0 0
  %2670 = vmatprep.subr.bf16.mxu0 0
  %2671 = vmatpush1.bf16.msra.mxu0 0
  %2672 = vmatprep.subr.bf16.mxu0 0
  %2673 = vmatpush1.bf16.msra.mxu0 0
  %2674 = vmatprep.subr.bf16.mxu0 0
  %2675 = vmatpush1.bf16.msra.mxu0 0
  %2676 = vmatprep.subr.bf16.mxu0 0
  %2677 = vmatpush1.bf16.msra.mxu0 0
  %2678 = vmatprep.subr.bf16.mxu0 0
  %2679 = vmatpush1.bf16.msra.mxu0 0
  %2680 = vmatprep.subr.bf16.mxu0 0
  %2681 = vmatpush1.bf16.msra.mxu0 0
  %2682 = vmatprep.mubr.bf16.mxu0 0
  %2683 = vmatmul.mubr.bf16.gmra.mrb[0].mxu0 %v2596
  %v2684 = vpop.f32.mrb[0].mxu0
  %v2685 = vadd.f32 %v2636, %v2684
  %v2686 = vpop.f32.mrb[0].mxu0
  %v2687 = vpop.f32.mrb[0].mxu0
  %v2688 = vadd.f32 %v2639, %v2687
  %v2689 = vpop.f32.mrb[0].mxu0
  %2690 = vmatprep.mubr.bf16.mxu0 0
  %2691 = vmatmul.mubr.bf16.gmra.mrb[0].mxu0 %v2599
  %v2692 = vpop.f32.mrb[0].mxu0
  %v2693 = vadd.f32 %v2644, %v2692
  %v2694 = vpop.f32.mrb[0].mxu0
  %v2695 = vpop.f32.mrb[0].mxu0
  %v2696 = vadd.f32 %v2647, %v2695
  %v2697 = vpop.f32.mrb[0].mxu0
  %2698 = vdwg.mxu0
  %v2699 = vpack.c.bf16 %v2688, %v2685
  %v2700 = vpack.c.bf16 %v2696, %v2693
  %v2703 = vunpack.c.l.b16 %v2699
  %v2704 = vunpack.c.h.b16 %v2699
  %v2705 = vunpack.c.l.b16 %v2700
  %v2706 = vunpack.c.h.b16 %v2700
  %v2707 = vpack.c.b16 %v2703, %v2703
  %v2708 = vpack.c.b16 %v2704, %v2704
  %v2709 = vpack.c.b16 %v2705, %v2705
  %v2710 = vpack.c.b16 %v2706, %v2706
  %s2715 = scalar_lea.vmem %s9, 32
  %2716 = vst.msk [vmem:[%s2715] sm:$0xf] %vm197, %v2707
  %2717 = vst.msk [vmem:[%s2715 + $0x4] sm:$0xf] %vm197, %v2708
  %2718 = vst.msk [vmem:[%s2715 + $0x8] sm:$0xf] %vm197, %v2709
  %2719 = vst.msk [vmem:[%s2715 + $0xc] sm:$0xf] %vm197, %v2710
  %v2720 = vsel %vm97, %v2685, 0.0
  %2721 = vadd.xlane.f32.xlu0 %v2720
  %v2722 = vpop.xlane.xlu0 %2721
  %v2723 = vsel %vm97, %v2688, 0.0
  %2724 = vadd.xlane.f32.xlu0 %v2723
  %v2725 = vpop.xlane.xlu0 %2724
  %v2726 = vsel %vm97, %v2693, 0.0
  %2727 = vadd.xlane.f32.xlu0 %v2726
  %v2728 = vpop.xlane.xlu0 %2727
  %v2729 = vsel %vm97, %v2696, 0.0
  %2730 = vadd.xlane.f32.xlu0 %v2729
  %v2731 = vpop.xlane.xlu0 %2730
  %v2732 = vadd.f32 %v1377, %v2722
  %v2733 = vadd.f32 %v1378, %v2725
  %v2734 = vadd.f32 %v1379, %v2728
  %v2735 = vadd.f32 %v1380, %v2731
  %v2736 = vmul.f32 %v2685, %v2685
  %v2737 = vmul.f32 %v2688, %v2688
  %v2738 = vmul.f32 %v2693, %v2693
  %v2739 = vmul.f32 %v2696, %v2696
  %v2740 = vsel %vm97, %v2736, 0.0
  %2741 = vadd.xlane.f32.xlu0 %v2740
  %v2742 = vpop.xlane.xlu0 %2741
  %v2743 = vsel %vm97, %v2737, 0.0
  %2744 = vadd.xlane.f32.xlu0 %v2743
  %v2745 = vpop.xlane.xlu0 %2744
  %v2746 = vsel %vm97, %v2738, 0.0
  %2747 = vadd.xlane.f32.xlu0 %v2746
  %v2748 = vpop.xlane.xlu0 %2747
  %v2749 = vsel %vm97, %v2739, 0.0
  %2750 = vadd.xlane.f32.xlu0 %v2749
  %v2751 = vpop.xlane.xlu0 %2750
  %v2752 = vadd.f32 %v1397, %v2742
  %v2753 = vadd.f32 %v1398, %v2745
  %v2754 = vadd.f32 %v1399, %v2748
  %v2755 = vadd.f32 %v1400, %v2751
  %s2756 = scalar_lea.vmem %s0, 32
  %v2757 = vld [vmem:[%s2756] sm:$0xff]
  %v2758 = vld [vmem:[%s2756 + $0x8] sm:$0xff]
  %v2759 = vld [vmem:[%s2756 + $0x10] sm:$0xff]
  %v2760 = vld [vmem:[%s2756 + $0x18] sm:$0xff]
  %v2761 = vmul.f32 %v2757, 0.5
  %v2762 = vmul.f32 %v2758, 0.5
  %v2763 = vmul.f32 %v2759, 0.5
  %v2764 = vmul.f32 %v2760, 0.5
  %v2765 = vadd.f32 %v2761, 0.0
  %v2766 = vadd.f32 %v2762, 0.0
  %v2767 = vadd.f32 %v2763, 0.0
  %v2768 = vadd.f32 %v2764, 0.0
  %vm2769 = vcmp.ge.f32.partialorder %v2765, 1.0
  %vm2770 = vcmp.ge.f32.partialorder %v2766, 1.0
  %vm2771 = vcmp.ge.f32.partialorder %v2767, 1.0
  %vm2772 = vcmp.ge.f32.partialorder %v2768, 1.0
  %v2773 = vsel %vm2769, 1, 0
  %v2774 = vsel %vm2770, 1, 0
  %v2775 = vsel %vm2771, 1, 0
  %v2776 = vsel %vm2772, 1, 0
  %v2777 = vcvt.s32.f32 %v2773
  %v2778 = vcvt.s32.f32 %v2774
  %v2779 = vcvt.s32.f32 %v2775
  %v2780 = vcvt.s32.f32 %v2776
  %v2781 = vsub.f32 1.0, %v2777
  %v2782 = vsub.f32 1.0, %v2778
  %v2783 = vsub.f32 1.0, %v2779
  %v2784 = vsub.f32 1.0, %v2780
  %v2785 = vmul.f32 %v2765, %v2781
  %v2786 = vmul.f32 %v2766, %v2782
  %v2787 = vmul.f32 %v2767, %v2783
  %v2788 = vmul.f32 %v2768, %v2784
  %v2789 = vpack.c.bf16 %v2778, %v2777
  %v2790 = vpack.c.bf16 %v2780, %v2779
  %v2791 = vld [vmem:[%s1] sm:$0xf]
  %v2792 = vld [vmem:[%s1 + $0x4] sm:$0xf]
  %v2793 = vld [vmem:[%s1 + $0x8] sm:$0xf]
  %v2794 = vld [vmem:[%s1 + $0xc] sm:$0xf]
  %v2795 = vld [vmem:[%s1 + $0x10] sm:$0xf]
  %v2796 = vld [vmem:[%s1 + $0x14] sm:$0xf]
  %v2797 = vld [vmem:[%s1 + $0x18] sm:$0xf]
  %v2798 = vld [vmem:[%s1 + $0x1c] sm:$0xf]
  %v2807 = vunpack.c.l.b16 %v2791
  %v2808 = vunpack.c.l.b16 %v2792
  %v2809 = vunpack.c.l.b16 %v2793
  %v2810 = vunpack.c.l.b16 %v2794
  %v2811 = vunpack.c.l.b16 %v2795
  %v2812 = vunpack.c.l.b16 %v2796
  %v2813 = vunpack.c.l.b16 %v2797
  %v2814 = vunpack.c.l.b16 %v2798
  %v2815 = vpack.c.b16 %v2808, %v2807
  %v2816 = vpack.c.b16 %v2810, %v2809
  %v2817 = vpack.c.b16 %v2812, %v2811
  %v2818 = vpack.c.b16 %v2814, %v2813
  %v2824 = vsel %vm97, %v2789, 0
  %v2827 = vsel %vm97, %v2790, 0
  %2829 = vmatprep.subr.bf16.mxu0 0
  %2830 = vmatpush1.bf16.msra.mxu0 %v2815
  %2831 = vmatprep.subr.bf16.mxu0 0
  %2832 = vmatpush1.bf16.msra.mxu0 %v2816
  %2833 = vmatprep.subr.bf16.mxu0 0
  %2834 = vmatpush1.bf16.msra.mxu0 %v2817
  %2835 = vmatprep.subr.bf16.mxu0 0
  %2836 = vmatpush1.bf16.msra.mxu0 %v2818
  %2837 = vmatprep.subr.bf16.mxu0 0
  %2838 = vmatpush1.bf16.msra.mxu0 0
  %2839 = vmatprep.subr.bf16.mxu0 0
  %2840 = vmatpush1.bf16.msra.mxu0 0
  %2841 = vmatprep.subr.bf16.mxu0 0
  %2842 = vmatpush1.bf16.msra.mxu0 0
  %2843 = vmatprep.subr.bf16.mxu0 0
  %2844 = vmatpush1.bf16.msra.mxu0 0
  %2845 = vmatprep.subr.bf16.mxu0 0
  %2846 = vmatpush1.bf16.msra.mxu0 0
  %2847 = vmatprep.subr.bf16.mxu0 0
  %2848 = vmatpush1.bf16.msra.mxu0 0
  %2849 = vmatprep.subr.bf16.mxu0 0
  %2850 = vmatpush1.bf16.msra.mxu0 0
  %2851 = vmatprep.subr.bf16.mxu0 0
  %2852 = vmatpush1.bf16.msra.mxu0 0
  %2853 = vmatprep.subr.bf16.mxu0 0
  %2854 = vmatpush1.bf16.msra.mxu0 0
  %2855 = vmatprep.subr.bf16.mxu0 0
  %2856 = vmatpush1.bf16.msra.mxu0 0
  %2857 = vmatprep.subr.bf16.mxu0 0
  %2858 = vmatpush1.bf16.msra.mxu0 0
  %2859 = vmatprep.subr.bf16.mxu0 0
  %2860 = vmatpush1.bf16.msra.mxu0 0
  %2861 = vmatprep.mubr.bf16.mxu0 0
  %2862 = vmatmul.mubr.bf16.gmra.mrb[0].mxu0 %v2824
  %v2863 = vpop.f32.mrb[0].mxu0
  %v2864 = vadd.f32 0.0, %v2863
  %v2865 = vpop.f32.mrb[0].mxu0
  %v2866 = vpop.f32.mrb[0].mxu0
  %v2867 = vadd.f32 0.0, %v2866
  %v2868 = vpop.f32.mrb[0].mxu0
  %2869 = vmatprep.mubr.bf16.mxu0 0
  %2870 = vmatmul.mubr.bf16.gmra.mrb[0].mxu0 %v2827
  %v2871 = vpop.f32.mrb[0].mxu0
  %v2872 = vadd.f32 0.0, %v2871
  %v2873 = vpop.f32.mrb[0].mxu0
  %v2874 = vpop.f32.mrb[0].mxu0
  %v2875 = vadd.f32 0.0, %v2874
  %v2876 = vpop.f32.mrb[0].mxu0
  %2877 = vdwg.mxu0
  %vm2878 = vcmp.ge.f32.partialorder %v2864, 1.0
  %vm2879 = vcmp.ge.f32.partialorder %v2867, 1.0
  %vm2880 = vcmp.ge.f32.partialorder %v2872, 1.0
  %vm2881 = vcmp.ge.f32.partialorder %v2875, 1.0
  %v2882 = vsel %vm2878, 1.0, 0.0
  %v2883 = vsel %vm2879, 1.0, 0.0
  %v2884 = vsel %vm2880, 1.0, 0.0
  %v2885 = vsel %vm2881, 1.0, 0.0
  %vm2886 = vcmp.le.f32.partialorder %v2864, -1.0
  %vm2887 = vcmp.le.f32.partialorder %v2867, -1.0
  %vm2888 = vcmp.le.f32.partialorder %v2872, -1.0
  %vm2889 = vcmp.le.f32.partialorder %v2875, -1.0
  %v2890 = vsel %vm2886, -1.0, 0.0
  %v2891 = vsel %vm2887, -1.0, 0.0
  %v2892 = vsel %vm2888, -1.0, 0.0
  %v2893 = vsel %vm2889, -1.0, 0.0
  %v2894 = vadd.f32 %v2882, %v2890
  %v2895 = vadd.f32 %v2883, %v2891
  %v2896 = vadd.f32 %v2884, %v2892
  %v2897 = vadd.f32 %v2885, %v2893
  %vm2898 = vcmp.ne.f32.partialorder %v2894, 0.0
  %vm2899 = vcmp.ne.f32.partialorder %v2895, 0.0
  %vm2900 = vcmp.ne.f32.partialorder %v2896, 0.0
  %vm2901 = vcmp.ne.f32.partialorder %v2897, 0.0
  %v2902 = vsel %vm2898, 0.0, %v2864
  %v2903 = vsel %vm2899, 0.0, %v2867
  %v2904 = vsel %vm2900, 0.0, %v2872
  %v2905 = vsel %vm2901, 0.0, %v2875
  %v2906 = vpack.c.bf16 %v2895, %v2894
  %v2907 = vpack.c.bf16 %v2897, %v2896
  %v2910 = vunpack.c.l.b16 %v2906
  %v2911 = vunpack.c.h.b16 %v2906
  %v2912 = vunpack.c.l.b16 %v2907
  %v2913 = vunpack.c.h.b16 %v2907
  %v2914 = vpack.c.b16 %v2910, %v2910
  %v2915 = vpack.c.b16 %v2911, %v2911
  %v2916 = vpack.c.b16 %v2912, %v2912
  %v2917 = vpack.c.b16 %v2913, %v2913
  %s2922 = scalar_lea.vmem %s7, 16
  %2923 = vst.msk [vmem:[%s2922] sm:$0xf] %vm197, %v2914
  %2924 = vst.msk [vmem:[%s2922 + $0x4] sm:$0xf] %vm197, %v2915
  %2925 = vst.msk [vmem:[%s2922 + $0x8] sm:$0xf] %vm197, %v2916
  %2926 = vst.msk [vmem:[%s2922 + $0xc] sm:$0xf] %vm197, %v2917
  %v2927 = vsel %vm97, %v2894, 0.0
  %2928 = vadd.xlane.f32.xlu0 %v2927
  %v2929 = vpop.xlane.xlu0 %2928
  %v2930 = vsel %vm97, %v2895, 0.0
  %2931 = vadd.xlane.f32.xlu0 %v2930
  %v2932 = vpop.xlane.xlu0 %2931
  %v2933 = vsel %vm97, %v2896, 0.0
  %2934 = vadd.xlane.f32.xlu0 %v2933
  %v2935 = vpop.xlane.xlu0 %2934
  %v2936 = vsel %vm97, %v2897, 0.0
  %2937 = vadd.xlane.f32.xlu0 %v2936
  %v2938 = vpop.xlane.xlu0 %2937
  %v2939 = vadd.f32 %v1576, %v2929
  %v2940 = vadd.f32 %v1577, %v2932
  %v2941 = vadd.f32 %v1578, %v2935
  %v2942 = vadd.f32 %v1579, %v2938
  %v2943 = vmul.f32 %v2894, %v2894
  %v2944 = vmul.f32 %v2895, %v2895
  %v2945 = vmul.f32 %v2896, %v2896
  %v2946 = vmul.f32 %v2897, %v2897
  %v2947 = vsel %vm97, %v2943, 0.0
  %2948 = vadd.xlane.f32.xlu0 %v2947
  %v2949 = vpop.xlane.xlu0 %2948
  %v2950 = vsel %vm97, %v2944, 0.0
  %2951 = vadd.xlane.f32.xlu0 %v2950
  %v2952 = vpop.xlane.xlu0 %2951
  %v2953 = vsel %vm97, %v2945, 0.0
  %2954 = vadd.xlane.f32.xlu0 %v2953
  %v2955 = vpop.xlane.xlu0 %2954
  %v2956 = vsel %vm97, %v2946, 0.0
  %2957 = vadd.xlane.f32.xlu0 %v2956
  %v2958 = vpop.xlane.xlu0 %2957
  %v2959 = vadd.f32 %v1596, %v2949
  %v2960 = vadd.f32 %v1597, %v2952
  %v2961 = vadd.f32 %v1598, %v2955
  %v2962 = vadd.f32 %v1599, %v2958
  %v2963 = vld [vmem:[%s3] sm:$0xf]
  %v2964 = vld [vmem:[%s3 + $0x4] sm:$0xf]
  %v2965 = vld [vmem:[%s3 + $0x8] sm:$0xf]
  %v2966 = vld [vmem:[%s3 + $0xc] sm:$0xf]
  %v2967 = vld [vmem:[%s4] sm:$0xff]
  %v2968 = vld [vmem:[%s4 + $0x8] sm:$0xff]
  %v2969 = vld [vmem:[%s4 + $0x10] sm:$0xff]
  %v2970 = vld [vmem:[%s4 + $0x18] sm:$0xff]
  %2972 = vset.pattern.permute.xlu0 0
  %2973 = vperm.xlu0 %2972, %v2967
  %v2974 = vpop.permute.xlu0 %2973
  %2977 = vset.pattern.permute.xlu0 0
  %2978 = vperm.xlu0 %2977, %v2968
  %v2979 = vpop.permute.xlu0 %2978
  %2982 = vset.pattern.permute.xlu0 0
  %2983 = vperm.xlu0 %2982, %v2969
  %v2984 = vpop.permute.xlu0 %2983
  %2987 = vset.pattern.permute.xlu0 0
  %2988 = vperm.xlu0 %2987, %v2970
  %v2989 = vpop.permute.xlu0 %2988
  %v2995 = vunpack.c.l.b16 %v2963
  %v2996 = vunpack.c.l.b16 %v2964
  %v2997 = vunpack.c.l.b16 %v2965
  %v2998 = vunpack.c.l.b16 %v2966
  %v2999 = vpack.c.b16 %v2996, %v2995
  %v3000 = vpack.c.b16 %v2998, %v2997
  %v3002 = vsel %vm276, %v2999, 0
  %v3005 = vsel %vm276, %v3000, 0
  %3007 = vmatprep.subr.bf16.mxu0 0
  %3008 = vmatpush1.bf16.msra.mxu0 %v2789
  %3009 = vmatprep.subr.bf16.mxu0 0
  %3010 = vmatpush1.bf16.msra.mxu0 %v2790
  %3011 = vmatprep.subr.bf16.mxu0 0
  %3012 = vmatpush1.bf16.msra.mxu0 0
  %3013 = vmatprep.subr.bf16.mxu0 0
  %3014 = vmatpush1.bf16.msra.mxu0 0
  %3015 = vmatprep.subr.bf16.mxu0 0
  %3016 = vmatpush1.bf16.msra.mxu0 0
  %3017 = vmatprep.subr.bf16.mxu0 0
  %3018 = vmatpush1.bf16.msra.mxu0 0
  %3019 = vmatprep.subr.bf16.mxu0 0
  %3020 = vmatpush1.bf16.msra.mxu0 0
  %3021 = vmatprep.subr.bf16.mxu0 0
  %3022 = vmatpush1.bf16.msra.mxu0 0
  %3023 = vmatprep.subr.bf16.mxu0 0
  %3024 = vmatpush1.bf16.msra.mxu0 0
  %3025 = vmatprep.subr.bf16.mxu0 0
  %3026 = vmatpush1.bf16.msra.mxu0 0
  %3027 = vmatprep.subr.bf16.mxu0 0
  %3028 = vmatpush1.bf16.msra.mxu0 0
  %3029 = vmatprep.subr.bf16.mxu0 0
  %3030 = vmatpush1.bf16.msra.mxu0 0
  %3031 = vmatprep.subr.bf16.mxu0 0
  %3032 = vmatpush1.bf16.msra.mxu0 0
  %3033 = vmatprep.subr.bf16.mxu0 0
  %3034 = vmatpush1.bf16.msra.mxu0 0
  %3035 = vmatprep.subr.bf16.mxu0 0
  %3036 = vmatpush1.bf16.msra.mxu0 0
  %3037 = vmatprep.subr.bf16.mxu0 0
  %3038 = vmatpush1.bf16.msra.mxu0 0
  %3039 = vmatprep.mubr.bf16.mxu0 0
  %3040 = vmatmul.mubr.bf16.gmra.mrb[0].mxu0 %v3002
  %v3041 = vpop.f32.mrb[0].mxu0
  %v3042 = vadd.f32 %v2974, %v3041
  %v3043 = vpop.f32.mrb[0].mxu0
  %v3044 = vpop.f32.mrb[0].mxu0
  %v3045 = vadd.f32 %v2979, %v3044
  %v3046 = vpop.f32.mrb[0].mxu0
  %3047 = vmatprep.mubr.bf16.mxu0 0
  %3048 = vmatmul.mubr.bf16.gmra.mrb[0].mxu0 %v3005
  %v3049 = vpop.f32.mrb[0].mxu0
  %v3050 = vadd.f32 %v2984, %v3049
  %v3051 = vpop.f32.mrb[0].mxu0
  %v3052 = vpop.f32.mrb[0].mxu0
  %v3053 = vadd.f32 %v2989, %v3052
  %v3054 = vpop.f32.mrb[0].mxu0
  %3055 = vdwg.mxu0
  %v3056 = vpack.c.bf16 %v3045, %v3042
  %v3057 = vpack.c.bf16 %v3053, %v3050
  %v3060 = vunpack.c.l.b16 %v3056
  %v3061 = vunpack.c.h.b16 %v3056
  %v3062 = vunpack.c.l.b16 %v3057
  %v3063 = vunpack.c.h.b16 %v3057
  %v3064 = vpack.c.b16 %v3060, %v3060
  %v3065 = vpack.c.b16 %v3061, %v3061
  %v3066 = vpack.c.b16 %v3062, %v3062
  %v3067 = vpack.c.b16 %v3063, %v3063
  %s3072 = scalar_lea.vmem %s8, 16
  %3073 = vst.msk [vmem:[%s3072] sm:$0xf] %vm197, %v3064
  %3074 = vst.msk [vmem:[%s3072 + $0x4] sm:$0xf] %vm197, %v3065
  %3075 = vst.msk [vmem:[%s3072 + $0x8] sm:$0xf] %vm197, %v3066
  %3076 = vst.msk [vmem:[%s3072 + $0xc] sm:$0xf] %vm197, %v3067
  %v3077 = vsel %vm97, %v3042, 0.0
  %3078 = vadd.xlane.f32.xlu0 %v3077
  %v3079 = vpop.xlane.xlu0 %3078
  %v3080 = vsel %vm97, %v3045, 0.0
  %3081 = vadd.xlane.f32.xlu0 %v3080
  %v3082 = vpop.xlane.xlu0 %3081
  %v3083 = vsel %vm97, %v3050, 0.0
  %3084 = vadd.xlane.f32.xlu0 %v3083
  %v3085 = vpop.xlane.xlu0 %3084
  %v3086 = vsel %vm97, %v3053, 0.0
  %3087 = vadd.xlane.f32.xlu0 %v3086
  %v3088 = vpop.xlane.xlu0 %3087
  %v3089 = vadd.f32 %v1726, %v3079
  %v3090 = vadd.f32 %v1727, %v3082
  %v3091 = vadd.f32 %v1728, %v3085
  %v3092 = vadd.f32 %v1729, %v3088
  %v3093 = vmul.f32 %v3042, %v3042
  %v3094 = vmul.f32 %v3045, %v3045
  %v3095 = vmul.f32 %v3050, %v3050
  %v3096 = vmul.f32 %v3053, %v3053
  %v3097 = vsel %vm97, %v3093, 0.0
  %3098 = vadd.xlane.f32.xlu0 %v3097
  %v3099 = vpop.xlane.xlu0 %3098
  %v3100 = vsel %vm97, %v3094, 0.0
  %3101 = vadd.xlane.f32.xlu0 %v3100
  %v3102 = vpop.xlane.xlu0 %3101
  %v3103 = vsel %vm97, %v3095, 0.0
  %3104 = vadd.xlane.f32.xlu0 %v3103
  %v3105 = vpop.xlane.xlu0 %3104
  %v3106 = vsel %vm97, %v3096, 0.0
  %3107 = vadd.xlane.f32.xlu0 %v3106
  %v3108 = vpop.xlane.xlu0 %3107
  %v3109 = vadd.f32 %v1746, %v3099
  %v3110 = vadd.f32 %v1747, %v3102
  %v3111 = vadd.f32 %v1748, %v3105
  %v3112 = vadd.f32 %v1749, %v3108
  %v3113 = vld [vmem:[%s2] sm:$0xf]
  %v3114 = vld [vmem:[%s2 + $0x4] sm:$0xf]
  %v3115 = vld [vmem:[%s2 + $0x8] sm:$0xf]
  %v3116 = vld [vmem:[%s2 + $0xc] sm:$0xf]
  %v3117 = vld [vmem:[%s2 + $0x10] sm:$0xf]
  %v3118 = vld [vmem:[%s2 + $0x14] sm:$0xf]
  %v3119 = vld [vmem:[%s2 + $0x18] sm:$0xf]
  %v3120 = vld [vmem:[%s2 + $0x1c] sm:$0xf]
  %v3129 = vunpack.c.l.b16 %v3113
  %v3130 = vunpack.c.l.b16 %v3114
  %v3131 = vunpack.c.l.b16 %v3115
  %v3132 = vunpack.c.l.b16 %v3116
  %v3133 = vunpack.c.l.b16 %v3117
  %v3134 = vunpack.c.l.b16 %v3118
  %v3135 = vunpack.c.l.b16 %v3119
  %v3136 = vunpack.c.l.b16 %v3120
  %v3137 = vpack.c.b16 %v3130, %v3129
  %v3138 = vpack.c.b16 %v3132, %v3131
  %v3139 = vpack.c.b16 %v3134, %v3133
  %v3140 = vpack.c.b16 %v3136, %v3135
  %3145 = vmatprep.subr.bf16.mxu0 0
  %3146 = vmatpush1.bf16.msra.mxu0 %v3137
  %3147 = vmatprep.subr.bf16.mxu0 0
  %3148 = vmatpush1.bf16.msra.mxu0 %v3138
  %3149 = vmatprep.subr.bf16.mxu0 0
  %3150 = vmatpush1.bf16.msra.mxu0 %v3139
  %3151 = vmatprep.subr.bf16.mxu0 0
  %3152 = vmatpush1.bf16.msra.mxu0 %v3140
  %3153 = vmatprep.subr.bf16.mxu0 0
  %3154 = vmatpush1.bf16.msra.mxu0 0
  %3155 = vmatprep.subr.bf16.mxu0 0
  %3156 = vmatpush1.bf16.msra.mxu0 0
  %3157 = vmatprep.subr.bf16.mxu0 0
  %3158 = vmatpush1.bf16.msra.mxu0 0
  %3159 = vmatprep.subr.bf16.mxu0 0
  %3160 = vmatpush1.bf16.msra.mxu0 0
  %3161 = vmatprep.subr.bf16.mxu0 0
  %3162 = vmatpush1.bf16.msra.mxu0 0
  %3163 = vmatprep.subr.bf16.mxu0 0
  %3164 = vmatpush1.bf16.msra.mxu0 0
  %3165 = vmatprep.subr.bf16.mxu0 0
  %3166 = vmatpush1.bf16.msra.mxu0 0
  %3167 = vmatprep.subr.bf16.mxu0 0
  %3168 = vmatpush1.bf16.msra.mxu0 0
  %3169 = vmatprep.subr.bf16.mxu0 0
  %3170 = vmatpush1.bf16.msra.mxu0 0
  %3171 = vmatprep.subr.bf16.mxu0 0
  %3172 = vmatpush1.bf16.msra.mxu0 0
  %3173 = vmatprep.subr.bf16.mxu0 0
  %3174 = vmatpush1.bf16.msra.mxu0 0
  %3175 = vmatprep.subr.bf16.mxu0 0
  %3176 = vmatpush1.bf16.msra.mxu0 0
  %3177 = vmatprep.mubr.bf16.mxu0 0
  %3178 = vmatmul.mubr.bf16.gmra.mrb[0].mxu0 %v2824
  %v3179 = vpop.f32.mrb[0].mxu0
  %v3180 = vadd.f32 0.0, %v3179
  %v3181 = vpop.f32.mrb[0].mxu0
  %v3182 = vpop.f32.mrb[0].mxu0
  %v3183 = vadd.f32 0.0, %v3182
  %v3184 = vpop.f32.mrb[0].mxu0
  %3185 = vmatprep.mubr.bf16.mxu0 0
  %3186 = vmatmul.mubr.bf16.gmra.mrb[0].mxu0 %v2827
  %v3187 = vpop.f32.mrb[0].mxu0
  %v3188 = vadd.f32 0.0, %v3187
  %v3189 = vpop.f32.mrb[0].mxu0
  %v3190 = vpop.f32.mrb[0].mxu0
  %v3191 = vadd.f32 0.0, %v3190
  %v3192 = vpop.f32.mrb[0].mxu0
  %3193 = vdwg.mxu0
  %v3194 = vpack.c.bf16 %v3183, %v3180
  %v3195 = vpack.c.bf16 %v3191, %v3188
  %3196 = vst.msk [vmem:[#allocation2] sm:$0xff] %vm97, %v3194
  %3197 = vst.msk [vmem:[#allocation2 + $0x8] sm:$0xff] %vm97, %v3195
  %v3198 = vld [vmem:[%s473] sm:$0xf]
  %v3199 = vld [vmem:[%s473 + $0x4] sm:$0xf]
  %v3200 = vld [vmem:[%s473 + $0x8] sm:$0xf]
  %v3201 = vld [vmem:[%s473 + $0xc] sm:$0xf]
  %v3202 = vld [vmem:[%s473 + $0x10] sm:$0xf]
  %v3203 = vld [vmem:[%s473 + $0x14] sm:$0xf]
  %v3204 = vld [vmem:[%s473 + $0x18] sm:$0xf]
  %v3205 = vld [vmem:[%s473 + $0x1c] sm:$0xf]
  %v3214 = vunpack.c.l.b16 %v3198
  %v3215 = vunpack.c.l.b16 %v3199
  %v3216 = vunpack.c.l.b16 %v3200
  %v3217 = vunpack.c.l.b16 %v3201
  %v3218 = vunpack.c.l.b16 %v3202
  %v3219 = vunpack.c.l.b16 %v3203
  %v3220 = vunpack.c.l.b16 %v3204
  %v3221 = vunpack.c.l.b16 %v3205
  %v3222 = vpack.c.b16 %v3215, %v3214
  %v3223 = vpack.c.b16 %v3217, %v3216
  %v3224 = vpack.c.b16 %v3219, %v3218
  %v3225 = vpack.c.b16 %v3221, %v3220
  %3230 = vmatprep.subr.bf16.mxu0 0
  %3231 = vmatpush1.bf16.msra.mxu0 %v3222
  %3232 = vmatprep.subr.bf16.mxu0 0
  %3233 = vmatpush1.bf16.msra.mxu0 %v3223
  %3234 = vmatprep.subr.bf16.mxu0 0
  %3235 = vmatpush1.bf16.msra.mxu0 %v3224
  %3236 = vmatprep.subr.bf16.mxu0 0
  %3237 = vmatpush1.bf16.msra.mxu0 %v3225
  %3238 = vmatprep.subr.bf16.mxu0 0
  %3239 = vmatpush1.bf16.msra.mxu0 0
  %3240 = vmatprep.subr.bf16.mxu0 0
  %3241 = vmatpush1.bf16.msra.mxu0 0
  %3242 = vmatprep.subr.bf16.mxu0 0
  %3243 = vmatpush1.bf16.msra.mxu0 0
  %3244 = vmatprep.subr.bf16.mxu0 0
  %3245 = vmatpush1.bf16.msra.mxu0 0
  %3246 = vmatprep.subr.bf16.mxu0 0
  %3247 = vmatpush1.bf16.msra.mxu0 0
  %3248 = vmatprep.subr.bf16.mxu0 0
  %3249 = vmatpush1.bf16.msra.mxu0 0
  %3250 = vmatprep.subr.bf16.mxu0 0
  %3251 = vmatpush1.bf16.msra.mxu0 0
  %3252 = vmatprep.subr.bf16.mxu0 0
  %3253 = vmatpush1.bf16.msra.mxu0 0
  %3254 = vmatprep.subr.bf16.mxu0 0
  %3255 = vmatpush1.bf16.msra.mxu0 0
  %3256 = vmatprep.subr.bf16.mxu0 0
  %3257 = vmatpush1.bf16.msra.mxu0 0
  %3258 = vmatprep.subr.bf16.mxu0 0
  %3259 = vmatpush1.bf16.msra.mxu0 0
  %3260 = vmatprep.subr.bf16.mxu0 0
  %3261 = vmatpush1.bf16.msra.mxu0 0
  %3262 = vmatprep.mubr.bf16.mxu0 0
  %3263 = vmatmul.mubr.bf16.gmra.mrb[0].mxu0 %v2824
  %v3264 = vpop.f32.mrb[0].mxu0
  %v3265 = vadd.f32 0.0, %v3264
  %v3266 = vpop.f32.mrb[0].mxu0
  %v3267 = vpop.f32.mrb[0].mxu0
  %v3268 = vadd.f32 0.0, %v3267
  %v3269 = vpop.f32.mrb[0].mxu0
  %3270 = vmatprep.mubr.bf16.mxu0 0
  %3271 = vmatmul.mubr.bf16.gmra.mrb[0].mxu0 %v2827
  %v3272 = vpop.f32.mrb[0].mxu0
  %v3273 = vadd.f32 0.0, %v3272
  %v3274 = vpop.f32.mrb[0].mxu0
  %v3275 = vpop.f32.mrb[0].mxu0
  %v3276 = vadd.f32 0.0, %v3275
  %v3277 = vpop.f32.mrb[0].mxu0
  %3278 = vdwg.mxu0
  %v3279 = vpack.c.bf16 %v3268, %v3265
  %v3280 = vpack.c.bf16 %v3276, %v3273
  %3281 = vst.msk [vmem:[#allocation2 + $0x10] sm:$0xff] %vm97, %v3279
  %3282 = vst.msk [vmem:[#allocation2 + $0x18] sm:$0xff] %vm97, %v3280
  %v3283 = vld [vmem:[%s559] sm:$0xf]
  %v3284 = vld [vmem:[%s559 + $0x4] sm:$0xf]
  %v3285 = vld [vmem:[%s559 + $0x8] sm:$0xf]
  %v3286 = vld [vmem:[%s559 + $0xc] sm:$0xf]
  %v3287 = vld [vmem:[%s559 + $0x10] sm:$0xf]
  %v3288 = vld [vmem:[%s559 + $0x14] sm:$0xf]
  %v3289 = vld [vmem:[%s559 + $0x18] sm:$0xf]
  %v3290 = vld [vmem:[%s559 + $0x1c] sm:$0xf]
  %v3299 = vunpack.c.l.b16 %v3283
  %v3300 = vunpack.c.l.b16 %v3284
  %v3301 = vunpack.c.l.b16 %v3285
  %v3302 = vunpack.c.l.b16 %v3286
  %v3303 = vunpack.c.l.b16 %v3287
  %v3304 = vunpack.c.l.b16 %v3288
  %v3305 = vunpack.c.l.b16 %v3289
  %v3306 = vunpack.c.l.b16 %v3290
  %v3307 = vpack.c.b16 %v3300, %v3299
  %v3308 = vpack.c.b16 %v3302, %v3301
  %v3309 = vpack.c.b16 %v3304, %v3303
  %v3310 = vpack.c.b16 %v3306, %v3305
  %3315 = vmatprep.subr.bf16.mxu0 0
  %3316 = vmatpush1.bf16.msra.mxu0 %v3307
  %3317 = vmatprep.subr.bf16.mxu0 0
  %3318 = vmatpush1.bf16.msra.mxu0 %v3308
  %3319 = vmatprep.subr.bf16.mxu0 0
  %3320 = vmatpush1.bf16.msra.mxu0 %v3309
  %3321 = vmatprep.subr.bf16.mxu0 0
  %3322 = vmatpush1.bf16.msra.mxu0 %v3310
  %3323 = vmatprep.subr.bf16.mxu0 0
  %3324 = vmatpush1.bf16.msra.mxu0 0
  %3325 = vmatprep.subr.bf16.mxu0 0
  %3326 = vmatpush1.bf16.msra.mxu0 0
  %3327 = vmatprep.subr.bf16.mxu0 0
  %3328 = vmatpush1.bf16.msra.mxu0 0
  %3329 = vmatprep.subr.bf16.mxu0 0
  %3330 = vmatpush1.bf16.msra.mxu0 0
  %3331 = vmatprep.subr.bf16.mxu0 0
  %3332 = vmatpush1.bf16.msra.mxu0 0
  %3333 = vmatprep.subr.bf16.mxu0 0
  %3334 = vmatpush1.bf16.msra.mxu0 0
  %3335 = vmatprep.subr.bf16.mxu0 0
  %3336 = vmatpush1.bf16.msra.mxu0 0
  %3337 = vmatprep.subr.bf16.mxu0 0
  %3338 = vmatpush1.bf16.msra.mxu0 0
  %3339 = vmatprep.subr.bf16.mxu0 0
  %3340 = vmatpush1.bf16.msra.mxu0 0
  %3341 = vmatprep.subr.bf16.mxu0 0
  %3342 = vmatpush1.bf16.msra.mxu0 0
  %3343 = vmatprep.subr.bf16.mxu0 0
  %3344 = vmatpush1.bf16.msra.mxu0 0
  %3345 = vmatprep.subr.bf16.mxu0 0
  %3346 = vmatpush1.bf16.msra.mxu0 0
  %3347 = vmatprep.mubr.bf16.mxu0 0
  %3348 = vmatmul.mubr.bf16.gmra.mrb[0].mxu0 %v2824
  %v3349 = vpop.f32.mrb[0].mxu0
  %v3350 = vadd.f32 0.0, %v3349
  %v3351 = vpop.f32.mrb[0].mxu0
  %v3352 = vpop.f32.mrb[0].mxu0
  %v3353 = vadd.f32 0.0, %v3352
  %v3354 = vpop.f32.mrb[0].mxu0
  %3355 = vmatprep.mubr.bf16.mxu0 0
  %3356 = vmatmul.mubr.bf16.gmra.mrb[0].mxu0 %v2827
  %v3357 = vpop.f32.mrb[0].mxu0
  %v3358 = vadd.f32 0.0, %v3357
  %v3359 = vpop.f32.mrb[0].mxu0
  %v3360 = vpop.f32.mrb[0].mxu0
  %v3361 = vadd.f32 0.0, %v3360
  %v3362 = vpop.f32.mrb[0].mxu0
  %3363 = vdwg.mxu0
  %v3364 = vpack.c.bf16 %v3353, %v3350
  %v3365 = vpack.c.bf16 %v3361, %v3358
  %3366 = vst.msk [vmem:[#allocation2 + $0x20] sm:$0xff] %vm97, %v3364
  %3367 = vst.msk [vmem:[#allocation2 + $0x28] sm:$0xff] %vm97, %v3365
  %v3368 = vld [vmem:[%s645] sm:$0xf]
  %v3369 = vld [vmem:[%s645 + $0x4] sm:$0xf]
  %v3370 = vld [vmem:[%s645 + $0x8] sm:$0xf]
  %v3371 = vld [vmem:[%s645 + $0xc] sm:$0xf]
  %v3372 = vld [vmem:[%s645 + $0x10] sm:$0xf]
  %v3373 = vld [vmem:[%s645 + $0x14] sm:$0xf]
  %v3374 = vld [vmem:[%s645 + $0x18] sm:$0xf]
  %v3375 = vld [vmem:[%s645 + $0x1c] sm:$0xf]
  %v3384 = vunpack.c.l.b16 %v3368
  %v3385 = vunpack.c.l.b16 %v3369
  %v3386 = vunpack.c.l.b16 %v3370
  %v3387 = vunpack.c.l.b16 %v3371
  %v3388 = vunpack.c.l.b16 %v3372
  %v3389 = vunpack.c.l.b16 %v3373
  %v3390 = vunpack.c.l.b16 %v3374
  %v3391 = vunpack.c.l.b16 %v3375
  %v3392 = vpack.c.b16 %v3385, %v3384
  %v3393 = vpack.c.b16 %v3387, %v3386
  %v3394 = vpack.c.b16 %v3389, %v3388
  %v3395 = vpack.c.b16 %v3391, %v3390
  %3400 = vmatprep.subr.bf16.mxu0 0
  %3401 = vmatpush1.bf16.msra.mxu0 %v3392
  %3402 = vmatprep.subr.bf16.mxu0 0
  %3403 = vmatpush1.bf16.msra.mxu0 %v3393
  %3404 = vmatprep.subr.bf16.mxu0 0
  %3405 = vmatpush1.bf16.msra.mxu0 %v3394
  %3406 = vmatprep.subr.bf16.mxu0 0
  %3407 = vmatpush1.bf16.msra.mxu0 %v3395
  %3408 = vmatprep.subr.bf16.mxu0 0
  %3409 = vmatpush1.bf16.msra.mxu0 0
  %3410 = vmatprep.subr.bf16.mxu0 0
  %3411 = vmatpush1.bf16.msra.mxu0 0
  %3412 = vmatprep.subr.bf16.mxu0 0
  %3413 = vmatpush1.bf16.msra.mxu0 0
  %3414 = vmatprep.subr.bf16.mxu0 0
  %3415 = vmatpush1.bf16.msra.mxu0 0
  %3416 = vmatprep.subr.bf16.mxu0 0
  %3417 = vmatpush1.bf16.msra.mxu0 0
  %3418 = vmatprep.subr.bf16.mxu0 0
  %3419 = vmatpush1.bf16.msra.mxu0 0
  %3420 = vmatprep.subr.bf16.mxu0 0
  %3421 = vmatpush1.bf16.msra.mxu0 0
  %3422 = vmatprep.subr.bf16.mxu0 0
  %3423 = vmatpush1.bf16.msra.mxu0 0
  %3424 = vmatprep.subr.bf16.mxu0 0
  %3425 = vmatpush1.bf16.msra.mxu0 0
  %3426 = vmatprep.subr.bf16.mxu0 0
  %3427 = vmatpush1.bf16.msra.mxu0 0
  %3428 = vmatprep.subr.bf16.mxu0 0
  %3429 = vmatpush1.bf16.msra.mxu0 0
  %3430 = vmatprep.subr.bf16.mxu0 0
  %3431 = vmatpush1.bf16.msra.mxu0 0
  %3432 = vmatprep.mubr.bf16.mxu0 0
  %3433 = vmatmul.mubr.bf16.gmra.mrb[0].mxu0 %v2824
  %v3434 = vpop.f32.mrb[0].mxu0
  %v3435 = vadd.f32 0.0, %v3434
  %v3436 = vpop.f32.mrb[0].mxu0
  %v3437 = vpop.f32.mrb[0].mxu0
  %v3438 = vadd.f32 0.0, %v3437
  %v3439 = vpop.f32.mrb[0].mxu0
  %3440 = vmatprep.mubr.bf16.mxu0 0
  %3441 = vmatmul.mubr.bf16.gmra.mrb[0].mxu0 %v2827
  %v3442 = vpop.f32.mrb[0].mxu0
  %v3443 = vadd.f32 0.0, %v3442
  %v3444 = vpop.f32.mrb[0].mxu0
  %v3445 = vpop.f32.mrb[0].mxu0
  %v3446 = vadd.f32 0.0, %v3445
  %v3447 = vpop.f32.mrb[0].mxu0
  %3448 = vdwg.mxu0
  %v3449 = vpack.c.bf16 %v3438, %v3435
  %v3450 = vpack.c.bf16 %v3446, %v3443
  %3451 = vst.msk [vmem:[#allocation2 + $0x30] sm:$0xff] %vm97, %v3449
  %3452 = vst.msk [vmem:[#allocation2 + $0x38] sm:$0xff] %vm97, %v3450
  %v3453 = vld [vmem:[%s731] sm:$0xf]
  %v3454 = vld [vmem:[%s731 + $0x4] sm:$0xf]
  %v3455 = vld [vmem:[%s731 + $0x8] sm:$0xf]
  %v3456 = vld [vmem:[%s731 + $0xc] sm:$0xf]
  %v3457 = vld [vmem:[%s731 + $0x10] sm:$0xf]
  %v3458 = vld [vmem:[%s731 + $0x14] sm:$0xf]
  %v3459 = vld [vmem:[%s731 + $0x18] sm:$0xf]
  %v3460 = vld [vmem:[%s731 + $0x1c] sm:$0xf]
  %v3469 = vunpack.c.l.b16 %v3453
  %v3470 = vunpack.c.l.b16 %v3454
  %v3471 = vunpack.c.l.b16 %v3455
  %v3472 = vunpack.c.l.b16 %v3456
  %v3473 = vunpack.c.l.b16 %v3457
  %v3474 = vunpack.c.l.b16 %v3458
  %v3475 = vunpack.c.l.b16 %v3459
  %v3476 = vunpack.c.l.b16 %v3460
  %v3477 = vpack.c.b16 %v3470, %v3469
  %v3478 = vpack.c.b16 %v3472, %v3471
  %v3479 = vpack.c.b16 %v3474, %v3473
  %v3480 = vpack.c.b16 %v3476, %v3475
  %3485 = vmatprep.subr.bf16.mxu0 0
  %3486 = vmatpush1.bf16.msra.mxu0 %v3477
  %3487 = vmatprep.subr.bf16.mxu0 0
  %3488 = vmatpush1.bf16.msra.mxu0 %v3478
  %3489 = vmatprep.subr.bf16.mxu0 0
  %3490 = vmatpush1.bf16.msra.mxu0 %v3479
  %3491 = vmatprep.subr.bf16.mxu0 0
  %3492 = vmatpush1.bf16.msra.mxu0 %v3480
  %3493 = vmatprep.subr.bf16.mxu0 0
  %3494 = vmatpush1.bf16.msra.mxu0 0
  %3495 = vmatprep.subr.bf16.mxu0 0
  %3496 = vmatpush1.bf16.msra.mxu0 0
  %3497 = vmatprep.subr.bf16.mxu0 0
  %3498 = vmatpush1.bf16.msra.mxu0 0
  %3499 = vmatprep.subr.bf16.mxu0 0
  %3500 = vmatpush1.bf16.msra.mxu0 0
  %3501 = vmatprep.subr.bf16.mxu0 0
  %3502 = vmatpush1.bf16.msra.mxu0 0
  %3503 = vmatprep.subr.bf16.mxu0 0
  %3504 = vmatpush1.bf16.msra.mxu0 0
  %3505 = vmatprep.subr.bf16.mxu0 0
  %3506 = vmatpush1.bf16.msra.mxu0 0
  %3507 = vmatprep.subr.bf16.mxu0 0
  %3508 = vmatpush1.bf16.msra.mxu0 0
  %3509 = vmatprep.subr.bf16.mxu0 0
  %3510 = vmatpush1.bf16.msra.mxu0 0
  %3511 = vmatprep.subr.bf16.mxu0 0
  %3512 = vmatpush1.bf16.msra.mxu0 0
  %3513 = vmatprep.subr.bf16.mxu0 0
  %3514 = vmatpush1.bf16.msra.mxu0 0
  %3515 = vmatprep.subr.bf16.mxu0 0
  %3516 = vmatpush1.bf16.msra.mxu0 0
  %3517 = vmatprep.mubr.bf16.mxu0 0
  %3518 = vmatmul.mubr.bf16.gmra.mrb[0].mxu0 %v2824
  %v3519 = vpop.f32.mrb[0].mxu0
  %v3520 = vadd.f32 0.0, %v3519
  %v3521 = vpop.f32.mrb[0].mxu0
  %v3522 = vpop.f32.mrb[0].mxu0
  %v3523 = vadd.f32 0.0, %v3522
  %v3524 = vpop.f32.mrb[0].mxu0
  %3525 = vmatprep.mubr.bf16.mxu0 0
  %3526 = vmatmul.mubr.bf16.gmra.mrb[0].mxu0 %v2827
  %v3527 = vpop.f32.mrb[0].mxu0
  %v3528 = vadd.f32 0.0, %v3527
  %v3529 = vpop.f32.mrb[0].mxu0
  %v3530 = vpop.f32.mrb[0].mxu0
  %v3531 = vadd.f32 0.0, %v3530
  %v3532 = vpop.f32.mrb[0].mxu0
  %3533 = vdwg.mxu0
  %v3534 = vpack.c.bf16 %v3523, %v3520
  %v3535 = vpack.c.bf16 %v3531, %v3528
  %3536 = vst.msk [vmem:[#allocation2 + $0x40] sm:$0xff] %vm97, %v3534
  %3537 = vst.msk [vmem:[#allocation2 + $0x48] sm:$0xff] %vm97, %v3535
  %v3538 = vld [vmem:[%s817] sm:$0xf]
  %v3539 = vld [vmem:[%s817 + $0x4] sm:$0xf]
  %v3540 = vld [vmem:[%s817 + $0x8] sm:$0xf]
  %v3541 = vld [vmem:[%s817 + $0xc] sm:$0xf]
  %v3542 = vld [vmem:[%s817 + $0x10] sm:$0xf]
  %v3543 = vld [vmem:[%s817 + $0x14] sm:$0xf]
  %v3544 = vld [vmem:[%s817 + $0x18] sm:$0xf]
  %v3545 = vld [vmem:[%s817 + $0x1c] sm:$0xf]
  %v3554 = vunpack.c.l.b16 %v3538
  %v3555 = vunpack.c.l.b16 %v3539
  %v3556 = vunpack.c.l.b16 %v3540
  %v3557 = vunpack.c.l.b16 %v3541
  %v3558 = vunpack.c.l.b16 %v3542
  %v3559 = vunpack.c.l.b16 %v3543
  %v3560 = vunpack.c.l.b16 %v3544
  %v3561 = vunpack.c.l.b16 %v3545
  %v3562 = vpack.c.b16 %v3555, %v3554
  %v3563 = vpack.c.b16 %v3557, %v3556
  %v3564 = vpack.c.b16 %v3559, %v3558
  %v3565 = vpack.c.b16 %v3561, %v3560
  %3570 = vmatprep.subr.bf16.mxu0 0
  %3571 = vmatpush1.bf16.msra.mxu0 %v3562
  %3572 = vmatprep.subr.bf16.mxu0 0
  %3573 = vmatpush1.bf16.msra.mxu0 %v3563
  %3574 = vmatprep.subr.bf16.mxu0 0
  %3575 = vmatpush1.bf16.msra.mxu0 %v3564
  %3576 = vmatprep.subr.bf16.mxu0 0
  %3577 = vmatpush1.bf16.msra.mxu0 %v3565
  %3578 = vmatprep.subr.bf16.mxu0 0
  %3579 = vmatpush1.bf16.msra.mxu0 0
  %3580 = vmatprep.subr.bf16.mxu0 0
  %3581 = vmatpush1.bf16.msra.mxu0 0
  %3582 = vmatprep.subr.bf16.mxu0 0
  %3583 = vmatpush1.bf16.msra.mxu0 0
  %3584 = vmatprep.subr.bf16.mxu0 0
  %3585 = vmatpush1.bf16.msra.mxu0 0
  %3586 = vmatprep.subr.bf16.mxu0 0
  %3587 = vmatpush1.bf16.msra.mxu0 0
  %3588 = vmatprep.subr.bf16.mxu0 0
  %3589 = vmatpush1.bf16.msra.mxu0 0
  %3590 = vmatprep.subr.bf16.mxu0 0
  %3591 = vmatpush1.bf16.msra.mxu0 0
  %3592 = vmatprep.subr.bf16.mxu0 0
  %3593 = vmatpush1.bf16.msra.mxu0 0
  %3594 = vmatprep.subr.bf16.mxu0 0
  %3595 = vmatpush1.bf16.msra.mxu0 0
  %3596 = vmatprep.subr.bf16.mxu0 0
  %3597 = vmatpush1.bf16.msra.mxu0 0
  %3598 = vmatprep.subr.bf16.mxu0 0
  %3599 = vmatpush1.bf16.msra.mxu0 0
  %3600 = vmatprep.subr.bf16.mxu0 0
  %3601 = vmatpush1.bf16.msra.mxu0 0
  %3602 = vmatprep.mubr.bf16.mxu0 0
  %3603 = vmatmul.mubr.bf16.gmra.mrb[0].mxu0 %v2824
  %v3604 = vpop.f32.mrb[0].mxu0
  %v3605 = vadd.f32 0.0, %v3604
  %v3606 = vpop.f32.mrb[0].mxu0
  %v3607 = vpop.f32.mrb[0].mxu0
  %v3608 = vadd.f32 0.0, %v3607
  %v3609 = vpop.f32.mrb[0].mxu0
  %3610 = vmatprep.mubr.bf16.mxu0 0
  %3611 = vmatmul.mubr.bf16.gmra.mrb[0].mxu0 %v2827
  %v3612 = vpop.f32.mrb[0].mxu0
  %v3613 = vadd.f32 0.0, %v3612
  %v3614 = vpop.f32.mrb[0].mxu0
  %v3615 = vpop.f32.mrb[0].mxu0
  %v3616 = vadd.f32 0.0, %v3615
  %v3617 = vpop.f32.mrb[0].mxu0
  %3618 = vdwg.mxu0
  %v3619 = vpack.c.bf16 %v3608, %v3605
  %v3620 = vpack.c.bf16 %v3616, %v3613
  %3621 = vst.msk [vmem:[#allocation2 + $0x50] sm:$0xff] %vm97, %v3619
  %3622 = vst.msk [vmem:[#allocation2 + $0x58] sm:$0xff] %vm97, %v3620
  %v3623 = vld [vmem:[%s903] sm:$0xf]
  %v3624 = vld [vmem:[%s903 + $0x4] sm:$0xf]
  %v3625 = vld [vmem:[%s903 + $0x8] sm:$0xf]
  %v3626 = vld [vmem:[%s903 + $0xc] sm:$0xf]
  %v3627 = vld [vmem:[%s903 + $0x10] sm:$0xf]
  %v3628 = vld [vmem:[%s903 + $0x14] sm:$0xf]
  %v3629 = vld [vmem:[%s903 + $0x18] sm:$0xf]
  %v3630 = vld [vmem:[%s903 + $0x1c] sm:$0xf]
  %v3639 = vunpack.c.l.b16 %v3623
  %v3640 = vunpack.c.l.b16 %v3624
  %v3641 = vunpack.c.l.b16 %v3625
  %v3642 = vunpack.c.l.b16 %v3626
  %v3643 = vunpack.c.l.b16 %v3627
  %v3644 = vunpack.c.l.b16 %v3628
  %v3645 = vunpack.c.l.b16 %v3629
  %v3646 = vunpack.c.l.b16 %v3630
  %v3647 = vpack.c.b16 %v3640, %v3639
  %v3648 = vpack.c.b16 %v3642, %v3641
  %v3649 = vpack.c.b16 %v3644, %v3643
  %v3650 = vpack.c.b16 %v3646, %v3645
  %3655 = vmatprep.subr.bf16.mxu0 0
  %3656 = vmatpush1.bf16.msra.mxu0 %v3647
  %3657 = vmatprep.subr.bf16.mxu0 0
  %3658 = vmatpush1.bf16.msra.mxu0 %v3648
  %3659 = vmatprep.subr.bf16.mxu0 0
  %3660 = vmatpush1.bf16.msra.mxu0 %v3649
  %3661 = vmatprep.subr.bf16.mxu0 0
  %3662 = vmatpush1.bf16.msra.mxu0 %v3650
  %3663 = vmatprep.subr.bf16.mxu0 0
  %3664 = vmatpush1.bf16.msra.mxu0 0
  %3665 = vmatprep.subr.bf16.mxu0 0
  %3666 = vmatpush1.bf16.msra.mxu0 0
  %3667 = vmatprep.subr.bf16.mxu0 0
  %3668 = vmatpush1.bf16.msra.mxu0 0
  %3669 = vmatprep.subr.bf16.mxu0 0
  %3670 = vmatpush1.bf16.msra.mxu0 0
  %3671 = vmatprep.subr.bf16.mxu0 0
  %3672 = vmatpush1.bf16.msra.mxu0 0
  %3673 = vmatprep.subr.bf16.mxu0 0
  %3674 = vmatpush1.bf16.msra.mxu0 0
  %3675 = vmatprep.subr.bf16.mxu0 0
  %3676 = vmatpush1.bf16.msra.mxu0 0
  %3677 = vmatprep.subr.bf16.mxu0 0
  %3678 = vmatpush1.bf16.msra.mxu0 0
  %3679 = vmatprep.subr.bf16.mxu0 0
  %3680 = vmatpush1.bf16.msra.mxu0 0
  %3681 = vmatprep.subr.bf16.mxu0 0
  %3682 = vmatpush1.bf16.msra.mxu0 0
  %3683 = vmatprep.subr.bf16.mxu0 0
  %3684 = vmatpush1.bf16.msra.mxu0 0
  %3685 = vmatprep.subr.bf16.mxu0 0
  %3686 = vmatpush1.bf16.msra.mxu0 0
  %3687 = vmatprep.mubr.bf16.mxu0 0
  %3688 = vmatmul.mubr.bf16.gmra.mrb[0].mxu0 %v2824
  %v3689 = vpop.f32.mrb[0].mxu0
  %v3690 = vadd.f32 0.0, %v3689
  %v3691 = vpop.f32.mrb[0].mxu0
  %v3692 = vpop.f32.mrb[0].mxu0
  %v3693 = vadd.f32 0.0, %v3692
  %v3694 = vpop.f32.mrb[0].mxu0
  %3695 = vmatprep.mubr.bf16.mxu0 0
  %3696 = vmatmul.mubr.bf16.gmra.mrb[0].mxu0 %v2827
  %v3697 = vpop.f32.mrb[0].mxu0
  %v3698 = vadd.f32 0.0, %v3697
  %v3699 = vpop.f32.mrb[0].mxu0
  %v3700 = vpop.f32.mrb[0].mxu0
  %v3701 = vadd.f32 0.0, %v3700
  %v3702 = vpop.f32.mrb[0].mxu0
  %3703 = vdwg.mxu0
  %v3704 = vpack.c.bf16 %v3693, %v3690
  %v3705 = vpack.c.bf16 %v3701, %v3698
  %3706 = vst.msk [vmem:[#allocation2 + $0x60] sm:$0xff] %vm97, %v3704
  %3707 = vst.msk [vmem:[#allocation2 + $0x68] sm:$0xff] %vm97, %v3705
  %v3708 = vld [vmem:[%s989] sm:$0xf]
  %v3709 = vld [vmem:[%s989 + $0x4] sm:$0xf]
  %v3710 = vld [vmem:[%s989 + $0x8] sm:$0xf]
  %v3711 = vld [vmem:[%s989 + $0xc] sm:$0xf]
  %v3712 = vld [vmem:[%s989 + $0x10] sm:$0xf]
  %v3713 = vld [vmem:[%s989 + $0x14] sm:$0xf]
  %v3714 = vld [vmem:[%s989 + $0x18] sm:$0xf]
  %v3715 = vld [vmem:[%s989 + $0x1c] sm:$0xf]
  %v3724 = vunpack.c.l.b16 %v3708
  %v3725 = vunpack.c.l.b16 %v3709
  %v3726 = vunpack.c.l.b16 %v3710
  %v3727 = vunpack.c.l.b16 %v3711
  %v3728 = vunpack.c.l.b16 %v3712
  %v3729 = vunpack.c.l.b16 %v3713
  %v3730 = vunpack.c.l.b16 %v3714
  %v3731 = vunpack.c.l.b16 %v3715
  %v3732 = vpack.c.b16 %v3725, %v3724
  %v3733 = vpack.c.b16 %v3727, %v3726
  %v3734 = vpack.c.b16 %v3729, %v3728
  %v3735 = vpack.c.b16 %v3731, %v3730
  %3740 = vmatprep.subr.bf16.mxu0 0
  %3741 = vmatpush1.bf16.msra.mxu0 %v3732
  %3742 = vmatprep.subr.bf16.mxu0 0
  %3743 = vmatpush1.bf16.msra.mxu0 %v3733
  %3744 = vmatprep.subr.bf16.mxu0 0
  %3745 = vmatpush1.bf16.msra.mxu0 %v3734
  %3746 = vmatprep.subr.bf16.mxu0 0
  %3747 = vmatpush1.bf16.msra.mxu0 %v3735
  %3748 = vmatprep.subr.bf16.mxu0 0
  %3749 = vmatpush1.bf16.msra.mxu0 0
  %3750 = vmatprep.subr.bf16.mxu0 0
  %3751 = vmatpush1.bf16.msra.mxu0 0
  %3752 = vmatprep.subr.bf16.mxu0 0
  %3753 = vmatpush1.bf16.msra.mxu0 0
  %3754 = vmatprep.subr.bf16.mxu0 0
  %3755 = vmatpush1.bf16.msra.mxu0 0
  %3756 = vmatprep.subr.bf16.mxu0 0
  %3757 = vmatpush1.bf16.msra.mxu0 0
  %3758 = vmatprep.subr.bf16.mxu0 0
  %3759 = vmatpush1.bf16.msra.mxu0 0
  %3760 = vmatprep.subr.bf16.mxu0 0
  %3761 = vmatpush1.bf16.msra.mxu0 0
  %3762 = vmatprep.subr.bf16.mxu0 0
  %3763 = vmatpush1.bf16.msra.mxu0 0
  %3764 = vmatprep.subr.bf16.mxu0 0
  %3765 = vmatpush1.bf16.msra.mxu0 0
  %3766 = vmatprep.subr.bf16.mxu0 0
  %3767 = vmatpush1.bf16.msra.mxu0 0
  %3768 = vmatprep.subr.bf16.mxu0 0
  %3769 = vmatpush1.bf16.msra.mxu0 0
  %3770 = vmatprep.subr.bf16.mxu0 0
  %3771 = vmatpush1.bf16.msra.mxu0 0
  %3772 = vmatprep.mubr.bf16.mxu0 0
  %3773 = vmatmul.mubr.bf16.gmra.mrb[0].mxu0 %v2824
  %v3774 = vpop.f32.mrb[0].mxu0
  %v3775 = vadd.f32 0.0, %v3774
  %v3776 = vpop.f32.mrb[0].mxu0
  %v3777 = vpop.f32.mrb[0].mxu0
  %v3778 = vadd.f32 0.0, %v3777
  %v3779 = vpop.f32.mrb[0].mxu0
  %3780 = vmatprep.mubr.bf16.mxu0 0
  %3781 = vmatmul.mubr.bf16.gmra.mrb[0].mxu0 %v2827
  %v3782 = vpop.f32.mrb[0].mxu0
  %v3783 = vadd.f32 0.0, %v3782
  %v3784 = vpop.f32.mrb[0].mxu0
  %v3785 = vpop.f32.mrb[0].mxu0
  %v3786 = vadd.f32 0.0, %v3785
  %v3787 = vpop.f32.mrb[0].mxu0
  %3788 = vdwg.mxu0
  %v3789 = vpack.c.bf16 %v3778, %v3775
  %v3790 = vpack.c.bf16 %v3786, %v3783
  %3791 = vst.msk [vmem:[#allocation2 + $0x70] sm:$0xff] %vm97, %v3789
  %3792 = vst.msk [vmem:[#allocation2 + $0x78] sm:$0xff] %vm97, %v3790
  %v3793 = vld [vmem:[%s1075] sm:$0xf]
  %v3794 = vld [vmem:[%s1075 + $0x4] sm:$0xf]
  %v3795 = vld [vmem:[%s1075 + $0x8] sm:$0xf]
  %v3796 = vld [vmem:[%s1075 + $0xc] sm:$0xf]
  %v3797 = vld [vmem:[%s1075 + $0x10] sm:$0xf]
  %v3798 = vld [vmem:[%s1075 + $0x14] sm:$0xf]
  %v3799 = vld [vmem:[%s1075 + $0x18] sm:$0xf]
  %v3800 = vld [vmem:[%s1075 + $0x1c] sm:$0xf]
  %v3809 = vunpack.c.l.b16 %v3793
  %v3810 = vunpack.c.l.b16 %v3794
  %v3811 = vunpack.c.l.b16 %v3795
  %v3812 = vunpack.c.l.b16 %v3796
  %v3813 = vunpack.c.l.b16 %v3797
  %v3814 = vunpack.c.l.b16 %v3798
  %v3815 = vunpack.c.l.b16 %v3799
  %v3816 = vunpack.c.l.b16 %v3800
  %v3817 = vpack.c.b16 %v3810, %v3809
  %v3818 = vpack.c.b16 %v3812, %v3811
  %v3819 = vpack.c.b16 %v3814, %v3813
  %v3820 = vpack.c.b16 %v3816, %v3815
  %3825 = vmatprep.subr.bf16.mxu0 0
  %3826 = vmatpush1.bf16.msra.mxu0 %v3817
  %3827 = vmatprep.subr.bf16.mxu0 0
  %3828 = vmatpush1.bf16.msra.mxu0 %v3818
  %3829 = vmatprep.subr.bf16.mxu0 0
  %3830 = vmatpush1.bf16.msra.mxu0 %v3819
  %3831 = vmatprep.subr.bf16.mxu0 0
  %3832 = vmatpush1.bf16.msra.mxu0 %v3820
  %3833 = vmatprep.subr.bf16.mxu0 0
  %3834 = vmatpush1.bf16.msra.mxu0 0
  %3835 = vmatprep.subr.bf16.mxu0 0
  %3836 = vmatpush1.bf16.msra.mxu0 0
  %3837 = vmatprep.subr.bf16.mxu0 0
  %3838 = vmatpush1.bf16.msra.mxu0 0
  %3839 = vmatprep.subr.bf16.mxu0 0
  %3840 = vmatpush1.bf16.msra.mxu0 0
  %3841 = vmatprep.subr.bf16.mxu0 0
  %3842 = vmatpush1.bf16.msra.mxu0 0
  %3843 = vmatprep.subr.bf16.mxu0 0
  %3844 = vmatpush1.bf16.msra.mxu0 0
  %3845 = vmatprep.subr.bf16.mxu0 0
  %3846 = vmatpush1.bf16.msra.mxu0 0
  %3847 = vmatprep.subr.bf16.mxu0 0
  %3848 = vmatpush1.bf16.msra.mxu0 0
  %3849 = vmatprep.subr.bf16.mxu0 0
  %3850 = vmatpush1.bf16.msra.mxu0 0
  %3851 = vmatprep.subr.bf16.mxu0 0
  %3852 = vmatpush1.bf16.msra.mxu0 0
  %3853 = vmatprep.subr.bf16.mxu0 0
  %3854 = vmatpush1.bf16.msra.mxu0 0
  %3855 = vmatprep.subr.bf16.mxu0 0
  %3856 = vmatpush1.bf16.msra.mxu0 0
  %3857 = vmatprep.mubr.bf16.mxu0 0
  %3858 = vmatmul.mubr.bf16.gmra.mrb[0].mxu0 %v2824
  %v3859 = vpop.f32.mrb[0].mxu0
  %v3860 = vadd.f32 0.0, %v3859
  %v3861 = vpop.f32.mrb[0].mxu0
  %v3862 = vpop.f32.mrb[0].mxu0
  %v3863 = vadd.f32 0.0, %v3862
  %v3864 = vpop.f32.mrb[0].mxu0
  %3865 = vmatprep.mubr.bf16.mxu0 0
  %3866 = vmatmul.mubr.bf16.gmra.mrb[0].mxu0 %v2827
  %v3867 = vpop.f32.mrb[0].mxu0
  %v3868 = vadd.f32 0.0, %v3867
  %v3869 = vpop.f32.mrb[0].mxu0
  %v3870 = vpop.f32.mrb[0].mxu0
  %v3871 = vadd.f32 0.0, %v3870
  %v3872 = vpop.f32.mrb[0].mxu0
  %3873 = vdwg.mxu0
  %v3874 = vpack.c.bf16 %v3863, %v3860
  %v3875 = vpack.c.bf16 %v3871, %v3868
  %3876 = vst.msk [vmem:[#allocation2 + $0x80] sm:$0xff] %vm97, %v3874
  %3877 = vst.msk [vmem:[#allocation2 + $0x88] sm:$0xff] %vm97, %v3875
  %v3878 = vld [vmem:[%s5] sm:$0xff]
  %v3879 = vld [vmem:[%s5 + $0x8] sm:$0xf]
  %v3880 = vld [vmem:[%s5 + $0xc] sm:$0xff]
  %v3881 = vld [vmem:[%s5 + $0x14] sm:$0xf]
  %v3882 = vld [vmem:[%s5 + $0x18] sm:$0xff]
  %v3883 = vld [vmem:[%s5 + $0x20] sm:$0xf]
  %v3884 = vld [vmem:[%s5 + $0x24] sm:$0xff]
  %v3885 = vld [vmem:[%s5 + $0x2c] sm:$0xf]
  %v3886 = vld [vmem:[#allocation2] sm:$0xff]
  %v3887 = vld [vmem:[#allocation2 + $0x8] sm:$0xff]
  %v3888 = vld [vmem:[#allocation2 + $0x10] sm:$0xff]
  %v3889 = vld [vmem:[#allocation2 + $0x18] sm:$0xff]
  %v3890 = vld [vmem:[#allocation2 + $0x20] sm:$0xff]
  %v3891 = vld [vmem:[#allocation2 + $0x28] sm:$0xff]
  %v3892 = vld [vmem:[#allocation2 + $0x30] sm:$0xff]
  %v3893 = vld [vmem:[#allocation2 + $0x38] sm:$0xff]
  %v3894 = vld [vmem:[#allocation2 + $0x40] sm:$0xff]
  %v3895 = vld [vmem:[#allocation2 + $0x48] sm:$0xff]
  %v3896 = vld [vmem:[#allocation2 + $0x50] sm:$0xff]
  %v3897 = vld [vmem:[#allocation2 + $0x58] sm:$0xff]
  %v3898 = vld [vmem:[#allocation2 + $0x60] sm:$0xff]
  %v3899 = vld [vmem:[#allocation2 + $0x68] sm:$0xff]
  %v3900 = vld [vmem:[#allocation2 + $0x70] sm:$0xff]
  %v3901 = vld [vmem:[#allocation2 + $0x78] sm:$0xff]
  %v3902 = vld [vmem:[#allocation2 + $0x80] sm:$0xff]
  %v3903 = vld [vmem:[#allocation2 + $0x88] sm:$0xff]
  %v3904 = vld [vmem:[%s6] sm:$0xff]
  %v3905 = vld [vmem:[%s6 + $0x8] sm:$0xff]
  %v3906 = vld [vmem:[%s6 + $0x10] sm:$0xff]
  %v3907 = vld [vmem:[%s6 + $0x18] sm:$0xff]
  %3909 = vset.pattern.permute.xlu0 0
  %3910 = vperm.xlu0 %3909, %v3904
  %v3911 = vpop.permute.xlu0 %3910
  %3914 = vset.pattern.permute.xlu0 0
  %3915 = vperm.xlu0 %3914, %v3905
  %v3916 = vpop.permute.xlu0 %3915
  %3919 = vset.pattern.permute.xlu0 0
  %3920 = vperm.xlu0 %3919, %v3906
  %v3921 = vpop.permute.xlu0 %3920
  %3924 = vset.pattern.permute.xlu0 0
  %3925 = vperm.xlu0 %3924, %v3907
  %v3926 = vpop.permute.xlu0 %3925
  %v3936 = vunpack.c.l.b16 %v3878
  %v3937 = vunpack.c.h.b16 %v3878
  %v3938 = vunpack.c.l.b16 %v3879
  %v3939 = vunpack.c.l.b16 %v3880
  %v3940 = vunpack.c.h.b16 %v3880
  %v3941 = vunpack.c.l.b16 %v3881
  %v3942 = vunpack.c.l.b16 %v3882
  %v3943 = vunpack.c.h.b16 %v3882
  %v3944 = vunpack.c.l.b16 %v3883
  %v3945 = vunpack.c.l.b16 %v3884
  %v3946 = vunpack.c.h.b16 %v3884
  %v3947 = vunpack.c.l.b16 %v3885
  %v3948 = vpack.c.b16 %v3939, %v3936
  %v3949 = vpack.c.b16 %v3940, %v3937
  %v3950 = vpack.c.b16 %v3941, %v3938
  %v3951 = vpack.c.b16 %v3945, %v3942
  %v3952 = vpack.c.b16 %v3946, %v3943
  %v3953 = vpack.c.b16 %v3947, %v3944
  %v3959 = vsel %vm276, %v3950, 0
  %v3962 = vsel %vm276, %v3953, 0
  %3964 = vmatprep.subr.bf16.mxu0 0
  %3965 = vmatpush1.bf16.msra.mxu0 %v3886
  %3966 = vmatprep.subr.bf16.mxu0 0
  %3967 = vmatpush1.bf16.msra.mxu0 %v3887
  %3968 = vmatprep.subr.bf16.mxu0 0
  %3969 = vmatpush1.bf16.msra.mxu0 %v3888
  %3970 = vmatprep.subr.bf16.mxu0 0
  %3971 = vmatpush1.bf16.msra.mxu0 %v3889
  %3972 = vmatprep.subr.bf16.mxu0 0
  %3973 = vmatpush1.bf16.msra.mxu0 %v3890
  %3974 = vmatprep.subr.bf16.mxu0 0
  %3975 = vmatpush1.bf16.msra.mxu0 %v3891
  %3976 = vmatprep.subr.bf16.mxu0 0
  %3977 = vmatpush1.bf16.msra.mxu0 %v3892
  %3978 = vmatprep.subr.bf16.mxu0 0
  %3979 = vmatpush1.bf16.msra.mxu0 %v3893
  %3980 = vmatprep.subr.bf16.mxu0 0
  %3981 = vmatpush1.bf16.msra.mxu0 %v3894
  %3982 = vmatprep.subr.bf16.mxu0 0
  %3983 = vmatpush1.bf16.msra.mxu0 %v3895
  %3984 = vmatprep.subr.bf16.mxu0 0
  %3985 = vmatpush1.bf16.msra.mxu0 %v3896
  %3986 = vmatprep.subr.bf16.mxu0 0
  %3987 = vmatpush1.bf16.msra.mxu0 %v3897
  %3988 = vmatprep.subr.bf16.mxu0 0
  %3989 = vmatpush1.bf16.msra.mxu0 %v3898
  %3990 = vmatprep.subr.bf16.mxu0 0
  %3991 = vmatpush1.bf16.msra.mxu0 %v3899
  %3992 = vmatprep.subr.bf16.mxu0 0
  %3993 = vmatpush1.bf16.msra.mxu0 %v3900
  %3994 = vmatprep.subr.bf16.mxu0 0
  %3995 = vmatpush1.bf16.msra.mxu0 %v3901
  %3996 = vmatprep.mubr.bf16.mxu0 %v3949
  %3997 = vmatmul.mubr.bf16.gmra.mrb[0].mxu0 %v3948
  %v3998 = vpop.f32.mrb[0].mxu0
  %v3999 = vadd.f32 %v3911, %v3998
  %v4000 = vpop.f32.mrb[0].mxu0
  %v4001 = vpop.f32.mrb[0].mxu0
  %v4002 = vadd.f32 %v3916, %v4001
  %v4003 = vpop.f32.mrb[0].mxu0
  %4004 = vmatprep.mubr.bf16.mxu0 %v3952
  %4005 = vmatmul.mubr.bf16.gmra.mrb[0].mxu0 %v3951
  %v4006 = vpop.f32.mrb[0].mxu0
  %v4007 = vadd.f32 %v3921, %v4006
  %v4008 = vpop.f32.mrb[0].mxu0
  %v4009 = vpop.f32.mrb[0].mxu0
  %v4010 = vadd.f32 %v3926, %v4009
  %v4011 = vpop.f32.mrb[0].mxu0
  %4012 = vdwg.mxu0
  %4013 = vmatprep.subr.bf16.mxu0 0
  %4014 = vmatpush1.bf16.msra.mxu0 %v3902
  %4015 = vmatprep.subr.bf16.mxu0 0
  %4016 = vmatpush1.bf16.msra.mxu0 %v3903
  %4017 = vmatprep.subr.bf16.mxu0 0
  %4018 = vmatpush1.bf16.msra.mxu0 0
  %4019 = vmatprep.subr.bf16.mxu0 0
  %4020 = vmatpush1.bf16.msra.mxu0 0
  %4021 = vmatprep.subr.bf16.mxu0 0
  %4022 = vmatpush1.bf16.msra.mxu0 0
  %4023 = vmatprep.subr.bf16.mxu0 0
  %4024 = vmatpush1.bf16.msra.mxu0 0
  %4025 = vmatprep.subr.bf16.mxu0 0
  %4026 = vmatpush1.bf16.msra.mxu0 0
  %4027 = vmatprep.subr.bf16.mxu0 0
  %4028 = vmatpush1.bf16.msra.mxu0 0
  %4029 = vmatprep.subr.bf16.mxu0 0
  %4030 = vmatpush1.bf16.msra.mxu0 0
  %4031 = vmatprep.subr.bf16.mxu0 0
  %4032 = vmatpush1.bf16.msra.mxu0 0
  %4033 = vmatprep.subr.bf16.mxu0 0
  %4034 = vmatpush1.bf16.msra.mxu0 0
  %4035 = vmatprep.subr.bf16.mxu0 0
  %4036 = vmatpush1.bf16.msra.mxu0 0
  %4037 = vmatprep.subr.bf16.mxu0 0
  %4038 = vmatpush1.bf16.msra.mxu0 0
  %4039 = vmatprep.subr.bf16.mxu0 0
  %4040 = vmatpush1.bf16.msra.mxu0 0
  %4041 = vmatprep.subr.bf16.mxu0 0
  %4042 = vmatpush1.bf16.msra.mxu0 0
  %4043 = vmatprep.subr.bf16.mxu0 0
  %4044 = vmatpush1.bf16.msra.mxu0 0
  %4045 = vmatprep.mubr.bf16.mxu0 0
  %4046 = vmatmul.mubr.bf16.gmra.mrb[0].mxu0 %v3959
  %v4047 = vpop.f32.mrb[0].mxu0
  %v4048 = vadd.f32 %v3999, %v4047
  %v4049 = vpop.f32.mrb[0].mxu0
  %v4050 = vpop.f32.mrb[0].mxu0
  %v4051 = vadd.f32 %v4002, %v4050
  %v4052 = vpop.f32.mrb[0].mxu0
  %4053 = vmatprep.mubr.bf16.mxu0 0
  %4054 = vmatmul.mubr.bf16.gmra.mrb[0].mxu0 %v3962
  %v4055 = vpop.f32.mrb[0].mxu0
  %v4056 = vadd.f32 %v4007, %v4055
  %v4057 = vpop.f32.mrb[0].mxu0
  %v4058 = vpop.f32.mrb[0].mxu0
  %v4059 = vadd.f32 %v4010, %v4058
  %v4060 = vpop.f32.mrb[0].mxu0
  %4061 = vdwg.mxu0
  %v4062 = vpack.c.bf16 %v4051, %v4048
  %v4063 = vpack.c.bf16 %v4059, %v4056
  %v4066 = vunpack.c.l.b16 %v4062
  %v4067 = vunpack.c.h.b16 %v4062
  %v4068 = vunpack.c.l.b16 %v4063
  %v4069 = vunpack.c.h.b16 %v4063
  %v4070 = vpack.c.b16 %v4066, %v4066
  %v4071 = vpack.c.b16 %v4067, %v4067
  %v4072 = vpack.c.b16 %v4068, %v4068
  %v4073 = vpack.c.b16 %v4069, %v4069
  %s4078 = scalar_lea.vmem %s9, 16
  %4079 = vst.msk [vmem:[%s4078] sm:$0xf] %vm197, %v4070
  %4080 = vst.msk [vmem:[%s4078 + $0x4] sm:$0xf] %vm197, %v4071
  %4081 = vst.msk [vmem:[%s4078 + $0x8] sm:$0xf] %vm197, %v4072
  %4082 = vst.msk [vmem:[%s4078 + $0xc] sm:$0xf] %vm197, %v4073
  %v4083 = vsel %vm97, %v4048, 0.0
  %4084 = vadd.xlane.f32.xlu0 %v4083
  %v4085 = vpop.xlane.xlu0 %4084
  %v4086 = vsel %vm97, %v4051, 0.0
  %4087 = vadd.xlane.f32.xlu0 %v4086
  %v4088 = vpop.xlane.xlu0 %4087
  %v4089 = vsel %vm97, %v4056, 0.0
  %4090 = vadd.xlane.f32.xlu0 %v4089
  %v4091 = vpop.xlane.xlu0 %4090
  %v4092 = vsel %vm97, %v4059, 0.0
  %4093 = vadd.xlane.f32.xlu0 %v4092
  %v4094 = vpop.xlane.xlu0 %4093
  %v4095 = vadd.f32 %v2732, %v4085
  %v4096 = vadd.f32 %v2733, %v4088
  %v4097 = vadd.f32 %v2734, %v4091
  %v4098 = vadd.f32 %v2735, %v4094
  %v4099 = vmul.f32 %v4048, %v4048
  %v4100 = vmul.f32 %v4051, %v4051
  %v4101 = vmul.f32 %v4056, %v4056
  %v4102 = vmul.f32 %v4059, %v4059
  %v4103 = vsel %vm97, %v4099, 0.0
  %4104 = vadd.xlane.f32.xlu0 %v4103
  %v4105 = vpop.xlane.xlu0 %4104
  %v4106 = vsel %vm97, %v4100, 0.0
  %4107 = vadd.xlane.f32.xlu0 %v4106
  %v4108 = vpop.xlane.xlu0 %4107
  %v4109 = vsel %vm97, %v4101, 0.0
  %4110 = vadd.xlane.f32.xlu0 %v4109
  %v4111 = vpop.xlane.xlu0 %4110
  %v4112 = vsel %vm97, %v4102, 0.0
  %4113 = vadd.xlane.f32.xlu0 %v4112
  %v4114 = vpop.xlane.xlu0 %4113
  %v4115 = vadd.f32 %v2752, %v4105
  %v4116 = vadd.f32 %v2753, %v4108
  %v4117 = vadd.f32 %v2754, %v4111
  %v4118 = vadd.f32 %v2755, %v4114
  %s4119 = scalar_lea.vmem %s0, 96
  %v4120 = vld [vmem:[%s4119] sm:$0xff]
  %v4121 = vld [vmem:[%s4119 + $0x8] sm:$0xff]
  %v4122 = vld [vmem:[%s4119 + $0x10] sm:$0xff]
  %v4123 = vld [vmem:[%s4119 + $0x18] sm:$0xff]
  %v4124 = vsub.f32 %v4120, %v2785
  %v4125 = vsub.f32 %v4121, %v2786
  %v4126 = vsub.f32 %v4122, %v2787
  %v4127 = vsub.f32 %v4123, %v2788
  %v4128 = vmul.f32 %v4124, 0.5
  %v4129 = vmul.f32 %v4125, 0.5
  %v4130 = vmul.f32 %v4126, 0.5
  %v4131 = vmul.f32 %v4127, 0.5
  %v4132 = vadd.f32 %v2785, %v4128
  %v4133 = vadd.f32 %v2786, %v4129
  %v4134 = vadd.f32 %v2787, %v4130
  %v4135 = vadd.f32 %v2788, %v4131
  %vm4136 = vcmp.ge.f32.partialorder %v4132, 1.0
  %vm4137 = vcmp.ge.f32.partialorder %v4133, 1.0
  %vm4138 = vcmp.ge.f32.partialorder %v4134, 1.0
  %vm4139 = vcmp.ge.f32.partialorder %v4135, 1.0
  %v4140 = vsel %vm4136, 1, 0
  %v4141 = vsel %vm4137, 1, 0
  %v4142 = vsel %vm4138, 1, 0
  %v4143 = vsel %vm4139, 1, 0
  %v4144 = vcvt.s32.f32 %v4140
  %v4145 = vcvt.s32.f32 %v4141
  %v4146 = vcvt.s32.f32 %v4142
  %v4147 = vcvt.s32.f32 %v4143
  %v4148 = vpack.c.bf16 %v4145, %v4144
  %v4149 = vpack.c.bf16 %v4147, %v4146
  %v4150 = vld [vmem:[%s1] sm:$0xf]
  %v4151 = vld [vmem:[%s1 + $0x4] sm:$0xf]
  %v4152 = vld [vmem:[%s1 + $0x8] sm:$0xf]
  %v4153 = vld [vmem:[%s1 + $0xc] sm:$0xf]
  %v4154 = vld [vmem:[%s1 + $0x10] sm:$0xf]
  %v4155 = vld [vmem:[%s1 + $0x14] sm:$0xf]
  %v4156 = vld [vmem:[%s1 + $0x18] sm:$0xf]
  %v4157 = vld [vmem:[%s1 + $0x1c] sm:$0xf]
  %v4166 = vunpack.c.l.b16 %v4150
  %v4167 = vunpack.c.l.b16 %v4151
  %v4168 = vunpack.c.l.b16 %v4152
  %v4169 = vunpack.c.l.b16 %v4153
  %v4170 = vunpack.c.l.b16 %v4154
  %v4171 = vunpack.c.l.b16 %v4155
  %v4172 = vunpack.c.l.b16 %v4156
  %v4173 = vunpack.c.l.b16 %v4157
  %v4174 = vpack.c.b16 %v4167, %v4166
  %v4175 = vpack.c.b16 %v4169, %v4168
  %v4176 = vpack.c.b16 %v4171, %v4170
  %v4177 = vpack.c.b16 %v4173, %v4172
  %v4183 = vsel %vm97, %v4148, 0
  %v4186 = vsel %vm97, %v4149, 0
  %4188 = vmatprep.subr.bf16.mxu0 0
  %4189 = vmatpush1.bf16.msra.mxu0 %v4174
  %4190 = vmatprep.subr.bf16.mxu0 0
  %4191 = vmatpush1.bf16.msra.mxu0 %v4175
  %4192 = vmatprep.subr.bf16.mxu0 0
  %4193 = vmatpush1.bf16.msra.mxu0 %v4176
  %4194 = vmatprep.subr.bf16.mxu0 0
  %4195 = vmatpush1.bf16.msra.mxu0 %v4177
  %4196 = vmatprep.subr.bf16.mxu0 0
  %4197 = vmatpush1.bf16.msra.mxu0 0
  %4198 = vmatprep.subr.bf16.mxu0 0
  %4199 = vmatpush1.bf16.msra.mxu0 0
  %4200 = vmatprep.subr.bf16.mxu0 0
  %4201 = vmatpush1.bf16.msra.mxu0 0
  %4202 = vmatprep.subr.bf16.mxu0 0
  %4203 = vmatpush1.bf16.msra.mxu0 0
  %4204 = vmatprep.subr.bf16.mxu0 0
  %4205 = vmatpush1.bf16.msra.mxu0 0
  %4206 = vmatprep.subr.bf16.mxu0 0
  %4207 = vmatpush1.bf16.msra.mxu0 0
  %4208 = vmatprep.subr.bf16.mxu0 0
  %4209 = vmatpush1.bf16.msra.mxu0 0
  %4210 = vmatprep.subr.bf16.mxu0 0
  %4211 = vmatpush1.bf16.msra.mxu0 0
  %4212 = vmatprep.subr.bf16.mxu0 0
  %4213 = vmatpush1.bf16.msra.mxu0 0
  %4214 = vmatprep.subr.bf16.mxu0 0
  %4215 = vmatpush1.bf16.msra.mxu0 0
  %4216 = vmatprep.subr.bf16.mxu0 0
  %4217 = vmatpush1.bf16.msra.mxu0 0
  %4218 = vmatprep.subr.bf16.mxu0 0
  %4219 = vmatpush1.bf16.msra.mxu0 0
  %4220 = vmatprep.mubr.bf16.mxu0 0
  %4221 = vmatmul.mubr.bf16.gmra.mrb[0].mxu0 %v4183
  %v4222 = vpop.f32.mrb[0].mxu0
  %v4223 = vadd.f32 0.0, %v4222
  %v4224 = vpop.f32.mrb[0].mxu0
  %v4225 = vpop.f32.mrb[0].mxu0
  %v4226 = vadd.f32 0.0, %v4225
  %v4227 = vpop.f32.mrb[0].mxu0
  %4228 = vmatprep.mubr.bf16.mxu0 0
  %4229 = vmatmul.mubr.bf16.gmra.mrb[0].mxu0 %v4186
  %v4230 = vpop.f32.mrb[0].mxu0
  %v4231 = vadd.f32 0.0, %v4230
  %v4232 = vpop.f32.mrb[0].mxu0
  %v4233 = vpop.f32.mrb[0].mxu0
  %v4234 = vadd.f32 0.0, %v4233
  %v4235 = vpop.f32.mrb[0].mxu0
  %4236 = vdwg.mxu0
  %v4237 = vadd.f32 %v2902, %v4223
  %v4238 = vadd.f32 %v2903, %v4226
  %v4239 = vadd.f32 %v2904, %v4231
  %v4240 = vadd.f32 %v2905, %v4234
  %vm4241 = vcmp.ge.f32.partialorder %v4237, 1.0
  %vm4242 = vcmp.ge.f32.partialorder %v4238, 1.0
  %vm4243 = vcmp.ge.f32.partialorder %v4239, 1.0
  %vm4244 = vcmp.ge.f32.partialorder %v4240, 1.0
  %v4245 = vsel %vm4241, 1.0, 0.0
  %v4246 = vsel %vm4242, 1.0, 0.0
  %v4247 = vsel %vm4243, 1.0, 0.0
  %v4248 = vsel %vm4244, 1.0, 0.0
  %vm4249 = vcmp.le.f32.partialorder %v4237, -1.0
  %vm4250 = vcmp.le.f32.partialorder %v4238, -1.0
  %vm4251 = vcmp.le.f32.partialorder %v4239, -1.0
  %vm4252 = vcmp.le.f32.partialorder %v4240, -1.0
  %v4253 = vsel %vm4249, -1.0, 0.0
  %v4254 = vsel %vm4250, -1.0, 0.0
  %v4255 = vsel %vm4251, -1.0, 0.0
  %v4256 = vsel %vm4252, -1.0, 0.0
  %v4257 = vadd.f32 %v4245, %v4253
  %v4258 = vadd.f32 %v4246, %v4254
  %v4259 = vadd.f32 %v4247, %v4255
  %v4260 = vadd.f32 %v4248, %v4256
  %v4261 = vpack.c.bf16 %v4258, %v4257
  %v4262 = vpack.c.bf16 %v4260, %v4259
  %v4265 = vunpack.c.l.b16 %v4261
  %v4266 = vunpack.c.h.b16 %v4261
  %v4267 = vunpack.c.l.b16 %v4262
  %v4268 = vunpack.c.h.b16 %v4262
  %v4269 = vpack.c.b16 %v4265, %v4265
  %v4270 = vpack.c.b16 %v4266, %v4266
  %v4271 = vpack.c.b16 %v4267, %v4267
  %v4272 = vpack.c.b16 %v4268, %v4268
  %s4277 = scalar_lea.vmem %s7, 48
  %4278 = vst.msk [vmem:[%s4277] sm:$0xf] %vm197, %v4269
  %4279 = vst.msk [vmem:[%s4277 + $0x4] sm:$0xf] %vm197, %v4270
  %4280 = vst.msk [vmem:[%s4277 + $0x8] sm:$0xf] %vm197, %v4271
  %4281 = vst.msk [vmem:[%s4277 + $0xc] sm:$0xf] %vm197, %v4272
  %v4282 = vsel %vm97, %v4257, 0.0
  %4283 = vadd.xlane.f32.xlu0 %v4282
  %v4284 = vpop.xlane.xlu0 %4283
  %v4285 = vsel %vm97, %v4258, 0.0
  %4286 = vadd.xlane.f32.xlu0 %v4285
  %v4287 = vpop.xlane.xlu0 %4286
  %v4288 = vsel %vm97, %v4259, 0.0
  %4289 = vadd.xlane.f32.xlu0 %v4288
  %v4290 = vpop.xlane.xlu0 %4289
  %v4291 = vsel %vm97, %v4260, 0.0
  %4292 = vadd.xlane.f32.xlu0 %v4291
  %v4293 = vpop.xlane.xlu0 %4292
  %v4294 = vadd.f32 %v2939, %v4284
  %v4295 = vadd.f32 %v2940, %v4287
  %v4296 = vadd.f32 %v2941, %v4290
  %v4297 = vadd.f32 %v2942, %v4293
  %v4298 = vmul.f32 %v4257, %v4257
  %v4299 = vmul.f32 %v4258, %v4258
  %v4300 = vmul.f32 %v4259, %v4259
  %v4301 = vmul.f32 %v4260, %v4260
  %v4302 = vsel %vm97, %v4298, 0.0
  %4303 = vadd.xlane.f32.xlu0 %v4302
  %v4304 = vpop.xlane.xlu0 %4303
  %v4305 = vsel %vm97, %v4299, 0.0
  %4306 = vadd.xlane.f32.xlu0 %v4305
  %v4307 = vpop.xlane.xlu0 %4306
  %v4308 = vsel %vm97, %v4300, 0.0
  %4309 = vadd.xlane.f32.xlu0 %v4308
  %v4310 = vpop.xlane.xlu0 %4309
  %v4311 = vsel %vm97, %v4301, 0.0
  %4312 = vadd.xlane.f32.xlu0 %v4311
  %v4313 = vpop.xlane.xlu0 %4312
  %v4314 = vadd.f32 %v2959, %v4304
  %v4315 = vadd.f32 %v2960, %v4307
  %v4316 = vadd.f32 %v2961, %v4310
  %v4317 = vadd.f32 %v2962, %v4313
  %v4318 = vld [vmem:[%s3] sm:$0xf]
  %v4319 = vld [vmem:[%s3 + $0x4] sm:$0xf]
  %v4320 = vld [vmem:[%s3 + $0x8] sm:$0xf]
  %v4321 = vld [vmem:[%s3 + $0xc] sm:$0xf]
  %v4322 = vld [vmem:[%s4] sm:$0xff]
  %v4323 = vld [vmem:[%s4 + $0x8] sm:$0xff]
  %v4324 = vld [vmem:[%s4 + $0x10] sm:$0xff]
  %v4325 = vld [vmem:[%s4 + $0x18] sm:$0xff]
  %4327 = vset.pattern.permute.xlu0 0
  %4328 = vperm.xlu0 %4327, %v4322
  %v4329 = vpop.permute.xlu0 %4328
  %4332 = vset.pattern.permute.xlu0 0
  %4333 = vperm.xlu0 %4332, %v4323
  %v4334 = vpop.permute.xlu0 %4333
  %4337 = vset.pattern.permute.xlu0 0
  %4338 = vperm.xlu0 %4337, %v4324
  %v4339 = vpop.permute.xlu0 %4338
  %4342 = vset.pattern.permute.xlu0 0
  %4343 = vperm.xlu0 %4342, %v4325
  %v4344 = vpop.permute.xlu0 %4343
  %v4350 = vunpack.c.l.b16 %v4318
  %v4351 = vunpack.c.l.b16 %v4319
  %v4352 = vunpack.c.l.b16 %v4320
  %v4353 = vunpack.c.l.b16 %v4321
  %v4354 = vpack.c.b16 %v4351, %v4350
  %v4355 = vpack.c.b16 %v4353, %v4352
  %v4357 = vsel %vm276, %v4354, 0
  %v4360 = vsel %vm276, %v4355, 0
  %4362 = vmatprep.subr.bf16.mxu0 0
  %4363 = vmatpush1.bf16.msra.mxu0 %v4148
  %4364 = vmatprep.subr.bf16.mxu0 0
  %4365 = vmatpush1.bf16.msra.mxu0 %v4149
  %4366 = vmatprep.subr.bf16.mxu0 0
  %4367 = vmatpush1.bf16.msra.mxu0 0
  %4368 = vmatprep.subr.bf16.mxu0 0
  %4369 = vmatpush1.bf16.msra.mxu0 0
  %4370 = vmatprep.subr.bf16.mxu0 0
  %4371 = vmatpush1.bf16.msra.mxu0 0
  %4372 = vmatprep.subr.bf16.mxu0 0
  %4373 = vmatpush1.bf16.msra.mxu0 0
  %4374 = vmatprep.subr.bf16.mxu0 0
  %4375 = vmatpush1.bf16.msra.mxu0 0
  %4376 = vmatprep.subr.bf16.mxu0 0
  %4377 = vmatpush1.bf16.msra.mxu0 0
  %4378 = vmatprep.subr.bf16.mxu0 0
  %4379 = vmatpush1.bf16.msra.mxu0 0
  %4380 = vmatprep.subr.bf16.mxu0 0
  %4381 = vmatpush1.bf16.msra.mxu0 0
  %4382 = vmatprep.subr.bf16.mxu0 0
  %4383 = vmatpush1.bf16.msra.mxu0 0
  %4384 = vmatprep.subr.bf16.mxu0 0
  %4385 = vmatpush1.bf16.msra.mxu0 0
  %4386 = vmatprep.subr.bf16.mxu0 0
  %4387 = vmatpush1.bf16.msra.mxu0 0
  %4388 = vmatprep.subr.bf16.mxu0 0
  %4389 = vmatpush1.bf16.msra.mxu0 0
  %4390 = vmatprep.subr.bf16.mxu0 0
  %4391 = vmatpush1.bf16.msra.mxu0 0
  %4392 = vmatprep.subr.bf16.mxu0 0
  %4393 = vmatpush1.bf16.msra.mxu0 0
  %4394 = vmatprep.mubr.bf16.mxu0 0
  %4395 = vmatmul.mubr.bf16.gmra.mrb[0].mxu0 %v4357
  %v4396 = vpop.f32.mrb[0].mxu0
  %v4397 = vadd.f32 %v4329, %v4396
  %v4398 = vpop.f32.mrb[0].mxu0
  %v4399 = vpop.f32.mrb[0].mxu0
  %v4400 = vadd.f32 %v4334, %v4399
  %v4401 = vpop.f32.mrb[0].mxu0
  %4402 = vmatprep.mubr.bf16.mxu0 0
  %4403 = vmatmul.mubr.bf16.gmra.mrb[0].mxu0 %v4360
  %v4404 = vpop.f32.mrb[0].mxu0
  %v4405 = vadd.f32 %v4339, %v4404
  %v4406 = vpop.f32.mrb[0].mxu0
  %v4407 = vpop.f32.mrb[0].mxu0
  %v4408 = vadd.f32 %v4344, %v4407
  %v4409 = vpop.f32.mrb[0].mxu0
  %4410 = vdwg.mxu0
  %v4411 = vpack.c.bf16 %v4400, %v4397
  %v4412 = vpack.c.bf16 %v4408, %v4405
  %v4415 = vunpack.c.l.b16 %v4411
  %v4416 = vunpack.c.h.b16 %v4411
  %v4417 = vunpack.c.l.b16 %v4412
  %v4418 = vunpack.c.h.b16 %v4412
  %v4419 = vpack.c.b16 %v4415, %v4415
  %v4420 = vpack.c.b16 %v4416, %v4416
  %v4421 = vpack.c.b16 %v4417, %v4417
  %v4422 = vpack.c.b16 %v4418, %v4418
  %s4427 = scalar_lea.vmem %s8, 48
  %4428 = vst.msk [vmem:[%s4427] sm:$0xf] %vm197, %v4419
  %4429 = vst.msk [vmem:[%s4427 + $0x4] sm:$0xf] %vm197, %v4420
  %4430 = vst.msk [vmem:[%s4427 + $0x8] sm:$0xf] %vm197, %v4421
  %4431 = vst.msk [vmem:[%s4427 + $0xc] sm:$0xf] %vm197, %v4422
  %v4432 = vsel %vm97, %v4397, 0.0
  %4433 = vadd.xlane.f32.xlu0 %v4432
  %v4434 = vpop.xlane.xlu0 %4433
  %v4435 = vsel %vm97, %v4400, 0.0
  %4436 = vadd.xlane.f32.xlu0 %v4435
  %v4437 = vpop.xlane.xlu0 %4436
  %v4438 = vsel %vm97, %v4405, 0.0
  %4439 = vadd.xlane.f32.xlu0 %v4438
  %v4440 = vpop.xlane.xlu0 %4439
  %v4441 = vsel %vm97, %v4408, 0.0
  %4442 = vadd.xlane.f32.xlu0 %v4441
  %v4443 = vpop.xlane.xlu0 %4442
  %v4444 = vadd.f32 %v3089, %v4434
  %v4445 = vadd.f32 %v3090, %v4437
  %v4446 = vadd.f32 %v3091, %v4440
  %v4447 = vadd.f32 %v3092, %v4443
  %v4448 = vmul.f32 %v4397, %v4397
  %v4449 = vmul.f32 %v4400, %v4400
  %v4450 = vmul.f32 %v4405, %v4405
  %v4451 = vmul.f32 %v4408, %v4408
  %v4452 = vsel %vm97, %v4448, 0.0
  %4453 = vadd.xlane.f32.xlu0 %v4452
  %v4454 = vpop.xlane.xlu0 %4453
  %v4455 = vsel %vm97, %v4449, 0.0
  %4456 = vadd.xlane.f32.xlu0 %v4455
  %v4457 = vpop.xlane.xlu0 %4456
  %v4458 = vsel %vm97, %v4450, 0.0
  %4459 = vadd.xlane.f32.xlu0 %v4458
  %v4460 = vpop.xlane.xlu0 %4459
  %v4461 = vsel %vm97, %v4451, 0.0
  %4462 = vadd.xlane.f32.xlu0 %v4461
  %v4463 = vpop.xlane.xlu0 %4462
  %v4464 = vadd.f32 %v3109, %v4454
  %v4465 = vadd.f32 %v3110, %v4457
  %v4466 = vadd.f32 %v3111, %v4460
  %v4467 = vadd.f32 %v3112, %v4463
  %v4468 = vld [vmem:[%s2] sm:$0xf]
  %v4469 = vld [vmem:[%s2 + $0x4] sm:$0xf]
  %v4470 = vld [vmem:[%s2 + $0x8] sm:$0xf]
  %v4471 = vld [vmem:[%s2 + $0xc] sm:$0xf]
  %v4472 = vld [vmem:[%s2 + $0x10] sm:$0xf]
  %v4473 = vld [vmem:[%s2 + $0x14] sm:$0xf]
  %v4474 = vld [vmem:[%s2 + $0x18] sm:$0xf]
  %v4475 = vld [vmem:[%s2 + $0x1c] sm:$0xf]
  %v4484 = vunpack.c.l.b16 %v4468
  %v4485 = vunpack.c.l.b16 %v4469
  %v4486 = vunpack.c.l.b16 %v4470
  %v4487 = vunpack.c.l.b16 %v4471
  %v4488 = vunpack.c.l.b16 %v4472
  %v4489 = vunpack.c.l.b16 %v4473
  %v4490 = vunpack.c.l.b16 %v4474
  %v4491 = vunpack.c.l.b16 %v4475
  %v4492 = vpack.c.b16 %v4485, %v4484
  %v4493 = vpack.c.b16 %v4487, %v4486
  %v4494 = vpack.c.b16 %v4489, %v4488
  %v4495 = vpack.c.b16 %v4491, %v4490
  %4500 = vmatprep.subr.bf16.mxu0 0
  %4501 = vmatpush1.bf16.msra.mxu0 %v4492
  %4502 = vmatprep.subr.bf16.mxu0 0
  %4503 = vmatpush1.bf16.msra.mxu0 %v4493
  %4504 = vmatprep.subr.bf16.mxu0 0
  %4505 = vmatpush1.bf16.msra.mxu0 %v4494
  %4506 = vmatprep.subr.bf16.mxu0 0
  %4507 = vmatpush1.bf16.msra.mxu0 %v4495
  %4508 = vmatprep.subr.bf16.mxu0 0
  %4509 = vmatpush1.bf16.msra.mxu0 0
  %4510 = vmatprep.subr.bf16.mxu0 0
  %4511 = vmatpush1.bf16.msra.mxu0 0
  %4512 = vmatprep.subr.bf16.mxu0 0
  %4513 = vmatpush1.bf16.msra.mxu0 0
  %4514 = vmatprep.subr.bf16.mxu0 0
  %4515 = vmatpush1.bf16.msra.mxu0 0
  %4516 = vmatprep.subr.bf16.mxu0 0
  %4517 = vmatpush1.bf16.msra.mxu0 0
  %4518 = vmatprep.subr.bf16.mxu0 0
  %4519 = vmatpush1.bf16.msra.mxu0 0
  %4520 = vmatprep.subr.bf16.mxu0 0
  %4521 = vmatpush1.bf16.msra.mxu0 0
  %4522 = vmatprep.subr.bf16.mxu0 0
  %4523 = vmatpush1.bf16.msra.mxu0 0
  %4524 = vmatprep.subr.bf16.mxu0 0
  %4525 = vmatpush1.bf16.msra.mxu0 0
  %4526 = vmatprep.subr.bf16.mxu0 0
  %4527 = vmatpush1.bf16.msra.mxu0 0
  %4528 = vmatprep.subr.bf16.mxu0 0
  %4529 = vmatpush1.bf16.msra.mxu0 0
  %4530 = vmatprep.subr.bf16.mxu0 0
  %4531 = vmatpush1.bf16.msra.mxu0 0
  %4532 = vmatprep.mubr.bf16.mxu0 0
  %4533 = vmatmul.mubr.bf16.gmra.mrb[0].mxu0 %v4183
  %v4534 = vpop.f32.mrb[0].mxu0
  %v4535 = vadd.f32 0.0, %v4534
  %v4536 = vpop.f32.mrb[0].mxu0
  %v4537 = vpop.f32.mrb[0].mxu0
  %v4538 = vadd.f32 0.0, %v4537
  %v4539 = vpop.f32.mrb[0].mxu0
  %4540 = vmatprep.mubr.bf16.mxu0 0
  %4541 = vmatmul.mubr.bf16.gmra.mrb[0].mxu0 %v4186
  %v4542 = vpop.f32.mrb[0].mxu0
  %v4543 = vadd.f32 0.0, %v4542
  %v4544 = vpop.f32.mrb[0].mxu0
  %v4545 = vpop.f32.mrb[0].mxu0
  %v4546 = vadd.f32 0.0, %v4545
  %v4547 = vpop.f32.mrb[0].mxu0
  %4548 = vdwg.mxu0
  %v4549 = vpack.c.bf16 %v4538, %v4535
  %v4550 = vpack.c.bf16 %v4546, %v4543
  %4551 = vst.msk [vmem:[#allocation2] sm:$0xff] %vm97, %v4549
  %4552 = vst.msk [vmem:[#allocation2 + $0x8] sm:$0xff] %vm97, %v4550
  %v4553 = vld [vmem:[%s473] sm:$0xf]
  %v4554 = vld [vmem:[%s473 + $0x4] sm:$0xf]
  %v4555 = vld [vmem:[%s473 + $0x8] sm:$0xf]
  %v4556 = vld [vmem:[%s473 + $0xc] sm:$0xf]
  %v4557 = vld [vmem:[%s473 + $0x10] sm:$0xf]
  %v4558 = vld [vmem:[%s473 + $0x14] sm:$0xf]
  %v4559 = vld [vmem:[%s473 + $0x18] sm:$0xf]
  %v4560 = vld [vmem:[%s473 + $0x1c] sm:$0xf]
  %v4569 = vunpack.c.l.b16 %v4553
  %v4570 = vunpack.c.l.b16 %v4554
  %v4571 = vunpack.c.l.b16 %v4555
  %v4572 = vunpack.c.l.b16 %v4556
  %v4573 = vunpack.c.l.b16 %v4557
  %v4574 = vunpack.c.l.b16 %v4558
  %v4575 = vunpack.c.l.b16 %v4559
  %v4576 = vunpack.c.l.b16 %v4560
  %v4577 = vpack.c.b16 %v4570, %v4569
  %v4578 = vpack.c.b16 %v4572, %v4571
  %v4579 = vpack.c.b16 %v4574, %v4573
  %v4580 = vpack.c.b16 %v4576, %v4575
  %4585 = vmatprep.subr.bf16.mxu0 0
  %4586 = vmatpush1.bf16.msra.mxu0 %v4577
  %4587 = vmatprep.subr.bf16.mxu0 0
  %4588 = vmatpush1.bf16.msra.mxu0 %v4578
  %4589 = vmatprep.subr.bf16.mxu0 0
  %4590 = vmatpush1.bf16.msra.mxu0 %v4579
  %4591 = vmatprep.subr.bf16.mxu0 0
  %4592 = vmatpush1.bf16.msra.mxu0 %v4580
  %4593 = vmatprep.subr.bf16.mxu0 0
  %4594 = vmatpush1.bf16.msra.mxu0 0
  %4595 = vmatprep.subr.bf16.mxu0 0
  %4596 = vmatpush1.bf16.msra.mxu0 0
  %4597 = vmatprep.subr.bf16.mxu0 0
  %4598 = vmatpush1.bf16.msra.mxu0 0
  %4599 = vmatprep.subr.bf16.mxu0 0
  %4600 = vmatpush1.bf16.msra.mxu0 0
  %4601 = vmatprep.subr.bf16.mxu0 0
  %4602 = vmatpush1.bf16.msra.mxu0 0
  %4603 = vmatprep.subr.bf16.mxu0 0
  %4604 = vmatpush1.bf16.msra.mxu0 0
  %4605 = vmatprep.subr.bf16.mxu0 0
  %4606 = vmatpush1.bf16.msra.mxu0 0
  %4607 = vmatprep.subr.bf16.mxu0 0
  %4608 = vmatpush1.bf16.msra.mxu0 0
  %4609 = vmatprep.subr.bf16.mxu0 0
  %4610 = vmatpush1.bf16.msra.mxu0 0
  %4611 = vmatprep.subr.bf16.mxu0 0
  %4612 = vmatpush1.bf16.msra.mxu0 0
  %4613 = vmatprep.subr.bf16.mxu0 0
  %4614 = vmatpush1.bf16.msra.mxu0 0
  %4615 = vmatprep.subr.bf16.mxu0 0
  %4616 = vmatpush1.bf16.msra.mxu0 0
  %4617 = vmatprep.mubr.bf16.mxu0 0
  %4618 = vmatmul.mubr.bf16.gmra.mrb[0].mxu0 %v4183
  %v4619 = vpop.f32.mrb[0].mxu0
  %v4620 = vadd.f32 0.0, %v4619
  %v4621 = vpop.f32.mrb[0].mxu0
  %v4622 = vpop.f32.mrb[0].mxu0
  %v4623 = vadd.f32 0.0, %v4622
  %v4624 = vpop.f32.mrb[0].mxu0
  %4625 = vmatprep.mubr.bf16.mxu0 0
  %4626 = vmatmul.mubr.bf16.gmra.mrb[0].mxu0 %v4186
  %v4627 = vpop.f32.mrb[0].mxu0
  %v4628 = vadd.f32 0.0, %v4627
  %v4629 = vpop.f32.mrb[0].mxu0
  %v4630 = vpop.f32.mrb[0].mxu0
  %v4631 = vadd.f32 0.0, %v4630
  %v4632 = vpop.f32.mrb[0].mxu0
  %4633 = vdwg.mxu0
  %v4634 = vpack.c.bf16 %v4623, %v4620
  %v4635 = vpack.c.bf16 %v4631, %v4628
  %4636 = vst.msk [vmem:[#allocation2 + $0x10] sm:$0xff] %vm97, %v4634
  %4637 = vst.msk [vmem:[#allocation2 + $0x18] sm:$0xff] %vm97, %v4635
  %v4638 = vld [vmem:[%s559] sm:$0xf]
  %v4639 = vld [vmem:[%s559 + $0x4] sm:$0xf]
  %v4640 = vld [vmem:[%s559 + $0x8] sm:$0xf]
  %v4641 = vld [vmem:[%s559 + $0xc] sm:$0xf]
  %v4642 = vld [vmem:[%s559 + $0x10] sm:$0xf]
  %v4643 = vld [vmem:[%s559 + $0x14] sm:$0xf]
  %v4644 = vld [vmem:[%s559 + $0x18] sm:$0xf]
  %v4645 = vld [vmem:[%s559 + $0x1c] sm:$0xf]
  %v4654 = vunpack.c.l.b16 %v4638
  %v4655 = vunpack.c.l.b16 %v4639
  %v4656 = vunpack.c.l.b16 %v4640
  %v4657 = vunpack.c.l.b16 %v4641
  %v4658 = vunpack.c.l.b16 %v4642
  %v4659 = vunpack.c.l.b16 %v4643
  %v4660 = vunpack.c.l.b16 %v4644
  %v4661 = vunpack.c.l.b16 %v4645
  %v4662 = vpack.c.b16 %v4655, %v4654
  %v4663 = vpack.c.b16 %v4657, %v4656
  %v4664 = vpack.c.b16 %v4659, %v4658
  %v4665 = vpack.c.b16 %v4661, %v4660
  %4670 = vmatprep.subr.bf16.mxu0 0
  %4671 = vmatpush1.bf16.msra.mxu0 %v4662
  %4672 = vmatprep.subr.bf16.mxu0 0
  %4673 = vmatpush1.bf16.msra.mxu0 %v4663
  %4674 = vmatprep.subr.bf16.mxu0 0
  %4675 = vmatpush1.bf16.msra.mxu0 %v4664
  %4676 = vmatprep.subr.bf16.mxu0 0
  %4677 = vmatpush1.bf16.msra.mxu0 %v4665
  %4678 = vmatprep.subr.bf16.mxu0 0
  %4679 = vmatpush1.bf16.msra.mxu0 0
  %4680 = vmatprep.subr.bf16.mxu0 0
  %4681 = vmatpush1.bf16.msra.mxu0 0
  %4682 = vmatprep.subr.bf16.mxu0 0
  %4683 = vmatpush1.bf16.msra.mxu0 0
  %4684 = vmatprep.subr.bf16.mxu0 0
  %4685 = vmatpush1.bf16.msra.mxu0 0
  %4686 = vmatprep.subr.bf16.mxu0 0
  %4687 = vmatpush1.bf16.msra.mxu0 0
  %4688 = vmatprep.subr.bf16.mxu0 0
  %4689 = vmatpush1.bf16.msra.mxu0 0
  %4690 = vmatprep.subr.bf16.mxu0 0
  %4691 = vmatpush1.bf16.msra.mxu0 0
  %4692 = vmatprep.subr.bf16.mxu0 0
  %4693 = vmatpush1.bf16.msra.mxu0 0
  %4694 = vmatprep.subr.bf16.mxu0 0
  %4695 = vmatpush1.bf16.msra.mxu0 0
  %4696 = vmatprep.subr.bf16.mxu0 0
  %4697 = vmatpush1.bf16.msra.mxu0 0
  %4698 = vmatprep.subr.bf16.mxu0 0
  %4699 = vmatpush1.bf16.msra.mxu0 0
  %4700 = vmatprep.subr.bf16.mxu0 0
  %4701 = vmatpush1.bf16.msra.mxu0 0
  %4702 = vmatprep.mubr.bf16.mxu0 0
  %4703 = vmatmul.mubr.bf16.gmra.mrb[0].mxu0 %v4183
  %v4704 = vpop.f32.mrb[0].mxu0
  %v4705 = vadd.f32 0.0, %v4704
  %v4706 = vpop.f32.mrb[0].mxu0
  %v4707 = vpop.f32.mrb[0].mxu0
  %v4708 = vadd.f32 0.0, %v4707
  %v4709 = vpop.f32.mrb[0].mxu0
  %4710 = vmatprep.mubr.bf16.mxu0 0
  %4711 = vmatmul.mubr.bf16.gmra.mrb[0].mxu0 %v4186
  %v4712 = vpop.f32.mrb[0].mxu0
  %v4713 = vadd.f32 0.0, %v4712
  %v4714 = vpop.f32.mrb[0].mxu0
  %v4715 = vpop.f32.mrb[0].mxu0
  %v4716 = vadd.f32 0.0, %v4715
  %v4717 = vpop.f32.mrb[0].mxu0
  %4718 = vdwg.mxu0
  %v4719 = vpack.c.bf16 %v4708, %v4705
  %v4720 = vpack.c.bf16 %v4716, %v4713
  %4721 = vst.msk [vmem:[#allocation2 + $0x20] sm:$0xff] %vm97, %v4719
  %4722 = vst.msk [vmem:[#allocation2 + $0x28] sm:$0xff] %vm97, %v4720
  %v4723 = vld [vmem:[%s645] sm:$0xf]
  %v4724 = vld [vmem:[%s645 + $0x4] sm:$0xf]
  %v4725 = vld [vmem:[%s645 + $0x8] sm:$0xf]
  %v4726 = vld [vmem:[%s645 + $0xc] sm:$0xf]
  %v4727 = vld [vmem:[%s645 + $0x10] sm:$0xf]
  %v4728 = vld [vmem:[%s645 + $0x14] sm:$0xf]
  %v4729 = vld [vmem:[%s645 + $0x18] sm:$0xf]
  %v4730 = vld [vmem:[%s645 + $0x1c] sm:$0xf]
  %v4739 = vunpack.c.l.b16 %v4723
  %v4740 = vunpack.c.l.b16 %v4724
  %v4741 = vunpack.c.l.b16 %v4725
  %v4742 = vunpack.c.l.b16 %v4726
  %v4743 = vunpack.c.l.b16 %v4727
  %v4744 = vunpack.c.l.b16 %v4728
  %v4745 = vunpack.c.l.b16 %v4729
  %v4746 = vunpack.c.l.b16 %v4730
  %v4747 = vpack.c.b16 %v4740, %v4739
  %v4748 = vpack.c.b16 %v4742, %v4741
  %v4749 = vpack.c.b16 %v4744, %v4743
  %v4750 = vpack.c.b16 %v4746, %v4745
  %4755 = vmatprep.subr.bf16.mxu0 0
  %4756 = vmatpush1.bf16.msra.mxu0 %v4747
  %4757 = vmatprep.subr.bf16.mxu0 0
  %4758 = vmatpush1.bf16.msra.mxu0 %v4748
  %4759 = vmatprep.subr.bf16.mxu0 0
  %4760 = vmatpush1.bf16.msra.mxu0 %v4749
  %4761 = vmatprep.subr.bf16.mxu0 0
  %4762 = vmatpush1.bf16.msra.mxu0 %v4750
  %4763 = vmatprep.subr.bf16.mxu0 0
  %4764 = vmatpush1.bf16.msra.mxu0 0
  %4765 = vmatprep.subr.bf16.mxu0 0
  %4766 = vmatpush1.bf16.msra.mxu0 0
  %4767 = vmatprep.subr.bf16.mxu0 0
  %4768 = vmatpush1.bf16.msra.mxu0 0
  %4769 = vmatprep.subr.bf16.mxu0 0
  %4770 = vmatpush1.bf16.msra.mxu0 0
  %4771 = vmatprep.subr.bf16.mxu0 0
  %4772 = vmatpush1.bf16.msra.mxu0 0
  %4773 = vmatprep.subr.bf16.mxu0 0
  %4774 = vmatpush1.bf16.msra.mxu0 0
  %4775 = vmatprep.subr.bf16.mxu0 0
  %4776 = vmatpush1.bf16.msra.mxu0 0
  %4777 = vmatprep.subr.bf16.mxu0 0
  %4778 = vmatpush1.bf16.msra.mxu0 0
  %4779 = vmatprep.subr.bf16.mxu0 0
  %4780 = vmatpush1.bf16.msra.mxu0 0
  %4781 = vmatprep.subr.bf16.mxu0 0
  %4782 = vmatpush1.bf16.msra.mxu0 0
  %4783 = vmatprep.subr.bf16.mxu0 0
  %4784 = vmatpush1.bf16.msra.mxu0 0
  %4785 = vmatprep.subr.bf16.mxu0 0
  %4786 = vmatpush1.bf16.msra.mxu0 0
  %4787 = vmatprep.mubr.bf16.mxu0 0
  %4788 = vmatmul.mubr.bf16.gmra.mrb[0].mxu0 %v4183
  %v4789 = vpop.f32.mrb[0].mxu0
  %v4790 = vadd.f32 0.0, %v4789
  %v4791 = vpop.f32.mrb[0].mxu0
  %v4792 = vpop.f32.mrb[0].mxu0
  %v4793 = vadd.f32 0.0, %v4792
  %v4794 = vpop.f32.mrb[0].mxu0
  %4795 = vmatprep.mubr.bf16.mxu0 0
  %4796 = vmatmul.mubr.bf16.gmra.mrb[0].mxu0 %v4186
  %v4797 = vpop.f32.mrb[0].mxu0
  %v4798 = vadd.f32 0.0, %v4797
  %v4799 = vpop.f32.mrb[0].mxu0
  %v4800 = vpop.f32.mrb[0].mxu0
  %v4801 = vadd.f32 0.0, %v4800
  %v4802 = vpop.f32.mrb[0].mxu0
  %4803 = vdwg.mxu0
  %v4804 = vpack.c.bf16 %v4793, %v4790
  %v4805 = vpack.c.bf16 %v4801, %v4798
  %4806 = vst.msk [vmem:[#allocation2 + $0x30] sm:$0xff] %vm97, %v4804
  %4807 = vst.msk [vmem:[#allocation2 + $0x38] sm:$0xff] %vm97, %v4805
  %v4808 = vld [vmem:[%s731] sm:$0xf]
  %v4809 = vld [vmem:[%s731 + $0x4] sm:$0xf]
  %v4810 = vld [vmem:[%s731 + $0x8] sm:$0xf]
  %v4811 = vld [vmem:[%s731 + $0xc] sm:$0xf]
  %v4812 = vld [vmem:[%s731 + $0x10] sm:$0xf]
  %v4813 = vld [vmem:[%s731 + $0x14] sm:$0xf]
  %v4814 = vld [vmem:[%s731 + $0x18] sm:$0xf]
  %v4815 = vld [vmem:[%s731 + $0x1c] sm:$0xf]
  %v4824 = vunpack.c.l.b16 %v4808
  %v4825 = vunpack.c.l.b16 %v4809
  %v4826 = vunpack.c.l.b16 %v4810
  %v4827 = vunpack.c.l.b16 %v4811
  %v4828 = vunpack.c.l.b16 %v4812
  %v4829 = vunpack.c.l.b16 %v4813
  %v4830 = vunpack.c.l.b16 %v4814
  %v4831 = vunpack.c.l.b16 %v4815
  %v4832 = vpack.c.b16 %v4825, %v4824
  %v4833 = vpack.c.b16 %v4827, %v4826
  %v4834 = vpack.c.b16 %v4829, %v4828
  %v4835 = vpack.c.b16 %v4831, %v4830
  %4840 = vmatprep.subr.bf16.mxu0 0
  %4841 = vmatpush1.bf16.msra.mxu0 %v4832
  %4842 = vmatprep.subr.bf16.mxu0 0
  %4843 = vmatpush1.bf16.msra.mxu0 %v4833
  %4844 = vmatprep.subr.bf16.mxu0 0
  %4845 = vmatpush1.bf16.msra.mxu0 %v4834
  %4846 = vmatprep.subr.bf16.mxu0 0
  %4847 = vmatpush1.bf16.msra.mxu0 %v4835
  %4848 = vmatprep.subr.bf16.mxu0 0
  %4849 = vmatpush1.bf16.msra.mxu0 0
  %4850 = vmatprep.subr.bf16.mxu0 0
  %4851 = vmatpush1.bf16.msra.mxu0 0
  %4852 = vmatprep.subr.bf16.mxu0 0
  %4853 = vmatpush1.bf16.msra.mxu0 0
  %4854 = vmatprep.subr.bf16.mxu0 0
  %4855 = vmatpush1.bf16.msra.mxu0 0
  %4856 = vmatprep.subr.bf16.mxu0 0
  %4857 = vmatpush1.bf16.msra.mxu0 0
  %4858 = vmatprep.subr.bf16.mxu0 0
  %4859 = vmatpush1.bf16.msra.mxu0 0
  %4860 = vmatprep.subr.bf16.mxu0 0
  %4861 = vmatpush1.bf16.msra.mxu0 0
  %4862 = vmatprep.subr.bf16.mxu0 0
  %4863 = vmatpush1.bf16.msra.mxu0 0
  %4864 = vmatprep.subr.bf16.mxu0 0
  %4865 = vmatpush1.bf16.msra.mxu0 0
  %4866 = vmatprep.subr.bf16.mxu0 0
  %4867 = vmatpush1.bf16.msra.mxu0 0
  %4868 = vmatprep.subr.bf16.mxu0 0
  %4869 = vmatpush1.bf16.msra.mxu0 0
  %4870 = vmatprep.subr.bf16.mxu0 0
  %4871 = vmatpush1.bf16.msra.mxu0 0
  %4872 = vmatprep.mubr.bf16.mxu0 0
  %4873 = vmatmul.mubr.bf16.gmra.mrb[0].mxu0 %v4183
  %v4874 = vpop.f32.mrb[0].mxu0
  %v4875 = vadd.f32 0.0, %v4874
  %v4876 = vpop.f32.mrb[0].mxu0
  %v4877 = vpop.f32.mrb[0].mxu0
  %v4878 = vadd.f32 0.0, %v4877
  %v4879 = vpop.f32.mrb[0].mxu0
  %4880 = vmatprep.mubr.bf16.mxu0 0
  %4881 = vmatmul.mubr.bf16.gmra.mrb[0].mxu0 %v4186
  %v4882 = vpop.f32.mrb[0].mxu0
  %v4883 = vadd.f32 0.0, %v4882
  %v4884 = vpop.f32.mrb[0].mxu0
  %v4885 = vpop.f32.mrb[0].mxu0
  %v4886 = vadd.f32 0.0, %v4885
  %v4887 = vpop.f32.mrb[0].mxu0
  %4888 = vdwg.mxu0
  %v4889 = vpack.c.bf16 %v4878, %v4875
  %v4890 = vpack.c.bf16 %v4886, %v4883
  %4891 = vst.msk [vmem:[#allocation2 + $0x40] sm:$0xff] %vm97, %v4889
  %4892 = vst.msk [vmem:[#allocation2 + $0x48] sm:$0xff] %vm97, %v4890
  %v4893 = vld [vmem:[%s817] sm:$0xf]
  %v4894 = vld [vmem:[%s817 + $0x4] sm:$0xf]
  %v4895 = vld [vmem:[%s817 + $0x8] sm:$0xf]
  %v4896 = vld [vmem:[%s817 + $0xc] sm:$0xf]
  %v4897 = vld [vmem:[%s817 + $0x10] sm:$0xf]
  %v4898 = vld [vmem:[%s817 + $0x14] sm:$0xf]
  %v4899 = vld [vmem:[%s817 + $0x18] sm:$0xf]
  %v4900 = vld [vmem:[%s817 + $0x1c] sm:$0xf]
  %v4909 = vunpack.c.l.b16 %v4893
  %v4910 = vunpack.c.l.b16 %v4894
  %v4911 = vunpack.c.l.b16 %v4895
  %v4912 = vunpack.c.l.b16 %v4896
  %v4913 = vunpack.c.l.b16 %v4897
  %v4914 = vunpack.c.l.b16 %v4898
  %v4915 = vunpack.c.l.b16 %v4899
  %v4916 = vunpack.c.l.b16 %v4900
  %v4917 = vpack.c.b16 %v4910, %v4909
  %v4918 = vpack.c.b16 %v4912, %v4911
  %v4919 = vpack.c.b16 %v4914, %v4913
  %v4920 = vpack.c.b16 %v4916, %v4915
  %4925 = vmatprep.subr.bf16.mxu0 0
  %4926 = vmatpush1.bf16.msra.mxu0 %v4917
  %4927 = vmatprep.subr.bf16.mxu0 0
  %4928 = vmatpush1.bf16.msra.mxu0 %v4918
  %4929 = vmatprep.subr.bf16.mxu0 0
  %4930 = vmatpush1.bf16.msra.mxu0 %v4919
  %4931 = vmatprep.subr.bf16.mxu0 0
  %4932 = vmatpush1.bf16.msra.mxu0 %v4920
  %4933 = vmatprep.subr.bf16.mxu0 0
  %4934 = vmatpush1.bf16.msra.mxu0 0
  %4935 = vmatprep.subr.bf16.mxu0 0
  %4936 = vmatpush1.bf16.msra.mxu0 0
  %4937 = vmatprep.subr.bf16.mxu0 0
  %4938 = vmatpush1.bf16.msra.mxu0 0
  %4939 = vmatprep.subr.bf16.mxu0 0
  %4940 = vmatpush1.bf16.msra.mxu0 0
  %4941 = vmatprep.subr.bf16.mxu0 0
  %4942 = vmatpush1.bf16.msra.mxu0 0
  %4943 = vmatprep.subr.bf16.mxu0 0
  %4944 = vmatpush1.bf16.msra.mxu0 0
  %4945 = vmatprep.subr.bf16.mxu0 0
  %4946 = vmatpush1.bf16.msra.mxu0 0
  %4947 = vmatprep.subr.bf16.mxu0 0
  %4948 = vmatpush1.bf16.msra.mxu0 0
  %4949 = vmatprep.subr.bf16.mxu0 0
  %4950 = vmatpush1.bf16.msra.mxu0 0
  %4951 = vmatprep.subr.bf16.mxu0 0
  %4952 = vmatpush1.bf16.msra.mxu0 0
  %4953 = vmatprep.subr.bf16.mxu0 0
  %4954 = vmatpush1.bf16.msra.mxu0 0
  %4955 = vmatprep.subr.bf16.mxu0 0
  %4956 = vmatpush1.bf16.msra.mxu0 0
  %4957 = vmatprep.mubr.bf16.mxu0 0
  %4958 = vmatmul.mubr.bf16.gmra.mrb[0].mxu0 %v4183
  %v4959 = vpop.f32.mrb[0].mxu0
  %v4960 = vadd.f32 0.0, %v4959
  %v4961 = vpop.f32.mrb[0].mxu0
  %v4962 = vpop.f32.mrb[0].mxu0
  %v4963 = vadd.f32 0.0, %v4962
  %v4964 = vpop.f32.mrb[0].mxu0
  %4965 = vmatprep.mubr.bf16.mxu0 0
  %4966 = vmatmul.mubr.bf16.gmra.mrb[0].mxu0 %v4186
  %v4967 = vpop.f32.mrb[0].mxu0
  %v4968 = vadd.f32 0.0, %v4967
  %v4969 = vpop.f32.mrb[0].mxu0
  %v4970 = vpop.f32.mrb[0].mxu0
  %v4971 = vadd.f32 0.0, %v4970
  %v4972 = vpop.f32.mrb[0].mxu0
  %4973 = vdwg.mxu0
  %v4974 = vpack.c.bf16 %v4963, %v4960
  %v4975 = vpack.c.bf16 %v4971, %v4968
  %4976 = vst.msk [vmem:[#allocation2 + $0x50] sm:$0xff] %vm97, %v4974
  %4977 = vst.msk [vmem:[#allocation2 + $0x58] sm:$0xff] %vm97, %v4975
  %v4978 = vld [vmem:[%s903] sm:$0xf]
  %v4979 = vld [vmem:[%s903 + $0x4] sm:$0xf]
  %v4980 = vld [vmem:[%s903 + $0x8] sm:$0xf]
  %v4981 = vld [vmem:[%s903 + $0xc] sm:$0xf]
  %v4982 = vld [vmem:[%s903 + $0x10] sm:$0xf]
  %v4983 = vld [vmem:[%s903 + $0x14] sm:$0xf]
  %v4984 = vld [vmem:[%s903 + $0x18] sm:$0xf]
  %v4985 = vld [vmem:[%s903 + $0x1c] sm:$0xf]
  %v4994 = vunpack.c.l.b16 %v4978
  %v4995 = vunpack.c.l.b16 %v4979
  %v4996 = vunpack.c.l.b16 %v4980
  %v4997 = vunpack.c.l.b16 %v4981
  %v4998 = vunpack.c.l.b16 %v4982
  %v4999 = vunpack.c.l.b16 %v4983
  %v5000 = vunpack.c.l.b16 %v4984
  %v5001 = vunpack.c.l.b16 %v4985
  %v5002 = vpack.c.b16 %v4995, %v4994
  %v5003 = vpack.c.b16 %v4997, %v4996
  %v5004 = vpack.c.b16 %v4999, %v4998
  %v5005 = vpack.c.b16 %v5001, %v5000
  %5010 = vmatprep.subr.bf16.mxu0 0
  %5011 = vmatpush1.bf16.msra.mxu0 %v5002
  %5012 = vmatprep.subr.bf16.mxu0 0
  %5013 = vmatpush1.bf16.msra.mxu0 %v5003
  %5014 = vmatprep.subr.bf16.mxu0 0
  %5015 = vmatpush1.bf16.msra.mxu0 %v5004
  %5016 = vmatprep.subr.bf16.mxu0 0
  %5017 = vmatpush1.bf16.msra.mxu0 %v5005
  %5018 = vmatprep.subr.bf16.mxu0 0
  %5019 = vmatpush1.bf16.msra.mxu0 0
  %5020 = vmatprep.subr.bf16.mxu0 0
  %5021 = vmatpush1.bf16.msra.mxu0 0
  %5022 = vmatprep.subr.bf16.mxu0 0
  %5023 = vmatpush1.bf16.msra.mxu0 0
  %5024 = vmatprep.subr.bf16.mxu0 0
  %5025 = vmatpush1.bf16.msra.mxu0 0
  %5026 = vmatprep.subr.bf16.mxu0 0
  %5027 = vmatpush1.bf16.msra.mxu0 0
  %5028 = vmatprep.subr.bf16.mxu0 0
  %5029 = vmatpush1.bf16.msra.mxu0 0
  %5030 = vmatprep.subr.bf16.mxu0 0
  %5031 = vmatpush1.bf16.msra.mxu0 0
  %5032 = vmatprep.subr.bf16.mxu0 0
  %5033 = vmatpush1.bf16.msra.mxu0 0
  %5034 = vmatprep.subr.bf16.mxu0 0
  %5035 = vmatpush1.bf16.msra.mxu0 0
  %5036 = vmatprep.subr.bf16.mxu0 0
  %5037 = vmatpush1.bf16.msra.mxu0 0
  %5038 = vmatprep.subr.bf16.mxu0 0
  %5039 = vmatpush1.bf16.msra.mxu0 0
  %5040 = vmatprep.subr.bf16.mxu0 0
  %5041 = vmatpush1.bf16.msra.mxu0 0
  %5042 = vmatprep.mubr.bf16.mxu0 0
  %5043 = vmatmul.mubr.bf16.gmra.mrb[0].mxu0 %v4183
  %v5044 = vpop.f32.mrb[0].mxu0
  %v5045 = vadd.f32 0.0, %v5044
  %v5046 = vpop.f32.mrb[0].mxu0
  %v5047 = vpop.f32.mrb[0].mxu0
  %v5048 = vadd.f32 0.0, %v5047
  %v5049 = vpop.f32.mrb[0].mxu0
  %5050 = vmatprep.mubr.bf16.mxu0 0
  %5051 = vmatmul.mubr.bf16.gmra.mrb[0].mxu0 %v4186
  %v5052 = vpop.f32.mrb[0].mxu0
  %v5053 = vadd.f32 0.0, %v5052
  %v5054 = vpop.f32.mrb[0].mxu0
  %v5055 = vpop.f32.mrb[0].mxu0
  %v5056 = vadd.f32 0.0, %v5055
  %v5057 = vpop.f32.mrb[0].mxu0
  %5058 = vdwg.mxu0
  %v5059 = vpack.c.bf16 %v5048, %v5045
  %v5060 = vpack.c.bf16 %v5056, %v5053
  %5061 = vst.msk [vmem:[#allocation2 + $0x60] sm:$0xff] %vm97, %v5059
  %5062 = vst.msk [vmem:[#allocation2 + $0x68] sm:$0xff] %vm97, %v5060
  %v5063 = vld [vmem:[%s989] sm:$0xf]
  %v5064 = vld [vmem:[%s989 + $0x4] sm:$0xf]
  %v5065 = vld [vmem:[%s989 + $0x8] sm:$0xf]
  %v5066 = vld [vmem:[%s989 + $0xc] sm:$0xf]
  %v5067 = vld [vmem:[%s989 + $0x10] sm:$0xf]
  %v5068 = vld [vmem:[%s989 + $0x14] sm:$0xf]
  %v5069 = vld [vmem:[%s989 + $0x18] sm:$0xf]
  %v5070 = vld [vmem:[%s989 + $0x1c] sm:$0xf]
  %v5079 = vunpack.c.l.b16 %v5063
  %v5080 = vunpack.c.l.b16 %v5064
  %v5081 = vunpack.c.l.b16 %v5065
  %v5082 = vunpack.c.l.b16 %v5066
  %v5083 = vunpack.c.l.b16 %v5067
  %v5084 = vunpack.c.l.b16 %v5068
  %v5085 = vunpack.c.l.b16 %v5069
  %v5086 = vunpack.c.l.b16 %v5070
  %v5087 = vpack.c.b16 %v5080, %v5079
  %v5088 = vpack.c.b16 %v5082, %v5081
  %v5089 = vpack.c.b16 %v5084, %v5083
  %v5090 = vpack.c.b16 %v5086, %v5085
  %5095 = vmatprep.subr.bf16.mxu0 0
  %5096 = vmatpush1.bf16.msra.mxu0 %v5087
  %5097 = vmatprep.subr.bf16.mxu0 0
  %5098 = vmatpush1.bf16.msra.mxu0 %v5088
  %5099 = vmatprep.subr.bf16.mxu0 0
  %5100 = vmatpush1.bf16.msra.mxu0 %v5089
  %5101 = vmatprep.subr.bf16.mxu0 0
  %5102 = vmatpush1.bf16.msra.mxu0 %v5090
  %5103 = vmatprep.subr.bf16.mxu0 0
  %5104 = vmatpush1.bf16.msra.mxu0 0
  %5105 = vmatprep.subr.bf16.mxu0 0
  %5106 = vmatpush1.bf16.msra.mxu0 0
  %5107 = vmatprep.subr.bf16.mxu0 0
  %5108 = vmatpush1.bf16.msra.mxu0 0
  %5109 = vmatprep.subr.bf16.mxu0 0
  %5110 = vmatpush1.bf16.msra.mxu0 0
  %5111 = vmatprep.subr.bf16.mxu0 0
  %5112 = vmatpush1.bf16.msra.mxu0 0
  %5113 = vmatprep.subr.bf16.mxu0 0
  %5114 = vmatpush1.bf16.msra.mxu0 0
  %5115 = vmatprep.subr.bf16.mxu0 0
  %5116 = vmatpush1.bf16.msra.mxu0 0
  %5117 = vmatprep.subr.bf16.mxu0 0
  %5118 = vmatpush1.bf16.msra.mxu0 0
  %5119 = vmatprep.subr.bf16.mxu0 0
  %5120 = vmatpush1.bf16.msra.mxu0 0
  %5121 = vmatprep.subr.bf16.mxu0 0
  %5122 = vmatpush1.bf16.msra.mxu0 0
  %5123 = vmatprep.subr.bf16.mxu0 0
  %5124 = vmatpush1.bf16.msra.mxu0 0
  %5125 = vmatprep.subr.bf16.mxu0 0
  %5126 = vmatpush1.bf16.msra.mxu0 0
  %5127 = vmatprep.mubr.bf16.mxu0 0
  %5128 = vmatmul.mubr.bf16.gmra.mrb[0].mxu0 %v4183
  %v5129 = vpop.f32.mrb[0].mxu0
  %v5130 = vadd.f32 0.0, %v5129
  %v5131 = vpop.f32.mrb[0].mxu0
  %v5132 = vpop.f32.mrb[0].mxu0
  %v5133 = vadd.f32 0.0, %v5132
  %v5134 = vpop.f32.mrb[0].mxu0
  %5135 = vmatprep.mubr.bf16.mxu0 0
  %5136 = vmatmul.mubr.bf16.gmra.mrb[0].mxu0 %v4186
  %v5137 = vpop.f32.mrb[0].mxu0
  %v5138 = vadd.f32 0.0, %v5137
  %v5139 = vpop.f32.mrb[0].mxu0
  %v5140 = vpop.f32.mrb[0].mxu0
  %v5141 = vadd.f32 0.0, %v5140
  %v5142 = vpop.f32.mrb[0].mxu0
  %5143 = vdwg.mxu0
  %v5144 = vpack.c.bf16 %v5133, %v5130
  %v5145 = vpack.c.bf16 %v5141, %v5138
  %5146 = vst.msk [vmem:[#allocation2 + $0x70] sm:$0xff] %vm97, %v5144
  %5147 = vst.msk [vmem:[#allocation2 + $0x78] sm:$0xff] %vm97, %v5145
  %v5148 = vld [vmem:[%s1075] sm:$0xf]
  %v5149 = vld [vmem:[%s1075 + $0x4] sm:$0xf]
  %v5150 = vld [vmem:[%s1075 + $0x8] sm:$0xf]
  %v5151 = vld [vmem:[%s1075 + $0xc] sm:$0xf]
  %v5152 = vld [vmem:[%s1075 + $0x10] sm:$0xf]
  %v5153 = vld [vmem:[%s1075 + $0x14] sm:$0xf]
  %v5154 = vld [vmem:[%s1075 + $0x18] sm:$0xf]
  %v5155 = vld [vmem:[%s1075 + $0x1c] sm:$0xf]
  %v5164 = vunpack.c.l.b16 %v5148
  %v5165 = vunpack.c.l.b16 %v5149
  %v5166 = vunpack.c.l.b16 %v5150
  %v5167 = vunpack.c.l.b16 %v5151
  %v5168 = vunpack.c.l.b16 %v5152
  %v5169 = vunpack.c.l.b16 %v5153
  %v5170 = vunpack.c.l.b16 %v5154
  %v5171 = vunpack.c.l.b16 %v5155
  %v5172 = vpack.c.b16 %v5165, %v5164
  %v5173 = vpack.c.b16 %v5167, %v5166
  %v5174 = vpack.c.b16 %v5169, %v5168
  %v5175 = vpack.c.b16 %v5171, %v5170
  %5180 = vmatprep.subr.bf16.mxu0 0
  %5181 = vmatpush1.bf16.msra.mxu0 %v5172
  %5182 = vmatprep.subr.bf16.mxu0 0
  %5183 = vmatpush1.bf16.msra.mxu0 %v5173
  %5184 = vmatprep.subr.bf16.mxu0 0
  %5185 = vmatpush1.bf16.msra.mxu0 %v5174
  %5186 = vmatprep.subr.bf16.mxu0 0
  %5187 = vmatpush1.bf16.msra.mxu0 %v5175
  %5188 = vmatprep.subr.bf16.mxu0 0
  %5189 = vmatpush1.bf16.msra.mxu0 0
  %5190 = vmatprep.subr.bf16.mxu0 0
  %5191 = vmatpush1.bf16.msra.mxu0 0
  %5192 = vmatprep.subr.bf16.mxu0 0
  %5193 = vmatpush1.bf16.msra.mxu0 0
  %5194 = vmatprep.subr.bf16.mxu0 0
  %5195 = vmatpush1.bf16.msra.mxu0 0
  %5196 = vmatprep.subr.bf16.mxu0 0
  %5197 = vmatpush1.bf16.msra.mxu0 0
  %5198 = vmatprep.subr.bf16.mxu0 0
  %5199 = vmatpush1.bf16.msra.mxu0 0
  %5200 = vmatprep.subr.bf16.mxu0 0
  %5201 = vmatpush1.bf16.msra.mxu0 0
  %5202 = vmatprep.subr.bf16.mxu0 0
  %5203 = vmatpush1.bf16.msra.mxu0 0
  %5204 = vmatprep.subr.bf16.mxu0 0
  %5205 = vmatpush1.bf16.msra.mxu0 0
  %5206 = vmatprep.subr.bf16.mxu0 0
  %5207 = vmatpush1.bf16.msra.mxu0 0
  %5208 = vmatprep.subr.bf16.mxu0 0
  %5209 = vmatpush1.bf16.msra.mxu0 0
  %5210 = vmatprep.subr.bf16.mxu0 0
  %5211 = vmatpush1.bf16.msra.mxu0 0
  %5212 = vmatprep.mubr.bf16.mxu0 0
  %5213 = vmatmul.mubr.bf16.gmra.mrb[0].mxu0 %v4183
  %v5214 = vpop.f32.mrb[0].mxu0
  %v5215 = vadd.f32 0.0, %v5214
  %v5216 = vpop.f32.mrb[0].mxu0
  %v5217 = vpop.f32.mrb[0].mxu0
  %v5218 = vadd.f32 0.0, %v5217
  %v5219 = vpop.f32.mrb[0].mxu0
  %5220 = vmatprep.mubr.bf16.mxu0 0
  %5221 = vmatmul.mubr.bf16.gmra.mrb[0].mxu0 %v4186
  %v5222 = vpop.f32.mrb[0].mxu0
  %v5223 = vadd.f32 0.0, %v5222
  %v5224 = vpop.f32.mrb[0].mxu0
  %v5225 = vpop.f32.mrb[0].mxu0
  %v5226 = vadd.f32 0.0, %v5225
  %v5227 = vpop.f32.mrb[0].mxu0
  %5228 = vdwg.mxu0
  %v5229 = vpack.c.bf16 %v5218, %v5215
  %v5230 = vpack.c.bf16 %v5226, %v5223
  %5231 = vst.msk [vmem:[#allocation2 + $0x80] sm:$0xff] %vm97, %v5229
  %5232 = vst.msk [vmem:[#allocation2 + $0x88] sm:$0xff] %vm97, %v5230
  %v5233 = vld [vmem:[%s5] sm:$0xff]
  %v5234 = vld [vmem:[%s5 + $0x8] sm:$0xf]
  %v5235 = vld [vmem:[%s5 + $0xc] sm:$0xff]
  %v5236 = vld [vmem:[%s5 + $0x14] sm:$0xf]
  %v5237 = vld [vmem:[%s5 + $0x18] sm:$0xff]
  %v5238 = vld [vmem:[%s5 + $0x20] sm:$0xf]
  %v5239 = vld [vmem:[%s5 + $0x24] sm:$0xff]
  %v5240 = vld [vmem:[%s5 + $0x2c] sm:$0xf]
  %v5241 = vld [vmem:[#allocation2] sm:$0xff]
  %v5242 = vld [vmem:[#allocation2 + $0x8] sm:$0xff]
  %v5243 = vld [vmem:[#allocation2 + $0x10] sm:$0xff]
  %v5244 = vld [vmem:[#allocation2 + $0x18] sm:$0xff]
  %v5245 = vld [vmem:[#allocation2 + $0x20] sm:$0xff]
  %v5246 = vld [vmem:[#allocation2 + $0x28] sm:$0xff]
  %v5247 = vld [vmem:[#allocation2 + $0x30] sm:$0xff]
  %v5248 = vld [vmem:[#allocation2 + $0x38] sm:$0xff]
  %v5249 = vld [vmem:[#allocation2 + $0x40] sm:$0xff]
  %v5250 = vld [vmem:[#allocation2 + $0x48] sm:$0xff]
  %v5251 = vld [vmem:[#allocation2 + $0x50] sm:$0xff]
  %v5252 = vld [vmem:[#allocation2 + $0x58] sm:$0xff]
  %v5253 = vld [vmem:[#allocation2 + $0x60] sm:$0xff]
  %v5254 = vld [vmem:[#allocation2 + $0x68] sm:$0xff]
  %v5255 = vld [vmem:[#allocation2 + $0x70] sm:$0xff]
  %v5256 = vld [vmem:[#allocation2 + $0x78] sm:$0xff]
  %v5257 = vld [vmem:[#allocation2 + $0x80] sm:$0xff]
  %v5258 = vld [vmem:[#allocation2 + $0x88] sm:$0xff]
  %v5259 = vld [vmem:[%s6] sm:$0xff]
  %v5260 = vld [vmem:[%s6 + $0x8] sm:$0xff]
  %v5261 = vld [vmem:[%s6 + $0x10] sm:$0xff]
  %v5262 = vld [vmem:[%s6 + $0x18] sm:$0xff]
  %5264 = vset.pattern.permute.xlu0 0
  %5265 = vperm.xlu0 %5264, %v5259
  %v5266 = vpop.permute.xlu0 %5265
  %5269 = vset.pattern.permute.xlu0 0
  %5270 = vperm.xlu0 %5269, %v5260
  %v5271 = vpop.permute.xlu0 %5270
  %5274 = vset.pattern.permute.xlu0 0
  %5275 = vperm.xlu0 %5274, %v5261
  %v5276 = vpop.permute.xlu0 %5275
  %5279 = vset.pattern.permute.xlu0 0
  %5280 = vperm.xlu0 %5279, %v5262
  %v5281 = vpop.permute.xlu0 %5280
  %v5291 = vunpack.c.l.b16 %v5233
  %v5292 = vunpack.c.h.b16 %v5233
  %v5293 = vunpack.c.l.b16 %v5234
  %v5294 = vunpack.c.l.b16 %v5235
  %v5295 = vunpack.c.h.b16 %v5235
  %v5296 = vunpack.c.l.b16 %v5236
  %v5297 = vunpack.c.l.b16 %v5237
  %v5298 = vunpack.c.h.b16 %v5237
  %v5299 = vunpack.c.l.b16 %v5238
  %v5300 = vunpack.c.l.b16 %v5239
  %v5301 = vunpack.c.h.b16 %v5239
  %v5302 = vunpack.c.l.b16 %v5240
  %v5303 = vpack.c.b16 %v5294, %v5291
  %v5304 = vpack.c.b16 %v5295, %v5292
  %v5305 = vpack.c.b16 %v5296, %v5293
  %v5306 = vpack.c.b16 %v5300, %v5297
  %v5307 = vpack.c.b16 %v5301, %v5298
  %v5308 = vpack.c.b16 %v5302, %v5299
  %v5314 = vsel %vm276, %v5305, 0
  %v5317 = vsel %vm276, %v5308, 0
  %5319 = vmatprep.subr.bf16.mxu0 0
  %5320 = vmatpush1.bf16.msra.mxu0 %v5241
  %5321 = vmatprep.subr.bf16.mxu0 0
  %5322 = vmatpush1.bf16.msra.mxu0 %v5242
  %5323 = vmatprep.subr.bf16.mxu0 0
  %5324 = vmatpush1.bf16.msra.mxu0 %v5243
  %5325 = vmatprep.subr.bf16.mxu0 0
  %5326 = vmatpush1.bf16.msra.mxu0 %v5244
  %5327 = vmatprep.subr.bf16.mxu0 0
  %5328 = vmatpush1.bf16.msra.mxu0 %v5245
  %5329 = vmatprep.subr.bf16.mxu0 0
  %5330 = vmatpush1.bf16.msra.mxu0 %v5246
  %5331 = vmatprep.subr.bf16.mxu0 0
  %5332 = vmatpush1.bf16.msra.mxu0 %v5247
  %5333 = vmatprep.subr.bf16.mxu0 0
  %5334 = vmatpush1.bf16.msra.mxu0 %v5248
  %5335 = vmatprep.subr.bf16.mxu0 0
  %5336 = vmatpush1.bf16.msra.mxu0 %v5249
  %5337 = vmatprep.subr.bf16.mxu0 0
  %5338 = vmatpush1.bf16.msra.mxu0 %v5250
  %5339 = vmatprep.subr.bf16.mxu0 0
  %5340 = vmatpush1.bf16.msra.mxu0 %v5251
  %5341 = vmatprep.subr.bf16.mxu0 0
  %5342 = vmatpush1.bf16.msra.mxu0 %v5252
  %5343 = vmatprep.subr.bf16.mxu0 0
  %5344 = vmatpush1.bf16.msra.mxu0 %v5253
  %5345 = vmatprep.subr.bf16.mxu0 0
  %5346 = vmatpush1.bf16.msra.mxu0 %v5254
  %5347 = vmatprep.subr.bf16.mxu0 0
  %5348 = vmatpush1.bf16.msra.mxu0 %v5255
  %5349 = vmatprep.subr.bf16.mxu0 0
  %5350 = vmatpush1.bf16.msra.mxu0 %v5256
  %5351 = vmatprep.mubr.bf16.mxu0 %v5304
  %5352 = vmatmul.mubr.bf16.gmra.mrb[0].mxu0 %v5303
  %v5353 = vpop.f32.mrb[0].mxu0
  %v5354 = vadd.f32 %v5266, %v5353
  %v5355 = vpop.f32.mrb[0].mxu0
  %v5356 = vpop.f32.mrb[0].mxu0
  %v5357 = vadd.f32 %v5271, %v5356
  %v5358 = vpop.f32.mrb[0].mxu0
  %5359 = vmatprep.mubr.bf16.mxu0 %v5307
  %5360 = vmatmul.mubr.bf16.gmra.mrb[0].mxu0 %v5306
  %v5361 = vpop.f32.mrb[0].mxu0
  %v5362 = vadd.f32 %v5276, %v5361
  %v5363 = vpop.f32.mrb[0].mxu0
  %v5364 = vpop.f32.mrb[0].mxu0
  %v5365 = vadd.f32 %v5281, %v5364
  %v5366 = vpop.f32.mrb[0].mxu0
  %5367 = vdwg.mxu0
  %5368 = vmatprep.subr.bf16.mxu0 0
  %5369 = vmatpush1.bf16.msra.mxu0 %v5257
  %5370 = vmatprep.subr.bf16.mxu0 0
  %5371 = vmatpush1.bf16.msra.mxu0 %v5258
  %5372 = vmatprep.subr.bf16.mxu0 0
  %5373 = vmatpush1.bf16.msra.mxu0 0
  %5374 = vmatprep.subr.bf16.mxu0 0
  %5375 = vmatpush1.bf16.msra.mxu0 0
  %5376 = vmatprep.subr.bf16.mxu0 0
  %5377 = vmatpush1.bf16.msra.mxu0 0
  %5378 = vmatprep.subr.bf16.mxu0 0
  %5379 = vmatpush1.bf16.msra.mxu0 0
  %5380 = vmatprep.subr.bf16.mxu0 0
  %5381 = vmatpush1.bf16.msra.mxu0 0
  %5382 = vmatprep.subr.bf16.mxu0 0
  %5383 = vmatpush1.bf16.msra.mxu0 0
  %5384 = vmatprep.subr.bf16.mxu0 0
  %5385 = vmatpush1.bf16.msra.mxu0 0
  %5386 = vmatprep.subr.bf16.mxu0 0
  %5387 = vmatpush1.bf16.msra.mxu0 0
  %5388 = vmatprep.subr.bf16.mxu0 0
  %5389 = vmatpush1.bf16.msra.mxu0 0
  %5390 = vmatprep.subr.bf16.mxu0 0
  %5391 = vmatpush1.bf16.msra.mxu0 0
  %5392 = vmatprep.subr.bf16.mxu0 0
  %5393 = vmatpush1.bf16.msra.mxu0 0
  %5394 = vmatprep.subr.bf16.mxu0 0
  %5395 = vmatpush1.bf16.msra.mxu0 0
  %5396 = vmatprep.subr.bf16.mxu0 0
  %5397 = vmatpush1.bf16.msra.mxu0 0
  %5398 = vmatprep.subr.bf16.mxu0 0
  %5399 = vmatpush1.bf16.msra.mxu0 0
  %5400 = vmatprep.mubr.bf16.mxu0 0
  %5401 = vmatmul.mubr.bf16.gmra.mrb[0].mxu0 %v5314
  %v5402 = vpop.f32.mrb[0].mxu0
  %v5403 = vadd.f32 %v5354, %v5402
  %v5404 = vpop.f32.mrb[0].mxu0
  %v5405 = vpop.f32.mrb[0].mxu0
  %v5406 = vadd.f32 %v5357, %v5405
  %v5407 = vpop.f32.mrb[0].mxu0
  %5408 = vmatprep.mubr.bf16.mxu0 0
  %5409 = vmatmul.mubr.bf16.gmra.mrb[0].mxu0 %v5317
  %v5410 = vpop.f32.mrb[0].mxu0
  %v5411 = vadd.f32 %v5362, %v5410
  %v5412 = vpop.f32.mrb[0].mxu0
  %v5413 = vpop.f32.mrb[0].mxu0
  %v5414 = vadd.f32 %v5365, %v5413
  %v5415 = vpop.f32.mrb[0].mxu0
  %5416 = vdwg.mxu0
  %v5417 = vpack.c.bf16 %v5406, %v5403
  %v5418 = vpack.c.bf16 %v5414, %v5411
  %v5421 = vunpack.c.l.b16 %v5417
  %v5422 = vunpack.c.h.b16 %v5417
  %v5423 = vunpack.c.l.b16 %v5418
  %v5424 = vunpack.c.h.b16 %v5418
  %v5425 = vpack.c.b16 %v5421, %v5421
  %v5426 = vpack.c.b16 %v5422, %v5422
  %v5427 = vpack.c.b16 %v5423, %v5423
  %v5428 = vpack.c.b16 %v5424, %v5424
  %s5433 = scalar_lea.vmem %s9, 48
  %5434 = vst.msk [vmem:[%s5433] sm:$0xf] %vm197, %v5425
  %5435 = vst.msk [vmem:[%s5433 + $0x4] sm:$0xf] %vm197, %v5426
  %5436 = vst.msk [vmem:[%s5433 + $0x8] sm:$0xf] %vm197, %v5427
  %5437 = vst.msk [vmem:[%s5433 + $0xc] sm:$0xf] %vm197, %v5428
  %v5438 = vsel %vm97, %v5403, 0.0
  %5439 = vadd.xlane.f32.xlu0 %v5438
  %v5440 = vpop.xlane.xlu0 %5439
  %v5441 = vsel %vm97, %v5406, 0.0
  %5442 = vadd.xlane.f32.xlu0 %v5441
  %v5443 = vpop.xlane.xlu0 %5442
  %v5444 = vsel %vm97, %v5411, 0.0
  %5445 = vadd.xlane.f32.xlu0 %v5444
  %v5446 = vpop.xlane.xlu0 %5445
  %v5447 = vsel %vm97, %v5414, 0.0
  %5448 = vadd.xlane.f32.xlu0 %v5447
  %v5449 = vpop.xlane.xlu0 %5448
  %v5450 = vadd.f32 %v4095, %v5440
  %v5451 = vadd.f32 %v4096, %v5443
  %v5452 = vadd.f32 %v4097, %v5446
  %v5453 = vadd.f32 %v4098, %v5449
  %v5454 = vmul.f32 %v5403, %v5403
  %v5455 = vmul.f32 %v5406, %v5406
  %v5456 = vmul.f32 %v5411, %v5411
  %v5457 = vmul.f32 %v5414, %v5414
  %v5458 = vsel %vm97, %v5454, 0.0
  %5459 = vadd.xlane.f32.xlu0 %v5458
  %v5460 = vpop.xlane.xlu0 %5459
  %v5461 = vsel %vm97, %v5455, 0.0
  %5462 = vadd.xlane.f32.xlu0 %v5461
  %v5463 = vpop.xlane.xlu0 %5462
  %v5464 = vsel %vm97, %v5456, 0.0
  %5465 = vadd.xlane.f32.xlu0 %v5464
  %v5466 = vpop.xlane.xlu0 %5465
  %v5467 = vsel %vm97, %v5457, 0.0
  %5468 = vadd.xlane.f32.xlu0 %v5467
  %v5469 = vpop.xlane.xlu0 %5468
  %v5470 = vadd.f32 %v4115, %v5460
  %v5471 = vadd.f32 %v4116, %v5463
  %v5472 = vadd.f32 %v4117, %v5466
  %v5473 = vadd.f32 %v4118, %v5469
  %vm5474 = vcmask 7168
  %5475 = vst.msk [vmem:[%s10] sm:$0xff] %vm5474, %v4294
  %5476 = vst.msk [vmem:[%s10 + $0x8] sm:$0xff] %vm5474, %v4295
  %5477 = vst.msk [vmem:[%s10 + $0x10] sm:$0xff] %vm5474, %v4296
  %5478 = vst.msk [vmem:[%s10 + $0x18] sm:$0xff] %vm5474, %v4297
  %s5479 = scalar_lea.vmem %s10, 32
  %5480 = vst.msk [vmem:[%s5479] sm:$0xff] %vm5474, %v4314
  %5481 = vst.msk [vmem:[%s5479 + $0x8] sm:$0xff] %vm5474, %v4315
  %5482 = vst.msk [vmem:[%s5479 + $0x10] sm:$0xff] %vm5474, %v4316
  %5483 = vst.msk [vmem:[%s5479 + $0x18] sm:$0xff] %vm5474, %v4317
  %s5484 = scalar_lea.vmem %s10, 64
  %5485 = vst.msk [vmem:[%s5484] sm:$0xff] %vm5474, %v4444
  %5486 = vst.msk [vmem:[%s5484 + $0x8] sm:$0xff] %vm5474, %v4445
  %5487 = vst.msk [vmem:[%s5484 + $0x10] sm:$0xff] %vm5474, %v4446
  %5488 = vst.msk [vmem:[%s5484 + $0x18] sm:$0xff] %vm5474, %v4447
  %s5489 = scalar_lea.vmem %s10, 96
  %5490 = vst.msk [vmem:[%s5489] sm:$0xff] %vm5474, %v4464
  %5491 = vst.msk [vmem:[%s5489 + $0x8] sm:$0xff] %vm5474, %v4465
  %5492 = vst.msk [vmem:[%s5489 + $0x10] sm:$0xff] %vm5474, %v4466
  %5493 = vst.msk [vmem:[%s5489 + $0x18] sm:$0xff] %vm5474, %v4467
  %s5494 = scalar_lea.vmem %s10, 128
  %5495 = vst.msk [vmem:[%s5494] sm:$0xff] %vm5474, %v5450
  %5496 = vst.msk [vmem:[%s5494 + $0x8] sm:$0xff] %vm5474, %v5451
  %5497 = vst.msk [vmem:[%s5494 + $0x10] sm:$0xff] %vm5474, %v5452
  %5498 = vst.msk [vmem:[%s5494 + $0x18] sm:$0xff] %vm5474, %v5453
  %s5499 = scalar_lea.vmem %s10, 160
  %5500 = vst.msk [vmem:[%s5499] sm:$0xff] %vm5474, %v5470
  %5501 = vst.msk [vmem:[%s5499 + $0x8] sm:$0xff] %vm5474, %v5471
  %5502 = vst.msk [vmem:[%s5499 + $0x10] sm:$0xff] %vm5474, %v5472
  %5503 = vst.msk [vmem:[%s5499 + $0x18] sm:$0xff] %vm5474, %v5473
  // Predicated region
  $region30: #{fatm_forward.4} parent=0 // pred_check
    _
  $region31: #{fatm_forward.4} parent=0 // pred_check_branch
    %5505 = sbr.rel (0) target = $region33
  $region32: #{fatm_forward.4} parent=0 // pred_region
    _
  $region33: #{fatm_forward.4} parent=0 // pred_fallthru
    _
  // Predicated region
  $region34: #{fatm_forward.4} parent=0 // pred_check
    _
  $region35: #{fatm_forward.4} parent=0 // pred_check_branch
    %5507 = sbr.rel (0) target = $region37
  $region36: #{fatm_forward.4} parent=0 // pred_region
    _
  $region37: #{fatm_forward.4} parent=0 // pred_fallthru
    _
  // Predicated region
  $region38: #{fatm_forward.4} parent=0 // pred_check
    _
  $region39: #{fatm_forward.4} parent=0 // pred_check_branch
    %5509 = sbr.rel (0) target = $region41
  $region40: #{fatm_forward.4} parent=0 // pred_region
    _
  $region41: #{fatm_forward.4} parent=0 // pred_fallthru
    _
  // Predicated region
  $region42: #{fatm_forward.4} parent=0 // pred_check
    _
  $region43: #{fatm_forward.4} parent=0 // pred_check_branch
    %5511 = sbr.rel (0) target = $region45
  $region44: #{fatm_forward.4} parent=0 // pred_region
    _
  $region45: #{fatm_forward.4} parent=0 // pred_fallthru
    _
  // Predicated region
  $region46: #{fatm_forward.4} parent=0 // pred_check
    _
  $region47: #{fatm_forward.4} parent=0 // pred_check_branch
    %5513 = sbr.rel (0) target = $region49
  $region48: #{fatm_forward.4} parent=0 // pred_region
    _
  $region49: #{fatm_forward.4} parent=0 // pred_fallthru
    _
  // Predicated region
  $region50: #{fatm_forward.4} parent=0 // pred_check
    _
  $region51: #{fatm_forward.4} parent=0 // pred_check_branch
    %5515 = sbr.rel (0) target = $region53
  $region52: #{fatm_forward.4} parent=0 // pred_region
    _
  $region53: #{fatm_forward.4} parent=0 // pred_fallthru
    _
  // Predicated region
  $region54: #{fatm_forward.4} parent=0 // pred_check
    _
  $region55: #{fatm_forward.4} parent=0 // pred_check_branch
    %5517 = sbr.rel (0) target = $region57
  $region56: #{fatm_forward.4} parent=0 // pred_region
    _
  $region57: #{fatm_forward.4} parent=0 // pred_fallthru
    _
  // Predicated region
  $region58: #{fatm_forward.4} parent=0 // pred_check
    _
  $region59: #{fatm_forward.4} parent=0 // pred_check_branch
    %5519 = sbr.rel (0) target = $region61
  $region60: #{fatm_forward.4} parent=0 // pred_region
    _
  $region61: #{fatm_forward.4} parent=0 // pred_fallthru
    _

</llo_original>
